<compile_context>
chip_gen: v5e
topology: v5e:2x2
jax: 0.10.0
libtpu: 0.0.40
codegen_flags: <defaults>
</compile_context>

<pallas_src>
import functools

import jax
import jax.numpy as jnp
from jax.experimental import pallas as pl
from jax.experimental.pallas import tpu as pltpu


# ---------------------------------------------------------------------------
# Fused ConvLSTM cell kernel
# ---------------------------------------------------------------------------
def _lstm_cell_kernel(patches_ref, w_ref, b_ref, c_ref,
                      pwf_ref, pwi_ref, pwo_ref,
                      h_out_ref, c_out_ref):
    """Fused ConvLSTM cell update for one block of TM flattened pixels.

    patches_ref: (TM, 9*(Cin+Cl))   im2col of concat([x_t, h_prev])  (NHWC order)
    w_ref      : (9*(Cin+Cl), 4*Cl) fused conv weights, gate order [f, i, g, o]
    b_ref      : (1, 4*Cl)          fused biases (conv_x + conv_h + peephole b)
    c_ref      : (TM, Cl)           previous cell state
    pw*_ref    : (TM, Cl)           peephole weights (per pixel & channel) f/i/o
    h_out_ref  : (TM, Cl)           new hidden state
    c_out_ref  : (TM, Cl)           new cell state
    """
    cl = c_ref.shape[-1]

    # One big MXU matmul covers all 9 conv taps, both (x, h) inputs, all 4 gates.
    pre = jnp.dot(patches_ref[...], w_ref[...],
                  preferred_element_type=jnp.float32)
    pre = pre + b_ref[...]                           # folded biases, single add

    c_prev = c_ref[...]
    f = jax.nn.sigmoid(pre[:, 0 * cl:1 * cl] + c_prev * pwf_ref[...])
    i = jax.nn.sigmoid(pre[:, 1 * cl:2 * cl] + c_prev * pwi_ref[...])
    g = jnp.tanh(pre[:, 2 * cl:3 * cl])
    c_new = f * c_prev + i * g
    o = jax.nn.sigmoid(pre[:, 3 * cl:4 * cl] + c_new * pwo_ref[...])
    h_new = o * jnp.tanh(c_new)

    h_out_ref[...] = h_new.astype(h_out_ref.dtype)
    c_out_ref[...] = c_new.astype(c_out_ref.dtype)


def _pick_block_rows(m):
    """Largest row-block <= 512 that divides M and yields >= 2 grid points
    (so the 'parallel' grid axis can feed both v7x TensorCores)."""
    for cand in (512, 256, 128, 64, 32, 16, 8):
        if m % cand == 0 and m // cand >= 2:
            return cand
    return m


def _cell_call(patches, c_flat, w_big, b_big, pw_f, pw_i, pw_o):
    m, k = patches.shape
    cl = c_flat.shape[-1]
    g4 = w_big.shape[-1]
    tm = _pick_block_rows(m)
    grid = (m // tm,)

    def row_spec(last):
        return pl.BlockSpec((tm, last), lambda i: (i, 0))

    def full_spec(shape):
        return pl.BlockSpec(shape, lambda i: (0, 0))

    return pl.pallas_call(
        _lstm_cell_kernel,
        out_shape=(jax.ShapeDtypeStruct((m, cl), jnp.float32),
                   jax.ShapeDtypeStruct((m, cl), jnp.float32)),
        grid=grid,
        in_specs=[
            row_spec(k),           # patches
            full_spec((k, g4)),    # fused conv weights
            full_spec((1, g4)),    # fused biases
            row_spec(cl),          # c_prev
            row_spec(cl),          # peephole w (f)
            row_spec(cl),          # peephole w (i)
            row_spec(cl),          # peephole w (o)
        ],
        out_specs=(row_spec(cl), row_spec(cl)),
        compiler_params=pltpu.CompilerParams(
            dimension_semantics=("parallel",)),
    )(patches, w_big, b_big, c_flat, pw_f, pw_i, pw_o)


# ---------------------------------------------------------------------------
# ConvLSTM forward (sequence loop) using the fused cell kernel
# ---------------------------------------------------------------------------
def conv_lstm_forward(x_nchw, fused, *, in_channels, lstm_channels):
    """ConvLSTM.forward with defaults (merge mode, all_hidden=False, no last_conv).

    x_nchw: (N, T*in_channels, H, W)  ->  last hidden state (N, lstm_channels, H, W).
    """
    # TODO(synk): nn.Dropout2d is stochastic (training-time only); treated as
    # identity here (eval-mode forward).
    n, c_tot, hd, wd = x_nchw.shape
    cin, cl = in_channels, lstm_channels
    t_steps = c_tot // cin
    m = n * hd * wd

    w_big, b_big, pw_f, pw_i, pw_o = fused
    x_nhwc = jnp.transpose(x_nchw, (0, 2, 3, 1))

    h = jnp.zeros((n, hd, wd, cl), jnp.float32)
    c = jnp.zeros((n, hd, wd, cl), jnp.float32)

    # The sequence is processed in reverse (matches `seq[::-1]` in lstm_layer).
    for t in reversed(range(t_steps)):
        x_t = x_nhwc[..., t * cin:(t + 1) * cin]
        mix = jnp.concatenate([x_t, h], axis=-1)                 # (N,H,W,Cin+Cl)
        mixp = jnp.pad(mix, ((0, 0), (1, 1), (1, 1), (0, 0)))
        # im2col: 9 shifted windows stacked along channels -> one lane-dense
        # (M, 9*(Cin+Cl)) slab; the kernel then issues a single big-K matmul.
        patches = jnp.concatenate(
            [mixp[:, dy:dy + hd, dx:dx + wd, :]
             for dy in range(3) for dx in range(3)], axis=-1
        ).reshape(m, 9 * (cin + cl))

        h_flat, c_flat = _cell_call(patches, c.reshape(m, cl),
                                    w_big, b_big, pw_f, pw_i, pw_o)
        h = h_flat.reshape(n, hd, wd, cl)
        c = c_flat.reshape(n, hd, wd, cl)

    return jnp.transpose(h, (0, 3, 1, 2))


# ---------------------------------------------------------------------------
# Parameter fusion (PyTorch layouts -> fused kernel layouts)
# ---------------------------------------------------------------------------
def build_fused_params(gate_params, n, height, width):
    """gate_params: {'f','i','c','o'} -> PyTorch-layout tensors
    (wx: (Cl,Cin,3,3), wh: (Cl,Cl,3,3), bx/bh: (Cl,), pw: (Cl,H,W), pb: (Cl,1,1))."""
    cl = gate_params["f"]["wx"].shape[0]
    cin = gate_params["f"]["wx"].shape[1]

    cols, biases = [], []
    for name in ("f", "i", "c", "o"):
        p = gate_params[name]
        wx = jnp.transpose(p["wx"], (2, 3, 1, 0))    # (3,3,Cin,Cl)  HWIO
        wh = jnp.transpose(p["wh"], (2, 3, 1, 0))    # (3,3,Cl,Cl)
        wcat = jnp.concatenate([wx, wh], axis=2)     # (3,3,Cin+Cl,Cl)
        cols.append(wcat.reshape(9 * (cin + cl), cl))
        b = p["bx"] + p["bh"]
        if "pb" in p:                                # fold peephole bias too
            b = b + p["pb"].reshape(cl)
        biases.append(b)

    w_big = jnp.concatenate(cols, axis=1)            # (9*(Cin+Cl), 4*Cl)
    b_big = jnp.concatenate(biases).reshape(1, 4 * cl)

    def peep_flat(pw_chw):
        pw = jnp.transpose(pw_chw, (1, 2, 0))        # (H,W,Cl)
        return jnp.broadcast_to(
            pw[None], (n, height, width, cl)).reshape(n * height * width, cl)

    pw_f = peep_flat(gate_params["f"]["pw"])
    pw_i = peep_flat(gate_params["i"]["pw"])
    pw_o = peep_flat(gate_params["o"]["pw"])
    return w_big, b_big, pw_f, pw_i, pw_o


# ---------------------------------------------------------------------------
# Pure-JAX reference (mirrors the PyTorch module step by step)
# ---------------------------------------------------------------------------
def _conv2d_same(x_nhwc, w_hwio, b):
    dn = ("NHWC", "HWIO", "NHWC")
    return jax.lax.conv_general_dilated(
        x_nhwc, w_hwio, (1, 1), "SAME", dimension_numbers=dn) + b


def reference_forward(x_nchw, gate_params, *, in_channels, lstm_channels):
    n, c_tot, hd, wd = x_nchw.shape
    cin, cl = in_channels, lstm_channels
    t_steps = c_tot // cin
    x_nhwc = jnp.transpose(x_nchw, (0, 2, 3, 1))

    hw = {}
    for name in ("f", "i", "c", "o"):
        p = gate_params[name]
        hw[name] = dict(wx=jnp.transpose(p["wx"], (2, 3, 1, 0)), bx=p["bx"],
                        wh=jnp.transpose(p["wh"], (2, 3, 1, 0)), bh=p["bh"])
        if "pw" in p:
            hw[name]["pw"] = jnp.transpose(p["pw"], (1, 2, 0))   # (H,W,Cl)
            hw[name]["pb"] = p["pb"].reshape(cl)

    def gate_pre(name, x, h):
        p = hw[name]
        return (_conv2d_same(x, p["wx"], p["bx"])
                + _conv2d_same(h, p["wh"], p["bh"]))

    h = jnp.zeros((n, hd, wd, cl), jnp.float32)
    c = jnp.zeros((n, hd, wd, cl), jnp.float32)
    for t in reversed(range(t_steps)):
        x_t = x_nhwc[..., t * cin:(t + 1) * cin]
        f = jax.nn.sigmoid(gate_pre("f", x_t, h)
                           + c * hw["f"]["pw"][None] + hw["f"]["pb"])
        i = jax.nn.sigmoid(gate_pre("i", x_t, h)
                           + c * hw["i"]["pw"][None] + hw["i"]["pb"])
        g = jnp.tanh(gate_pre("c", x_t, h))
        c_new = f * c + i * g
        o = jax.nn.sigmoid(gate_pre("o", x_t, h)
                           + c_new * hw["o"]["pw"][None] + hw["o"]["pb"])
        h = o * jnp.tanh(c_new)
        c = c_new
    return jnp.transpose(h, (0, 3, 1, 2))


# ---------------------------------------------------------------------------
if __name__ == "__main__":
    # ConvLSTM(in_channels=4, height=16, width=16, lstm_channels=16)
    # with input (batch=2, seq*in_channels = 8*4 = 32, 16, 16), mode='merge'.
    N, Cin, H, W, Cl, T = 2, 4, 16, 16, 16, 8

    key = jax.random.PRNGKey(0)
    k_x, key = jax.random.split(key)
    x_nchw = jax.random.normal(k_x, (N, T * Cin, H, W), jnp.float32)

    # Deterministic synthetic parameters in PyTorch layouts (per gate).
    gate_params = {}
    for idx, name in enumerate(("f", "i", "c", "o")):
        ks = jax.random.split(jax.random.fold_in(key, idx), 6)
        p = dict(
            wx=jax.random.normal(ks[0], (Cl, Cin, 3, 3), jnp.float32) * 0.1,
            bx=jax.random.normal(ks[1], (Cl,), jnp.float32) * 0.1,
            wh=jax.random.normal(ks[2], (Cl, Cl, 3, 3), jnp.float32) * 0.1,
            bh=jax.random.normal(ks[3], (Cl,), jnp.float32) * 0.1,
        )
        if name != "c":  # peephole gates: f, i, o
            p["pw"] = (jax.random.normal(ks[4], (Cl, H, W), jnp.float32)
                       * (2.0 / W) ** 0.5)
            p["pb"] = jax.random.normal(ks[5], (Cl, 1, 1), jnp.float32) * 0.1
        gate_params[name] = p

    fused = build_fused_params(gate_params, N, H, W)

    fwd = jax.jit(functools.partial(conv_lstm_forward,
                                    in_channels=Cin, lstm_channels=Cl))
    out = jax.block_until_ready(fwd(x_nchw, fused))

    ref = jax.block_until_ready(
        reference_forward(x_nchw, gate_params,
                          in_channels=Cin, lstm_channels=Cl))

    assert out.shape == (N, Cl, H, W)
    max_err = float(jnp.max(jnp.abs(out - ref)))
    assert max_err < 1e-3, f"max abs err = {max_err}"
    print("KERNEL_OK")
</pallas_src>

<mosaic_0001>
module attributes {stable_mosaic.version = 11 : i64} {
  func.func @_lstm_cell_kernel(%arg0: i32, %arg1: memref<256x180xf32, #tpu.memory_space<vmem>>, %arg2: memref<180x64xf32, #tpu.memory_space<vmem>>, %arg3: memref<1x64xf32, #tpu.memory_space<vmem>>, %arg4: memref<256x16xf32, #tpu.memory_space<vmem>>, %arg5: memref<256x16xf32, #tpu.memory_space<vmem>>, %arg6: memref<256x16xf32, #tpu.memory_space<vmem>>, %arg7: memref<256x16xf32, #tpu.memory_space<vmem>>, %arg8: memref<256x16xf32, #tpu.memory_space<vmem>>, %arg9: memref<256x16xf32, #tpu.memory_space<vmem>>) attributes {dimension_semantics = [#tpu.dimension_semantics<parallel>], iteration_bounds = array<i64: 2>, scalar_prefetch = 0 : i64, scratch_operands = 0 : i64, tpu.core_type = #tpu.core_type<tc>, window_params = [{transform_indices = @transform_0, window_bounds = array<i64: 256, 180>}, {pipeline_mode = #tpu.pipeline_mode<synchronous>, transform_indices = @transform_1, window_bounds = array<i64: 180, 64>}, {pipeline_mode = #tpu.pipeline_mode<synchronous>, transform_indices = @transform_2, window_bounds = array<i64: 1, 64>}, {transform_indices = @transform_3, window_bounds = array<i64: 256, 16>}, {transform_indices = @transform_4, window_bounds = array<i64: 256, 16>}, {transform_indices = @transform_5, window_bounds = array<i64: 256, 16>}, {transform_indices = @transform_6, window_bounds = array<i64: 256, 16>}, {transform_indices = @transform_7, window_bounds = array<i64: 256, 16>}, {transform_indices = @transform_8, window_bounds = array<i64: 256, 16>}]} {
    %c0 = arith.constant 0 : index
    %c0_0 = arith.constant 0 : index
    %0 = vector.load %arg1[%c0, %c0_0] : memref<256x180xf32, #tpu.memory_space<vmem>>, vector<256x180xf32>
    %c0_1 = arith.constant 0 : index
    %c0_2 = arith.constant 0 : index
    %1 = vector.load %arg2[%c0_1, %c0_2] : memref<180x64xf32, #tpu.memory_space<vmem>>, vector<180x64xf32>
    %cst = arith.constant dense<0.000000e+00> : vector<256x64xf32>
    %2 = tpu.matmul %0, %1, %cst {dimension_numbers = #tpu.dot_dimension_numbers<[1], [0], [0], [1], [0, 0, 1, 1], [], []>} : vector<256x180xf32>, vector<180x64xf32>, vector<256x64xf32> -> vector<256x64xf32>
    %c0_3 = arith.constant 0 : index
    %c0_4 = arith.constant 0 : index
    %3 = vector.load %arg3[%c0_3, %c0_4] : memref<1x64xf32, #tpu.memory_space<vmem>>, vector<1x64xf32>
    %4 = vector.broadcast %3 : vector<1x64xf32> to vector<256x64xf32>
    %5 = arith.addf %2, %4 : vector<256x64xf32>
    %c0_5 = arith.constant 0 : index
    %c0_6 = arith.constant 0 : index
    %6 = vector.load %arg4[%c0_5, %c0_6] : memref<256x16xf32, #tpu.memory_space<vmem>>, vector<256x16xf32>
    %7 = vector.extract_strided_slice %5 {offsets = [0, 0], sizes = [256, 16], strides = [1, 1]} : vector<256x64xf32> to vector<256x16xf32>
    %c0_7 = arith.constant 0 : index
    %c0_8 = arith.constant 0 : index
    %8 = vector.load %arg5[%c0_7, %c0_8] : memref<256x16xf32, #tpu.memory_space<vmem>>, vector<256x16xf32>
    %9 = arith.mulf %6, %8 : vector<256x16xf32>
    %10 = arith.addf %7, %9 : vector<256x16xf32>
    %11 = arith.negf %10 : vector<256x16xf32>
    %12 = math.exp %11 : vector<256x16xf32>
    %cst_9 = arith.constant 1.000000e+00 : f32
    %13 = vector.broadcast %cst_9 : f32 to vector<256x16xf32>
    %14 = arith.addf %13, %12 : vector<256x16xf32>
    %15 = arith.divf %13, %14 : vector<256x16xf32>
    %16 = vector.extract_strided_slice %5 {offsets = [0, 16], sizes = [256, 16], strides = [1, 1]} : vector<256x64xf32> to vector<256x16xf32>
    %c0_10 = arith.constant 0 : index
    %c0_11 = arith.constant 0 : index
    %17 = vector.load %arg6[%c0_10, %c0_11] : memref<256x16xf32, #tpu.memory_space<vmem>>, vector<256x16xf32>
    %18 = arith.mulf %6, %17 : vector<256x16xf32>
    %19 = arith.addf %16, %18 : vector<256x16xf32>
    %20 = arith.negf %19 : vector<256x16xf32>
    %21 = math.exp %20 : vector<256x16xf32>
    %cst_12 = arith.constant 1.000000e+00 : f32
    %22 = vector.broadcast %cst_12 : f32 to vector<256x16xf32>
    %23 = arith.addf %22, %21 : vector<256x16xf32>
    %24 = arith.divf %22, %23 : vector<256x16xf32>
    %25 = vector.extract_strided_slice %5 {offsets = [0, 32], sizes = [256, 16], strides = [1, 1]} : vector<256x64xf32> to vector<256x16xf32>
    %26 = math.tanh %25 : vector<256x16xf32>
    %27 = arith.mulf %15, %6 : vector<256x16xf32>
    %28 = arith.mulf %24, %26 : vector<256x16xf32>
    %29 = arith.addf %27, %28 : vector<256x16xf32>
    %30 = vector.extract_strided_slice %5 {offsets = [0, 48], sizes = [256, 16], strides = [1, 1]} : vector<256x64xf32> to vector<256x16xf32>
    %c0_13 = arith.constant 0 : index
    %c0_14 = arith.constant 0 : index
    %31 = vector.load %arg7[%c0_13, %c0_14] : memref<256x16xf32, #tpu.memory_space<vmem>>, vector<256x16xf32>
    %32 = arith.mulf %29, %31 : vector<256x16xf32>
    %33 = arith.addf %30, %32 : vector<256x16xf32>
    %34 = arith.negf %33 : vector<256x16xf32>
    %35 = math.exp %34 : vector<256x16xf32>
    %cst_15 = arith.constant 1.000000e+00 : f32
    %36 = vector.broadcast %cst_15 : f32 to vector<256x16xf32>
    %37 = arith.addf %36, %35 : vector<256x16xf32>
    %38 = arith.divf %36, %37 : vector<256x16xf32>
    %39 = math.tanh %29 : vector<256x16xf32>
    %40 = arith.mulf %38, %39 : vector<256x16xf32>
    %c0_16 = arith.constant 0 : index
    %c0_17 = arith.constant 0 : index
    %41 = vector.load %arg8[%c0_16, %c0_17] : memref<256x16xf32, #tpu.memory_space<vmem>>, vector<256x16xf32>
    tpu.vector_store %arg8[%c0_16, %c0_17], %40 {strides = array<i32>} : memref<256x16xf32, #tpu.memory_space<vmem>>, vector<256x16xf32>,
    %c0_18 = arith.constant 0 : index
    %c0_19 = arith.constant 0 : index
    %42 = vector.load %arg9[%c0_18, %c0_19] : memref<256x16xf32, #tpu.memory_space<vmem>>, vector<256x16xf32>
    tpu.vector_store %arg9[%c0_18, %c0_19], %29 {strides = array<i32>} : memref<256x16xf32, #tpu.memory_space<vmem>>, vector<256x16xf32>,
    return
  }
  func.func @transform_0(%arg0: i32) -> (i32, i32) {
    %c0_i32 = arith.constant 0 : i32
    %c0_i32_0 = arith.constant 0 : i32
    return %arg0, %c0_i32 : i32, i32
  }
  func.func @transform_1(%arg0: i32) -> (i32, i32) {
    %c0_i32 = arith.constant 0 : i32
    %c0_i32_0 = arith.constant 0 : i32
    %c0_i32_1 = arith.constant 0 : i32
    return %c0_i32, %c0_i32_0 : i32, i32
  }
  func.func @transform_2(%arg0: i32) -> (i32, i32) {
    %c0_i32 = arith.constant 0 : i32
    %c0_i32_0 = arith.constant 0 : i32
    %c0_i32_1 = arith.constant 0 : i32
    return %c0_i32, %c0_i32_0 : i32, i32
  }
  func.func @transform_3(%arg0: i32) -> (i32, i32) {
    %c0_i32 = arith.constant 0 : i32
    %c0_i32_0 = arith.constant 0 : i32
    return %arg0, %c0_i32 : i32, i32
  }
  func.func @transform_4(%arg0: i32) -> (i32, i32) {
    %c0_i32 = arith.constant 0 : i32
    %c0_i32_0 = arith.constant 0 : i32
    return %arg0, %c0_i32 : i32, i32
  }
  func.func @transform_5(%arg0: i32) -> (i32, i32) {
    %c0_i32 = arith.constant 0 : i32
    %c0_i32_0 = arith.constant 0 : i32
    return %arg0, %c0_i32 : i32, i32
  }
  func.func @transform_6(%arg0: i32) -> (i32, i32) {
    %c0_i32 = arith.constant 0 : i32
    %c0_i32_0 = arith.constant 0 : i32
    return %arg0, %c0_i32 : i32, i32
  }
  func.func @transform_7(%arg0: i32) -> (i32, i32) {
    %c0_i32 = arith.constant 0 : i32
    %c0_i32_0 = arith.constant 0 : i32
    return %arg0, %c0_i32 : i32, i32
  }
  func.func @transform_8(%arg0: i32) -> (i32, i32) {
    %c0_i32 = arith.constant 0 : i32
    %c0_i32_0 = arith.constant 0 : i32
    return %arg0, %c0_i32 : i32, i32
  }
}

module attributes {stable_mosaic.version = 11 : i64} {
  func.func @_lstm_cell_kernel(%arg0: i32, %arg1: memref<256x180xf32, #tpu.memory_space<vmem>>, %arg2: memref<180x64xf32, #tpu.memory_space<vmem>>, %arg3: memref<1x64xf32, #tpu.memory_space<vmem>>, %arg4: memref<256x16xf32, #tpu.memory_space<vmem>>, %arg5: memref<256x16xf32, #tpu.memory_space<vmem>>, %arg6: memref<256x16xf32, #tpu.memory_space<vmem>>, %arg7: memref<256x16xf32, #tpu.memory_space<vmem>>, %arg8: memref<256x16xf32, #tpu.memory_space<vmem>>, %arg9: memref<256x16xf32, #tpu.memory_space<vmem>>) attributes {dimension_semantics = [#tpu.dimension_semantics<parallel>], iteration_bounds = array<i64: 2>, scalar_prefetch = 0 : i64, scratch_operands = 0 : i64, tpu.core_type = #tpu.core_type<tc>, window_params = [{transform_indices = @transform_0, window_bounds = array<i64: 256, 180>}, {pipeline_mode = #tpu.pipeline_mode<synchronous>, transform_indices = @transform_1, window_bounds = array<i64: 180, 64>}, {pipeline_mode = #tpu.pipeline_mode<synchronous>, transform_indices = @transform_2, window_bounds = array<i64: 1, 64>}, {transform_indices = @transform_3, window_bounds = array<i64: 256, 16>}, {transform_indices = @transform_4, window_bounds = array<i64: 256, 16>}, {transform_indices = @transform_5, window_bounds = array<i64: 256, 16>}, {transform_indices = @transform_6, window_bounds = array<i64: 256, 16>}, {transform_indices = @transform_7, window_bounds = array<i64: 256, 16>}, {transform_indices = @transform_8, window_bounds = array<i64: 256, 16>}]} {
    %c0 = arith.constant 0 : index
    %c0_0 = arith.constant 0 : index
    %0 = vector.load %arg1[%c0, %c0_0] : memref<256x180xf32, #tpu.memory_space<vmem>>, vector<256x180xf32>
    %c0_1 = arith.constant 0 : index
    %c0_2 = arith.constant 0 : index
    %1 = vector.load %arg2[%c0_1, %c0_2] : memref<180x64xf32, #tpu.memory_space<vmem>>, vector<180x64xf32>
    %cst = arith.constant dense<0.000000e+00> : vector<256x64xf32>
    %2 = tpu.matmul %0, %1, %cst {dimension_numbers = #tpu.dot_dimension_numbers<[1], [0], [0], [1], [0, 0, 1, 1], [], []>} : vector<256x180xf32>, vector<180x64xf32>, vector<256x64xf32> -> vector<256x64xf32>
    %c0_3 = arith.constant 0 : index
    %c0_4 = arith.constant 0 : index
    %3 = vector.load %arg3[%c0_3, %c0_4] : memref<1x64xf32, #tpu.memory_space<vmem>>, vector<1x64xf32>
    %4 = vector.broadcast %3 : vector<1x64xf32> to vector<256x64xf32>
    %5 = arith.addf %2, %4 : vector<256x64xf32>
    %c0_5 = arith.constant 0 : index
    %c0_6 = arith.constant 0 : index
    %6 = vector.load %arg4[%c0_5, %c0_6] : memref<256x16xf32, #tpu.memory_space<vmem>>, vector<256x16xf32>
    %7 = vector.extract_strided_slice %5 {offsets = [0, 0], sizes = [256, 16], strides = [1, 1]} : vector<256x64xf32> to vector<256x16xf32>
    %c0_7 = arith.constant 0 : index
    %c0_8 = arith.constant 0 : index
    %8 = vector.load %arg5[%c0_7, %c0_8] : memref<256x16xf32, #tpu.memory_space<vmem>>, vector<256x16xf32>
    %9 = arith.mulf %6, %8 : vector<256x16xf32>
    %10 = arith.addf %7, %9 : vector<256x16xf32>
    %11 = arith.negf %10 : vector<256x16xf32>
    %12 = math.exp %11 : vector<256x16xf32>
    %cst_9 = arith.constant 1.000000e+00 : f32
    %13 = vector.broadcast %cst_9 : f32 to vector<256x16xf32>
    %14 = arith.addf %13, %12 : vector<256x16xf32>
    %15 = arith.divf %13, %14 : vector<256x16xf32>
    %16 = vector.extract_strided_slice %5 {offsets = [0, 16], sizes = [256, 16], strides = [1, 1]} : vector<256x64xf32> to vector<256x16xf32>
    %c0_10 = arith.constant 0 : index
    %c0_11 = arith.constant 0 : index
    %17 = vector.load %arg6[%c0_10, %c0_11] : memref<256x16xf32, #tpu.memory_space<vmem>>, vector<256x16xf32>
    %18 = arith.mulf %6, %17 : vector<256x16xf32>
    %19 = arith.addf %16, %18 : vector<256x16xf32>
    %20 = arith.negf %19 : vector<256x16xf32>
    %21 = math.exp %20 : vector<256x16xf32>
    %cst_12 = arith.constant 1.000000e+00 : f32
    %22 = vector.broadcast %cst_12 : f32 to vector<256x16xf32>
    %23 = arith.addf %22, %21 : vector<256x16xf32>
    %24 = arith.divf %22, %23 : vector<256x16xf32>
    %25 = vector.extract_strided_slice %5 {offsets = [0, 32], sizes = [256, 16], strides = [1, 1]} : vector<256x64xf32> to vector<256x16xf32>
    %26 = math.tanh %25 : vector<256x16xf32>
    %27 = arith.mulf %15, %6 : vector<256x16xf32>
    %28 = arith.mulf %24, %26 : vector<256x16xf32>
    %29 = arith.addf %27, %28 : vector<256x16xf32>
    %30 = vector.extract_strided_slice %5 {offsets = [0, 48], sizes = [256, 16], strides = [1, 1]} : vector<256x64xf32> to vector<256x16xf32>
    %c0_13 = arith.constant 0 : index
    %c0_14 = arith.constant 0 : index
    %31 = vector.load %arg7[%c0_13, %c0_14] : memref<256x16xf32, #tpu.memory_space<vmem>>, vector<256x16xf32>
    %32 = arith.mulf %29, %31 : vector<256x16xf32>
    %33 = arith.addf %30, %32 : vector<256x16xf32>
    %34 = arith.negf %33 : vector<256x16xf32>
    %35 = math.exp %34 : vector<256x16xf32>
    %cst_15 = arith.constant 1.000000e+00 : f32
    %36 = vector.broadcast %cst_15 : f32 to vector<256x16xf32>
    %37 = arith.addf %36, %35 : vector<256x16xf32>
    %38 = arith.divf %36, %37 : vector<256x16xf32>
    %39 = math.tanh %29 : vector<256x16xf32>
    %40 = arith.mulf %38, %39 : vector<256x16xf32>
    %c0_16 = arith.constant 0 : index
    %c0_17 = arith.constant 0 : index
    %41 = vector.load %arg8[%c0_16, %c0_17] : memref<256x16xf32, #tpu.memory_space<vmem>>, vector<256x16xf32>
    tpu.vector_store %arg8[%c0_16, %c0_17], %40 {strides = array<i32>} : memref<256x16xf32, #tpu.memory_space<vmem>>, vector<256x16xf32>,
    %c0_18 = arith.constant 0 : index
    %c0_19 = arith.constant 0 : index
    %42 = vector.load %arg9[%c0_18, %c0_19] : memref<256x16xf32, #tpu.memory_space<vmem>>, vector<256x16xf32>
    tpu.vector_store %arg9[%c0_18, %c0_19], %29 {strides = array<i32>} : memref<256x16xf32, #tpu.memory_space<vmem>>, vector<256x16xf32>,
    return
  }
  func.func @transform_0(%arg0: i32) -> (i32, i32) {
    %c0_i32 = arith.constant 0 : i32
    %c0_i32_0 = arith.constant 0 : i32
    return %arg0, %c0_i32 : i32, i32
  }
  func.func @transform_1(%arg0: i32) -> (i32, i32) {
    %c0_i32 = arith.constant 0 : i32
    %c0_i32_0 = arith.constant 0 : i32
    %c0_i32_1 = arith.constant 0 : i32
    return %c0_i32, %c0_i32_0 : i32, i32
  }
  func.func @transform_2(%arg0: i32) -> (i32, i32) {
    %c0_i32 = arith.constant 0 : i32
    %c0_i32_0 = arith.constant 0 : i32
    %c0_i32_1 = arith.constant 0 : i32
    return %c0_i32, %c0_i32_0 : i32, i32
  }
  func.func @transform_3(%arg0: i32) -> (i32, i32) {
    %c0_i32 = arith.constant 0 : i32
    %c0_i32_0 = arith.constant 0 : i32
    return %arg0, %c0_i32 : i32, i32
  }
  func.func @transform_4(%arg0: i32) -> (i32, i32) {
    %c0_i32 = arith.constant 0 : i32
    %c0_i32_0 = arith.constant 0 : i32
    return %arg0, %c0_i32 : i32, i32
  }
  func.func @transform_5(%arg0: i32) -> (i32, i32) {
    %c0_i32 = arith.constant 0 : i32
    %c0_i32_0 = arith.constant 0 : i32
    return %arg0, %c0_i32 : i32, i32
  }
  func.func @transform_6(%arg0: i32) -> (i32, i32) {
    %c0_i32 = arith.constant 0 : i32
    %c0_i32_0 = arith.constant 0 : i32
    return %arg0, %c0_i32 : i32, i32
  }
  func.func @transform_7(%arg0: i32) -> (i32, i32) {
    %c0_i32 = arith.constant 0 : i32
    %c0_i32_0 = arith.constant 0 : i32
    return %arg0, %c0_i32 : i32, i32
  }
  func.func @transform_8(%arg0: i32) -> (i32, i32) {
    %c0_i32 = arith.constant 0 : i32
    %c0_i32_0 = arith.constant 0 : i32
    return %arg0, %c0_i32 : i32, i32
  }
}

</mosaic_0001>

<llo_original>
// kernel: conv_lstm_forward.8
$region0: #{conv_lstm_forward.8}
  #allocation0 [shape = 'u32[]', space=smem, size = 0x4, offset = 0x4, fixed_abs, tag = 'smem constant byte address 0x4 - core index']
  #allocation1 [shape = 'u32[72,128]{1,0:T(1,128)}', space=vmem, size = 0x9000, scoped, tag = 'internal scratch']
  %s0 = inlined_call_operand.vmem [shape: f32[512,180], index: 0, kind: input, shape index: {}]
  %s1 = inlined_call_operand.vmem [shape: f32[180,64], index: 1, kind: input, shape index: {}]
  %s2 = inlined_call_operand.vmem [shape: f32[1,64], index: 2, kind: input, shape index: {}]
  %s3 = inlined_call_operand.vmem [shape: f32[512,16], index: 3, kind: input, shape index: {}]
  %s4 = inlined_call_operand.vmem [shape: f32[512,16], index: 4, kind: input, shape index: {}]
  %s5 = inlined_call_operand.vmem [shape: f32[512,16], index: 5, kind: input, shape index: {}]
  %s6 = inlined_call_operand.vmem [shape: f32[512,16], index: 6, kind: input, shape index: {}]
  %s7 = inlined_call_operand.vmem [shape: f32[512,16], index: 7, kind: output, shape index: {0}]
  %s8 = inlined_call_operand.vmem [shape: f32[512,16], index: 8, kind: output, shape index: {1}]
  %9 = xla_tuple %s7, %s8
  %s10 = sld [smem:[#allocation0]]
  $region69: #{conv_lstm_forward.8} parent=0
    _
  %s12 = ssub.s32 1, %s10
  %s13 = scalar_select 0, %s12, %s10
  loop: start=0, step=1, limit=4
  $region2: #{conv_lstm_forward.8} parent=0 // loop_pre_header
    _
  $region3: #{conv_lstm_forward.8} parent=0 // loop_header
    %s15 = sphi 0, %s19
    %p16 = scmp.ge.s32.totalorder %s15, 4
    %s25 = sphi 0, %s27
    %s28 = sphi 0, %s25
    %s29 = sphi 0, %s28
    %s45 = sphi 0, %s29
    %s49 = sphi 0, %s49
    %s51 = sphi 0, %s49
    %s52 = sphi 0, %s51
    %s66 = sphi 0, %s52
    %s70 = sphi 0, %s70
    %s72 = sphi 0, %s70
    %s73 = sphi 0, %s72
    %s87 = sphi 0, %s73
    %s93 = sphi 0, %s95
    %s96 = sphi 0, %s93
    %s97 = sphi 0, %s96
    %s113 = sphi 0, %s97
    %s119 = sphi 0, %s121
    %s122 = sphi 0, %s119
    %s123 = sphi 0, %s122
    %s139 = sphi 0, %s123
    %s145 = sphi 0, %s147
    %s148 = sphi 0, %s145
    %s149 = sphi 0, %s148
    %s165 = sphi 0, %s149
    %s171 = sphi 0, %s173
    %s174 = sphi 0, %s171
    %s175 = sphi 0, %s174
    %s191 = sphi 0, %s175
    %s197 = sphi 0, %s199
    %s200 = sphi 0, %s197
    %s201 = sphi 0, %s200
    %s217 = sphi 0, %s201
    %s223 = sphi 0, %s225
    %s226 = sphi 0, %s223
    %s227 = sphi 0, %s226
    %s243 = sphi 0, %s227
  $region4: #{conv_lstm_forward.8} parent=0 // loop_header_branch
    %18 = sbr.rel (%p16) target = $region8
  $region5: #{conv_lstm_forward.8} parent=0 // loop_body
    %s20 = ssub.s32 %s15, 1
    %s21 = ssub.s32 %s15, 2
    %s22 = sadd.s32 %s15, 1
    %s23 = ssub.s32 %s15, %s22
    %p24 = scmp.eq.s32.totalorder %s23, 0
    %s26 = sadd.s32 %s25, 1
    %s27 = scalar_select %p24, %s25, %s26
    %p30 = pneg %p24
    %p31 = scmp.eq.s32.totalorder %s15, 1
    %p32 = por %p30, %p31
    %p33 = scmp.ne.s32.totalorder %s25, %s28
    %p34 = scmp.eq.s32.totalorder %s15, 0
    %p35 = por %p33, %p34
    %p36 = scmp.ne.s32.totalorder %s25, %s28
    %p37 = scmp.eq.s32.totalorder %s20, 1
    %p38 = por %p36, %p37
    %p39 = scmp.ne.s32.totalorder %s28, %s29
    %p40 = scmp.eq.s32.totalorder %s20, 0
    %p41 = por %p39, %p40
    %p42 = scmp.ne.s32.totalorder %s28, %s29
    %p43 = scmp.eq.s32.totalorder %s21, 1
    %p44 = por %p42, %p43
    %p46 = scmp.ne.s32.totalorder %s29, %s45
    %p47 = scmp.eq.s32.totalorder %s21, 0
    %p48 = por %p46, %p47
    %s50 = sadd.s32 %s49, 1
    %p53 = scmp.eq.s32.totalorder %s15, 1
    %p54 = scmp.ne.s32.totalorder %s49, %s51
    %p55 = scmp.eq.s32.totalorder %s15, 0
    %p56 = por %p54, %p55
    %p57 = scmp.ne.s32.totalorder %s49, %s51
    %p58 = scmp.eq.s32.totalorder %s20, 1
    %p59 = por %p57, %p58
    %p60 = scmp.ne.s32.totalorder %s51, %s52
    %p61 = scmp.eq.s32.totalorder %s20, 0
    %p62 = por %p60, %p61
    %p63 = scmp.ne.s32.totalorder %s51, %s52
    %p64 = scmp.eq.s32.totalorder %s21, 1
    %p65 = por %p63, %p64
    %p67 = scmp.ne.s32.totalorder %s52, %s66
    %p68 = scmp.eq.s32.totalorder %s21, 0
    %p69 = por %p67, %p68
    %s71 = sadd.s32 %s70, 1
    %p74 = scmp.eq.s32.totalorder %s15, 1
    %p75 = scmp.ne.s32.totalorder %s70, %s72
    %p76 = scmp.eq.s32.totalorder %s15, 0
    %p77 = por %p75, %p76
    %p78 = scmp.ne.s32.totalorder %s70, %s72
    %p79 = scmp.eq.s32.totalorder %s20, 1
    %p80 = por %p78, %p79
    %p81 = scmp.ne.s32.totalorder %s72, %s73
    %p82 = scmp.eq.s32.totalorder %s20, 0
    %p83 = por %p81, %p82
    %p84 = scmp.ne.s32.totalorder %s72, %s73
    %p85 = scmp.eq.s32.totalorder %s21, 1
    %p86 = por %p84, %p85
    %p88 = scmp.ne.s32.totalorder %s73, %s87
    %p89 = scmp.eq.s32.totalorder %s21, 0
    %p90 = por %p88, %p89
    %s91 = ssub.s32 %s15, %s22
    %p92 = scmp.eq.s32.totalorder %s91, 0
    %s94 = sadd.s32 %s93, 1
    %s95 = scalar_select %p92, %s93, %s94
    %p98 = pneg %p92
    %p99 = scmp.eq.s32.totalorder %s15, 1
    %p100 = por %p98, %p99
    %p101 = scmp.ne.s32.totalorder %s93, %s96
    %p102 = scmp.eq.s32.totalorder %s15, 0
    %p103 = por %p101, %p102
    %p104 = scmp.ne.s32.totalorder %s93, %s96
    %p105 = scmp.eq.s32.totalorder %s20, 1
    %p106 = por %p104, %p105
    %p107 = scmp.ne.s32.totalorder %s96, %s97
    %p108 = scmp.eq.s32.totalorder %s20, 0
    %p109 = por %p107, %p108
    %p110 = scmp.ne.s32.totalorder %s96, %s97
    %p111 = scmp.eq.s32.totalorder %s21, 1
    %p112 = por %p110, %p111
    %p114 = scmp.ne.s32.totalorder %s97, %s113
    %p115 = scmp.eq.s32.totalorder %s21, 0
    %p116 = por %p114, %p115
    %s117 = ssub.s32 %s15, %s22
    %p118 = scmp.eq.s32.totalorder %s117, 0
    %s120 = sadd.s32 %s119, 1
    %s121 = scalar_select %p118, %s119, %s120
    %p124 = pneg %p118
    %p125 = scmp.eq.s32.totalorder %s15, 1
    %p126 = por %p124, %p125
    %p127 = scmp.ne.s32.totalorder %s119, %s122
    %p128 = scmp.eq.s32.totalorder %s15, 0
    %p129 = por %p127, %p128
    %p130 = scmp.ne.s32.totalorder %s119, %s122
    %p131 = scmp.eq.s32.totalorder %s20, 1
    %p132 = por %p130, %p131
    %p133 = scmp.ne.s32.totalorder %s122, %s123
    %p134 = scmp.eq.s32.totalorder %s20, 0
    %p135 = por %p133, %p134
    %p136 = scmp.ne.s32.totalorder %s122, %s123
    %p137 = scmp.eq.s32.totalorder %s21, 1
    %p138 = por %p136, %p137
    %p140 = scmp.ne.s32.totalorder %s123, %s139
    %p141 = scmp.eq.s32.totalorder %s21, 0
    %p142 = por %p140, %p141
    %s143 = ssub.s32 %s15, %s22
    %p144 = scmp.eq.s32.totalorder %s143, 0
    %s146 = sadd.s32 %s145, 1
    %s147 = scalar_select %p144, %s145, %s146
    %p150 = pneg %p144
    %p151 = scmp.eq.s32.totalorder %s15, 1
    %p152 = por %p150, %p151
    %p153 = scmp.ne.s32.totalorder %s145, %s148
    %p154 = scmp.eq.s32.totalorder %s15, 0
    %p155 = por %p153, %p154
    %p156 = scmp.ne.s32.totalorder %s145, %s148
    %p157 = scmp.eq.s32.totalorder %s20, 1
    %p158 = por %p156, %p157
    %p159 = scmp.ne.s32.totalorder %s148, %s149
    %p160 = scmp.eq.s32.totalorder %s20, 0
    %p161 = por %p159, %p160
    %p162 = scmp.ne.s32.totalorder %s148, %s149
    %p163 = scmp.eq.s32.totalorder %s21, 1
    %p164 = por %p162, %p163
    %p166 = scmp.ne.s32.totalorder %s149, %s165
    %p167 = scmp.eq.s32.totalorder %s21, 0
    %p168 = por %p166, %p167
    %s169 = ssub.s32 %s15, %s22
    %p170 = scmp.eq.s32.totalorder %s169, 0
    %s172 = sadd.s32 %s171, 1
    %s173 = scalar_select %p170, %s171, %s172
    %p176 = pneg %p170
    %p177 = scmp.eq.s32.totalorder %s15, 1
    %p178 = por %p176, %p177
    %p179 = scmp.ne.s32.totalorder %s171, %s174
    %p180 = scmp.eq.s32.totalorder %s15, 0
    %p181 = por %p179, %p180
    %p182 = scmp.ne.s32.totalorder %s171, %s174
    %p183 = scmp.eq.s32.totalorder %s20, 1
    %p184 = por %p182, %p183
    %p185 = scmp.ne.s32.totalorder %s174, %s175
    %p186 = scmp.eq.s32.totalorder %s20, 0
    %p187 = por %p185, %p186
    %p188 = scmp.ne.s32.totalorder %s174, %s175
    %p189 = scmp.eq.s32.totalorder %s21, 1
    %p190 = por %p188, %p189
    %p192 = scmp.ne.s32.totalorder %s175, %s191
    %p193 = scmp.eq.s32.totalorder %s21, 0
    %p194 = por %p192, %p193
    %s195 = ssub.s32 %s15, %s22
    %p196 = scmp.eq.s32.totalorder %s195, 0
    %s198 = sadd.s32 %s197, 1
    %s199 = scalar_select %p196, %s197, %s198
    %p202 = pneg %p196
    %p203 = scmp.eq.s32.totalorder %s15, 1
    %p204 = por %p202, %p203
    %p205 = scmp.ne.s32.totalorder %s197, %s200
    %p206 = scmp.eq.s32.totalorder %s15, 0
    %p207 = por %p205, %p206
    %p208 = scmp.ne.s32.totalorder %s197, %s200
    %p209 = scmp.eq.s32.totalorder %s20, 1
    %p210 = por %p208, %p209
    %p211 = scmp.ne.s32.totalorder %s200, %s201
    %p212 = scmp.eq.s32.totalorder %s20, 0
    %p213 = por %p211, %p212
    %p214 = scmp.ne.s32.totalorder %s200, %s201
    %p215 = scmp.eq.s32.totalorder %s21, 1
    %p216 = por %p214, %p215
    %p218 = scmp.ne.s32.totalorder %s201, %s217
    %p219 = scmp.eq.s32.totalorder %s21, 0
    %p220 = por %p218, %p219
    %s221 = ssub.s32 %s15, %s22
    %p222 = scmp.eq.s32.totalorder %s221, 0
    %s224 = sadd.s32 %s223, 1
    %s225 = scalar_select %p222, %s223, %s224
    %p228 = pneg %p222
    %p229 = scmp.eq.s32.totalorder %s15, 1
    %p230 = por %p228, %p229
    %p231 = scmp.ne.s32.totalorder %s223, %s226
    %p232 = scmp.eq.s32.totalorder %s15, 0
    %p233 = por %p231, %p232
    %p234 = scmp.ne.s32.totalorder %s223, %s226
    %p235 = scmp.eq.s32.totalorder %s20, 1
    %p236 = por %p234, %p235
    %p237 = scmp.ne.s32.totalorder %s226, %s227
    %p238 = scmp.eq.s32.totalorder %s20, 0
    %p239 = por %p237, %p238
    %p240 = scmp.ne.s32.totalorder %s226, %s227
    %p241 = scmp.eq.s32.totalorder %s21, 1
    %p242 = por %p240, %p241
    %p244 = scmp.ne.s32.totalorder %s227, %s243
    %p245 = scmp.eq.s32.totalorder %s21, 0
    %p246 = por %p244, %p245
    %p247 = scmp.le.s32.totalorder 1, %s15
    %p248 = scmp.lt.s32.totalorder %s15, 3
    %p249 = pnand %p247, %p248
    %p250 = pneg %p249
    // Predicated region
    $region9: #{conv_lstm_forward.8} parent=5 // pred_check
      _
    $region10: #{conv_lstm_forward.8} parent=5 // pred_check_branch
      %252 = sbr.rel (%p249) target = $region12
    $region11: #{conv_lstm_forward.8} parent=5 // pred_region
      %s253 = ssub.s32 %s15, 1
      // Predicated region
      $region13: #{conv_lstm_forward.8} parent=11 // pred_check
        %p254 = pneg %p62
      $region14: #{conv_lstm_forward.8} parent=11 // pred_check_branch
        %256 = sbr.rel (%p254) target = $region16
      $region15: #{conv_lstm_forward.8} parent=11 // pred_region
        _
      $region16: #{conv_lstm_forward.8} parent=11 // pred_fallthru
        _
      // Predicated region
      $region17: #{conv_lstm_forward.8} parent=11 // pred_check
        %p257 = pneg %p83
      $region18: #{conv_lstm_forward.8} parent=11 // pred_check_branch
        %259 = sbr.rel (%p257) target = $region20
      $region19: #{conv_lstm_forward.8} parent=11 // pred_region
        _
      $region20: #{conv_lstm_forward.8} parent=11 // pred_fallthru
        _
    $region12: #{conv_lstm_forward.8} parent=5 // pred_fallthru
      _
    %p260 = scmp.lt.s32.totalorder %s15, 2
    // Predicated region
    $region21: #{conv_lstm_forward.8} parent=5 // pred_check
      %p261 = pneg %p260
    $region22: #{conv_lstm_forward.8} parent=5 // pred_check_branch
      %263 = sbr.rel (%p261) target = $region24
    $region23: #{conv_lstm_forward.8} parent=5 // pred_region
      // Predicated region
      $region25: #{conv_lstm_forward.8} parent=23 // pred_check
        %p264 = pneg %p35
      $region26: #{conv_lstm_forward.8} parent=23 // pred_check_branch
        %266 = sbr.rel (%p264) target = $region28
      $region27: #{conv_lstm_forward.8} parent=23 // pred_region
        %s267 = smul.u32 32, %s15
        %p268 = scmp.lt.s32.totalorder %s267, 63
        %s269 = scalar_select %p268, %s267, 63
        %s270 = smul.addr %s269, 2
        %s271 = smul.addr %s270, 8
        %s272 = scalar_lea.vmem %s0, %s271
        %s273 = smul.u32 32, %s15
      $region28: #{conv_lstm_forward.8} parent=23 // pred_fallthru
        _
      // Predicated region
      $region29: #{conv_lstm_forward.8} parent=23 // pred_check
        %p274 = pneg %p103
      $region30: #{conv_lstm_forward.8} parent=23 // pred_check_branch
        %276 = sbr.rel (%p274) target = $region32
      $region31: #{conv_lstm_forward.8} parent=23 // pred_region
        %s277 = smul.u32 32, %s15
        %p278 = scmp.lt.s32.totalorder %s277, 63
        %s279 = scalar_select %p278, %s277, 63
        %s280 = smul.addr %s279, 8
        %s281 = scalar_lea.vmem %s3, %s280
        %s282 = smul.u32 32, %s15
      $region32: #{conv_lstm_forward.8} parent=23 // pred_fallthru
        _
      // Predicated region
      $region33: #{conv_lstm_forward.8} parent=23 // pred_check
        %p283 = pneg %p129
      $region34: #{conv_lstm_forward.8} parent=23 // pred_check_branch
        %285 = sbr.rel (%p283) target = $region36
      $region35: #{conv_lstm_forward.8} parent=23 // pred_region
        %s286 = smul.u32 32, %s15
        %p287 = scmp.lt.s32.totalorder %s286, 63
        %s288 = scalar_select %p287, %s286, 63
        %s289 = smul.addr %s288, 8
        %s290 = scalar_lea.vmem %s4, %s289
        %s291 = smul.u32 32, %s15
      $region36: #{conv_lstm_forward.8} parent=23 // pred_fallthru
        _
      // Predicated region
      $region37: #{conv_lstm_forward.8} parent=23 // pred_check
        %p292 = pneg %p155
      $region38: #{conv_lstm_forward.8} parent=23 // pred_check_branch
        %294 = sbr.rel (%p292) target = $region40
      $region39: #{conv_lstm_forward.8} parent=23 // pred_region
        %s295 = smul.u32 32, %s15
        %p296 = scmp.lt.s32.totalorder %s295, 63
        %s297 = scalar_select %p296, %s295, 63
        %s298 = smul.addr %s297, 8
        %s299 = scalar_lea.vmem %s5, %s298
        %s300 = smul.u32 32, %s15
      $region40: #{conv_lstm_forward.8} parent=23 // pred_fallthru
        _
      // Predicated region
      $region41: #{conv_lstm_forward.8} parent=23 // pred_check
        %p301 = pneg %p181
      $region42: #{conv_lstm_forward.8} parent=23 // pred_check_branch
        %303 = sbr.rel (%p301) target = $region44
      $region43: #{conv_lstm_forward.8} parent=23 // pred_region
        %s304 = smul.u32 32, %s15
        %p305 = scmp.lt.s32.totalorder %s304, 63
        %s306 = scalar_select %p305, %s304, 63
        %s307 = smul.addr %s306, 8
        %s308 = scalar_lea.vmem %s6, %s307
        %s309 = smul.u32 32, %s15
      $region44: #{conv_lstm_forward.8} parent=23 // pred_fallthru
        _
    $region24: #{conv_lstm_forward.8} parent=5 // pred_fallthru
      _
    %p310 = scmp.le.s32.totalorder 1, %s15
    %p311 = scmp.lt.s32.totalorder %s15, 3
    %p312 = pnand %p310, %p311
    %p313 = pneg %p312
    // Predicated region
    $region45: #{conv_lstm_forward.8} parent=5 // pred_check
      _
    $region46: #{conv_lstm_forward.8} parent=5 // pred_check_branch
      %315 = sbr.rel (%p312) target = $region48
    $region47: #{conv_lstm_forward.8} parent=5 // pred_region
      %s316 = ssub.s32 %s15, 1
      %s317 = smul.u32 32, %s20
      %p318 = scmp.lt.s32.totalorder %s317, 63
      %s319 = scalar_select %p318, %s317, 63
      %s320 = smul.addr %s319, 2
      %s321 = smul.addr %s320, 8
      %s322 = scalar_lea.vmem %s0, %s321
      %p323 = pneg %p41
      %p324 = pneg %p38
      %p325 = pneg %p62
      %p326 = pneg %p59
      %p327 = pneg %p83
      %p328 = pneg %p80
      %s329 = smul.u32 32, %s20
      %p330 = scmp.lt.s32.totalorder %s329, 63
      %s331 = scalar_select %p330, %s329, 63
      %s332 = smul.addr %s331, 8
      %s333 = scalar_lea.vmem %s3, %s332
      %p334 = pneg %p109
      %p335 = pneg %p106
      %s336 = smul.u32 32, %s20
      %p337 = scmp.lt.s32.totalorder %s336, 63
      %s338 = scalar_select %p337, %s336, 63
      %s339 = smul.addr %s338, 8
      %s340 = scalar_lea.vmem %s4, %s339
      %p341 = pneg %p135
      %p342 = pneg %p132
      %s343 = smul.u32 32, %s20
      %p344 = scmp.lt.s32.totalorder %s343, 63
      %s345 = scalar_select %p344, %s343, 63
      %s346 = smul.addr %s345, 8
      %s347 = scalar_lea.vmem %s5, %s346
      %p348 = pneg %p161
      %p349 = pneg %p158
      %s350 = smul.u32 32, %s20
      %p351 = scmp.lt.s32.totalorder %s350, 63
      %s352 = scalar_select %p351, %s350, 63
      %s353 = smul.addr %s352, 8
      %s354 = scalar_lea.vmem %s6, %s353
      %p355 = pneg %p187
      %p356 = pneg %p184
      %p357 = pneg %p213
      %p358 = pneg %p210
      %s359 = smul.u32 32, %s20
      %p360 = scmp.lt.s32.totalorder %s359, 63
      %s361 = scalar_select %p360, %s359, 63
      %s362 = smul.addr %s361, 8
      %s363 = scalar_lea.vmem %s7, %s362
      %p364 = pneg %p239
      %p365 = pneg %p236
      %s366 = smul.u32 32, %s20
      %p367 = scmp.lt.s32.totalorder %s366, 63
      %s368 = scalar_select %p367, %s366, 63
      %s369 = smul.addr %s368, 8
      %s370 = scalar_lea.vmem %s8, %s369
      %s371 = smul.u32 32, %s20
      %p372 = scmp.lt.s32.totalorder %s371, 63
      %s373 = scalar_select %p372, %s371, 63
      %s374 = smul.addr %s373, 2
      %s375 = smul.addr %s374, 8
      %s376 = scalar_lea.vmem %s0, %s375
      %s377 = smul.u32 32, %s20
      %s378 = smul.u32 32, %s20
      %p379 = scmp.lt.s32.totalorder %s378, 63
      %s380 = scalar_select %p379, %s378, 63
      %s381 = smul.addr %s380, 8
      %s382 = scalar_lea.vmem %s3, %s381
      %s383 = smul.u32 32, %s20
      %s384 = smul.u32 32, %s20
      %p385 = scmp.lt.s32.totalorder %s384, 63
      %s386 = scalar_select %p385, %s384, 63
      %s387 = smul.addr %s386, 8
      %s388 = scalar_lea.vmem %s4, %s387
      %s389 = smul.u32 32, %s20
      %s390 = smul.u32 32, %s20
      %p391 = scmp.lt.s32.totalorder %s390, 63
      %s392 = scalar_select %p391, %s390, 63
      %s393 = smul.addr %s392, 8
      %s394 = scalar_lea.vmem %s5, %s393
      %s395 = smul.u32 32, %s20
      %s396 = smul.u32 32, %s20
      %p397 = scmp.lt.s32.totalorder %s396, 63
      %s398 = scalar_select %p397, %s396, 63
      %s399 = smul.addr %s398, 8
      %s400 = scalar_lea.vmem %s6, %s399
      %s401 = smul.u32 32, %s20
      %s402 = smul.u32 32, %s20
      %p403 = scmp.lt.s32.totalorder %s402, 63
      %s404 = scalar_select %p403, %s402, 63
      %s405 = smul.addr %s404, 8
      %s406 = scalar_lea.vmem %s7, %s405
      %s407 = smul.u32 32, %s20
      %s408 = smul.u32 32, %s20
      %p409 = scmp.lt.s32.totalorder %s408, 63
      %s410 = scalar_select %p409, %s408, 63
      %s411 = smul.addr %s410, 8
      %s412 = scalar_lea.vmem %s8, %s411
      %s413 = smul.u32 32, %s20
      %v414 = vld [vmem:[%s376] sm:$0xff]
      %v415 = vld [vmem:[%s376 + $0x8] sm:$0xff]
      %v416 = vld [vmem:[%s376 + $0x10] sm:$0xff]
      %v417 = vld [vmem:[%s376 + $0x18] sm:$0xff]
      %v418 = vld [vmem:[%s376 + $0x20] sm:$0xff]
      %v419 = vld [vmem:[%s376 + $0x28] sm:$0xff]
      %v420 = vld [vmem:[%s376 + $0x30] sm:$0xff]
      %v421 = vld [vmem:[%s376 + $0x38] sm:$0xff]
      %v422 = vld [vmem:[%s376 + $0x40] sm:$0xff]
      %v423 = vld [vmem:[%s376 + $0x48] sm:$0xff]
      %v424 = vld [vmem:[%s376 + $0x50] sm:$0xff]
      %v425 = vld [vmem:[%s376 + $0x58] sm:$0xff]
      %v426 = vld [vmem:[%s376 + $0x60] sm:$0xff]
      %v427 = vld [vmem:[%s376 + $0x68] sm:$0xff]
      %v428 = vld [vmem:[%s376 + $0x70] sm:$0xff]
      %v429 = vld [vmem:[%s376 + $0x78] sm:$0xff]
      %v430 = vld [vmem:[%s376 + $0x80] sm:$0xff]
      %v431 = vld [vmem:[%s376 + $0x88] sm:$0xff]
      %v432 = vld [vmem:[%s376 + $0x90] sm:$0xff]
      %v433 = vld [vmem:[%s376 + $0x98] sm:$0xff]
      %v434 = vld [vmem:[%s376 + $0xa0] sm:$0xff]
      %v435 = vld [vmem:[%s376 + $0xa8] sm:$0xff]
      %v436 = vld [vmem:[%s376 + $0xb0] sm:$0xff]
      %v437 = vld [vmem:[%s376 + $0xb8] sm:$0xff]
      %v438 = vld [vmem:[%s376 + $0xc0] sm:$0xff]
      %v439 = vld [vmem:[%s376 + $0xc8] sm:$0xff]
      %v440 = vld [vmem:[%s376 + $0xd0] sm:$0xff]
      %v441 = vld [vmem:[%s376 + $0xd8] sm:$0xff]
      %v442 = vld [vmem:[%s376 + $0xe0] sm:$0xff]
      %v443 = vld [vmem:[%s376 + $0xe8] sm:$0xff]
      %v444 = vld [vmem:[%s376 + $0xf0] sm:$0xff]
      %v445 = vld [vmem:[%s376 + $0xf8] sm:$0xff]
      %v446 = vld [vmem:[%s376 + $0x100] sm:$0xff]
      %v447 = vld [vmem:[%s376 + $0x108] sm:$0xff]
      %v448 = vld [vmem:[%s376 + $0x110] sm:$0xff]
      %v449 = vld [vmem:[%s376 + $0x118] sm:$0xff]
      %v450 = vld [vmem:[%s376 + $0x120] sm:$0xff]
      %v451 = vld [vmem:[%s376 + $0x128] sm:$0xff]
      %v452 = vld [vmem:[%s376 + $0x130] sm:$0xff]
      %v453 = vld [vmem:[%s376 + $0x138] sm:$0xff]
      %v454 = vld [vmem:[%s376 + $0x140] sm:$0xff]
      %v455 = vld [vmem:[%s376 + $0x148] sm:$0xff]
      %v456 = vld [vmem:[%s376 + $0x150] sm:$0xff]
      %v457 = vld [vmem:[%s376 + $0x158] sm:$0xff]
      %v458 = vld [vmem:[%s376 + $0x160] sm:$0xff]
      %v459 = vld [vmem:[%s376 + $0x168] sm:$0xff]
      %v460 = vld [vmem:[%s376 + $0x170] sm:$0xff]
      %v461 = vld [vmem:[%s376 + $0x178] sm:$0xff]
      %v462 = vld [vmem:[%s376 + $0x180] sm:$0xff]
      %v463 = vld [vmem:[%s376 + $0x188] sm:$0xff]
      %v464 = vld [vmem:[%s376 + $0x190] sm:$0xff]
      %v465 = vld [vmem:[%s376 + $0x198] sm:$0xff]
      %v466 = vld [vmem:[%s376 + $0x1a0] sm:$0xff]
      %v467 = vld [vmem:[%s376 + $0x1a8] sm:$0xff]
      %v468 = vld [vmem:[%s376 + $0x1b0] sm:$0xff]
      %v469 = vld [vmem:[%s376 + $0x1b8] sm:$0xff]
      %v470 = vld [vmem:[%s376 + $0x1c0] sm:$0xff]
      %v471 = vld [vmem:[%s376 + $0x1c8] sm:$0xff]
      %v472 = vld [vmem:[%s376 + $0x1d0] sm:$0xff]
      %v473 = vld [vmem:[%s376 + $0x1d8] sm:$0xff]
      %v474 = vld [vmem:[%s376 + $0x1e0] sm:$0xff]
      %v475 = vld [vmem:[%s376 + $0x1e8] sm:$0xff]
      %v476 = vld [vmem:[%s376 + $0x1f0] sm:$0xff]
      %v477 = vld [vmem:[%s376 + $0x1f8] sm:$0xff]
      %v478 = vld [vmem:[%s1] sm:$0xff]
      %v479 = vld [vmem:[%s1 + $0x8] sm:$0xff]
      %v480 = vld [vmem:[%s1 + $0x10] sm:$0xff]
      %v481 = vld [vmem:[%s1 + $0x18] sm:$0xff]
      %v482 = vld [vmem:[%s1 + $0x20] sm:$0xff]
      %v483 = vld [vmem:[%s1 + $0x28] sm:$0xff]
      %v484 = vld [vmem:[%s1 + $0x30] sm:$0xff]
      %v485 = vld [vmem:[%s1 + $0x38] sm:$0xff]
      %v486 = vld [vmem:[%s1 + $0x40] sm:$0xff]
      %v487 = vld [vmem:[%s1 + $0x48] sm:$0xff]
      %v488 = vld [vmem:[%s1 + $0x50] sm:$0xff]
      %v489 = vld [vmem:[%s1 + $0x58] sm:$0xff]
      %v490 = vld [vmem:[%s1 + $0x60] sm:$0xff]
      %v491 = vld [vmem:[%s1 + $0x68] sm:$0xff]
      %v492 = vld [vmem:[%s1 + $0x70] sm:$0xff]
      %v493 = vld [vmem:[%s1 + $0x78] sm:$0xff]
      %v494 = vld [vmem:[%s1 + $0x80] sm:$0xff]
      %v495 = vld [vmem:[%s1 + $0x88] sm:$0xff]
      %v496 = vld [vmem:[%s1 + $0x90] sm:$0xff]
      %v497 = vld [vmem:[%s1 + $0x98] sm:$0xff]
      %v498 = vld [vmem:[%s1 + $0xa0] sm:$0xff]
      %v499 = vld [vmem:[%s1 + $0xa8] sm:$0xff]
      %v500 = vld [vmem:[%s1 + $0xb0] sm:$0xf]
      %v501 = vld [vmem:[%s2] sm:$0x1]
      %v503 = vperm.slane %v501, 0
      %vm505 = vcmask 424960
      %v507 = vsel %vm505, %v415, 0
      %v510 = vsel %vm505, %v417, 0
      %v513 = vsel %vm505, %v419, 0
      %v516 = vsel %vm505, %v421, 0
      %v519 = vsel %vm505, %v423, 0
      %v522 = vsel %vm505, %v425, 0
      %v525 = vsel %vm505, %v427, 0
      %v528 = vsel %vm505, %v429, 0
      %v531 = vsel %vm505, %v431, 0
      %v534 = vsel %vm505, %v433, 0
      %v537 = vsel %vm505, %v435, 0
      %v540 = vsel %vm505, %v437, 0
      %v543 = vsel %vm505, %v439, 0
      %v546 = vsel %vm505, %v441, 0
      %v549 = vsel %vm505, %v443, 0
      %v552 = vsel %vm505, %v445, 0
      %v555 = vsel %vm505, %v447, 0
      %v558 = vsel %vm505, %v449, 0
      %v561 = vsel %vm505, %v451, 0
      %v564 = vsel %vm505, %v453, 0
      %v567 = vsel %vm505, %v455, 0
      %v570 = vsel %vm505, %v457, 0
      %v573 = vsel %vm505, %v459, 0
      %v576 = vsel %vm505, %v461, 0
      %v579 = vsel %vm505, %v463, 0
      %v582 = vsel %vm505, %v465, 0
      %v585 = vsel %vm505, %v467, 0
      %v588 = vsel %vm505, %v469, 0
      %v591 = vsel %vm505, %v471, 0
      %v594 = vsel %vm505, %v473, 0
      %v597 = vsel %vm505, %v475, 0
      %v600 = vsel %vm505, %v477, 0
      %vm602 = vcmask 1043456
      %v604 = vsel %vm602, %v500, 0
      %606 = vmatpush.msra.mxu0 %v493
      %607 = vmatpush.msra.mxu0 %v492
      %608 = vmatpush.msra.mxu0 %v491
      %609 = vmatpush.msra.mxu0 %v490
      %610 = vmatpush.msra.mxu0 %v489
      %611 = vmatpush.msra.mxu0 %v488
      %612 = vmatpush.msra.mxu0 %v487
      %613 = vmatpush.msra.mxu0 %v486
      %614 = vmatpush.msra.mxu0 %v485
      %615 = vmatpush.msra.mxu0 %v484
      %616 = vmatpush.msra.mxu0 %v483
      %617 = vmatpush.msra.mxu0 %v482
      %618 = vmatpush.msra.mxu0 %v481
      %619 = vmatpush.msra.mxu0 %v480
      %620 = vmatpush.msra.mxu0 %v479
      %621 = vmatpush.msra.mxu0 %v478
      %622 = vmatmul.f32.gmra.mxu0 %v414
      %v623 = vpop.f32.mrf.mxu0
      %v624 = vadd.f32 %v503, %v623
      %625 = vmatmul.f32.gmra.mxu0 %v416
      %v626 = vpop.f32.mrf.mxu0
      %v627 = vadd.f32 %v503, %v626
      %628 = vmatmul.f32.gmra.mxu0 %v418
      %v629 = vpop.f32.mrf.mxu0
      %v630 = vadd.f32 %v503, %v629
      %631 = vmatmul.f32.gmra.mxu0 %v420
      %v632 = vpop.f32.mrf.mxu0
      %v633 = vadd.f32 %v503, %v632
      %634 = vmatmul.f32.gmra.mxu0 %v422
      %v635 = vpop.f32.mrf.mxu0
      %v636 = vadd.f32 %v503, %v635
      %637 = vmatmul.f32.gmra.mxu0 %v424
      %v638 = vpop.f32.mrf.mxu0
      %v639 = vadd.f32 %v503, %v638
      %640 = vmatmul.f32.gmra.mxu0 %v426
      %v641 = vpop.f32.mrf.mxu0
      %v642 = vadd.f32 %v503, %v641
      %643 = vmatmul.f32.gmra.mxu0 %v428
      %v644 = vpop.f32.mrf.mxu0
      %v645 = vadd.f32 %v503, %v644
      %646 = vmatmul.f32.gmra.mxu0 %v430
      %v647 = vpop.f32.mrf.mxu0
      %v648 = vadd.f32 %v503, %v647
      %649 = vmatmul.f32.gmra.mxu0 %v432
      %v650 = vpop.f32.mrf.mxu0
      %v651 = vadd.f32 %v503, %v650
      %652 = vmatmul.f32.gmra.mxu0 %v434
      %v653 = vpop.f32.mrf.mxu0
      %v654 = vadd.f32 %v503, %v653
      %655 = vmatmul.f32.gmra.mxu0 %v436
      %v656 = vpop.f32.mrf.mxu0
      %v657 = vadd.f32 %v503, %v656
      %658 = vmatmul.f32.gmra.mxu0 %v438
      %v659 = vpop.f32.mrf.mxu0
      %v660 = vadd.f32 %v503, %v659
      %661 = vmatmul.f32.gmra.mxu0 %v440
      %v662 = vpop.f32.mrf.mxu0
      %v663 = vadd.f32 %v503, %v662
      %664 = vmatmul.f32.gmra.mxu0 %v442
      %v665 = vpop.f32.mrf.mxu0
      %v666 = vadd.f32 %v503, %v665
      %667 = vmatmul.f32.gmra.mxu0 %v444
      %v668 = vpop.f32.mrf.mxu0
      %v669 = vadd.f32 %v503, %v668
      %670 = vmatmul.f32.gmra.mxu0 %v446
      %v671 = vpop.f32.mrf.mxu0
      %v672 = vadd.f32 %v503, %v671
      %673 = vmatmul.f32.gmra.mxu0 %v448
      %v674 = vpop.f32.mrf.mxu0
      %v675 = vadd.f32 %v503, %v674
      %676 = vmatmul.f32.gmra.mxu0 %v450
      %v677 = vpop.f32.mrf.mxu0
      %v678 = vadd.f32 %v503, %v677
      %679 = vmatmul.f32.gmra.mxu0 %v452
      %v680 = vpop.f32.mrf.mxu0
      %v681 = vadd.f32 %v503, %v680
      %682 = vmatmul.f32.gmra.mxu0 %v454
      %v683 = vpop.f32.mrf.mxu0
      %v684 = vadd.f32 %v503, %v683
      %685 = vmatmul.f32.gmra.mxu0 %v456
      %v686 = vpop.f32.mrf.mxu0
      %v687 = vadd.f32 %v503, %v686
      %688 = vmatmul.f32.gmra.mxu0 %v458
      %v689 = vpop.f32.mrf.mxu0
      %v690 = vadd.f32 %v503, %v689
      %691 = vmatmul.f32.gmra.mxu0 %v460
      %v692 = vpop.f32.mrf.mxu0
      %v693 = vadd.f32 %v503, %v692
      %694 = vmatmul.f32.gmra.mxu0 %v462
      %v695 = vpop.f32.mrf.mxu0
      %v696 = vadd.f32 %v503, %v695
      %697 = vmatmul.f32.gmra.mxu0 %v464
      %v698 = vpop.f32.mrf.mxu0
      %v699 = vadd.f32 %v503, %v698
      %700 = vmatmul.f32.gmra.mxu0 %v466
      %v701 = vpop.f32.mrf.mxu0
      %v702 = vadd.f32 %v503, %v701
      %703 = vmatmul.f32.gmra.mxu0 %v468
      %v704 = vpop.f32.mrf.mxu0
      %v705 = vadd.f32 %v503, %v704
      %706 = vmatmul.f32.gmra.mxu0 %v470
      %v707 = vpop.f32.mrf.mxu0
      %v708 = vadd.f32 %v503, %v707
      %709 = vmatmul.f32.gmra.mxu0 %v472
      %v710 = vpop.f32.mrf.mxu0
      %v711 = vadd.f32 %v503, %v710
      %712 = vmatmul.f32.gmra.mxu0 %v474
      %v713 = vpop.f32.mrf.mxu0
      %v714 = vadd.f32 %v503, %v713
      %715 = vmatmul.f32.gmra.mxu0 %v476
      %v716 = vpop.f32.mrf.mxu0
      %v717 = vadd.f32 %v503, %v716
      %718 = vdwg.mxu0
      %719 = vmatpush.msra.mxu0 0.0
      %720 = vmatpush.msra.mxu0 0.0
      %721 = vmatpush.msra.mxu0 0.0
      %722 = vmatpush.msra.mxu0 0.0
      %723 = vmatpush.msra.mxu0 0.0
      %724 = vmatpush.msra.mxu0 0.0
      %725 = vmatpush.msra.mxu0 0.0
      %726 = vmatpush.msra.mxu0 0.0
      %727 = vmatpush.msra.mxu0 0.0
      %728 = vmatpush.msra.mxu0 %v604
      %729 = vmatpush.msra.mxu0 %v499
      %730 = vmatpush.msra.mxu0 %v498
      %731 = vmatpush.msra.mxu0 %v497
      %732 = vmatpush.msra.mxu0 %v496
      %733 = vmatpush.msra.mxu0 %v495
      %734 = vmatpush.msra.mxu0 %v494
      %735 = vmatmul.f32.gmra.mxu0 %v507
      %v736 = vpop.f32.mrf.mxu0
      %v737 = vadd.f32 %v624, %v736
      %738 = vmatmul.f32.gmra.mxu0 %v510
      %v739 = vpop.f32.mrf.mxu0
      %v740 = vadd.f32 %v627, %v739
      %741 = vmatmul.f32.gmra.mxu0 %v513
      %v742 = vpop.f32.mrf.mxu0
      %v743 = vadd.f32 %v630, %v742
      %744 = vmatmul.f32.gmra.mxu0 %v516
      %v745 = vpop.f32.mrf.mxu0
      %v746 = vadd.f32 %v633, %v745
      %747 = vmatmul.f32.gmra.mxu0 %v519
      %v748 = vpop.f32.mrf.mxu0
      %v749 = vadd.f32 %v636, %v748
      %750 = vmatmul.f32.gmra.mxu0 %v522
      %v751 = vpop.f32.mrf.mxu0
      %v752 = vadd.f32 %v639, %v751
      %753 = vmatmul.f32.gmra.mxu0 %v525
      %v754 = vpop.f32.mrf.mxu0
      %v755 = vadd.f32 %v642, %v754
      %756 = vmatmul.f32.gmra.mxu0 %v528
      %v757 = vpop.f32.mrf.mxu0
      %v758 = vadd.f32 %v645, %v757
      %759 = vmatmul.f32.gmra.mxu0 %v531
      %v760 = vpop.f32.mrf.mxu0
      %v761 = vadd.f32 %v648, %v760
      %762 = vmatmul.f32.gmra.mxu0 %v534
      %v763 = vpop.f32.mrf.mxu0
      %v764 = vadd.f32 %v651, %v763
      %765 = vmatmul.f32.gmra.mxu0 %v537
      %v766 = vpop.f32.mrf.mxu0
      %v767 = vadd.f32 %v654, %v766
      %768 = vmatmul.f32.gmra.mxu0 %v540
      %v769 = vpop.f32.mrf.mxu0
      %v770 = vadd.f32 %v657, %v769
      %771 = vmatmul.f32.gmra.mxu0 %v543
      %v772 = vpop.f32.mrf.mxu0
      %v773 = vadd.f32 %v660, %v772
      %774 = vmatmul.f32.gmra.mxu0 %v546
      %v775 = vpop.f32.mrf.mxu0
      %v776 = vadd.f32 %v663, %v775
      %777 = vmatmul.f32.gmra.mxu0 %v549
      %v778 = vpop.f32.mrf.mxu0
      %v779 = vadd.f32 %v666, %v778
      %780 = vmatmul.f32.gmra.mxu0 %v552
      %v781 = vpop.f32.mrf.mxu0
      %v782 = vadd.f32 %v669, %v781
      %783 = vmatmul.f32.gmra.mxu0 %v555
      %v784 = vpop.f32.mrf.mxu0
      %v785 = vadd.f32 %v672, %v784
      %786 = vmatmul.f32.gmra.mxu0 %v558
      %v787 = vpop.f32.mrf.mxu0
      %v788 = vadd.f32 %v675, %v787
      %789 = vmatmul.f32.gmra.mxu0 %v561
      %v790 = vpop.f32.mrf.mxu0
      %v791 = vadd.f32 %v678, %v790
      %792 = vmatmul.f32.gmra.mxu0 %v564
      %v793 = vpop.f32.mrf.mxu0
      %v794 = vadd.f32 %v681, %v793
      %795 = vmatmul.f32.gmra.mxu0 %v567
      %v796 = vpop.f32.mrf.mxu0
      %v797 = vadd.f32 %v684, %v796
      %798 = vmatmul.f32.gmra.mxu0 %v570
      %v799 = vpop.f32.mrf.mxu0
      %v800 = vadd.f32 %v687, %v799
      %801 = vmatmul.f32.gmra.mxu0 %v573
      %v802 = vpop.f32.mrf.mxu0
      %v803 = vadd.f32 %v690, %v802
      %804 = vmatmul.f32.gmra.mxu0 %v576
      %v805 = vpop.f32.mrf.mxu0
      %v806 = vadd.f32 %v693, %v805
      %807 = vmatmul.f32.gmra.mxu0 %v579
      %v808 = vpop.f32.mrf.mxu0
      %v809 = vadd.f32 %v696, %v808
      %810 = vmatmul.f32.gmra.mxu0 %v582
      %v811 = vpop.f32.mrf.mxu0
      %v812 = vadd.f32 %v699, %v811
      %813 = vmatmul.f32.gmra.mxu0 %v585
      %v814 = vpop.f32.mrf.mxu0
      %v815 = vadd.f32 %v702, %v814
      %816 = vmatmul.f32.gmra.mxu0 %v588
      %v817 = vpop.f32.mrf.mxu0
      %v818 = vadd.f32 %v705, %v817
      %819 = vmatmul.f32.gmra.mxu0 %v591
      %v820 = vpop.f32.mrf.mxu0
      %v821 = vadd.f32 %v708, %v820
      %822 = vmatmul.f32.gmra.mxu0 %v594
      %v823 = vpop.f32.mrf.mxu0
      %v824 = vadd.f32 %v711, %v823
      %825 = vmatmul.f32.gmra.mxu0 %v597
      %v826 = vpop.f32.mrf.mxu0
      %v827 = vadd.f32 %v714, %v826
      %828 = vmatmul.f32.gmra.mxu0 %v600
      %v829 = vpop.f32.mrf.mxu0
      %v830 = vadd.f32 %v717, %v829
      %831 = vdwg.mxu0
      %v832 = vld [vmem:[%s382] sm:$0xff]
      %v833 = vld [vmem:[%s382 + $0x8] sm:$0xff]
      %v834 = vld [vmem:[%s382 + $0x10] sm:$0xff]
      %v835 = vld [vmem:[%s382 + $0x18] sm:$0xff]
      %v836 = vld [vmem:[%s382 + $0x20] sm:$0xff]
      %v837 = vld [vmem:[%s382 + $0x28] sm:$0xff]
      %v838 = vld [vmem:[%s382 + $0x30] sm:$0xff]
      %v839 = vld [vmem:[%s382 + $0x38] sm:$0xff]
      %v840 = vld [vmem:[%s382 + $0x40] sm:$0xff]
      %v841 = vld [vmem:[%s382 + $0x48] sm:$0xff]
      %v842 = vld [vmem:[%s382 + $0x50] sm:$0xff]
      %v843 = vld [vmem:[%s382 + $0x58] sm:$0xff]
      %v844 = vld [vmem:[%s382 + $0x60] sm:$0xff]
      %v845 = vld [vmem:[%s382 + $0x68] sm:$0xff]
      %v846 = vld [vmem:[%s382 + $0x70] sm:$0xff]
      %v847 = vld [vmem:[%s382 + $0x78] sm:$0xff]
      %v848 = vld [vmem:[%s382 + $0x80] sm:$0xff]
      %v849 = vld [vmem:[%s382 + $0x88] sm:$0xff]
      %v850 = vld [vmem:[%s382 + $0x90] sm:$0xff]
      %v851 = vld [vmem:[%s382 + $0x98] sm:$0xff]
      %v852 = vld [vmem:[%s382 + $0xa0] sm:$0xff]
      %v853 = vld [vmem:[%s382 + $0xa8] sm:$0xff]
      %v854 = vld [vmem:[%s382 + $0xb0] sm:$0xff]
      %v855 = vld [vmem:[%s382 + $0xb8] sm:$0xff]
      %v856 = vld [vmem:[%s382 + $0xc0] sm:$0xff]
      %v857 = vld [vmem:[%s382 + $0xc8] sm:$0xff]
      %v858 = vld [vmem:[%s382 + $0xd0] sm:$0xff]
      %v859 = vld [vmem:[%s382 + $0xd8] sm:$0xff]
      %v860 = vld [vmem:[%s382 + $0xe0] sm:$0xff]
      %v861 = vld [vmem:[%s382 + $0xe8] sm:$0xff]
      %v862 = vld [vmem:[%s382 + $0xf0] sm:$0xff]
      %v863 = vld [vmem:[%s382 + $0xf8] sm:$0xff]
      %v864 = vld [vmem:[%s388] sm:$0xff]
      %v865 = vld [vmem:[%s388 + $0x8] sm:$0xff]
      %v866 = vld [vmem:[%s388 + $0x10] sm:$0xff]
      %v867 = vld [vmem:[%s388 + $0x18] sm:$0xff]
      %v868 = vld [vmem:[%s388 + $0x20] sm:$0xff]
      %v869 = vld [vmem:[%s388 + $0x28] sm:$0xff]
      %v870 = vld [vmem:[%s388 + $0x30] sm:$0xff]
      %v871 = vld [vmem:[%s388 + $0x38] sm:$0xff]
      %v872 = vld [vmem:[%s388 + $0x40] sm:$0xff]
      %v873 = vld [vmem:[%s388 + $0x48] sm:$0xff]
      %v874 = vld [vmem:[%s388 + $0x50] sm:$0xff]
      %v875 = vld [vmem:[%s388 + $0x58] sm:$0xff]
      %v876 = vld [vmem:[%s388 + $0x60] sm:$0xff]
      %v877 = vld [vmem:[%s388 + $0x68] sm:$0xff]
      %v878 = vld [vmem:[%s388 + $0x70] sm:$0xff]
      %v879 = vld [vmem:[%s388 + $0x78] sm:$0xff]
      %v880 = vld [vmem:[%s388 + $0x80] sm:$0xff]
      %v881 = vld [vmem:[%s388 + $0x88] sm:$0xff]
      %v882 = vld [vmem:[%s388 + $0x90] sm:$0xff]
      %v883 = vld [vmem:[%s388 + $0x98] sm:$0xff]
      %v884 = vld [vmem:[%s388 + $0xa0] sm:$0xff]
      %v885 = vld [vmem:[%s388 + $0xa8] sm:$0xff]
      %v886 = vld [vmem:[%s388 + $0xb0] sm:$0xff]
      %v887 = vld [vmem:[%s388 + $0xb8] sm:$0xff]
      %v888 = vld [vmem:[%s388 + $0xc0] sm:$0xff]
      %v889 = vld [vmem:[%s388 + $0xc8] sm:$0xff]
      %v890 = vld [vmem:[%s388 + $0xd0] sm:$0xff]
      %v891 = vld [vmem:[%s388 + $0xd8] sm:$0xff]
      %v892 = vld [vmem:[%s388 + $0xe0] sm:$0xff]
      %v893 = vld [vmem:[%s388 + $0xe8] sm:$0xff]
      %v894 = vld [vmem:[%s388 + $0xf0] sm:$0xff]
      %v895 = vld [vmem:[%s388 + $0xf8] sm:$0xff]
      %v896 = vmul.f32 %v832, %v864
      %v897 = vmul.f32 %v833, %v865
      %v898 = vmul.f32 %v834, %v866
      %v899 = vmul.f32 %v835, %v867
      %v900 = vmul.f32 %v836, %v868
      %v901 = vmul.f32 %v837, %v869
      %v902 = vmul.f32 %v838, %v870
      %v903 = vmul.f32 %v839, %v871
      %v904 = vmul.f32 %v840, %v872
      %v905 = vmul.f32 %v841, %v873
      %v906 = vmul.f32 %v842, %v874
      %v907 = vmul.f32 %v843, %v875
      %v908 = vmul.f32 %v844, %v876
      %v909 = vmul.f32 %v845, %v877
      %v910 = vmul.f32 %v846, %v878
      %v911 = vmul.f32 %v847, %v879
      %v912 = vmul.f32 %v848, %v880
      %v913 = vmul.f32 %v849, %v881
      %v914 = vmul.f32 %v850, %v882
      %v915 = vmul.f32 %v851, %v883
      %v916 = vmul.f32 %v852, %v884
      %v917 = vmul.f32 %v853, %v885
      %v918 = vmul.f32 %v854, %v886
      %v919 = vmul.f32 %v855, %v887
      %v920 = vmul.f32 %v856, %v888
      %v921 = vmul.f32 %v857, %v889
      %v922 = vmul.f32 %v858, %v890
      %v923 = vmul.f32 %v859, %v891
      %v924 = vmul.f32 %v860, %v892
      %v925 = vmul.f32 %v861, %v893
      %v926 = vmul.f32 %v862, %v894
      %v927 = vmul.f32 %v863, %v895
      %v928 = vadd.f32 %v737, %v896
      %v929 = vadd.f32 %v740, %v897
      %v930 = vadd.f32 %v743, %v898
      %v931 = vadd.f32 %v746, %v899
      %v932 = vadd.f32 %v749, %v900
      %v933 = vadd.f32 %v752, %v901
      %v934 = vadd.f32 %v755, %v902
      %v935 = vadd.f32 %v758, %v903
      %v936 = vadd.f32 %v761, %v904
      %v937 = vadd.f32 %v764, %v905
      %v938 = vadd.f32 %v767, %v906
      %v939 = vadd.f32 %v770, %v907
      %v940 = vadd.f32 %v773, %v908
      %v941 = vadd.f32 %v776, %v909
      %v942 = vadd.f32 %v779, %v910
      %v943 = vadd.f32 %v782, %v911
      %v944 = vadd.f32 %v785, %v912
      %v945 = vadd.f32 %v788, %v913
      %v946 = vadd.f32 %v791, %v914
      %v947 = vadd.f32 %v794, %v915
      %v948 = vadd.f32 %v797, %v916
      %v949 = vadd.f32 %v800, %v917
      %v950 = vadd.f32 %v803, %v918
      %v951 = vadd.f32 %v806, %v919
      %v952 = vadd.f32 %v809, %v920
      %v953 = vadd.f32 %v812, %v921
      %v954 = vadd.f32 %v815, %v922
      %v955 = vadd.f32 %v818, %v923
      %v956 = vadd.f32 %v821, %v924
      %v957 = vadd.f32 %v824, %v925
      %v958 = vadd.f32 %v827, %v926
      %v959 = vadd.f32 %v830, %v927
      %v960 = vxor.u32 %v928, 2147483648
      %v961 = vxor.u32 %v929, 2147483648
      %v962 = vxor.u32 %v930, 2147483648
      %v963 = vxor.u32 %v931, 2147483648
      %v964 = vxor.u32 %v932, 2147483648
      %v965 = vxor.u32 %v933, 2147483648
      %v966 = vxor.u32 %v934, 2147483648
      %v967 = vxor.u32 %v935, 2147483648
      %v968 = vxor.u32 %v936, 2147483648
      %v969 = vxor.u32 %v937, 2147483648
      %v970 = vxor.u32 %v938, 2147483648
      %v971 = vxor.u32 %v939, 2147483648
      %v972 = vxor.u32 %v940, 2147483648
      %v973 = vxor.u32 %v941, 2147483648
      %v974 = vxor.u32 %v942, 2147483648
      %v975 = vxor.u32 %v943, 2147483648
      %v976 = vxor.u32 %v944, 2147483648
      %v977 = vxor.u32 %v945, 2147483648
      %v978 = vxor.u32 %v946, 2147483648
      %v979 = vxor.u32 %v947, 2147483648
      %v980 = vxor.u32 %v948, 2147483648
      %v981 = vxor.u32 %v949, 2147483648
      %v982 = vxor.u32 %v950, 2147483648
      %v983 = vxor.u32 %v951, 2147483648
      %v984 = vxor.u32 %v952, 2147483648
      %v985 = vxor.u32 %v953, 2147483648
      %v986 = vxor.u32 %v954, 2147483648
      %v987 = vxor.u32 %v955, 2147483648
      %v988 = vxor.u32 %v956, 2147483648
      %v989 = vxor.u32 %v957, 2147483648
      %v990 = vxor.u32 %v958, 2147483648
      %v991 = vxor.u32 %v959, 2147483648
      %v992 = vmul.f32 %v960, 1.442695
      %v993 = vpow.pop %v992
      %v994 = vmul.f32 %v961, 1.442695
      %v995 = vpow.pop %v994
      %v996 = vmul.f32 %v962, 1.442695
      %v997 = vpow.pop %v996
      %v998 = vmul.f32 %v963, 1.442695
      %v999 = vpow.pop %v998
      %v1000 = vmul.f32 %v964, 1.442695
      %v1001 = vpow.pop %v1000
      %v1002 = vmul.f32 %v965, 1.442695
      %v1003 = vpow.pop %v1002
      %v1004 = vmul.f32 %v966, 1.442695
      %v1005 = vpow.pop %v1004
      %v1006 = vmul.f32 %v967, 1.442695
      %v1007 = vpow.pop %v1006
      %v1008 = vmul.f32 %v968, 1.442695
      %v1009 = vpow.pop %v1008
      %v1010 = vmul.f32 %v969, 1.442695
      %v1011 = vpow.pop %v1010
      %v1012 = vmul.f32 %v970, 1.442695
      %v1013 = vpow.pop %v1012
      %v1014 = vmul.f32 %v971, 1.442695
      %v1015 = vpow.pop %v1014
      %v1016 = vmul.f32 %v972, 1.442695
      %v1017 = vpow.pop %v1016
      %v1018 = vmul.f32 %v973, 1.442695
      %v1019 = vpow.pop %v1018
      %v1020 = vmul.f32 %v974, 1.442695
      %v1021 = vpow.pop %v1020
      %v1022 = vmul.f32 %v975, 1.442695
      %v1023 = vpow.pop %v1022
      %v1024 = vmul.f32 %v976, 1.442695
      %v1025 = vpow.pop %v1024
      %v1026 = vmul.f32 %v977, 1.442695
      %v1027 = vpow.pop %v1026
      %v1028 = vmul.f32 %v978, 1.442695
      %v1029 = vpow.pop %v1028
      %v1030 = vmul.f32 %v979, 1.442695
      %v1031 = vpow.pop %v1030
      %v1032 = vmul.f32 %v980, 1.442695
      %v1033 = vpow.pop %v1032
      %v1034 = vmul.f32 %v981, 1.442695
      %v1035 = vpow.pop %v1034
      %v1036 = vmul.f32 %v982, 1.442695
      %v1037 = vpow.pop %v1036
      %v1038 = vmul.f32 %v983, 1.442695
      %v1039 = vpow.pop %v1038
      %v1040 = vmul.f32 %v984, 1.442695
      %v1041 = vpow.pop %v1040
      %v1042 = vmul.f32 %v985, 1.442695
      %v1043 = vpow.pop %v1042
      %v1044 = vmul.f32 %v986, 1.442695
      %v1045 = vpow.pop %v1044
      %v1046 = vmul.f32 %v987, 1.442695
      %v1047 = vpow.pop %v1046
      %v1048 = vmul.f32 %v988, 1.442695
      %v1049 = vpow.pop %v1048
      %v1050 = vmul.f32 %v989, 1.442695
      %v1051 = vpow.pop %v1050
      %v1052 = vmul.f32 %v990, 1.442695
      %v1053 = vpow.pop %v1052
      %v1054 = vmul.f32 %v991, 1.442695
      %v1055 = vpow.pop %v1054
      %v1056 = vadd.f32 %v993, 1.0
      %v1057 = vadd.f32 %v995, 1.0
      %v1058 = vadd.f32 %v997, 1.0
      %v1059 = vadd.f32 %v999, 1.0
      %v1060 = vadd.f32 %v1001, 1.0
      %v1061 = vadd.f32 %v1003, 1.0
      %v1062 = vadd.f32 %v1005, 1.0
      %v1063 = vadd.f32 %v1007, 1.0
      %v1064 = vadd.f32 %v1009, 1.0
      %v1065 = vadd.f32 %v1011, 1.0
      %v1066 = vadd.f32 %v1013, 1.0
      %v1067 = vadd.f32 %v1015, 1.0
      %v1068 = vadd.f32 %v1017, 1.0
      %v1069 = vadd.f32 %v1019, 1.0
      %v1070 = vadd.f32 %v1021, 1.0
      %v1071 = vadd.f32 %v1023, 1.0
      %v1072 = vadd.f32 %v1025, 1.0
      %v1073 = vadd.f32 %v1027, 1.0
      %v1074 = vadd.f32 %v1029, 1.0
      %v1075 = vadd.f32 %v1031, 1.0
      %v1076 = vadd.f32 %v1033, 1.0
      %v1077 = vadd.f32 %v1035, 1.0
      %v1078 = vadd.f32 %v1037, 1.0
      %v1079 = vadd.f32 %v1039, 1.0
      %v1080 = vadd.f32 %v1041, 1.0
      %v1081 = vadd.f32 %v1043, 1.0
      %v1082 = vadd.f32 %v1045, 1.0
      %v1083 = vadd.f32 %v1047, 1.0
      %v1084 = vadd.f32 %v1049, 1.0
      %v1085 = vadd.f32 %v1051, 1.0
      %v1086 = vadd.f32 %v1053, 1.0
      %v1087 = vadd.f32 %v1055, 1.0
      %v1088 = vrcp.pop %v1056
      %v1089 = vmul.f32 %v1056, %v1088
      %v1090 = vsub.f32 1.0, %v1089
      %v1091 = vmul.f32 %v1088, %v1090
      %v1092 = vadd.f32 %v1088, %v1091
      %vm1093 = vweird.f32 %v1056
      %vm1094 = vweird.f32 %v1088
      %vm1095 = vmor %vm1093, %vm1094
      %v1096 = vsel %vm1095, %v1088, %v1092
      %v1097 = vand.u32 2147483647, %v1056
      %vm1098 = vcmp.eq.f32.partialorder %v1097, 8.507059e+37
      %v1099 = vand.u32 %v1056, 2147483648
      %v1100 = vor.u32 1.1754944e-38, %v1099
      %v1101 = vsel %vm1098, %v1100, %v1096
      %v1102 = vmul.f32 1.0, %v1101
      %v1103 = vrcp.pop %v1057
      %v1104 = vmul.f32 %v1057, %v1103
      %v1105 = vsub.f32 1.0, %v1104
      %v1106 = vmul.f32 %v1103, %v1105
      %v1107 = vadd.f32 %v1103, %v1106
      %vm1108 = vweird.f32 %v1057
      %vm1109 = vweird.f32 %v1103
      %vm1110 = vmor %vm1108, %vm1109
      %v1111 = vsel %vm1110, %v1103, %v1107
      %v1112 = vand.u32 2147483647, %v1057
      %vm1113 = vcmp.eq.f32.partialorder %v1112, 8.507059e+37
      %v1114 = vand.u32 %v1057, 2147483648
      %v1115 = vor.u32 1.1754944e-38, %v1114
      %v1116 = vsel %vm1113, %v1115, %v1111
      %v1117 = vmul.f32 1.0, %v1116
      %v1118 = vrcp.pop %v1058
      %v1119 = vmul.f32 %v1058, %v1118
      %v1120 = vsub.f32 1.0, %v1119
      %v1121 = vmul.f32 %v1118, %v1120
      %v1122 = vadd.f32 %v1118, %v1121
      %vm1123 = vweird.f32 %v1058
      %vm1124 = vweird.f32 %v1118
      %vm1125 = vmor %vm1123, %vm1124
      %v1126 = vsel %vm1125, %v1118, %v1122
      %v1127 = vand.u32 2147483647, %v1058
      %vm1128 = vcmp.eq.f32.partialorder %v1127, 8.507059e+37
      %v1129 = vand.u32 %v1058, 2147483648
      %v1130 = vor.u32 1.1754944e-38, %v1129
      %v1131 = vsel %vm1128, %v1130, %v1126
      %v1132 = vmul.f32 1.0, %v1131
      %v1133 = vrcp.pop %v1059
      %v1134 = vmul.f32 %v1059, %v1133
      %v1135 = vsub.f32 1.0, %v1134
      %v1136 = vmul.f32 %v1133, %v1135
      %v1137 = vadd.f32 %v1133, %v1136
      %vm1138 = vweird.f32 %v1059
      %vm1139 = vweird.f32 %v1133
      %vm1140 = vmor %vm1138, %vm1139
      %v1141 = vsel %vm1140, %v1133, %v1137
      %v1142 = vand.u32 2147483647, %v1059
      %vm1143 = vcmp.eq.f32.partialorder %v1142, 8.507059e+37
      %v1144 = vand.u32 %v1059, 2147483648
      %v1145 = vor.u32 1.1754944e-38, %v1144
      %v1146 = vsel %vm1143, %v1145, %v1141
      %v1147 = vmul.f32 1.0, %v1146
      %v1148 = vrcp.pop %v1060
      %v1149 = vmul.f32 %v1060, %v1148
      %v1150 = vsub.f32 1.0, %v1149
      %v1151 = vmul.f32 %v1148, %v1150
      %v1152 = vadd.f32 %v1148, %v1151
      %vm1153 = vweird.f32 %v1060
      %vm1154 = vweird.f32 %v1148
      %vm1155 = vmor %vm1153, %vm1154
      %v1156 = vsel %vm1155, %v1148, %v1152
      %v1157 = vand.u32 2147483647, %v1060
      %vm1158 = vcmp.eq.f32.partialorder %v1157, 8.507059e+37
      %v1159 = vand.u32 %v1060, 2147483648
      %v1160 = vor.u32 1.1754944e-38, %v1159
      %v1161 = vsel %vm1158, %v1160, %v1156
      %v1162 = vmul.f32 1.0, %v1161
      %v1163 = vrcp.pop %v1061
      %v1164 = vmul.f32 %v1061, %v1163
      %v1165 = vsub.f32 1.0, %v1164
      %v1166 = vmul.f32 %v1163, %v1165
      %v1167 = vadd.f32 %v1163, %v1166
      %vm1168 = vweird.f32 %v1061
      %vm1169 = vweird.f32 %v1163
      %vm1170 = vmor %vm1168, %vm1169
      %v1171 = vsel %vm1170, %v1163, %v1167
      %v1172 = vand.u32 2147483647, %v1061
      %vm1173 = vcmp.eq.f32.partialorder %v1172, 8.507059e+37
      %v1174 = vand.u32 %v1061, 2147483648
      %v1175 = vor.u32 1.1754944e-38, %v1174
      %v1176 = vsel %vm1173, %v1175, %v1171
      %v1177 = vmul.f32 1.0, %v1176
      %v1178 = vrcp.pop %v1062
      %v1179 = vmul.f32 %v1062, %v1178
      %v1180 = vsub.f32 1.0, %v1179
      %v1181 = vmul.f32 %v1178, %v1180
      %v1182 = vadd.f32 %v1178, %v1181
      %vm1183 = vweird.f32 %v1062
      %vm1184 = vweird.f32 %v1178
      %vm1185 = vmor %vm1183, %vm1184
      %v1186 = vsel %vm1185, %v1178, %v1182
      %v1187 = vand.u32 2147483647, %v1062
      %vm1188 = vcmp.eq.f32.partialorder %v1187, 8.507059e+37
      %v1189 = vand.u32 %v1062, 2147483648
      %v1190 = vor.u32 1.1754944e-38, %v1189
      %v1191 = vsel %vm1188, %v1190, %v1186
      %v1192 = vmul.f32 1.0, %v1191
      %v1193 = vrcp.pop %v1063
      %v1194 = vmul.f32 %v1063, %v1193
      %v1195 = vsub.f32 1.0, %v1194
      %v1196 = vmul.f32 %v1193, %v1195
      %v1197 = vadd.f32 %v1193, %v1196
      %vm1198 = vweird.f32 %v1063
      %vm1199 = vweird.f32 %v1193
      %vm1200 = vmor %vm1198, %vm1199
      %v1201 = vsel %vm1200, %v1193, %v1197
      %v1202 = vand.u32 2147483647, %v1063
      %vm1203 = vcmp.eq.f32.partialorder %v1202, 8.507059e+37
      %v1204 = vand.u32 %v1063, 2147483648
      %v1205 = vor.u32 1.1754944e-38, %v1204
      %v1206 = vsel %vm1203, %v1205, %v1201
      %v1207 = vmul.f32 1.0, %v1206
      %v1208 = vrcp.pop %v1064
      %v1209 = vmul.f32 %v1064, %v1208
      %v1210 = vsub.f32 1.0, %v1209
      %v1211 = vmul.f32 %v1208, %v1210
      %v1212 = vadd.f32 %v1208, %v1211
      %vm1213 = vweird.f32 %v1064
      %vm1214 = vweird.f32 %v1208
      %vm1215 = vmor %vm1213, %vm1214
      %v1216 = vsel %vm1215, %v1208, %v1212
      %v1217 = vand.u32 2147483647, %v1064
      %vm1218 = vcmp.eq.f32.partialorder %v1217, 8.507059e+37
      %v1219 = vand.u32 %v1064, 2147483648
      %v1220 = vor.u32 1.1754944e-38, %v1219
      %v1221 = vsel %vm1218, %v1220, %v1216
      %v1222 = vmul.f32 1.0, %v1221
      %v1223 = vrcp.pop %v1065
      %v1224 = vmul.f32 %v1065, %v1223
      %v1225 = vsub.f32 1.0, %v1224
      %v1226 = vmul.f32 %v1223, %v1225
      %v1227 = vadd.f32 %v1223, %v1226
      %vm1228 = vweird.f32 %v1065
      %vm1229 = vweird.f32 %v1223
      %vm1230 = vmor %vm1228, %vm1229
      %v1231 = vsel %vm1230, %v1223, %v1227
      %v1232 = vand.u32 2147483647, %v1065
      %vm1233 = vcmp.eq.f32.partialorder %v1232, 8.507059e+37
      %v1234 = vand.u32 %v1065, 2147483648
      %v1235 = vor.u32 1.1754944e-38, %v1234
      %v1236 = vsel %vm1233, %v1235, %v1231
      %v1237 = vmul.f32 1.0, %v1236
      %v1238 = vrcp.pop %v1066
      %v1239 = vmul.f32 %v1066, %v1238
      %v1240 = vsub.f32 1.0, %v1239
      %v1241 = vmul.f32 %v1238, %v1240
      %v1242 = vadd.f32 %v1238, %v1241
      %vm1243 = vweird.f32 %v1066
      %vm1244 = vweird.f32 %v1238
      %vm1245 = vmor %vm1243, %vm1244
      %v1246 = vsel %vm1245, %v1238, %v1242
      %v1247 = vand.u32 2147483647, %v1066
      %vm1248 = vcmp.eq.f32.partialorder %v1247, 8.507059e+37
      %v1249 = vand.u32 %v1066, 2147483648
      %v1250 = vor.u32 1.1754944e-38, %v1249
      %v1251 = vsel %vm1248, %v1250, %v1246
      %v1252 = vmul.f32 1.0, %v1251
      %v1253 = vrcp.pop %v1067
      %v1254 = vmul.f32 %v1067, %v1253
      %v1255 = vsub.f32 1.0, %v1254
      %v1256 = vmul.f32 %v1253, %v1255
      %v1257 = vadd.f32 %v1253, %v1256
      %vm1258 = vweird.f32 %v1067
      %vm1259 = vweird.f32 %v1253
      %vm1260 = vmor %vm1258, %vm1259
      %v1261 = vsel %vm1260, %v1253, %v1257
      %v1262 = vand.u32 2147483647, %v1067
      %vm1263 = vcmp.eq.f32.partialorder %v1262, 8.507059e+37
      %v1264 = vand.u32 %v1067, 2147483648
      %v1265 = vor.u32 1.1754944e-38, %v1264
      %v1266 = vsel %vm1263, %v1265, %v1261
      %v1267 = vmul.f32 1.0, %v1266
      %v1268 = vrcp.pop %v1068
      %v1269 = vmul.f32 %v1068, %v1268
      %v1270 = vsub.f32 1.0, %v1269
      %v1271 = vmul.f32 %v1268, %v1270
      %v1272 = vadd.f32 %v1268, %v1271
      %vm1273 = vweird.f32 %v1068
      %vm1274 = vweird.f32 %v1268
      %vm1275 = vmor %vm1273, %vm1274
      %v1276 = vsel %vm1275, %v1268, %v1272
      %v1277 = vand.u32 2147483647, %v1068
      %vm1278 = vcmp.eq.f32.partialorder %v1277, 8.507059e+37
      %v1279 = vand.u32 %v1068, 2147483648
      %v1280 = vor.u32 1.1754944e-38, %v1279
      %v1281 = vsel %vm1278, %v1280, %v1276
      %v1282 = vmul.f32 1.0, %v1281
      %v1283 = vrcp.pop %v1069
      %v1284 = vmul.f32 %v1069, %v1283
      %v1285 = vsub.f32 1.0, %v1284
      %v1286 = vmul.f32 %v1283, %v1285
      %v1287 = vadd.f32 %v1283, %v1286
      %vm1288 = vweird.f32 %v1069
      %vm1289 = vweird.f32 %v1283
      %vm1290 = vmor %vm1288, %vm1289
      %v1291 = vsel %vm1290, %v1283, %v1287
      %v1292 = vand.u32 2147483647, %v1069
      %vm1293 = vcmp.eq.f32.partialorder %v1292, 8.507059e+37
      %v1294 = vand.u32 %v1069, 2147483648
      %v1295 = vor.u32 1.1754944e-38, %v1294
      %v1296 = vsel %vm1293, %v1295, %v1291
      %v1297 = vmul.f32 1.0, %v1296
      %v1298 = vrcp.pop %v1070
      %v1299 = vmul.f32 %v1070, %v1298
      %v1300 = vsub.f32 1.0, %v1299
      %v1301 = vmul.f32 %v1298, %v1300
      %v1302 = vadd.f32 %v1298, %v1301
      %vm1303 = vweird.f32 %v1070
      %vm1304 = vweird.f32 %v1298
      %vm1305 = vmor %vm1303, %vm1304
      %v1306 = vsel %vm1305, %v1298, %v1302
      %v1307 = vand.u32 2147483647, %v1070
      %vm1308 = vcmp.eq.f32.partialorder %v1307, 8.507059e+37
      %v1309 = vand.u32 %v1070, 2147483648
      %v1310 = vor.u32 1.1754944e-38, %v1309
      %v1311 = vsel %vm1308, %v1310, %v1306
      %v1312 = vmul.f32 1.0, %v1311
      %v1313 = vrcp.pop %v1071
      %v1314 = vmul.f32 %v1071, %v1313
      %v1315 = vsub.f32 1.0, %v1314
      %v1316 = vmul.f32 %v1313, %v1315
      %v1317 = vadd.f32 %v1313, %v1316
      %vm1318 = vweird.f32 %v1071
      %vm1319 = vweird.f32 %v1313
      %vm1320 = vmor %vm1318, %vm1319
      %v1321 = vsel %vm1320, %v1313, %v1317
      %v1322 = vand.u32 2147483647, %v1071
      %vm1323 = vcmp.eq.f32.partialorder %v1322, 8.507059e+37
      %v1324 = vand.u32 %v1071, 2147483648
      %v1325 = vor.u32 1.1754944e-38, %v1324
      %v1326 = vsel %vm1323, %v1325, %v1321
      %v1327 = vmul.f32 1.0, %v1326
      %v1328 = vrcp.pop %v1072
      %v1329 = vmul.f32 %v1072, %v1328
      %v1330 = vsub.f32 1.0, %v1329
      %v1331 = vmul.f32 %v1328, %v1330
      %v1332 = vadd.f32 %v1328, %v1331
      %vm1333 = vweird.f32 %v1072
      %vm1334 = vweird.f32 %v1328
      %vm1335 = vmor %vm1333, %vm1334
      %v1336 = vsel %vm1335, %v1328, %v1332
      %v1337 = vand.u32 2147483647, %v1072
      %vm1338 = vcmp.eq.f32.partialorder %v1337, 8.507059e+37
      %v1339 = vand.u32 %v1072, 2147483648
      %v1340 = vor.u32 1.1754944e-38, %v1339
      %v1341 = vsel %vm1338, %v1340, %v1336
      %v1342 = vmul.f32 1.0, %v1341
      %v1343 = vrcp.pop %v1073
      %v1344 = vmul.f32 %v1073, %v1343
      %v1345 = vsub.f32 1.0, %v1344
      %v1346 = vmul.f32 %v1343, %v1345
      %v1347 = vadd.f32 %v1343, %v1346
      %vm1348 = vweird.f32 %v1073
      %vm1349 = vweird.f32 %v1343
      %vm1350 = vmor %vm1348, %vm1349
      %v1351 = vsel %vm1350, %v1343, %v1347
      %v1352 = vand.u32 2147483647, %v1073
      %vm1353 = vcmp.eq.f32.partialorder %v1352, 8.507059e+37
      %v1354 = vand.u32 %v1073, 2147483648
      %v1355 = vor.u32 1.1754944e-38, %v1354
      %v1356 = vsel %vm1353, %v1355, %v1351
      %v1357 = vmul.f32 1.0, %v1356
      %v1358 = vrcp.pop %v1074
      %v1359 = vmul.f32 %v1074, %v1358
      %v1360 = vsub.f32 1.0, %v1359
      %v1361 = vmul.f32 %v1358, %v1360
      %v1362 = vadd.f32 %v1358, %v1361
      %vm1363 = vweird.f32 %v1074
      %vm1364 = vweird.f32 %v1358
      %vm1365 = vmor %vm1363, %vm1364
      %v1366 = vsel %vm1365, %v1358, %v1362
      %v1367 = vand.u32 2147483647, %v1074
      %vm1368 = vcmp.eq.f32.partialorder %v1367, 8.507059e+37
      %v1369 = vand.u32 %v1074, 2147483648
      %v1370 = vor.u32 1.1754944e-38, %v1369
      %v1371 = vsel %vm1368, %v1370, %v1366
      %v1372 = vmul.f32 1.0, %v1371
      %v1373 = vrcp.pop %v1075
      %v1374 = vmul.f32 %v1075, %v1373
      %v1375 = vsub.f32 1.0, %v1374
      %v1376 = vmul.f32 %v1373, %v1375
      %v1377 = vadd.f32 %v1373, %v1376
      %vm1378 = vweird.f32 %v1075
      %vm1379 = vweird.f32 %v1373
      %vm1380 = vmor %vm1378, %vm1379
      %v1381 = vsel %vm1380, %v1373, %v1377
      %v1382 = vand.u32 2147483647, %v1075
      %vm1383 = vcmp.eq.f32.partialorder %v1382, 8.507059e+37
      %v1384 = vand.u32 %v1075, 2147483648
      %v1385 = vor.u32 1.1754944e-38, %v1384
      %v1386 = vsel %vm1383, %v1385, %v1381
      %v1387 = vmul.f32 1.0, %v1386
      %v1388 = vrcp.pop %v1076
      %v1389 = vmul.f32 %v1076, %v1388
      %v1390 = vsub.f32 1.0, %v1389
      %v1391 = vmul.f32 %v1388, %v1390
      %v1392 = vadd.f32 %v1388, %v1391
      %vm1393 = vweird.f32 %v1076
      %vm1394 = vweird.f32 %v1388
      %vm1395 = vmor %vm1393, %vm1394
      %v1396 = vsel %vm1395, %v1388, %v1392
      %v1397 = vand.u32 2147483647, %v1076
      %vm1398 = vcmp.eq.f32.partialorder %v1397, 8.507059e+37
      %v1399 = vand.u32 %v1076, 2147483648
      %v1400 = vor.u32 1.1754944e-38, %v1399
      %v1401 = vsel %vm1398, %v1400, %v1396
      %v1402 = vmul.f32 1.0, %v1401
      %v1403 = vrcp.pop %v1077
      %v1404 = vmul.f32 %v1077, %v1403
      %v1405 = vsub.f32 1.0, %v1404
      %v1406 = vmul.f32 %v1403, %v1405
      %v1407 = vadd.f32 %v1403, %v1406
      %vm1408 = vweird.f32 %v1077
      %vm1409 = vweird.f32 %v1403
      %vm1410 = vmor %vm1408, %vm1409
      %v1411 = vsel %vm1410, %v1403, %v1407
      %v1412 = vand.u32 2147483647, %v1077
      %vm1413 = vcmp.eq.f32.partialorder %v1412, 8.507059e+37
      %v1414 = vand.u32 %v1077, 2147483648
      %v1415 = vor.u32 1.1754944e-38, %v1414
      %v1416 = vsel %vm1413, %v1415, %v1411
      %v1417 = vmul.f32 1.0, %v1416
      %v1418 = vrcp.pop %v1078
      %v1419 = vmul.f32 %v1078, %v1418
      %v1420 = vsub.f32 1.0, %v1419
      %v1421 = vmul.f32 %v1418, %v1420
      %v1422 = vadd.f32 %v1418, %v1421
      %vm1423 = vweird.f32 %v1078
      %vm1424 = vweird.f32 %v1418
      %vm1425 = vmor %vm1423, %vm1424
      %v1426 = vsel %vm1425, %v1418, %v1422
      %v1427 = vand.u32 2147483647, %v1078
      %vm1428 = vcmp.eq.f32.partialorder %v1427, 8.507059e+37
      %v1429 = vand.u32 %v1078, 2147483648
      %v1430 = vor.u32 1.1754944e-38, %v1429
      %v1431 = vsel %vm1428, %v1430, %v1426
      %v1432 = vmul.f32 1.0, %v1431
      %v1433 = vrcp.pop %v1079
      %v1434 = vmul.f32 %v1079, %v1433
      %v1435 = vsub.f32 1.0, %v1434
      %v1436 = vmul.f32 %v1433, %v1435
      %v1437 = vadd.f32 %v1433, %v1436
      %vm1438 = vweird.f32 %v1079
      %vm1439 = vweird.f32 %v1433
      %vm1440 = vmor %vm1438, %vm1439
      %v1441 = vsel %vm1440, %v1433, %v1437
      %v1442 = vand.u32 2147483647, %v1079
      %vm1443 = vcmp.eq.f32.partialorder %v1442, 8.507059e+37
      %v1444 = vand.u32 %v1079, 2147483648
      %v1445 = vor.u32 1.1754944e-38, %v1444
      %v1446 = vsel %vm1443, %v1445, %v1441
      %v1447 = vmul.f32 1.0, %v1446
      %v1448 = vrcp.pop %v1080
      %v1449 = vmul.f32 %v1080, %v1448
      %v1450 = vsub.f32 1.0, %v1449
      %v1451 = vmul.f32 %v1448, %v1450
      %v1452 = vadd.f32 %v1448, %v1451
      %vm1453 = vweird.f32 %v1080
      %vm1454 = vweird.f32 %v1448
      %vm1455 = vmor %vm1453, %vm1454
      %v1456 = vsel %vm1455, %v1448, %v1452
      %v1457 = vand.u32 2147483647, %v1080
      %vm1458 = vcmp.eq.f32.partialorder %v1457, 8.507059e+37
      %v1459 = vand.u32 %v1080, 2147483648
      %v1460 = vor.u32 1.1754944e-38, %v1459
      %v1461 = vsel %vm1458, %v1460, %v1456
      %v1462 = vmul.f32 1.0, %v1461
      %v1463 = vrcp.pop %v1081
      %v1464 = vmul.f32 %v1081, %v1463
      %v1465 = vsub.f32 1.0, %v1464
      %v1466 = vmul.f32 %v1463, %v1465
      %v1467 = vadd.f32 %v1463, %v1466
      %vm1468 = vweird.f32 %v1081
      %vm1469 = vweird.f32 %v1463
      %vm1470 = vmor %vm1468, %vm1469
      %v1471 = vsel %vm1470, %v1463, %v1467
      %v1472 = vand.u32 2147483647, %v1081
      %vm1473 = vcmp.eq.f32.partialorder %v1472, 8.507059e+37
      %v1474 = vand.u32 %v1081, 2147483648
      %v1475 = vor.u32 1.1754944e-38, %v1474
      %v1476 = vsel %vm1473, %v1475, %v1471
      %v1477 = vmul.f32 1.0, %v1476
      %v1478 = vrcp.pop %v1082
      %v1479 = vmul.f32 %v1082, %v1478
      %v1480 = vsub.f32 1.0, %v1479
      %v1481 = vmul.f32 %v1478, %v1480
      %v1482 = vadd.f32 %v1478, %v1481
      %vm1483 = vweird.f32 %v1082
      %vm1484 = vweird.f32 %v1478
      %vm1485 = vmor %vm1483, %vm1484
      %v1486 = vsel %vm1485, %v1478, %v1482
      %v1487 = vand.u32 2147483647, %v1082
      %vm1488 = vcmp.eq.f32.partialorder %v1487, 8.507059e+37
      %v1489 = vand.u32 %v1082, 2147483648
      %v1490 = vor.u32 1.1754944e-38, %v1489
      %v1491 = vsel %vm1488, %v1490, %v1486
      %v1492 = vmul.f32 1.0, %v1491
      %v1493 = vrcp.pop %v1083
      %v1494 = vmul.f32 %v1083, %v1493
      %v1495 = vsub.f32 1.0, %v1494
      %v1496 = vmul.f32 %v1493, %v1495
      %v1497 = vadd.f32 %v1493, %v1496
      %vm1498 = vweird.f32 %v1083
      %vm1499 = vweird.f32 %v1493
      %vm1500 = vmor %vm1498, %vm1499
      %v1501 = vsel %vm1500, %v1493, %v1497
      %v1502 = vand.u32 2147483647, %v1083
      %vm1503 = vcmp.eq.f32.partialorder %v1502, 8.507059e+37
      %v1504 = vand.u32 %v1083, 2147483648
      %v1505 = vor.u32 1.1754944e-38, %v1504
      %v1506 = vsel %vm1503, %v1505, %v1501
      %v1507 = vmul.f32 1.0, %v1506
      %v1508 = vrcp.pop %v1084
      %v1509 = vmul.f32 %v1084, %v1508
      %v1510 = vsub.f32 1.0, %v1509
      %v1511 = vmul.f32 %v1508, %v1510
      %v1512 = vadd.f32 %v1508, %v1511
      %vm1513 = vweird.f32 %v1084
      %vm1514 = vweird.f32 %v1508
      %vm1515 = vmor %vm1513, %vm1514
      %v1516 = vsel %vm1515, %v1508, %v1512
      %v1517 = vand.u32 2147483647, %v1084
      %vm1518 = vcmp.eq.f32.partialorder %v1517, 8.507059e+37
      %v1519 = vand.u32 %v1084, 2147483648
      %v1520 = vor.u32 1.1754944e-38, %v1519
      %v1521 = vsel %vm1518, %v1520, %v1516
      %v1522 = vmul.f32 1.0, %v1521
      %v1523 = vrcp.pop %v1085
      %v1524 = vmul.f32 %v1085, %v1523
      %v1525 = vsub.f32 1.0, %v1524
      %v1526 = vmul.f32 %v1523, %v1525
      %v1527 = vadd.f32 %v1523, %v1526
      %vm1528 = vweird.f32 %v1085
      %vm1529 = vweird.f32 %v1523
      %vm1530 = vmor %vm1528, %vm1529
      %v1531 = vsel %vm1530, %v1523, %v1527
      %v1532 = vand.u32 2147483647, %v1085
      %vm1533 = vcmp.eq.f32.partialorder %v1532, 8.507059e+37
      %v1534 = vand.u32 %v1085, 2147483648
      %v1535 = vor.u32 1.1754944e-38, %v1534
      %v1536 = vsel %vm1533, %v1535, %v1531
      %v1537 = vmul.f32 1.0, %v1536
      %v1538 = vrcp.pop %v1086
      %v1539 = vmul.f32 %v1086, %v1538
      %v1540 = vsub.f32 1.0, %v1539
      %v1541 = vmul.f32 %v1538, %v1540
      %v1542 = vadd.f32 %v1538, %v1541
      %vm1543 = vweird.f32 %v1086
      %vm1544 = vweird.f32 %v1538
      %vm1545 = vmor %vm1543, %vm1544
      %v1546 = vsel %vm1545, %v1538, %v1542
      %v1547 = vand.u32 2147483647, %v1086
      %vm1548 = vcmp.eq.f32.partialorder %v1547, 8.507059e+37
      %v1549 = vand.u32 %v1086, 2147483648
      %v1550 = vor.u32 1.1754944e-38, %v1549
      %v1551 = vsel %vm1548, %v1550, %v1546
      %v1552 = vmul.f32 1.0, %v1551
      %v1553 = vrcp.pop %v1087
      %v1554 = vmul.f32 %v1087, %v1553
      %v1555 = vsub.f32 1.0, %v1554
      %v1556 = vmul.f32 %v1553, %v1555
      %v1557 = vadd.f32 %v1553, %v1556
      %vm1558 = vweird.f32 %v1087
      %vm1559 = vweird.f32 %v1553
      %vm1560 = vmor %vm1558, %vm1559
      %v1561 = vsel %vm1560, %v1553, %v1557
      %v1562 = vand.u32 2147483647, %v1087
      %vm1563 = vcmp.eq.f32.partialorder %v1562, 8.507059e+37
      %v1564 = vand.u32 %v1087, 2147483648
      %v1565 = vor.u32 1.1754944e-38, %v1564
      %v1566 = vsel %vm1563, %v1565, %v1561
      %v1567 = vmul.f32 1.0, %v1566
      %v1568 = vld [vmem:[%s394] sm:$0xff]
      %v1569 = vld [vmem:[%s394 + $0x8] sm:$0xff]
      %v1570 = vld [vmem:[%s394 + $0x10] sm:$0xff]
      %v1571 = vld [vmem:[%s394 + $0x18] sm:$0xff]
      %v1572 = vld [vmem:[%s394 + $0x20] sm:$0xff]
      %v1573 = vld [vmem:[%s394 + $0x28] sm:$0xff]
      %v1574 = vld [vmem:[%s394 + $0x30] sm:$0xff]
      %v1575 = vld [vmem:[%s394 + $0x38] sm:$0xff]
      %v1576 = vld [vmem:[%s394 + $0x40] sm:$0xff]
      %v1577 = vld [vmem:[%s394 + $0x48] sm:$0xff]
      %v1578 = vld [vmem:[%s394 + $0x50] sm:$0xff]
      %v1579 = vld [vmem:[%s394 + $0x58] sm:$0xff]
      %v1580 = vld [vmem:[%s394 + $0x60] sm:$0xff]
      %v1581 = vld [vmem:[%s394 + $0x68] sm:$0xff]
      %v1582 = vld [vmem:[%s394 + $0x70] sm:$0xff]
      %v1583 = vld [vmem:[%s394 + $0x78] sm:$0xff]
      %v1584 = vld [vmem:[%s394 + $0x80] sm:$0xff]
      %v1585 = vld [vmem:[%s394 + $0x88] sm:$0xff]
      %v1586 = vld [vmem:[%s394 + $0x90] sm:$0xff]
      %v1587 = vld [vmem:[%s394 + $0x98] sm:$0xff]
      %v1588 = vld [vmem:[%s394 + $0xa0] sm:$0xff]
      %v1589 = vld [vmem:[%s394 + $0xa8] sm:$0xff]
      %v1590 = vld [vmem:[%s394 + $0xb0] sm:$0xff]
      %v1591 = vld [vmem:[%s394 + $0xb8] sm:$0xff]
      %v1592 = vld [vmem:[%s394 + $0xc0] sm:$0xff]
      %v1593 = vld [vmem:[%s394 + $0xc8] sm:$0xff]
      %v1594 = vld [vmem:[%s394 + $0xd0] sm:$0xff]
      %v1595 = vld [vmem:[%s394 + $0xd8] sm:$0xff]
      %v1596 = vld [vmem:[%s394 + $0xe0] sm:$0xff]
      %v1597 = vld [vmem:[%s394 + $0xe8] sm:$0xff]
      %v1598 = vld [vmem:[%s394 + $0xf0] sm:$0xff]
      %v1599 = vld [vmem:[%s394 + $0xf8] sm:$0xff]
      %v1600 = vmul.f32 %v832, %v1568
      %v1601 = vmul.f32 %v833, %v1569
      %v1602 = vmul.f32 %v834, %v1570
      %v1603 = vmul.f32 %v835, %v1571
      %v1604 = vmul.f32 %v836, %v1572
      %v1605 = vmul.f32 %v837, %v1573
      %v1606 = vmul.f32 %v838, %v1574
      %v1607 = vmul.f32 %v839, %v1575
      %v1608 = vmul.f32 %v840, %v1576
      %v1609 = vmul.f32 %v841, %v1577
      %v1610 = vmul.f32 %v842, %v1578
      %v1611 = vmul.f32 %v843, %v1579
      %v1612 = vmul.f32 %v844, %v1580
      %v1613 = vmul.f32 %v845, %v1581
      %v1614 = vmul.f32 %v846, %v1582
      %v1615 = vmul.f32 %v847, %v1583
      %v1616 = vmul.f32 %v848, %v1584
      %v1617 = vmul.f32 %v849, %v1585
      %v1618 = vmul.f32 %v850, %v1586
      %v1619 = vmul.f32 %v851, %v1587
      %v1620 = vmul.f32 %v852, %v1588
      %v1621 = vmul.f32 %v853, %v1589
      %v1622 = vmul.f32 %v854, %v1590
      %v1623 = vmul.f32 %v855, %v1591
      %v1624 = vmul.f32 %v856, %v1592
      %v1625 = vmul.f32 %v857, %v1593
      %v1626 = vmul.f32 %v858, %v1594
      %v1627 = vmul.f32 %v859, %v1595
      %v1628 = vmul.f32 %v860, %v1596
      %v1629 = vmul.f32 %v861, %v1597
      %v1630 = vmul.f32 %v862, %v1598
      %v1631 = vmul.f32 %v863, %v1599
      %1664 = vrot.lane.b32.xlu0 %v1600, 16
      %v1665 = vpop.permute.xlu0 %1664
      %1666 = vrot.lane.b32.xlu0 %v1601, 16
      %v1667 = vpop.permute.xlu0 %1666
      %1668 = vrot.lane.b32.xlu0 %v1602, 16
      %v1669 = vpop.permute.xlu0 %1668
      %1670 = vrot.lane.b32.xlu0 %v1603, 16
      %v1671 = vpop.permute.xlu0 %1670
      %1672 = vrot.lane.b32.xlu0 %v1604, 16
      %v1673 = vpop.permute.xlu0 %1672
      %1674 = vrot.lane.b32.xlu0 %v1605, 16
      %v1675 = vpop.permute.xlu0 %1674
      %1676 = vrot.lane.b32.xlu0 %v1606, 16
      %v1677 = vpop.permute.xlu0 %1676
      %1678 = vrot.lane.b32.xlu0 %v1607, 16
      %v1679 = vpop.permute.xlu0 %1678
      %1680 = vrot.lane.b32.xlu0 %v1608, 16
      %v1681 = vpop.permute.xlu0 %1680
      %1682 = vrot.lane.b32.xlu0 %v1609, 16
      %v1683 = vpop.permute.xlu0 %1682
      %1684 = vrot.lane.b32.xlu0 %v1610, 16
      %v1685 = vpop.permute.xlu0 %1684
      %1686 = vrot.lane.b32.xlu0 %v1611, 16
      %v1687 = vpop.permute.xlu0 %1686
      %1688 = vrot.lane.b32.xlu0 %v1612, 16
      %v1689 = vpop.permute.xlu0 %1688
      %1690 = vrot.lane.b32.xlu0 %v1613, 16
      %v1691 = vpop.permute.xlu0 %1690
      %1692 = vrot.lane.b32.xlu0 %v1614, 16
      %v1693 = vpop.permute.xlu0 %1692
      %1694 = vrot.lane.b32.xlu0 %v1615, 16
      %v1695 = vpop.permute.xlu0 %1694
      %1696 = vrot.lane.b32.xlu0 %v1616, 16
      %v1697 = vpop.permute.xlu0 %1696
      %1698 = vrot.lane.b32.xlu0 %v1617, 16
      %v1699 = vpop.permute.xlu0 %1698
      %1700 = vrot.lane.b32.xlu0 %v1618, 16
      %v1701 = vpop.permute.xlu0 %1700
      %1702 = vrot.lane.b32.xlu0 %v1619, 16
      %v1703 = vpop.permute.xlu0 %1702
      %1704 = vrot.lane.b32.xlu0 %v1620, 16
      %v1705 = vpop.permute.xlu0 %1704
      %1706 = vrot.lane.b32.xlu0 %v1621, 16
      %v1707 = vpop.permute.xlu0 %1706
      %1708 = vrot.lane.b32.xlu0 %v1622, 16
      %v1709 = vpop.permute.xlu0 %1708
      %1710 = vrot.lane.b32.xlu0 %v1623, 16
      %v1711 = vpop.permute.xlu0 %1710
      %1712 = vrot.lane.b32.xlu0 %v1624, 16
      %v1713 = vpop.permute.xlu0 %1712
      %1714 = vrot.lane.b32.xlu0 %v1625, 16
      %v1715 = vpop.permute.xlu0 %1714
      %1716 = vrot.lane.b32.xlu0 %v1626, 16
      %v1717 = vpop.permute.xlu0 %1716
      %1718 = vrot.lane.b32.xlu0 %v1627, 16
      %v1719 = vpop.permute.xlu0 %1718
      %1720 = vrot.lane.b32.xlu0 %v1628, 16
      %v1721 = vpop.permute.xlu0 %1720
      %1722 = vrot.lane.b32.xlu0 %v1629, 16
      %v1723 = vpop.permute.xlu0 %1722
      %1724 = vrot.lane.b32.xlu0 %v1630, 16
      %v1725 = vpop.permute.xlu0 %1724
      %1726 = vrot.lane.b32.xlu0 %v1631, 16
      %v1727 = vpop.permute.xlu0 %1726
      %v1760 = vadd.f32 %v737, %v1665
      %v1761 = vadd.f32 %v740, %v1667
      %v1762 = vadd.f32 %v743, %v1669
      %v1763 = vadd.f32 %v746, %v1671
      %v1764 = vadd.f32 %v749, %v1673
      %v1765 = vadd.f32 %v752, %v1675
      %v1766 = vadd.f32 %v755, %v1677
      %v1767 = vadd.f32 %v758, %v1679
      %v1768 = vadd.f32 %v761, %v1681
      %v1769 = vadd.f32 %v764, %v1683
      %v1770 = vadd.f32 %v767, %v1685
      %v1771 = vadd.f32 %v770, %v1687
      %v1772 = vadd.f32 %v773, %v1689
      %v1773 = vadd.f32 %v776, %v1691
      %v1774 = vadd.f32 %v779, %v1693
      %v1775 = vadd.f32 %v782, %v1695
      %v1776 = vadd.f32 %v785, %v1697
      %v1777 = vadd.f32 %v788, %v1699
      %v1778 = vadd.f32 %v791, %v1701
      %v1779 = vadd.f32 %v794, %v1703
      %v1780 = vadd.f32 %v797, %v1705
      %v1781 = vadd.f32 %v800, %v1707
      %v1782 = vadd.f32 %v803, %v1709
      %v1783 = vadd.f32 %v806, %v1711
      %v1784 = vadd.f32 %v809, %v1713
      %v1785 = vadd.f32 %v812, %v1715
      %v1786 = vadd.f32 %v815, %v1717
      %v1787 = vadd.f32 %v818, %v1719
      %v1788 = vadd.f32 %v821, %v1721
      %v1789 = vadd.f32 %v824, %v1723
      %v1790 = vadd.f32 %v827, %v1725
      %v1791 = vadd.f32 %v830, %v1727
      %v1792 = vxor.u32 %v1760, 2147483648
      %v1793 = vxor.u32 %v1761, 2147483648
      %v1794 = vxor.u32 %v1762, 2147483648
      %v1795 = vxor.u32 %v1763, 2147483648
      %v1796 = vxor.u32 %v1764, 2147483648
      %v1797 = vxor.u32 %v1765, 2147483648
      %v1798 = vxor.u32 %v1766, 2147483648
      %v1799 = vxor.u32 %v1767, 2147483648
      %v1800 = vxor.u32 %v1768, 2147483648
      %v1801 = vxor.u32 %v1769, 2147483648
      %v1802 = vxor.u32 %v1770, 2147483648
      %v1803 = vxor.u32 %v1771, 2147483648
      %v1804 = vxor.u32 %v1772, 2147483648
      %v1805 = vxor.u32 %v1773, 2147483648
      %v1806 = vxor.u32 %v1774, 2147483648
      %v1807 = vxor.u32 %v1775, 2147483648
      %v1808 = vxor.u32 %v1776, 2147483648
      %v1809 = vxor.u32 %v1777, 2147483648
      %v1810 = vxor.u32 %v1778, 2147483648
      %v1811 = vxor.u32 %v1779, 2147483648
      %v1812 = vxor.u32 %v1780, 2147483648
      %v1813 = vxor.u32 %v1781, 2147483648
      %v1814 = vxor.u32 %v1782, 2147483648
      %v1815 = vxor.u32 %v1783, 2147483648
      %v1816 = vxor.u32 %v1784, 2147483648
      %v1817 = vxor.u32 %v1785, 2147483648
      %v1818 = vxor.u32 %v1786, 2147483648
      %v1819 = vxor.u32 %v1787, 2147483648
      %v1820 = vxor.u32 %v1788, 2147483648
      %v1821 = vxor.u32 %v1789, 2147483648
      %v1822 = vxor.u32 %v1790, 2147483648
      %v1823 = vxor.u32 %v1791, 2147483648
      %v1824 = vmul.f32 %v1792, 1.442695
      %v1825 = vpow.pop %v1824
      %v1826 = vmul.f32 %v1793, 1.442695
      %v1827 = vpow.pop %v1826
      %v1828 = vmul.f32 %v1794, 1.442695
      %v1829 = vpow.pop %v1828
      %v1830 = vmul.f32 %v1795, 1.442695
      %v1831 = vpow.pop %v1830
      %v1832 = vmul.f32 %v1796, 1.442695
      %v1833 = vpow.pop %v1832
      %v1834 = vmul.f32 %v1797, 1.442695
      %v1835 = vpow.pop %v1834
      %v1836 = vmul.f32 %v1798, 1.442695
      %v1837 = vpow.pop %v1836
      %v1838 = vmul.f32 %v1799, 1.442695
      %v1839 = vpow.pop %v1838
      %v1840 = vmul.f32 %v1800, 1.442695
      %v1841 = vpow.pop %v1840
      %v1842 = vmul.f32 %v1801, 1.442695
      %v1843 = vpow.pop %v1842
      %v1844 = vmul.f32 %v1802, 1.442695
      %v1845 = vpow.pop %v1844
      %v1846 = vmul.f32 %v1803, 1.442695
      %v1847 = vpow.pop %v1846
      %v1848 = vmul.f32 %v1804, 1.442695
      %v1849 = vpow.pop %v1848
      %v1850 = vmul.f32 %v1805, 1.442695
      %v1851 = vpow.pop %v1850
      %v1852 = vmul.f32 %v1806, 1.442695
      %v1853 = vpow.pop %v1852
      %v1854 = vmul.f32 %v1807, 1.442695
      %v1855 = vpow.pop %v1854
      %v1856 = vmul.f32 %v1808, 1.442695
      %v1857 = vpow.pop %v1856
      %v1858 = vmul.f32 %v1809, 1.442695
      %v1859 = vpow.pop %v1858
      %v1860 = vmul.f32 %v1810, 1.442695
      %v1861 = vpow.pop %v1860
      %v1862 = vmul.f32 %v1811, 1.442695
      %v1863 = vpow.pop %v1862
      %v1864 = vmul.f32 %v1812, 1.442695
      %v1865 = vpow.pop %v1864
      %v1866 = vmul.f32 %v1813, 1.442695
      %v1867 = vpow.pop %v1866
      %v1868 = vmul.f32 %v1814, 1.442695
      %v1869 = vpow.pop %v1868
      %v1870 = vmul.f32 %v1815, 1.442695
      %v1871 = vpow.pop %v1870
      %v1872 = vmul.f32 %v1816, 1.442695
      %v1873 = vpow.pop %v1872
      %v1874 = vmul.f32 %v1817, 1.442695
      %v1875 = vpow.pop %v1874
      %v1876 = vmul.f32 %v1818, 1.442695
      %v1877 = vpow.pop %v1876
      %v1878 = vmul.f32 %v1819, 1.442695
      %v1879 = vpow.pop %v1878
      %v1880 = vmul.f32 %v1820, 1.442695
      %v1881 = vpow.pop %v1880
      %v1882 = vmul.f32 %v1821, 1.442695
      %v1883 = vpow.pop %v1882
      %v1884 = vmul.f32 %v1822, 1.442695
      %v1885 = vpow.pop %v1884
      %v1886 = vmul.f32 %v1823, 1.442695
      %v1887 = vpow.pop %v1886
      %v1888 = vadd.f32 %v1825, 1.0
      %v1889 = vadd.f32 %v1827, 1.0
      %v1890 = vadd.f32 %v1829, 1.0
      %v1891 = vadd.f32 %v1831, 1.0
      %v1892 = vadd.f32 %v1833, 1.0
      %v1893 = vadd.f32 %v1835, 1.0
      %v1894 = vadd.f32 %v1837, 1.0
      %v1895 = vadd.f32 %v1839, 1.0
      %v1896 = vadd.f32 %v1841, 1.0
      %v1897 = vadd.f32 %v1843, 1.0
      %v1898 = vadd.f32 %v1845, 1.0
      %v1899 = vadd.f32 %v1847, 1.0
      %v1900 = vadd.f32 %v1849, 1.0
      %v1901 = vadd.f32 %v1851, 1.0
      %v1902 = vadd.f32 %v1853, 1.0
      %v1903 = vadd.f32 %v1855, 1.0
      %v1904 = vadd.f32 %v1857, 1.0
      %v1905 = vadd.f32 %v1859, 1.0
      %v1906 = vadd.f32 %v1861, 1.0
      %v1907 = vadd.f32 %v1863, 1.0
      %v1908 = vadd.f32 %v1865, 1.0
      %v1909 = vadd.f32 %v1867, 1.0
      %v1910 = vadd.f32 %v1869, 1.0
      %v1911 = vadd.f32 %v1871, 1.0
      %v1912 = vadd.f32 %v1873, 1.0
      %v1913 = vadd.f32 %v1875, 1.0
      %v1914 = vadd.f32 %v1877, 1.0
      %v1915 = vadd.f32 %v1879, 1.0
      %v1916 = vadd.f32 %v1881, 1.0
      %v1917 = vadd.f32 %v1883, 1.0
      %v1918 = vadd.f32 %v1885, 1.0
      %v1919 = vadd.f32 %v1887, 1.0
      %v1920 = vrcp.pop %v1888
      %v1921 = vmul.f32 %v1888, %v1920
      %v1922 = vsub.f32 1.0, %v1921
      %v1923 = vmul.f32 %v1920, %v1922
      %v1924 = vadd.f32 %v1920, %v1923
      %vm1925 = vweird.f32 %v1888
      %vm1926 = vweird.f32 %v1920
      %vm1927 = vmor %vm1925, %vm1926
      %v1928 = vsel %vm1927, %v1920, %v1924
      %v1929 = vand.u32 2147483647, %v1888
      %vm1930 = vcmp.eq.f32.partialorder %v1929, 8.507059e+37
      %v1931 = vand.u32 %v1888, 2147483648
      %v1932 = vor.u32 1.1754944e-38, %v1931
      %v1933 = vsel %vm1930, %v1932, %v1928
      %v1934 = vmul.f32 1.0, %v1933
      %v1935 = vrcp.pop %v1889
      %v1936 = vmul.f32 %v1889, %v1935
      %v1937 = vsub.f32 1.0, %v1936
      %v1938 = vmul.f32 %v1935, %v1937
      %v1939 = vadd.f32 %v1935, %v1938
      %vm1940 = vweird.f32 %v1889
      %vm1941 = vweird.f32 %v1935
      %vm1942 = vmor %vm1940, %vm1941
      %v1943 = vsel %vm1942, %v1935, %v1939
      %v1944 = vand.u32 2147483647, %v1889
      %vm1945 = vcmp.eq.f32.partialorder %v1944, 8.507059e+37
      %v1946 = vand.u32 %v1889, 2147483648
      %v1947 = vor.u32 1.1754944e-38, %v1946
      %v1948 = vsel %vm1945, %v1947, %v1943
      %v1949 = vmul.f32 1.0, %v1948
      %v1950 = vrcp.pop %v1890
      %v1951 = vmul.f32 %v1890, %v1950
      %v1952 = vsub.f32 1.0, %v1951
      %v1953 = vmul.f32 %v1950, %v1952
      %v1954 = vadd.f32 %v1950, %v1953
      %vm1955 = vweird.f32 %v1890
      %vm1956 = vweird.f32 %v1950
      %vm1957 = vmor %vm1955, %vm1956
      %v1958 = vsel %vm1957, %v1950, %v1954
      %v1959 = vand.u32 2147483647, %v1890
      %vm1960 = vcmp.eq.f32.partialorder %v1959, 8.507059e+37
      %v1961 = vand.u32 %v1890, 2147483648
      %v1962 = vor.u32 1.1754944e-38, %v1961
      %v1963 = vsel %vm1960, %v1962, %v1958
      %v1964 = vmul.f32 1.0, %v1963
      %v1965 = vrcp.pop %v1891
      %v1966 = vmul.f32 %v1891, %v1965
      %v1967 = vsub.f32 1.0, %v1966
      %v1968 = vmul.f32 %v1965, %v1967
      %v1969 = vadd.f32 %v1965, %v1968
      %vm1970 = vweird.f32 %v1891
      %vm1971 = vweird.f32 %v1965
      %vm1972 = vmor %vm1970, %vm1971
      %v1973 = vsel %vm1972, %v1965, %v1969
      %v1974 = vand.u32 2147483647, %v1891
      %vm1975 = vcmp.eq.f32.partialorder %v1974, 8.507059e+37
      %v1976 = vand.u32 %v1891, 2147483648
      %v1977 = vor.u32 1.1754944e-38, %v1976
      %v1978 = vsel %vm1975, %v1977, %v1973
      %v1979 = vmul.f32 1.0, %v1978
      %v1980 = vrcp.pop %v1892
      %v1981 = vmul.f32 %v1892, %v1980
      %v1982 = vsub.f32 1.0, %v1981
      %v1983 = vmul.f32 %v1980, %v1982
      %v1984 = vadd.f32 %v1980, %v1983
      %vm1985 = vweird.f32 %v1892
      %vm1986 = vweird.f32 %v1980
      %vm1987 = vmor %vm1985, %vm1986
      %v1988 = vsel %vm1987, %v1980, %v1984
      %v1989 = vand.u32 2147483647, %v1892
      %vm1990 = vcmp.eq.f32.partialorder %v1989, 8.507059e+37
      %v1991 = vand.u32 %v1892, 2147483648
      %v1992 = vor.u32 1.1754944e-38, %v1991
      %v1993 = vsel %vm1990, %v1992, %v1988
      %v1994 = vmul.f32 1.0, %v1993
      %v1995 = vrcp.pop %v1893
      %v1996 = vmul.f32 %v1893, %v1995
      %v1997 = vsub.f32 1.0, %v1996
      %v1998 = vmul.f32 %v1995, %v1997
      %v1999 = vadd.f32 %v1995, %v1998
      %vm2000 = vweird.f32 %v1893
      %vm2001 = vweird.f32 %v1995
      %vm2002 = vmor %vm2000, %vm2001
      %v2003 = vsel %vm2002, %v1995, %v1999
      %v2004 = vand.u32 2147483647, %v1893
      %vm2005 = vcmp.eq.f32.partialorder %v2004, 8.507059e+37
      %v2006 = vand.u32 %v1893, 2147483648
      %v2007 = vor.u32 1.1754944e-38, %v2006
      %v2008 = vsel %vm2005, %v2007, %v2003
      %v2009 = vmul.f32 1.0, %v2008
      %v2010 = vrcp.pop %v1894
      %v2011 = vmul.f32 %v1894, %v2010
      %v2012 = vsub.f32 1.0, %v2011
      %v2013 = vmul.f32 %v2010, %v2012
      %v2014 = vadd.f32 %v2010, %v2013
      %vm2015 = vweird.f32 %v1894
      %vm2016 = vweird.f32 %v2010
      %vm2017 = vmor %vm2015, %vm2016
      %v2018 = vsel %vm2017, %v2010, %v2014
      %v2019 = vand.u32 2147483647, %v1894
      %vm2020 = vcmp.eq.f32.partialorder %v2019, 8.507059e+37
      %v2021 = vand.u32 %v1894, 2147483648
      %v2022 = vor.u32 1.1754944e-38, %v2021
      %v2023 = vsel %vm2020, %v2022, %v2018
      %v2024 = vmul.f32 1.0, %v2023
      %v2025 = vrcp.pop %v1895
      %v2026 = vmul.f32 %v1895, %v2025
      %v2027 = vsub.f32 1.0, %v2026
      %v2028 = vmul.f32 %v2025, %v2027
      %v2029 = vadd.f32 %v2025, %v2028
      %vm2030 = vweird.f32 %v1895
      %vm2031 = vweird.f32 %v2025
      %vm2032 = vmor %vm2030, %vm2031
      %v2033 = vsel %vm2032, %v2025, %v2029
      %v2034 = vand.u32 2147483647, %v1895
      %vm2035 = vcmp.eq.f32.partialorder %v2034, 8.507059e+37
      %v2036 = vand.u32 %v1895, 2147483648
      %v2037 = vor.u32 1.1754944e-38, %v2036
      %v2038 = vsel %vm2035, %v2037, %v2033
      %v2039 = vmul.f32 1.0, %v2038
      %v2040 = vrcp.pop %v1896
      %v2041 = vmul.f32 %v1896, %v2040
      %v2042 = vsub.f32 1.0, %v2041
      %v2043 = vmul.f32 %v2040, %v2042
      %v2044 = vadd.f32 %v2040, %v2043
      %vm2045 = vweird.f32 %v1896
      %vm2046 = vweird.f32 %v2040
      %vm2047 = vmor %vm2045, %vm2046
      %v2048 = vsel %vm2047, %v2040, %v2044
      %v2049 = vand.u32 2147483647, %v1896
      %vm2050 = vcmp.eq.f32.partialorder %v2049, 8.507059e+37
      %v2051 = vand.u32 %v1896, 2147483648
      %v2052 = vor.u32 1.1754944e-38, %v2051
      %v2053 = vsel %vm2050, %v2052, %v2048
      %v2054 = vmul.f32 1.0, %v2053
      %v2055 = vrcp.pop %v1897
      %v2056 = vmul.f32 %v1897, %v2055
      %v2057 = vsub.f32 1.0, %v2056
      %v2058 = vmul.f32 %v2055, %v2057
      %v2059 = vadd.f32 %v2055, %v2058
      %vm2060 = vweird.f32 %v1897
      %vm2061 = vweird.f32 %v2055
      %vm2062 = vmor %vm2060, %vm2061
      %v2063 = vsel %vm2062, %v2055, %v2059
      %v2064 = vand.u32 2147483647, %v1897
      %vm2065 = vcmp.eq.f32.partialorder %v2064, 8.507059e+37
      %v2066 = vand.u32 %v1897, 2147483648
      %v2067 = vor.u32 1.1754944e-38, %v2066
      %v2068 = vsel %vm2065, %v2067, %v2063
      %v2069 = vmul.f32 1.0, %v2068
      %v2070 = vrcp.pop %v1898
      %v2071 = vmul.f32 %v1898, %v2070
      %v2072 = vsub.f32 1.0, %v2071
      %v2073 = vmul.f32 %v2070, %v2072
      %v2074 = vadd.f32 %v2070, %v2073
      %vm2075 = vweird.f32 %v1898
      %vm2076 = vweird.f32 %v2070
      %vm2077 = vmor %vm2075, %vm2076
      %v2078 = vsel %vm2077, %v2070, %v2074
      %v2079 = vand.u32 2147483647, %v1898
      %vm2080 = vcmp.eq.f32.partialorder %v2079, 8.507059e+37
      %v2081 = vand.u32 %v1898, 2147483648
      %v2082 = vor.u32 1.1754944e-38, %v2081
      %v2083 = vsel %vm2080, %v2082, %v2078
      %v2084 = vmul.f32 1.0, %v2083
      %v2085 = vrcp.pop %v1899
      %v2086 = vmul.f32 %v1899, %v2085
      %v2087 = vsub.f32 1.0, %v2086
      %v2088 = vmul.f32 %v2085, %v2087
      %v2089 = vadd.f32 %v2085, %v2088
      %vm2090 = vweird.f32 %v1899
      %vm2091 = vweird.f32 %v2085
      %vm2092 = vmor %vm2090, %vm2091
      %v2093 = vsel %vm2092, %v2085, %v2089
      %v2094 = vand.u32 2147483647, %v1899
      %vm2095 = vcmp.eq.f32.partialorder %v2094, 8.507059e+37
      %v2096 = vand.u32 %v1899, 2147483648
      %v2097 = vor.u32 1.1754944e-38, %v2096
      %v2098 = vsel %vm2095, %v2097, %v2093
      %v2099 = vmul.f32 1.0, %v2098
      %v2100 = vrcp.pop %v1900
      %v2101 = vmul.f32 %v1900, %v2100
      %v2102 = vsub.f32 1.0, %v2101
      %v2103 = vmul.f32 %v2100, %v2102
      %v2104 = vadd.f32 %v2100, %v2103
      %vm2105 = vweird.f32 %v1900
      %vm2106 = vweird.f32 %v2100
      %vm2107 = vmor %vm2105, %vm2106
      %v2108 = vsel %vm2107, %v2100, %v2104
      %v2109 = vand.u32 2147483647, %v1900
      %vm2110 = vcmp.eq.f32.partialorder %v2109, 8.507059e+37
      %v2111 = vand.u32 %v1900, 2147483648
      %v2112 = vor.u32 1.1754944e-38, %v2111
      %v2113 = vsel %vm2110, %v2112, %v2108
      %v2114 = vmul.f32 1.0, %v2113
      %v2115 = vrcp.pop %v1901
      %v2116 = vmul.f32 %v1901, %v2115
      %v2117 = vsub.f32 1.0, %v2116
      %v2118 = vmul.f32 %v2115, %v2117
      %v2119 = vadd.f32 %v2115, %v2118
      %vm2120 = vweird.f32 %v1901
      %vm2121 = vweird.f32 %v2115
      %vm2122 = vmor %vm2120, %vm2121
      %v2123 = vsel %vm2122, %v2115, %v2119
      %v2124 = vand.u32 2147483647, %v1901
      %vm2125 = vcmp.eq.f32.partialorder %v2124, 8.507059e+37
      %v2126 = vand.u32 %v1901, 2147483648
      %v2127 = vor.u32 1.1754944e-38, %v2126
      %v2128 = vsel %vm2125, %v2127, %v2123
      %v2129 = vmul.f32 1.0, %v2128
      %v2130 = vrcp.pop %v1902
      %v2131 = vmul.f32 %v1902, %v2130
      %v2132 = vsub.f32 1.0, %v2131
      %v2133 = vmul.f32 %v2130, %v2132
      %v2134 = vadd.f32 %v2130, %v2133
      %vm2135 = vweird.f32 %v1902
      %vm2136 = vweird.f32 %v2130
      %vm2137 = vmor %vm2135, %vm2136
      %v2138 = vsel %vm2137, %v2130, %v2134
      %v2139 = vand.u32 2147483647, %v1902
      %vm2140 = vcmp.eq.f32.partialorder %v2139, 8.507059e+37
      %v2141 = vand.u32 %v1902, 2147483648
      %v2142 = vor.u32 1.1754944e-38, %v2141
      %v2143 = vsel %vm2140, %v2142, %v2138
      %v2144 = vmul.f32 1.0, %v2143
      %v2145 = vrcp.pop %v1903
      %v2146 = vmul.f32 %v1903, %v2145
      %v2147 = vsub.f32 1.0, %v2146
      %v2148 = vmul.f32 %v2145, %v2147
      %v2149 = vadd.f32 %v2145, %v2148
      %vm2150 = vweird.f32 %v1903
      %vm2151 = vweird.f32 %v2145
      %vm2152 = vmor %vm2150, %vm2151
      %v2153 = vsel %vm2152, %v2145, %v2149
      %v2154 = vand.u32 2147483647, %v1903
      %vm2155 = vcmp.eq.f32.partialorder %v2154, 8.507059e+37
      %v2156 = vand.u32 %v1903, 2147483648
      %v2157 = vor.u32 1.1754944e-38, %v2156
      %v2158 = vsel %vm2155, %v2157, %v2153
      %v2159 = vmul.f32 1.0, %v2158
      %v2160 = vrcp.pop %v1904
      %v2161 = vmul.f32 %v1904, %v2160
      %v2162 = vsub.f32 1.0, %v2161
      %v2163 = vmul.f32 %v2160, %v2162
      %v2164 = vadd.f32 %v2160, %v2163
      %vm2165 = vweird.f32 %v1904
      %vm2166 = vweird.f32 %v2160
      %vm2167 = vmor %vm2165, %vm2166
      %v2168 = vsel %vm2167, %v2160, %v2164
      %v2169 = vand.u32 2147483647, %v1904
      %vm2170 = vcmp.eq.f32.partialorder %v2169, 8.507059e+37
      %v2171 = vand.u32 %v1904, 2147483648
      %v2172 = vor.u32 1.1754944e-38, %v2171
      %v2173 = vsel %vm2170, %v2172, %v2168
      %v2174 = vmul.f32 1.0, %v2173
      %v2175 = vrcp.pop %v1905
      %v2176 = vmul.f32 %v1905, %v2175
      %v2177 = vsub.f32 1.0, %v2176
      %v2178 = vmul.f32 %v2175, %v2177
      %v2179 = vadd.f32 %v2175, %v2178
      %vm2180 = vweird.f32 %v1905
      %vm2181 = vweird.f32 %v2175
      %vm2182 = vmor %vm2180, %vm2181
      %v2183 = vsel %vm2182, %v2175, %v2179
      %v2184 = vand.u32 2147483647, %v1905
      %vm2185 = vcmp.eq.f32.partialorder %v2184, 8.507059e+37
      %v2186 = vand.u32 %v1905, 2147483648
      %v2187 = vor.u32 1.1754944e-38, %v2186
      %v2188 = vsel %vm2185, %v2187, %v2183
      %v2189 = vmul.f32 1.0, %v2188
      %v2190 = vrcp.pop %v1906
      %v2191 = vmul.f32 %v1906, %v2190
      %v2192 = vsub.f32 1.0, %v2191
      %v2193 = vmul.f32 %v2190, %v2192
      %v2194 = vadd.f32 %v2190, %v2193
      %vm2195 = vweird.f32 %v1906
      %vm2196 = vweird.f32 %v2190
      %vm2197 = vmor %vm2195, %vm2196
      %v2198 = vsel %vm2197, %v2190, %v2194
      %v2199 = vand.u32 2147483647, %v1906
      %vm2200 = vcmp.eq.f32.partialorder %v2199, 8.507059e+37
      %v2201 = vand.u32 %v1906, 2147483648
      %v2202 = vor.u32 1.1754944e-38, %v2201
      %v2203 = vsel %vm2200, %v2202, %v2198
      %v2204 = vmul.f32 1.0, %v2203
      %v2205 = vrcp.pop %v1907
      %v2206 = vmul.f32 %v1907, %v2205
      %v2207 = vsub.f32 1.0, %v2206
      %v2208 = vmul.f32 %v2205, %v2207
      %v2209 = vadd.f32 %v2205, %v2208
      %vm2210 = vweird.f32 %v1907
      %vm2211 = vweird.f32 %v2205
      %vm2212 = vmor %vm2210, %vm2211
      %v2213 = vsel %vm2212, %v2205, %v2209
      %v2214 = vand.u32 2147483647, %v1907
      %vm2215 = vcmp.eq.f32.partialorder %v2214, 8.507059e+37
      %v2216 = vand.u32 %v1907, 2147483648
      %v2217 = vor.u32 1.1754944e-38, %v2216
      %v2218 = vsel %vm2215, %v2217, %v2213
      %v2219 = vmul.f32 1.0, %v2218
      %v2220 = vrcp.pop %v1908
      %v2221 = vmul.f32 %v1908, %v2220
      %v2222 = vsub.f32 1.0, %v2221
      %v2223 = vmul.f32 %v2220, %v2222
      %v2224 = vadd.f32 %v2220, %v2223
      %vm2225 = vweird.f32 %v1908
      %vm2226 = vweird.f32 %v2220
      %vm2227 = vmor %vm2225, %vm2226
      %v2228 = vsel %vm2227, %v2220, %v2224
      %v2229 = vand.u32 2147483647, %v1908
      %vm2230 = vcmp.eq.f32.partialorder %v2229, 8.507059e+37
      %v2231 = vand.u32 %v1908, 2147483648
      %v2232 = vor.u32 1.1754944e-38, %v2231
      %v2233 = vsel %vm2230, %v2232, %v2228
      %v2234 = vmul.f32 1.0, %v2233
      %v2235 = vrcp.pop %v1909
      %v2236 = vmul.f32 %v1909, %v2235
      %v2237 = vsub.f32 1.0, %v2236
      %v2238 = vmul.f32 %v2235, %v2237
      %v2239 = vadd.f32 %v2235, %v2238
      %vm2240 = vweird.f32 %v1909
      %vm2241 = vweird.f32 %v2235
      %vm2242 = vmor %vm2240, %vm2241
      %v2243 = vsel %vm2242, %v2235, %v2239
      %v2244 = vand.u32 2147483647, %v1909
      %vm2245 = vcmp.eq.f32.partialorder %v2244, 8.507059e+37
      %v2246 = vand.u32 %v1909, 2147483648
      %v2247 = vor.u32 1.1754944e-38, %v2246
      %v2248 = vsel %vm2245, %v2247, %v2243
      %v2249 = vmul.f32 1.0, %v2248
      %v2250 = vrcp.pop %v1910
      %v2251 = vmul.f32 %v1910, %v2250
      %v2252 = vsub.f32 1.0, %v2251
      %v2253 = vmul.f32 %v2250, %v2252
      %v2254 = vadd.f32 %v2250, %v2253
      %vm2255 = vweird.f32 %v1910
      %vm2256 = vweird.f32 %v2250
      %vm2257 = vmor %vm2255, %vm2256
      %v2258 = vsel %vm2257, %v2250, %v2254
      %v2259 = vand.u32 2147483647, %v1910
      %vm2260 = vcmp.eq.f32.partialorder %v2259, 8.507059e+37
      %v2261 = vand.u32 %v1910, 2147483648
      %v2262 = vor.u32 1.1754944e-38, %v2261
      %v2263 = vsel %vm2260, %v2262, %v2258
      %v2264 = vmul.f32 1.0, %v2263
      %v2265 = vrcp.pop %v1911
      %v2266 = vmul.f32 %v1911, %v2265
      %v2267 = vsub.f32 1.0, %v2266
      %v2268 = vmul.f32 %v2265, %v2267
      %v2269 = vadd.f32 %v2265, %v2268
      %vm2270 = vweird.f32 %v1911
      %vm2271 = vweird.f32 %v2265
      %vm2272 = vmor %vm2270, %vm2271
      %v2273 = vsel %vm2272, %v2265, %v2269
      %v2274 = vand.u32 2147483647, %v1911
      %vm2275 = vcmp.eq.f32.partialorder %v2274, 8.507059e+37
      %v2276 = vand.u32 %v1911, 2147483648
      %v2277 = vor.u32 1.1754944e-38, %v2276
      %v2278 = vsel %vm2275, %v2277, %v2273
      %v2279 = vmul.f32 1.0, %v2278
      %v2280 = vrcp.pop %v1912
      %v2281 = vmul.f32 %v1912, %v2280
      %v2282 = vsub.f32 1.0, %v2281
      %v2283 = vmul.f32 %v2280, %v2282
      %v2284 = vadd.f32 %v2280, %v2283
      %vm2285 = vweird.f32 %v1912
      %vm2286 = vweird.f32 %v2280
      %vm2287 = vmor %vm2285, %vm2286
      %v2288 = vsel %vm2287, %v2280, %v2284
      %v2289 = vand.u32 2147483647, %v1912
      %vm2290 = vcmp.eq.f32.partialorder %v2289, 8.507059e+37
      %v2291 = vand.u32 %v1912, 2147483648
      %v2292 = vor.u32 1.1754944e-38, %v2291
      %v2293 = vsel %vm2290, %v2292, %v2288
      %v2294 = vmul.f32 1.0, %v2293
      %v2295 = vrcp.pop %v1913
      %v2296 = vmul.f32 %v1913, %v2295
      %v2297 = vsub.f32 1.0, %v2296
      %v2298 = vmul.f32 %v2295, %v2297
      %v2299 = vadd.f32 %v2295, %v2298
      %vm2300 = vweird.f32 %v1913
      %vm2301 = vweird.f32 %v2295
      %vm2302 = vmor %vm2300, %vm2301
      %v2303 = vsel %vm2302, %v2295, %v2299
      %v2304 = vand.u32 2147483647, %v1913
      %vm2305 = vcmp.eq.f32.partialorder %v2304, 8.507059e+37
      %v2306 = vand.u32 %v1913, 2147483648
      %v2307 = vor.u32 1.1754944e-38, %v2306
      %v2308 = vsel %vm2305, %v2307, %v2303
      %v2309 = vmul.f32 1.0, %v2308
      %v2310 = vrcp.pop %v1914
      %v2311 = vmul.f32 %v1914, %v2310
      %v2312 = vsub.f32 1.0, %v2311
      %v2313 = vmul.f32 %v2310, %v2312
      %v2314 = vadd.f32 %v2310, %v2313
      %vm2315 = vweird.f32 %v1914
      %vm2316 = vweird.f32 %v2310
      %vm2317 = vmor %vm2315, %vm2316
      %v2318 = vsel %vm2317, %v2310, %v2314
      %v2319 = vand.u32 2147483647, %v1914
      %vm2320 = vcmp.eq.f32.partialorder %v2319, 8.507059e+37
      %v2321 = vand.u32 %v1914, 2147483648
      %v2322 = vor.u32 1.1754944e-38, %v2321
      %v2323 = vsel %vm2320, %v2322, %v2318
      %v2324 = vmul.f32 1.0, %v2323
      %v2325 = vrcp.pop %v1915
      %v2326 = vmul.f32 %v1915, %v2325
      %v2327 = vsub.f32 1.0, %v2326
      %v2328 = vmul.f32 %v2325, %v2327
      %v2329 = vadd.f32 %v2325, %v2328
      %vm2330 = vweird.f32 %v1915
      %vm2331 = vweird.f32 %v2325
      %vm2332 = vmor %vm2330, %vm2331
      %v2333 = vsel %vm2332, %v2325, %v2329
      %v2334 = vand.u32 2147483647, %v1915
      %vm2335 = vcmp.eq.f32.partialorder %v2334, 8.507059e+37
      %v2336 = vand.u32 %v1915, 2147483648
      %v2337 = vor.u32 1.1754944e-38, %v2336
      %v2338 = vsel %vm2335, %v2337, %v2333
      %v2339 = vmul.f32 1.0, %v2338
      %v2340 = vrcp.pop %v1916
      %v2341 = vmul.f32 %v1916, %v2340
      %v2342 = vsub.f32 1.0, %v2341
      %v2343 = vmul.f32 %v2340, %v2342
      %v2344 = vadd.f32 %v2340, %v2343
      %vm2345 = vweird.f32 %v1916
      %vm2346 = vweird.f32 %v2340
      %vm2347 = vmor %vm2345, %vm2346
      %v2348 = vsel %vm2347, %v2340, %v2344
      %v2349 = vand.u32 2147483647, %v1916
      %vm2350 = vcmp.eq.f32.partialorder %v2349, 8.507059e+37
      %v2351 = vand.u32 %v1916, 2147483648
      %v2352 = vor.u32 1.1754944e-38, %v2351
      %v2353 = vsel %vm2350, %v2352, %v2348
      %v2354 = vmul.f32 1.0, %v2353
      %v2355 = vrcp.pop %v1917
      %v2356 = vmul.f32 %v1917, %v2355
      %v2357 = vsub.f32 1.0, %v2356
      %v2358 = vmul.f32 %v2355, %v2357
      %v2359 = vadd.f32 %v2355, %v2358
      %vm2360 = vweird.f32 %v1917
      %vm2361 = vweird.f32 %v2355
      %vm2362 = vmor %vm2360, %vm2361
      %v2363 = vsel %vm2362, %v2355, %v2359
      %v2364 = vand.u32 2147483647, %v1917
      %vm2365 = vcmp.eq.f32.partialorder %v2364, 8.507059e+37
      %v2366 = vand.u32 %v1917, 2147483648
      %v2367 = vor.u32 1.1754944e-38, %v2366
      %v2368 = vsel %vm2365, %v2367, %v2363
      %v2369 = vmul.f32 1.0, %v2368
      %v2370 = vrcp.pop %v1918
      %v2371 = vmul.f32 %v1918, %v2370
      %v2372 = vsub.f32 1.0, %v2371
      %v2373 = vmul.f32 %v2370, %v2372
      %v2374 = vadd.f32 %v2370, %v2373
      %vm2375 = vweird.f32 %v1918
      %vm2376 = vweird.f32 %v2370
      %vm2377 = vmor %vm2375, %vm2376
      %v2378 = vsel %vm2377, %v2370, %v2374
      %v2379 = vand.u32 2147483647, %v1918
      %vm2380 = vcmp.eq.f32.partialorder %v2379, 8.507059e+37
      %v2381 = vand.u32 %v1918, 2147483648
      %v2382 = vor.u32 1.1754944e-38, %v2381
      %v2383 = vsel %vm2380, %v2382, %v2378
      %v2384 = vmul.f32 1.0, %v2383
      %v2385 = vrcp.pop %v1919
      %v2386 = vmul.f32 %v1919, %v2385
      %v2387 = vsub.f32 1.0, %v2386
      %v2388 = vmul.f32 %v2385, %v2387
      %v2389 = vadd.f32 %v2385, %v2388
      %vm2390 = vweird.f32 %v1919
      %vm2391 = vweird.f32 %v2385
      %vm2392 = vmor %vm2390, %vm2391
      %v2393 = vsel %vm2392, %v2385, %v2389
      %v2394 = vand.u32 2147483647, %v1919
      %vm2395 = vcmp.eq.f32.partialorder %v2394, 8.507059e+37
      %v2396 = vand.u32 %v1919, 2147483648
      %v2397 = vor.u32 1.1754944e-38, %v2396
      %v2398 = vsel %vm2395, %v2397, %v2393
      %v2399 = vmul.f32 1.0, %v2398
      %v2400 = vtanh.pop %v737
      %v2401 = vtanh.pop %v740
      %v2402 = vtanh.pop %v743
      %v2403 = vtanh.pop %v746
      %v2404 = vtanh.pop %v749
      %v2405 = vtanh.pop %v752
      %v2406 = vtanh.pop %v755
      %v2407 = vtanh.pop %v758
      %v2408 = vtanh.pop %v761
      %v2409 = vtanh.pop %v764
      %v2410 = vtanh.pop %v767
      %v2411 = vtanh.pop %v770
      %v2412 = vtanh.pop %v773
      %v2413 = vtanh.pop %v776
      %v2414 = vtanh.pop %v779
      %v2415 = vtanh.pop %v782
      %v2416 = vtanh.pop %v785
      %v2417 = vtanh.pop %v788
      %v2418 = vtanh.pop %v791
      %v2419 = vtanh.pop %v794
      %v2420 = vtanh.pop %v797
      %v2421 = vtanh.pop %v800
      %v2422 = vtanh.pop %v803
      %v2423 = vtanh.pop %v806
      %v2424 = vtanh.pop %v809
      %v2425 = vtanh.pop %v812
      %v2426 = vtanh.pop %v815
      %v2427 = vtanh.pop %v818
      %v2428 = vtanh.pop %v821
      %v2429 = vtanh.pop %v824
      %v2430 = vtanh.pop %v827
      %v2431 = vtanh.pop %v830
      %v2432 = vmul.f32 %v1102, %v832
      %v2433 = vmul.f32 %v1117, %v833
      %v2434 = vmul.f32 %v1132, %v834
      %v2435 = vmul.f32 %v1147, %v835
      %v2436 = vmul.f32 %v1162, %v836
      %v2437 = vmul.f32 %v1177, %v837
      %v2438 = vmul.f32 %v1192, %v838
      %v2439 = vmul.f32 %v1207, %v839
      %v2440 = vmul.f32 %v1222, %v840
      %v2441 = vmul.f32 %v1237, %v841
      %v2442 = vmul.f32 %v1252, %v842
      %v2443 = vmul.f32 %v1267, %v843
      %v2444 = vmul.f32 %v1282, %v844
      %v2445 = vmul.f32 %v1297, %v845
      %v2446 = vmul.f32 %v1312, %v846
      %v2447 = vmul.f32 %v1327, %v847
      %v2448 = vmul.f32 %v1342, %v848
      %v2449 = vmul.f32 %v1357, %v849
      %v2450 = vmul.f32 %v1372, %v850
      %v2451 = vmul.f32 %v1387, %v851
      %v2452 = vmul.f32 %v1402, %v852
      %v2453 = vmul.f32 %v1417, %v853
      %v2454 = vmul.f32 %v1432, %v854
      %v2455 = vmul.f32 %v1447, %v855
      %v2456 = vmul.f32 %v1462, %v856
      %v2457 = vmul.f32 %v1477, %v857
      %v2458 = vmul.f32 %v1492, %v858
      %v2459 = vmul.f32 %v1507, %v859
      %v2460 = vmul.f32 %v1522, %v860
      %v2461 = vmul.f32 %v1537, %v861
      %v2462 = vmul.f32 %v1552, %v862
      %v2463 = vmul.f32 %v1567, %v863
      %2496 = vrot.lane.b32.xlu0 %v2400, 112
      %v2497 = vpop.permute.xlu0 %2496
      %2498 = vrot.lane.b32.xlu0 %v2401, 112
      %v2499 = vpop.permute.xlu0 %2498
      %2500 = vrot.lane.b32.xlu0 %v2402, 112
      %v2501 = vpop.permute.xlu0 %2500
      %2502 = vrot.lane.b32.xlu0 %v2403, 112
      %v2503 = vpop.permute.xlu0 %2502
      %2504 = vrot.lane.b32.xlu0 %v2404, 112
      %v2505 = vpop.permute.xlu0 %2504
      %2506 = vrot.lane.b32.xlu0 %v2405, 112
      %v2507 = vpop.permute.xlu0 %2506
      %2508 = vrot.lane.b32.xlu0 %v2406, 112
      %v2509 = vpop.permute.xlu0 %2508
      %2510 = vrot.lane.b32.xlu0 %v2407, 112
      %v2511 = vpop.permute.xlu0 %2510
      %2512 = vrot.lane.b32.xlu0 %v2408, 112
      %v2513 = vpop.permute.xlu0 %2512
      %2514 = vrot.lane.b32.xlu0 %v2409, 112
      %v2515 = vpop.permute.xlu0 %2514
      %2516 = vrot.lane.b32.xlu0 %v2410, 112
      %v2517 = vpop.permute.xlu0 %2516
      %2518 = vrot.lane.b32.xlu0 %v2411, 112
      %v2519 = vpop.permute.xlu0 %2518
      %2520 = vrot.lane.b32.xlu0 %v2412, 112
      %v2521 = vpop.permute.xlu0 %2520
      %2522 = vrot.lane.b32.xlu0 %v2413, 112
      %v2523 = vpop.permute.xlu0 %2522
      %2524 = vrot.lane.b32.xlu0 %v2414, 112
      %v2525 = vpop.permute.xlu0 %2524
      %2526 = vrot.lane.b32.xlu0 %v2415, 112
      %v2527 = vpop.permute.xlu0 %2526
      %2528 = vrot.lane.b32.xlu0 %v2416, 112
      %v2529 = vpop.permute.xlu0 %2528
      %2530 = vrot.lane.b32.xlu0 %v2417, 112
      %v2531 = vpop.permute.xlu0 %2530
      %2532 = vrot.lane.b32.xlu0 %v2418, 112
      %v2533 = vpop.permute.xlu0 %2532
      %2534 = vrot.lane.b32.xlu0 %v2419, 112
      %v2535 = vpop.permute.xlu0 %2534
      %2536 = vrot.lane.b32.xlu0 %v2420, 112
      %v2537 = vpop.permute.xlu0 %2536
      %2538 = vrot.lane.b32.xlu0 %v2421, 112
      %v2539 = vpop.permute.xlu0 %2538
      %2540 = vrot.lane.b32.xlu0 %v2422, 112
      %v2541 = vpop.permute.xlu0 %2540
      %2542 = vrot.lane.b32.xlu0 %v2423, 112
      %v2543 = vpop.permute.xlu0 %2542
      %2544 = vrot.lane.b32.xlu0 %v2424, 112
      %v2545 = vpop.permute.xlu0 %2544
      %2546 = vrot.lane.b32.xlu0 %v2425, 112
      %v2547 = vpop.permute.xlu0 %2546
      %2548 = vrot.lane.b32.xlu0 %v2426, 112
      %v2549 = vpop.permute.xlu0 %2548
      %2550 = vrot.lane.b32.xlu0 %v2427, 112
      %v2551 = vpop.permute.xlu0 %2550
      %2552 = vrot.lane.b32.xlu0 %v2428, 112
      %v2553 = vpop.permute.xlu0 %2552
      %2554 = vrot.lane.b32.xlu0 %v2429, 112
      %v2555 = vpop.permute.xlu0 %2554
      %2556 = vrot.lane.b32.xlu0 %v2430, 112
      %v2557 = vpop.permute.xlu0 %2556
      %2558 = vrot.lane.b32.xlu0 %v2431, 112
      %v2559 = vpop.permute.xlu0 %2558
      %v2592 = vmul.f32 %v1934, %v2497
      %v2593 = vmul.f32 %v1949, %v2499
      %v2594 = vmul.f32 %v1964, %v2501
      %v2595 = vmul.f32 %v1979, %v2503
      %v2596 = vmul.f32 %v1994, %v2505
      %v2597 = vmul.f32 %v2009, %v2507
      %v2598 = vmul.f32 %v2024, %v2509
      %v2599 = vmul.f32 %v2039, %v2511
      %v2600 = vmul.f32 %v2054, %v2513
      %v2601 = vmul.f32 %v2069, %v2515
      %v2602 = vmul.f32 %v2084, %v2517
      %v2603 = vmul.f32 %v2099, %v2519
      %v2604 = vmul.f32 %v2114, %v2521
      %v2605 = vmul.f32 %v2129, %v2523
      %v2606 = vmul.f32 %v2144, %v2525
      %v2607 = vmul.f32 %v2159, %v2527
      %v2608 = vmul.f32 %v2174, %v2529
      %v2609 = vmul.f32 %v2189, %v2531
      %v2610 = vmul.f32 %v2204, %v2533
      %v2611 = vmul.f32 %v2219, %v2535
      %v2612 = vmul.f32 %v2234, %v2537
      %v2613 = vmul.f32 %v2249, %v2539
      %v2614 = vmul.f32 %v2264, %v2541
      %v2615 = vmul.f32 %v2279, %v2543
      %v2616 = vmul.f32 %v2294, %v2545
      %v2617 = vmul.f32 %v2309, %v2547
      %v2618 = vmul.f32 %v2324, %v2549
      %v2619 = vmul.f32 %v2339, %v2551
      %v2620 = vmul.f32 %v2354, %v2553
      %v2621 = vmul.f32 %v2369, %v2555
      %v2622 = vmul.f32 %v2384, %v2557
      %v2623 = vmul.f32 %v2399, %v2559
      %2656 = vrot.lane.b32.xlu0 %v2592, 112
      %v2657 = vpop.permute.xlu0 %2656
      %2658 = vrot.lane.b32.xlu0 %v2593, 112
      %v2659 = vpop.permute.xlu0 %2658
      %2660 = vrot.lane.b32.xlu0 %v2594, 112
      %v2661 = vpop.permute.xlu0 %2660
      %2662 = vrot.lane.b32.xlu0 %v2595, 112
      %v2663 = vpop.permute.xlu0 %2662
      %2664 = vrot.lane.b32.xlu0 %v2596, 112
      %v2665 = vpop.permute.xlu0 %2664
      %2666 = vrot.lane.b32.xlu0 %v2597, 112
      %v2667 = vpop.permute.xlu0 %2666
      %2668 = vrot.lane.b32.xlu0 %v2598, 112
      %v2669 = vpop.permute.xlu0 %2668
      %2670 = vrot.lane.b32.xlu0 %v2599, 112
      %v2671 = vpop.permute.xlu0 %2670
      %2672 = vrot.lane.b32.xlu0 %v2600, 112
      %v2673 = vpop.permute.xlu0 %2672
      %2674 = vrot.lane.b32.xlu0 %v2601, 112
      %v2675 = vpop.permute.xlu0 %2674
      %2676 = vrot.lane.b32.xlu0 %v2602, 112
      %v2677 = vpop.permute.xlu0 %2676
      %2678 = vrot.lane.b32.xlu0 %v2603, 112
      %v2679 = vpop.permute.xlu0 %2678
      %2680 = vrot.lane.b32.xlu0 %v2604, 112
      %v2681 = vpop.permute.xlu0 %2680
      %2682 = vrot.lane.b32.xlu0 %v2605, 112
      %v2683 = vpop.permute.xlu0 %2682
      %2684 = vrot.lane.b32.xlu0 %v2606, 112
      %v2685 = vpop.permute.xlu0 %2684
      %2686 = vrot.lane.b32.xlu0 %v2607, 112
      %v2687 = vpop.permute.xlu0 %2686
      %2688 = vrot.lane.b32.xlu0 %v2608, 112
      %v2689 = vpop.permute.xlu0 %2688
      %2690 = vrot.lane.b32.xlu0 %v2609, 112
      %v2691 = vpop.permute.xlu0 %2690
      %2692 = vrot.lane.b32.xlu0 %v2610, 112
      %v2693 = vpop.permute.xlu0 %2692
      %2694 = vrot.lane.b32.xlu0 %v2611, 112
      %v2695 = vpop.permute.xlu0 %2694
      %2696 = vrot.lane.b32.xlu0 %v2612, 112
      %v2697 = vpop.permute.xlu0 %2696
      %2698 = vrot.lane.b32.xlu0 %v2613, 112
      %v2699 = vpop.permute.xlu0 %2698
      %2700 = vrot.lane.b32.xlu0 %v2614, 112
      %v2701 = vpop.permute.xlu0 %2700
      %2702 = vrot.lane.b32.xlu0 %v2615, 112
      %v2703 = vpop.permute.xlu0 %2702
      %2704 = vrot.lane.b32.xlu0 %v2616, 112
      %v2705 = vpop.permute.xlu0 %2704
      %2706 = vrot.lane.b32.xlu0 %v2617, 112
      %v2707 = vpop.permute.xlu0 %2706
      %2708 = vrot.lane.b32.xlu0 %v2618, 112
      %v2709 = vpop.permute.xlu0 %2708
      %2710 = vrot.lane.b32.xlu0 %v2619, 112
      %v2711 = vpop.permute.xlu0 %2710
      %2712 = vrot.lane.b32.xlu0 %v2620, 112
      %v2713 = vpop.permute.xlu0 %2712
      %2714 = vrot.lane.b32.xlu0 %v2621, 112
      %v2715 = vpop.permute.xlu0 %2714
      %2716 = vrot.lane.b32.xlu0 %v2622, 112
      %v2717 = vpop.permute.xlu0 %2716
      %2718 = vrot.lane.b32.xlu0 %v2623, 112
      %v2719 = vpop.permute.xlu0 %2718
      %v2752 = vadd.f32 %v2432, %v2657
      %v2753 = vadd.f32 %v2433, %v2659
      %v2754 = vadd.f32 %v2434, %v2661
      %v2755 = vadd.f32 %v2435, %v2663
      %v2756 = vadd.f32 %v2436, %v2665
      %v2757 = vadd.f32 %v2437, %v2667
      %v2758 = vadd.f32 %v2438, %v2669
      %v2759 = vadd.f32 %v2439, %v2671
      %v2760 = vadd.f32 %v2440, %v2673
      %v2761 = vadd.f32 %v2441, %v2675
      %v2762 = vadd.f32 %v2442, %v2677
      %v2763 = vadd.f32 %v2443, %v2679
      %v2764 = vadd.f32 %v2444, %v2681
      %v2765 = vadd.f32 %v2445, %v2683
      %v2766 = vadd.f32 %v2446, %v2685
      %v2767 = vadd.f32 %v2447, %v2687
      %v2768 = vadd.f32 %v2448, %v2689
      %v2769 = vadd.f32 %v2449, %v2691
      %v2770 = vadd.f32 %v2450, %v2693
      %v2771 = vadd.f32 %v2451, %v2695
      %v2772 = vadd.f32 %v2452, %v2697
      %v2773 = vadd.f32 %v2453, %v2699
      %v2774 = vadd.f32 %v2454, %v2701
      %v2775 = vadd.f32 %v2455, %v2703
      %v2776 = vadd.f32 %v2456, %v2705
      %v2777 = vadd.f32 %v2457, %v2707
      %v2778 = vadd.f32 %v2458, %v2709
      %v2779 = vadd.f32 %v2459, %v2711
      %v2780 = vadd.f32 %v2460, %v2713
      %v2781 = vadd.f32 %v2461, %v2715
      %v2782 = vadd.f32 %v2462, %v2717
      %v2783 = vadd.f32 %v2463, %v2719
      %v2784 = vld [vmem:[%s400] sm:$0xff]
      %v2785 = vld [vmem:[%s400 + $0x8] sm:$0xff]
      %v2786 = vld [vmem:[%s400 + $0x10] sm:$0xff]
      %v2787 = vld [vmem:[%s400 + $0x18] sm:$0xff]
      %v2788 = vld [vmem:[%s400 + $0x20] sm:$0xff]
      %v2789 = vld [vmem:[%s400 + $0x28] sm:$0xff]
      %v2790 = vld [vmem:[%s400 + $0x30] sm:$0xff]
      %v2791 = vld [vmem:[%s400 + $0x38] sm:$0xff]
      %v2792 = vld [vmem:[%s400 + $0x40] sm:$0xff]
      %v2793 = vld [vmem:[%s400 + $0x48] sm:$0xff]
      %v2794 = vld [vmem:[%s400 + $0x50] sm:$0xff]
      %v2795 = vld [vmem:[%s400 + $0x58] sm:$0xff]
      %v2796 = vld [vmem:[%s400 + $0x60] sm:$0xff]
      %v2797 = vld [vmem:[%s400 + $0x68] sm:$0xff]
      %v2798 = vld [vmem:[%s400 + $0x70] sm:$0xff]
      %v2799 = vld [vmem:[%s400 + $0x78] sm:$0xff]
      %v2800 = vld [vmem:[%s400 + $0x80] sm:$0xff]
      %v2801 = vld [vmem:[%s400 + $0x88] sm:$0xff]
      %v2802 = vld [vmem:[%s400 + $0x90] sm:$0xff]
      %v2803 = vld [vmem:[%s400 + $0x98] sm:$0xff]
      %v2804 = vld [vmem:[%s400 + $0xa0] sm:$0xff]
      %v2805 = vld [vmem:[%s400 + $0xa8] sm:$0xff]
      %v2806 = vld [vmem:[%s400 + $0xb0] sm:$0xff]
      %v2807 = vld [vmem:[%s400 + $0xb8] sm:$0xff]
      %v2808 = vld [vmem:[%s400 + $0xc0] sm:$0xff]
      %v2809 = vld [vmem:[%s400 + $0xc8] sm:$0xff]
      %v2810 = vld [vmem:[%s400 + $0xd0] sm:$0xff]
      %v2811 = vld [vmem:[%s400 + $0xd8] sm:$0xff]
      %v2812 = vld [vmem:[%s400 + $0xe0] sm:$0xff]
      %v2813 = vld [vmem:[%s400 + $0xe8] sm:$0xff]
      %v2814 = vld [vmem:[%s400 + $0xf0] sm:$0xff]
      %v2815 = vld [vmem:[%s400 + $0xf8] sm:$0xff]
      %v2816 = vmul.f32 %v2752, %v2784
      %v2817 = vmul.f32 %v2753, %v2785
      %v2818 = vmul.f32 %v2754, %v2786
      %v2819 = vmul.f32 %v2755, %v2787
      %v2820 = vmul.f32 %v2756, %v2788
      %v2821 = vmul.f32 %v2757, %v2789
      %v2822 = vmul.f32 %v2758, %v2790
      %v2823 = vmul.f32 %v2759, %v2791
      %v2824 = vmul.f32 %v2760, %v2792
      %v2825 = vmul.f32 %v2761, %v2793
      %v2826 = vmul.f32 %v2762, %v2794
      %v2827 = vmul.f32 %v2763, %v2795
      %v2828 = vmul.f32 %v2764, %v2796
      %v2829 = vmul.f32 %v2765, %v2797
      %v2830 = vmul.f32 %v2766, %v2798
      %v2831 = vmul.f32 %v2767, %v2799
      %v2832 = vmul.f32 %v2768, %v2800
      %v2833 = vmul.f32 %v2769, %v2801
      %v2834 = vmul.f32 %v2770, %v2802
      %v2835 = vmul.f32 %v2771, %v2803
      %v2836 = vmul.f32 %v2772, %v2804
      %v2837 = vmul.f32 %v2773, %v2805
      %v2838 = vmul.f32 %v2774, %v2806
      %v2839 = vmul.f32 %v2775, %v2807
      %v2840 = vmul.f32 %v2776, %v2808
      %v2841 = vmul.f32 %v2777, %v2809
      %v2842 = vmul.f32 %v2778, %v2810
      %v2843 = vmul.f32 %v2779, %v2811
      %v2844 = vmul.f32 %v2780, %v2812
      %v2845 = vmul.f32 %v2781, %v2813
      %v2846 = vmul.f32 %v2782, %v2814
      %v2847 = vmul.f32 %v2783, %v2815
      %2880 = vrot.lane.b32.xlu0 %v2816, 48
      %v2881 = vpop.permute.xlu0 %2880
      %2882 = vrot.lane.b32.xlu0 %v2817, 48
      %v2883 = vpop.permute.xlu0 %2882
      %2884 = vrot.lane.b32.xlu0 %v2818, 48
      %v2885 = vpop.permute.xlu0 %2884
      %2886 = vrot.lane.b32.xlu0 %v2819, 48
      %v2887 = vpop.permute.xlu0 %2886
      %2888 = vrot.lane.b32.xlu0 %v2820, 48
      %v2889 = vpop.permute.xlu0 %2888
      %2890 = vrot.lane.b32.xlu0 %v2821, 48
      %v2891 = vpop.permute.xlu0 %2890
      %2892 = vrot.lane.b32.xlu0 %v2822, 48
      %v2893 = vpop.permute.xlu0 %2892
      %2894 = vrot.lane.b32.xlu0 %v2823, 48
      %v2895 = vpop.permute.xlu0 %2894
      %2896 = vrot.lane.b32.xlu0 %v2824, 48
      %v2897 = vpop.permute.xlu0 %2896
      %2898 = vrot.lane.b32.xlu0 %v2825, 48
      %v2899 = vpop.permute.xlu0 %2898
      %2900 = vrot.lane.b32.xlu0 %v2826, 48
      %v2901 = vpop.permute.xlu0 %2900
      %2902 = vrot.lane.b32.xlu0 %v2827, 48
      %v2903 = vpop.permute.xlu0 %2902
      %2904 = vrot.lane.b32.xlu0 %v2828, 48
      %v2905 = vpop.permute.xlu0 %2904
      %2906 = vrot.lane.b32.xlu0 %v2829, 48
      %v2907 = vpop.permute.xlu0 %2906
      %2908 = vrot.lane.b32.xlu0 %v2830, 48
      %v2909 = vpop.permute.xlu0 %2908
      %2910 = vrot.lane.b32.xlu0 %v2831, 48
      %v2911 = vpop.permute.xlu0 %2910
      %2912 = vrot.lane.b32.xlu0 %v2832, 48
      %v2913 = vpop.permute.xlu0 %2912
      %2914 = vrot.lane.b32.xlu0 %v2833, 48
      %v2915 = vpop.permute.xlu0 %2914
      %2916 = vrot.lane.b32.xlu0 %v2834, 48
      %v2917 = vpop.permute.xlu0 %2916
      %2918 = vrot.lane.b32.xlu0 %v2835, 48
      %v2919 = vpop.permute.xlu0 %2918
      %2920 = vrot.lane.b32.xlu0 %v2836, 48
      %v2921 = vpop.permute.xlu0 %2920
      %2922 = vrot.lane.b32.xlu0 %v2837, 48
      %v2923 = vpop.permute.xlu0 %2922
      %2924 = vrot.lane.b32.xlu0 %v2838, 48
      %v2925 = vpop.permute.xlu0 %2924
      %2926 = vrot.lane.b32.xlu0 %v2839, 48
      %v2927 = vpop.permute.xlu0 %2926
      %2928 = vrot.lane.b32.xlu0 %v2840, 48
      %v2929 = vpop.permute.xlu0 %2928
      %2930 = vrot.lane.b32.xlu0 %v2841, 48
      %v2931 = vpop.permute.xlu0 %2930
      %2932 = vrot.lane.b32.xlu0 %v2842, 48
      %v2933 = vpop.permute.xlu0 %2932
      %2934 = vrot.lane.b32.xlu0 %v2843, 48
      %v2935 = vpop.permute.xlu0 %2934
      %2936 = vrot.lane.b32.xlu0 %v2844, 48
      %v2937 = vpop.permute.xlu0 %2936
      %2938 = vrot.lane.b32.xlu0 %v2845, 48
      %v2939 = vpop.permute.xlu0 %2938
      %2940 = vrot.lane.b32.xlu0 %v2846, 48
      %v2941 = vpop.permute.xlu0 %2940
      %2942 = vrot.lane.b32.xlu0 %v2847, 48
      %v2943 = vpop.permute.xlu0 %2942
      %v2976 = vadd.f32 %v737, %v2881
      %v2977 = vadd.f32 %v740, %v2883
      %v2978 = vadd.f32 %v743, %v2885
      %v2979 = vadd.f32 %v746, %v2887
      %v2980 = vadd.f32 %v749, %v2889
      %v2981 = vadd.f32 %v752, %v2891
      %v2982 = vadd.f32 %v755, %v2893
      %v2983 = vadd.f32 %v758, %v2895
      %v2984 = vadd.f32 %v761, %v2897
      %v2985 = vadd.f32 %v764, %v2899
      %v2986 = vadd.f32 %v767, %v2901
      %v2987 = vadd.f32 %v770, %v2903
      %v2988 = vadd.f32 %v773, %v2905
      %v2989 = vadd.f32 %v776, %v2907
      %v2990 = vadd.f32 %v779, %v2909
      %v2991 = vadd.f32 %v782, %v2911
      %v2992 = vadd.f32 %v785, %v2913
      %v2993 = vadd.f32 %v788, %v2915
      %v2994 = vadd.f32 %v791, %v2917
      %v2995 = vadd.f32 %v794, %v2919
      %v2996 = vadd.f32 %v797, %v2921
      %v2997 = vadd.f32 %v800, %v2923
      %v2998 = vadd.f32 %v803, %v2925
      %v2999 = vadd.f32 %v806, %v2927
      %v3000 = vadd.f32 %v809, %v2929
      %v3001 = vadd.f32 %v812, %v2931
      %v3002 = vadd.f32 %v815, %v2933
      %v3003 = vadd.f32 %v818, %v2935
      %v3004 = vadd.f32 %v821, %v2937
      %v3005 = vadd.f32 %v824, %v2939
      %v3006 = vadd.f32 %v827, %v2941
      %v3007 = vadd.f32 %v830, %v2943
      %v3008 = vxor.u32 %v2976, 2147483648
      %v3009 = vxor.u32 %v2977, 2147483648
      %v3010 = vxor.u32 %v2978, 2147483648
      %v3011 = vxor.u32 %v2979, 2147483648
      %v3012 = vxor.u32 %v2980, 2147483648
      %v3013 = vxor.u32 %v2981, 2147483648
      %v3014 = vxor.u32 %v2982, 2147483648
      %v3015 = vxor.u32 %v2983, 2147483648
      %v3016 = vxor.u32 %v2984, 2147483648
      %v3017 = vxor.u32 %v2985, 2147483648
      %v3018 = vxor.u32 %v2986, 2147483648
      %v3019 = vxor.u32 %v2987, 2147483648
      %v3020 = vxor.u32 %v2988, 2147483648
      %v3021 = vxor.u32 %v2989, 2147483648
      %v3022 = vxor.u32 %v2990, 2147483648
      %v3023 = vxor.u32 %v2991, 2147483648
      %v3024 = vxor.u32 %v2992, 2147483648
      %v3025 = vxor.u32 %v2993, 2147483648
      %v3026 = vxor.u32 %v2994, 2147483648
      %v3027 = vxor.u32 %v2995, 2147483648
      %v3028 = vxor.u32 %v2996, 2147483648
      %v3029 = vxor.u32 %v2997, 2147483648
      %v3030 = vxor.u32 %v2998, 2147483648
      %v3031 = vxor.u32 %v2999, 2147483648
      %v3032 = vxor.u32 %v3000, 2147483648
      %v3033 = vxor.u32 %v3001, 2147483648
      %v3034 = vxor.u32 %v3002, 2147483648
      %v3035 = vxor.u32 %v3003, 2147483648
      %v3036 = vxor.u32 %v3004, 2147483648
      %v3037 = vxor.u32 %v3005, 2147483648
      %v3038 = vxor.u32 %v3006, 2147483648
      %v3039 = vxor.u32 %v3007, 2147483648
      %v3040 = vmul.f32 %v3008, 1.442695
      %v3041 = vpow.pop %v3040
      %v3042 = vmul.f32 %v3009, 1.442695
      %v3043 = vpow.pop %v3042
      %v3044 = vmul.f32 %v3010, 1.442695
      %v3045 = vpow.pop %v3044
      %v3046 = vmul.f32 %v3011, 1.442695
      %v3047 = vpow.pop %v3046
      %v3048 = vmul.f32 %v3012, 1.442695
      %v3049 = vpow.pop %v3048
      %v3050 = vmul.f32 %v3013, 1.442695
      %v3051 = vpow.pop %v3050
      %v3052 = vmul.f32 %v3014, 1.442695
      %v3053 = vpow.pop %v3052
      %v3054 = vmul.f32 %v3015, 1.442695
      %v3055 = vpow.pop %v3054
      %v3056 = vmul.f32 %v3016, 1.442695
      %v3057 = vpow.pop %v3056
      %v3058 = vmul.f32 %v3017, 1.442695
      %v3059 = vpow.pop %v3058
      %v3060 = vmul.f32 %v3018, 1.442695
      %v3061 = vpow.pop %v3060
      %v3062 = vmul.f32 %v3019, 1.442695
      %v3063 = vpow.pop %v3062
      %v3064 = vmul.f32 %v3020, 1.442695
      %v3065 = vpow.pop %v3064
      %v3066 = vmul.f32 %v3021, 1.442695
      %v3067 = vpow.pop %v3066
      %v3068 = vmul.f32 %v3022, 1.442695
      %v3069 = vpow.pop %v3068
      %v3070 = vmul.f32 %v3023, 1.442695
      %v3071 = vpow.pop %v3070
      %v3072 = vmul.f32 %v3024, 1.442695
      %v3073 = vpow.pop %v3072
      %v3074 = vmul.f32 %v3025, 1.442695
      %v3075 = vpow.pop %v3074
      %v3076 = vmul.f32 %v3026, 1.442695
      %v3077 = vpow.pop %v3076
      %v3078 = vmul.f32 %v3027, 1.442695
      %v3079 = vpow.pop %v3078
      %v3080 = vmul.f32 %v3028, 1.442695
      %v3081 = vpow.pop %v3080
      %v3082 = vmul.f32 %v3029, 1.442695
      %v3083 = vpow.pop %v3082
      %v3084 = vmul.f32 %v3030, 1.442695
      %v3085 = vpow.pop %v3084
      %v3086 = vmul.f32 %v3031, 1.442695
      %v3087 = vpow.pop %v3086
      %v3088 = vmul.f32 %v3032, 1.442695
      %v3089 = vpow.pop %v3088
      %v3090 = vmul.f32 %v3033, 1.442695
      %v3091 = vpow.pop %v3090
      %v3092 = vmul.f32 %v3034, 1.442695
      %v3093 = vpow.pop %v3092
      %v3094 = vmul.f32 %v3035, 1.442695
      %v3095 = vpow.pop %v3094
      %v3096 = vmul.f32 %v3036, 1.442695
      %v3097 = vpow.pop %v3096
      %v3098 = vmul.f32 %v3037, 1.442695
      %v3099 = vpow.pop %v3098
      %v3100 = vmul.f32 %v3038, 1.442695
      %v3101 = vpow.pop %v3100
      %v3102 = vmul.f32 %v3039, 1.442695
      %v3103 = vpow.pop %v3102
      %v3104 = vadd.f32 %v3041, 1.0
      %v3105 = vadd.f32 %v3043, 1.0
      %v3106 = vadd.f32 %v3045, 1.0
      %v3107 = vadd.f32 %v3047, 1.0
      %v3108 = vadd.f32 %v3049, 1.0
      %v3109 = vadd.f32 %v3051, 1.0
      %v3110 = vadd.f32 %v3053, 1.0
      %v3111 = vadd.f32 %v3055, 1.0
      %v3112 = vadd.f32 %v3057, 1.0
      %v3113 = vadd.f32 %v3059, 1.0
      %v3114 = vadd.f32 %v3061, 1.0
      %v3115 = vadd.f32 %v3063, 1.0
      %v3116 = vadd.f32 %v3065, 1.0
      %v3117 = vadd.f32 %v3067, 1.0
      %v3118 = vadd.f32 %v3069, 1.0
      %v3119 = vadd.f32 %v3071, 1.0
      %v3120 = vadd.f32 %v3073, 1.0
      %v3121 = vadd.f32 %v3075, 1.0
      %v3122 = vadd.f32 %v3077, 1.0
      %v3123 = vadd.f32 %v3079, 1.0
      %v3124 = vadd.f32 %v3081, 1.0
      %v3125 = vadd.f32 %v3083, 1.0
      %v3126 = vadd.f32 %v3085, 1.0
      %v3127 = vadd.f32 %v3087, 1.0
      %v3128 = vadd.f32 %v3089, 1.0
      %v3129 = vadd.f32 %v3091, 1.0
      %v3130 = vadd.f32 %v3093, 1.0
      %v3131 = vadd.f32 %v3095, 1.0
      %v3132 = vadd.f32 %v3097, 1.0
      %v3133 = vadd.f32 %v3099, 1.0
      %v3134 = vadd.f32 %v3101, 1.0
      %v3135 = vadd.f32 %v3103, 1.0
      %v3136 = vrcp.pop %v3104
      %v3137 = vmul.f32 %v3104, %v3136
      %v3138 = vsub.f32 1.0, %v3137
      %v3139 = vmul.f32 %v3136, %v3138
      %v3140 = vadd.f32 %v3136, %v3139
      %vm3141 = vweird.f32 %v3104
      %vm3142 = vweird.f32 %v3136
      %vm3143 = vmor %vm3141, %vm3142
      %v3144 = vsel %vm3143, %v3136, %v3140
      %v3145 = vand.u32 2147483647, %v3104
      %vm3146 = vcmp.eq.f32.partialorder %v3145, 8.507059e+37
      %v3147 = vand.u32 %v3104, 2147483648
      %v3148 = vor.u32 1.1754944e-38, %v3147
      %v3149 = vsel %vm3146, %v3148, %v3144
      %v3150 = vmul.f32 1.0, %v3149
      %v3151 = vrcp.pop %v3105
      %v3152 = vmul.f32 %v3105, %v3151
      %v3153 = vsub.f32 1.0, %v3152
      %v3154 = vmul.f32 %v3151, %v3153
      %v3155 = vadd.f32 %v3151, %v3154
      %vm3156 = vweird.f32 %v3105
      %vm3157 = vweird.f32 %v3151
      %vm3158 = vmor %vm3156, %vm3157
      %v3159 = vsel %vm3158, %v3151, %v3155
      %v3160 = vand.u32 2147483647, %v3105
      %vm3161 = vcmp.eq.f32.partialorder %v3160, 8.507059e+37
      %v3162 = vand.u32 %v3105, 2147483648
      %v3163 = vor.u32 1.1754944e-38, %v3162
      %v3164 = vsel %vm3161, %v3163, %v3159
      %v3165 = vmul.f32 1.0, %v3164
      %v3166 = vrcp.pop %v3106
      %v3167 = vmul.f32 %v3106, %v3166
      %v3168 = vsub.f32 1.0, %v3167
      %v3169 = vmul.f32 %v3166, %v3168
      %v3170 = vadd.f32 %v3166, %v3169
      %vm3171 = vweird.f32 %v3106
      %vm3172 = vweird.f32 %v3166
      %vm3173 = vmor %vm3171, %vm3172
      %v3174 = vsel %vm3173, %v3166, %v3170
      %v3175 = vand.u32 2147483647, %v3106
      %vm3176 = vcmp.eq.f32.partialorder %v3175, 8.507059e+37
      %v3177 = vand.u32 %v3106, 2147483648
      %v3178 = vor.u32 1.1754944e-38, %v3177
      %v3179 = vsel %vm3176, %v3178, %v3174
      %v3180 = vmul.f32 1.0, %v3179
      %v3181 = vrcp.pop %v3107
      %v3182 = vmul.f32 %v3107, %v3181
      %v3183 = vsub.f32 1.0, %v3182
      %v3184 = vmul.f32 %v3181, %v3183
      %v3185 = vadd.f32 %v3181, %v3184
      %vm3186 = vweird.f32 %v3107
      %vm3187 = vweird.f32 %v3181
      %vm3188 = vmor %vm3186, %vm3187
      %v3189 = vsel %vm3188, %v3181, %v3185
      %v3190 = vand.u32 2147483647, %v3107
      %vm3191 = vcmp.eq.f32.partialorder %v3190, 8.507059e+37
      %v3192 = vand.u32 %v3107, 2147483648
      %v3193 = vor.u32 1.1754944e-38, %v3192
      %v3194 = vsel %vm3191, %v3193, %v3189
      %v3195 = vmul.f32 1.0, %v3194
      %v3196 = vrcp.pop %v3108
      %v3197 = vmul.f32 %v3108, %v3196
      %v3198 = vsub.f32 1.0, %v3197
      %v3199 = vmul.f32 %v3196, %v3198
      %v3200 = vadd.f32 %v3196, %v3199
      %vm3201 = vweird.f32 %v3108
      %vm3202 = vweird.f32 %v3196
      %vm3203 = vmor %vm3201, %vm3202
      %v3204 = vsel %vm3203, %v3196, %v3200
      %v3205 = vand.u32 2147483647, %v3108
      %vm3206 = vcmp.eq.f32.partialorder %v3205, 8.507059e+37
      %v3207 = vand.u32 %v3108, 2147483648
      %v3208 = vor.u32 1.1754944e-38, %v3207
      %v3209 = vsel %vm3206, %v3208, %v3204
      %v3210 = vmul.f32 1.0, %v3209
      %v3211 = vrcp.pop %v3109
      %v3212 = vmul.f32 %v3109, %v3211
      %v3213 = vsub.f32 1.0, %v3212
      %v3214 = vmul.f32 %v3211, %v3213
      %v3215 = vadd.f32 %v3211, %v3214
      %vm3216 = vweird.f32 %v3109
      %vm3217 = vweird.f32 %v3211
      %vm3218 = vmor %vm3216, %vm3217
      %v3219 = vsel %vm3218, %v3211, %v3215
      %v3220 = vand.u32 2147483647, %v3109
      %vm3221 = vcmp.eq.f32.partialorder %v3220, 8.507059e+37
      %v3222 = vand.u32 %v3109, 2147483648
      %v3223 = vor.u32 1.1754944e-38, %v3222
      %v3224 = vsel %vm3221, %v3223, %v3219
      %v3225 = vmul.f32 1.0, %v3224
      %v3226 = vrcp.pop %v3110
      %v3227 = vmul.f32 %v3110, %v3226
      %v3228 = vsub.f32 1.0, %v3227
      %v3229 = vmul.f32 %v3226, %v3228
      %v3230 = vadd.f32 %v3226, %v3229
      %vm3231 = vweird.f32 %v3110
      %vm3232 = vweird.f32 %v3226
      %vm3233 = vmor %vm3231, %vm3232
      %v3234 = vsel %vm3233, %v3226, %v3230
      %v3235 = vand.u32 2147483647, %v3110
      %vm3236 = vcmp.eq.f32.partialorder %v3235, 8.507059e+37
      %v3237 = vand.u32 %v3110, 2147483648
      %v3238 = vor.u32 1.1754944e-38, %v3237
      %v3239 = vsel %vm3236, %v3238, %v3234
      %v3240 = vmul.f32 1.0, %v3239
      %v3241 = vrcp.pop %v3111
      %v3242 = vmul.f32 %v3111, %v3241
      %v3243 = vsub.f32 1.0, %v3242
      %v3244 = vmul.f32 %v3241, %v3243
      %v3245 = vadd.f32 %v3241, %v3244
      %vm3246 = vweird.f32 %v3111
      %vm3247 = vweird.f32 %v3241
      %vm3248 = vmor %vm3246, %vm3247
      %v3249 = vsel %vm3248, %v3241, %v3245
      %v3250 = vand.u32 2147483647, %v3111
      %vm3251 = vcmp.eq.f32.partialorder %v3250, 8.507059e+37
      %v3252 = vand.u32 %v3111, 2147483648
      %v3253 = vor.u32 1.1754944e-38, %v3252
      %v3254 = vsel %vm3251, %v3253, %v3249
      %v3255 = vmul.f32 1.0, %v3254
      %v3256 = vrcp.pop %v3112
      %v3257 = vmul.f32 %v3112, %v3256
      %v3258 = vsub.f32 1.0, %v3257
      %v3259 = vmul.f32 %v3256, %v3258
      %v3260 = vadd.f32 %v3256, %v3259
      %vm3261 = vweird.f32 %v3112
      %vm3262 = vweird.f32 %v3256
      %vm3263 = vmor %vm3261, %vm3262
      %v3264 = vsel %vm3263, %v3256, %v3260
      %v3265 = vand.u32 2147483647, %v3112
      %vm3266 = vcmp.eq.f32.partialorder %v3265, 8.507059e+37
      %v3267 = vand.u32 %v3112, 2147483648
      %v3268 = vor.u32 1.1754944e-38, %v3267
      %v3269 = vsel %vm3266, %v3268, %v3264
      %v3270 = vmul.f32 1.0, %v3269
      %v3271 = vrcp.pop %v3113
      %v3272 = vmul.f32 %v3113, %v3271
      %v3273 = vsub.f32 1.0, %v3272
      %v3274 = vmul.f32 %v3271, %v3273
      %v3275 = vadd.f32 %v3271, %v3274
      %vm3276 = vweird.f32 %v3113
      %vm3277 = vweird.f32 %v3271
      %vm3278 = vmor %vm3276, %vm3277
      %v3279 = vsel %vm3278, %v3271, %v3275
      %v3280 = vand.u32 2147483647, %v3113
      %vm3281 = vcmp.eq.f32.partialorder %v3280, 8.507059e+37
      %v3282 = vand.u32 %v3113, 2147483648
      %v3283 = vor.u32 1.1754944e-38, %v3282
      %v3284 = vsel %vm3281, %v3283, %v3279
      %v3285 = vmul.f32 1.0, %v3284
      %v3286 = vrcp.pop %v3114
      %v3287 = vmul.f32 %v3114, %v3286
      %v3288 = vsub.f32 1.0, %v3287
      %v3289 = vmul.f32 %v3286, %v3288
      %v3290 = vadd.f32 %v3286, %v3289
      %vm3291 = vweird.f32 %v3114
      %vm3292 = vweird.f32 %v3286
      %vm3293 = vmor %vm3291, %vm3292
      %v3294 = vsel %vm3293, %v3286, %v3290
      %v3295 = vand.u32 2147483647, %v3114
      %vm3296 = vcmp.eq.f32.partialorder %v3295, 8.507059e+37
      %v3297 = vand.u32 %v3114, 2147483648
      %v3298 = vor.u32 1.1754944e-38, %v3297
      %v3299 = vsel %vm3296, %v3298, %v3294
      %v3300 = vmul.f32 1.0, %v3299
      %v3301 = vrcp.pop %v3115
      %v3302 = vmul.f32 %v3115, %v3301
      %v3303 = vsub.f32 1.0, %v3302
      %v3304 = vmul.f32 %v3301, %v3303
      %v3305 = vadd.f32 %v3301, %v3304
      %vm3306 = vweird.f32 %v3115
      %vm3307 = vweird.f32 %v3301
      %vm3308 = vmor %vm3306, %vm3307
      %v3309 = vsel %vm3308, %v3301, %v3305
      %v3310 = vand.u32 2147483647, %v3115
      %vm3311 = vcmp.eq.f32.partialorder %v3310, 8.507059e+37
      %v3312 = vand.u32 %v3115, 2147483648
      %v3313 = vor.u32 1.1754944e-38, %v3312
      %v3314 = vsel %vm3311, %v3313, %v3309
      %v3315 = vmul.f32 1.0, %v3314
      %v3316 = vrcp.pop %v3116
      %v3317 = vmul.f32 %v3116, %v3316
      %v3318 = vsub.f32 1.0, %v3317
      %v3319 = vmul.f32 %v3316, %v3318
      %v3320 = vadd.f32 %v3316, %v3319
      %vm3321 = vweird.f32 %v3116
      %vm3322 = vweird.f32 %v3316
      %vm3323 = vmor %vm3321, %vm3322
      %v3324 = vsel %vm3323, %v3316, %v3320
      %v3325 = vand.u32 2147483647, %v3116
      %vm3326 = vcmp.eq.f32.partialorder %v3325, 8.507059e+37
      %v3327 = vand.u32 %v3116, 2147483648
      %v3328 = vor.u32 1.1754944e-38, %v3327
      %v3329 = vsel %vm3326, %v3328, %v3324
      %v3330 = vmul.f32 1.0, %v3329
      %v3331 = vrcp.pop %v3117
      %v3332 = vmul.f32 %v3117, %v3331
      %v3333 = vsub.f32 1.0, %v3332
      %v3334 = vmul.f32 %v3331, %v3333
      %v3335 = vadd.f32 %v3331, %v3334
      %vm3336 = vweird.f32 %v3117
      %vm3337 = vweird.f32 %v3331
      %vm3338 = vmor %vm3336, %vm3337
      %v3339 = vsel %vm3338, %v3331, %v3335
      %v3340 = vand.u32 2147483647, %v3117
      %vm3341 = vcmp.eq.f32.partialorder %v3340, 8.507059e+37
      %v3342 = vand.u32 %v3117, 2147483648
      %v3343 = vor.u32 1.1754944e-38, %v3342
      %v3344 = vsel %vm3341, %v3343, %v3339
      %v3345 = vmul.f32 1.0, %v3344
      %v3346 = vrcp.pop %v3118
      %v3347 = vmul.f32 %v3118, %v3346
      %v3348 = vsub.f32 1.0, %v3347
      %v3349 = vmul.f32 %v3346, %v3348
      %v3350 = vadd.f32 %v3346, %v3349
      %vm3351 = vweird.f32 %v3118
      %vm3352 = vweird.f32 %v3346
      %vm3353 = vmor %vm3351, %vm3352
      %v3354 = vsel %vm3353, %v3346, %v3350
      %v3355 = vand.u32 2147483647, %v3118
      %vm3356 = vcmp.eq.f32.partialorder %v3355, 8.507059e+37
      %v3357 = vand.u32 %v3118, 2147483648
      %v3358 = vor.u32 1.1754944e-38, %v3357
      %v3359 = vsel %vm3356, %v3358, %v3354
      %v3360 = vmul.f32 1.0, %v3359
      %v3361 = vrcp.pop %v3119
      %v3362 = vmul.f32 %v3119, %v3361
      %v3363 = vsub.f32 1.0, %v3362
      %v3364 = vmul.f32 %v3361, %v3363
      %v3365 = vadd.f32 %v3361, %v3364
      %vm3366 = vweird.f32 %v3119
      %vm3367 = vweird.f32 %v3361
      %vm3368 = vmor %vm3366, %vm3367
      %v3369 = vsel %vm3368, %v3361, %v3365
      %v3370 = vand.u32 2147483647, %v3119
      %vm3371 = vcmp.eq.f32.partialorder %v3370, 8.507059e+37
      %v3372 = vand.u32 %v3119, 2147483648
      %v3373 = vor.u32 1.1754944e-38, %v3372
      %v3374 = vsel %vm3371, %v3373, %v3369
      %v3375 = vmul.f32 1.0, %v3374
      %v3376 = vrcp.pop %v3120
      %v3377 = vmul.f32 %v3120, %v3376
      %v3378 = vsub.f32 1.0, %v3377
      %v3379 = vmul.f32 %v3376, %v3378
      %v3380 = vadd.f32 %v3376, %v3379
      %vm3381 = vweird.f32 %v3120
      %vm3382 = vweird.f32 %v3376
      %vm3383 = vmor %vm3381, %vm3382
      %v3384 = vsel %vm3383, %v3376, %v3380
      %v3385 = vand.u32 2147483647, %v3120
      %vm3386 = vcmp.eq.f32.partialorder %v3385, 8.507059e+37
      %v3387 = vand.u32 %v3120, 2147483648
      %v3388 = vor.u32 1.1754944e-38, %v3387
      %v3389 = vsel %vm3386, %v3388, %v3384
      %v3390 = vmul.f32 1.0, %v3389
      %v3391 = vrcp.pop %v3121
      %v3392 = vmul.f32 %v3121, %v3391
      %v3393 = vsub.f32 1.0, %v3392
      %v3394 = vmul.f32 %v3391, %v3393
      %v3395 = vadd.f32 %v3391, %v3394
      %vm3396 = vweird.f32 %v3121
      %vm3397 = vweird.f32 %v3391
      %vm3398 = vmor %vm3396, %vm3397
      %v3399 = vsel %vm3398, %v3391, %v3395
      %v3400 = vand.u32 2147483647, %v3121
      %vm3401 = vcmp.eq.f32.partialorder %v3400, 8.507059e+37
      %v3402 = vand.u32 %v3121, 2147483648
      %v3403 = vor.u32 1.1754944e-38, %v3402
      %v3404 = vsel %vm3401, %v3403, %v3399
      %v3405 = vmul.f32 1.0, %v3404
      %v3406 = vrcp.pop %v3122
      %v3407 = vmul.f32 %v3122, %v3406
      %v3408 = vsub.f32 1.0, %v3407
      %v3409 = vmul.f32 %v3406, %v3408
      %v3410 = vadd.f32 %v3406, %v3409
      %vm3411 = vweird.f32 %v3122
      %vm3412 = vweird.f32 %v3406
      %vm3413 = vmor %vm3411, %vm3412
      %v3414 = vsel %vm3413, %v3406, %v3410
      %v3415 = vand.u32 2147483647, %v3122
      %vm3416 = vcmp.eq.f32.partialorder %v3415, 8.507059e+37
      %v3417 = vand.u32 %v3122, 2147483648
      %v3418 = vor.u32 1.1754944e-38, %v3417
      %v3419 = vsel %vm3416, %v3418, %v3414
      %v3420 = vmul.f32 1.0, %v3419
      %v3421 = vrcp.pop %v3123
      %v3422 = vmul.f32 %v3123, %v3421
      %v3423 = vsub.f32 1.0, %v3422
      %v3424 = vmul.f32 %v3421, %v3423
      %v3425 = vadd.f32 %v3421, %v3424
      %vm3426 = vweird.f32 %v3123
      %vm3427 = vweird.f32 %v3421
      %vm3428 = vmor %vm3426, %vm3427
      %v3429 = vsel %vm3428, %v3421, %v3425
      %v3430 = vand.u32 2147483647, %v3123
      %vm3431 = vcmp.eq.f32.partialorder %v3430, 8.507059e+37
      %v3432 = vand.u32 %v3123, 2147483648
      %v3433 = vor.u32 1.1754944e-38, %v3432
      %v3434 = vsel %vm3431, %v3433, %v3429
      %v3435 = vmul.f32 1.0, %v3434
      %v3436 = vrcp.pop %v3124
      %v3437 = vmul.f32 %v3124, %v3436
      %v3438 = vsub.f32 1.0, %v3437
      %v3439 = vmul.f32 %v3436, %v3438
      %v3440 = vadd.f32 %v3436, %v3439
      %vm3441 = vweird.f32 %v3124
      %vm3442 = vweird.f32 %v3436
      %vm3443 = vmor %vm3441, %vm3442
      %v3444 = vsel %vm3443, %v3436, %v3440
      %v3445 = vand.u32 2147483647, %v3124
      %vm3446 = vcmp.eq.f32.partialorder %v3445, 8.507059e+37
      %v3447 = vand.u32 %v3124, 2147483648
      %v3448 = vor.u32 1.1754944e-38, %v3447
      %v3449 = vsel %vm3446, %v3448, %v3444
      %v3450 = vmul.f32 1.0, %v3449
      %v3451 = vrcp.pop %v3125
      %v3452 = vmul.f32 %v3125, %v3451
      %v3453 = vsub.f32 1.0, %v3452
      %v3454 = vmul.f32 %v3451, %v3453
      %v3455 = vadd.f32 %v3451, %v3454
      %vm3456 = vweird.f32 %v3125
      %vm3457 = vweird.f32 %v3451
      %vm3458 = vmor %vm3456, %vm3457
      %v3459 = vsel %vm3458, %v3451, %v3455
      %v3460 = vand.u32 2147483647, %v3125
      %vm3461 = vcmp.eq.f32.partialorder %v3460, 8.507059e+37
      %v3462 = vand.u32 %v3125, 2147483648
      %v3463 = vor.u32 1.1754944e-38, %v3462
      %v3464 = vsel %vm3461, %v3463, %v3459
      %v3465 = vmul.f32 1.0, %v3464
      %v3466 = vrcp.pop %v3126
      %v3467 = vmul.f32 %v3126, %v3466
      %v3468 = vsub.f32 1.0, %v3467
      %v3469 = vmul.f32 %v3466, %v3468
      %v3470 = vadd.f32 %v3466, %v3469
      %vm3471 = vweird.f32 %v3126
      %vm3472 = vweird.f32 %v3466
      %vm3473 = vmor %vm3471, %vm3472
      %v3474 = vsel %vm3473, %v3466, %v3470
      %v3475 = vand.u32 2147483647, %v3126
      %vm3476 = vcmp.eq.f32.partialorder %v3475, 8.507059e+37
      %v3477 = vand.u32 %v3126, 2147483648
      %v3478 = vor.u32 1.1754944e-38, %v3477
      %v3479 = vsel %vm3476, %v3478, %v3474
      %v3480 = vmul.f32 1.0, %v3479
      %v3481 = vrcp.pop %v3127
      %v3482 = vmul.f32 %v3127, %v3481
      %v3483 = vsub.f32 1.0, %v3482
      %v3484 = vmul.f32 %v3481, %v3483
      %v3485 = vadd.f32 %v3481, %v3484
      %vm3486 = vweird.f32 %v3127
      %vm3487 = vweird.f32 %v3481
      %vm3488 = vmor %vm3486, %vm3487
      %v3489 = vsel %vm3488, %v3481, %v3485
      %v3490 = vand.u32 2147483647, %v3127
      %vm3491 = vcmp.eq.f32.partialorder %v3490, 8.507059e+37
      %v3492 = vand.u32 %v3127, 2147483648
      %v3493 = vor.u32 1.1754944e-38, %v3492
      %v3494 = vsel %vm3491, %v3493, %v3489
      %v3495 = vmul.f32 1.0, %v3494
      %v3496 = vrcp.pop %v3128
      %v3497 = vmul.f32 %v3128, %v3496
      %v3498 = vsub.f32 1.0, %v3497
      %v3499 = vmul.f32 %v3496, %v3498
      %v3500 = vadd.f32 %v3496, %v3499
      %vm3501 = vweird.f32 %v3128
      %vm3502 = vweird.f32 %v3496
      %vm3503 = vmor %vm3501, %vm3502
      %v3504 = vsel %vm3503, %v3496, %v3500
      %v3505 = vand.u32 2147483647, %v3128
      %vm3506 = vcmp.eq.f32.partialorder %v3505, 8.507059e+37
      %v3507 = vand.u32 %v3128, 2147483648
      %v3508 = vor.u32 1.1754944e-38, %v3507
      %v3509 = vsel %vm3506, %v3508, %v3504
      %v3510 = vmul.f32 1.0, %v3509
      %v3511 = vrcp.pop %v3129
      %v3512 = vmul.f32 %v3129, %v3511
      %v3513 = vsub.f32 1.0, %v3512
      %v3514 = vmul.f32 %v3511, %v3513
      %v3515 = vadd.f32 %v3511, %v3514
      %vm3516 = vweird.f32 %v3129
      %vm3517 = vweird.f32 %v3511
      %vm3518 = vmor %vm3516, %vm3517
      %v3519 = vsel %vm3518, %v3511, %v3515
      %v3520 = vand.u32 2147483647, %v3129
      %vm3521 = vcmp.eq.f32.partialorder %v3520, 8.507059e+37
      %v3522 = vand.u32 %v3129, 2147483648
      %v3523 = vor.u32 1.1754944e-38, %v3522
      %v3524 = vsel %vm3521, %v3523, %v3519
      %v3525 = vmul.f32 1.0, %v3524
      %v3526 = vrcp.pop %v3130
      %v3527 = vmul.f32 %v3130, %v3526
      %v3528 = vsub.f32 1.0, %v3527
      %v3529 = vmul.f32 %v3526, %v3528
      %v3530 = vadd.f32 %v3526, %v3529
      %vm3531 = vweird.f32 %v3130
      %vm3532 = vweird.f32 %v3526
      %vm3533 = vmor %vm3531, %vm3532
      %v3534 = vsel %vm3533, %v3526, %v3530
      %v3535 = vand.u32 2147483647, %v3130
      %vm3536 = vcmp.eq.f32.partialorder %v3535, 8.507059e+37
      %v3537 = vand.u32 %v3130, 2147483648
      %v3538 = vor.u32 1.1754944e-38, %v3537
      %v3539 = vsel %vm3536, %v3538, %v3534
      %v3540 = vmul.f32 1.0, %v3539
      %v3541 = vrcp.pop %v3131
      %v3542 = vmul.f32 %v3131, %v3541
      %v3543 = vsub.f32 1.0, %v3542
      %v3544 = vmul.f32 %v3541, %v3543
      %v3545 = vadd.f32 %v3541, %v3544
      %vm3546 = vweird.f32 %v3131
      %vm3547 = vweird.f32 %v3541
      %vm3548 = vmor %vm3546, %vm3547
      %v3549 = vsel %vm3548, %v3541, %v3545
      %v3550 = vand.u32 2147483647, %v3131
      %vm3551 = vcmp.eq.f32.partialorder %v3550, 8.507059e+37
      %v3552 = vand.u32 %v3131, 2147483648
      %v3553 = vor.u32 1.1754944e-38, %v3552
      %v3554 = vsel %vm3551, %v3553, %v3549
      %v3555 = vmul.f32 1.0, %v3554
      %v3556 = vrcp.pop %v3132
      %v3557 = vmul.f32 %v3132, %v3556
      %v3558 = vsub.f32 1.0, %v3557
      %v3559 = vmul.f32 %v3556, %v3558
      %v3560 = vadd.f32 %v3556, %v3559
      %vm3561 = vweird.f32 %v3132
      %vm3562 = vweird.f32 %v3556
      %vm3563 = vmor %vm3561, %vm3562
      %v3564 = vsel %vm3563, %v3556, %v3560
      %v3565 = vand.u32 2147483647, %v3132
      %vm3566 = vcmp.eq.f32.partialorder %v3565, 8.507059e+37
      %v3567 = vand.u32 %v3132, 2147483648
      %v3568 = vor.u32 1.1754944e-38, %v3567
      %v3569 = vsel %vm3566, %v3568, %v3564
      %v3570 = vmul.f32 1.0, %v3569
      %v3571 = vrcp.pop %v3133
      %v3572 = vmul.f32 %v3133, %v3571
      %v3573 = vsub.f32 1.0, %v3572
      %v3574 = vmul.f32 %v3571, %v3573
      %v3575 = vadd.f32 %v3571, %v3574
      %vm3576 = vweird.f32 %v3133
      %vm3577 = vweird.f32 %v3571
      %vm3578 = vmor %vm3576, %vm3577
      %v3579 = vsel %vm3578, %v3571, %v3575
      %v3580 = vand.u32 2147483647, %v3133
      %vm3581 = vcmp.eq.f32.partialorder %v3580, 8.507059e+37
      %v3582 = vand.u32 %v3133, 2147483648
      %v3583 = vor.u32 1.1754944e-38, %v3582
      %v3584 = vsel %vm3581, %v3583, %v3579
      %v3585 = vmul.f32 1.0, %v3584
      %v3586 = vrcp.pop %v3134
      %v3587 = vmul.f32 %v3134, %v3586
      %v3588 = vsub.f32 1.0, %v3587
      %v3589 = vmul.f32 %v3586, %v3588
      %v3590 = vadd.f32 %v3586, %v3589
      %vm3591 = vweird.f32 %v3134
      %vm3592 = vweird.f32 %v3586
      %vm3593 = vmor %vm3591, %vm3592
      %v3594 = vsel %vm3593, %v3586, %v3590
      %v3595 = vand.u32 2147483647, %v3134
      %vm3596 = vcmp.eq.f32.partialorder %v3595, 8.507059e+37
      %v3597 = vand.u32 %v3134, 2147483648
      %v3598 = vor.u32 1.1754944e-38, %v3597
      %v3599 = vsel %vm3596, %v3598, %v3594
      %v3600 = vmul.f32 1.0, %v3599
      %v3601 = vrcp.pop %v3135
      %v3602 = vmul.f32 %v3135, %v3601
      %v3603 = vsub.f32 1.0, %v3602
      %v3604 = vmul.f32 %v3601, %v3603
      %v3605 = vadd.f32 %v3601, %v3604
      %vm3606 = vweird.f32 %v3135
      %vm3607 = vweird.f32 %v3601
      %vm3608 = vmor %vm3606, %vm3607
      %v3609 = vsel %vm3608, %v3601, %v3605
      %v3610 = vand.u32 2147483647, %v3135
      %vm3611 = vcmp.eq.f32.partialorder %v3610, 8.507059e+37
      %v3612 = vand.u32 %v3135, 2147483648
      %v3613 = vor.u32 1.1754944e-38, %v3612
      %v3614 = vsel %vm3611, %v3613, %v3609
      %v3615 = vmul.f32 1.0, %v3614
      %v3616 = vtanh.pop %v2752
      %v3617 = vtanh.pop %v2753
      %v3618 = vtanh.pop %v2754
      %v3619 = vtanh.pop %v2755
      %v3620 = vtanh.pop %v2756
      %v3621 = vtanh.pop %v2757
      %v3622 = vtanh.pop %v2758
      %v3623 = vtanh.pop %v2759
      %v3624 = vtanh.pop %v2760
      %v3625 = vtanh.pop %v2761
      %v3626 = vtanh.pop %v2762
      %v3627 = vtanh.pop %v2763
      %v3628 = vtanh.pop %v2764
      %v3629 = vtanh.pop %v2765
      %v3630 = vtanh.pop %v2766
      %v3631 = vtanh.pop %v2767
      %v3632 = vtanh.pop %v2768
      %v3633 = vtanh.pop %v2769
      %v3634 = vtanh.pop %v2770
      %v3635 = vtanh.pop %v2771
      %v3636 = vtanh.pop %v2772
      %v3637 = vtanh.pop %v2773
      %v3638 = vtanh.pop %v2774
      %v3639 = vtanh.pop %v2775
      %v3640 = vtanh.pop %v2776
      %v3641 = vtanh.pop %v2777
      %v3642 = vtanh.pop %v2778
      %v3643 = vtanh.pop %v2779
      %v3644 = vtanh.pop %v2780
      %v3645 = vtanh.pop %v2781
      %v3646 = vtanh.pop %v2782
      %v3647 = vtanh.pop %v2783
      %3680 = vrot.lane.b32.xlu0 %v3616, 48
      %v3681 = vpop.permute.xlu0 %3680
      %3682 = vrot.lane.b32.xlu0 %v3617, 48
      %v3683 = vpop.permute.xlu0 %3682
      %3684 = vrot.lane.b32.xlu0 %v3618, 48
      %v3685 = vpop.permute.xlu0 %3684
      %3686 = vrot.lane.b32.xlu0 %v3619, 48
      %v3687 = vpop.permute.xlu0 %3686
      %3688 = vrot.lane.b32.xlu0 %v3620, 48
      %v3689 = vpop.permute.xlu0 %3688
      %3690 = vrot.lane.b32.xlu0 %v3621, 48
      %v3691 = vpop.permute.xlu0 %3690
      %3692 = vrot.lane.b32.xlu0 %v3622, 48
      %v3693 = vpop.permute.xlu0 %3692
      %3694 = vrot.lane.b32.xlu0 %v3623, 48
      %v3695 = vpop.permute.xlu0 %3694
      %3696 = vrot.lane.b32.xlu0 %v3624, 48
      %v3697 = vpop.permute.xlu0 %3696
      %3698 = vrot.lane.b32.xlu0 %v3625, 48
      %v3699 = vpop.permute.xlu0 %3698
      %3700 = vrot.lane.b32.xlu0 %v3626, 48
      %v3701 = vpop.permute.xlu0 %3700
      %3702 = vrot.lane.b32.xlu0 %v3627, 48
      %v3703 = vpop.permute.xlu0 %3702
      %3704 = vrot.lane.b32.xlu0 %v3628, 48
      %v3705 = vpop.permute.xlu0 %3704
      %3706 = vrot.lane.b32.xlu0 %v3629, 48
      %v3707 = vpop.permute.xlu0 %3706
      %3708 = vrot.lane.b32.xlu0 %v3630, 48
      %v3709 = vpop.permute.xlu0 %3708
      %3710 = vrot.lane.b32.xlu0 %v3631, 48
      %v3711 = vpop.permute.xlu0 %3710
      %3712 = vrot.lane.b32.xlu0 %v3632, 48
      %v3713 = vpop.permute.xlu0 %3712
      %3714 = vrot.lane.b32.xlu0 %v3633, 48
      %v3715 = vpop.permute.xlu0 %3714
      %3716 = vrot.lane.b32.xlu0 %v3634, 48
      %v3717 = vpop.permute.xlu0 %3716
      %3718 = vrot.lane.b32.xlu0 %v3635, 48
      %v3719 = vpop.permute.xlu0 %3718
      %3720 = vrot.lane.b32.xlu0 %v3636, 48
      %v3721 = vpop.permute.xlu0 %3720
      %3722 = vrot.lane.b32.xlu0 %v3637, 48
      %v3723 = vpop.permute.xlu0 %3722
      %3724 = vrot.lane.b32.xlu0 %v3638, 48
      %v3725 = vpop.permute.xlu0 %3724
      %3726 = vrot.lane.b32.xlu0 %v3639, 48
      %v3727 = vpop.permute.xlu0 %3726
      %3728 = vrot.lane.b32.xlu0 %v3640, 48
      %v3729 = vpop.permute.xlu0 %3728
      %3730 = vrot.lane.b32.xlu0 %v3641, 48
      %v3731 = vpop.permute.xlu0 %3730
      %3732 = vrot.lane.b32.xlu0 %v3642, 48
      %v3733 = vpop.permute.xlu0 %3732
      %3734 = vrot.lane.b32.xlu0 %v3643, 48
      %v3735 = vpop.permute.xlu0 %3734
      %3736 = vrot.lane.b32.xlu0 %v3644, 48
      %v3737 = vpop.permute.xlu0 %3736
      %3738 = vrot.lane.b32.xlu0 %v3645, 48
      %v3739 = vpop.permute.xlu0 %3738
      %3740 = vrot.lane.b32.xlu0 %v3646, 48
      %v3741 = vpop.permute.xlu0 %3740
      %3742 = vrot.lane.b32.xlu0 %v3647, 48
      %v3743 = vpop.permute.xlu0 %3742
      %v3776 = vmul.f32 %v3150, %v3681
      %v3777 = vmul.f32 %v3165, %v3683
      %v3778 = vmul.f32 %v3180, %v3685
      %v3779 = vmul.f32 %v3195, %v3687
      %v3780 = vmul.f32 %v3210, %v3689
      %v3781 = vmul.f32 %v3225, %v3691
      %v3782 = vmul.f32 %v3240, %v3693
      %v3783 = vmul.f32 %v3255, %v3695
      %v3784 = vmul.f32 %v3270, %v3697
      %v3785 = vmul.f32 %v3285, %v3699
      %v3786 = vmul.f32 %v3300, %v3701
      %v3787 = vmul.f32 %v3315, %v3703
      %v3788 = vmul.f32 %v3330, %v3705
      %v3789 = vmul.f32 %v3345, %v3707
      %v3790 = vmul.f32 %v3360, %v3709
      %v3791 = vmul.f32 %v3375, %v3711
      %v3792 = vmul.f32 %v3390, %v3713
      %v3793 = vmul.f32 %v3405, %v3715
      %v3794 = vmul.f32 %v3420, %v3717
      %v3795 = vmul.f32 %v3435, %v3719
      %v3796 = vmul.f32 %v3450, %v3721
      %v3797 = vmul.f32 %v3465, %v3723
      %v3798 = vmul.f32 %v3480, %v3725
      %v3799 = vmul.f32 %v3495, %v3727
      %v3800 = vmul.f32 %v3510, %v3729
      %v3801 = vmul.f32 %v3525, %v3731
      %v3802 = vmul.f32 %v3540, %v3733
      %v3803 = vmul.f32 %v3555, %v3735
      %v3804 = vmul.f32 %v3570, %v3737
      %v3805 = vmul.f32 %v3585, %v3739
      %v3806 = vmul.f32 %v3600, %v3741
      %v3807 = vmul.f32 %v3615, %v3743
      %3840 = vrot.lane.b32.xlu0 %v3776, 80
      %v3841 = vpop.permute.xlu0 %3840
      %3842 = vrot.lane.b32.xlu0 %v3777, 80
      %v3843 = vpop.permute.xlu0 %3842
      %3844 = vrot.lane.b32.xlu0 %v3778, 80
      %v3845 = vpop.permute.xlu0 %3844
      %3846 = vrot.lane.b32.xlu0 %v3779, 80
      %v3847 = vpop.permute.xlu0 %3846
      %3848 = vrot.lane.b32.xlu0 %v3780, 80
      %v3849 = vpop.permute.xlu0 %3848
      %3850 = vrot.lane.b32.xlu0 %v3781, 80
      %v3851 = vpop.permute.xlu0 %3850
      %3852 = vrot.lane.b32.xlu0 %v3782, 80
      %v3853 = vpop.permute.xlu0 %3852
      %3854 = vrot.lane.b32.xlu0 %v3783, 80
      %v3855 = vpop.permute.xlu0 %3854
      %3856 = vrot.lane.b32.xlu0 %v3784, 80
      %v3857 = vpop.permute.xlu0 %3856
      %3858 = vrot.lane.b32.xlu0 %v3785, 80
      %v3859 = vpop.permute.xlu0 %3858
      %3860 = vrot.lane.b32.xlu0 %v3786, 80
      %v3861 = vpop.permute.xlu0 %3860
      %3862 = vrot.lane.b32.xlu0 %v3787, 80
      %v3863 = vpop.permute.xlu0 %3862
      %3864 = vrot.lane.b32.xlu0 %v3788, 80
      %v3865 = vpop.permute.xlu0 %3864
      %3866 = vrot.lane.b32.xlu0 %v3789, 80
      %v3867 = vpop.permute.xlu0 %3866
      %3868 = vrot.lane.b32.xlu0 %v3790, 80
      %v3869 = vpop.permute.xlu0 %3868
      %3870 = vrot.lane.b32.xlu0 %v3791, 80
      %v3871 = vpop.permute.xlu0 %3870
      %3872 = vrot.lane.b32.xlu0 %v3792, 80
      %v3873 = vpop.permute.xlu0 %3872
      %3874 = vrot.lane.b32.xlu0 %v3793, 80
      %v3875 = vpop.permute.xlu0 %3874
      %3876 = vrot.lane.b32.xlu0 %v3794, 80
      %v3877 = vpop.permute.xlu0 %3876
      %3878 = vrot.lane.b32.xlu0 %v3795, 80
      %v3879 = vpop.permute.xlu0 %3878
      %3880 = vrot.lane.b32.xlu0 %v3796, 80
      %v3881 = vpop.permute.xlu0 %3880
      %3882 = vrot.lane.b32.xlu0 %v3797, 80
      %v3883 = vpop.permute.xlu0 %3882
      %3884 = vrot.lane.b32.xlu0 %v3798, 80
      %v3885 = vpop.permute.xlu0 %3884
      %3886 = vrot.lane.b32.xlu0 %v3799, 80
      %v3887 = vpop.permute.xlu0 %3886
      %3888 = vrot.lane.b32.xlu0 %v3800, 80
      %v3889 = vpop.permute.xlu0 %3888
      %3890 = vrot.lane.b32.xlu0 %v3801, 80
      %v3891 = vpop.permute.xlu0 %3890
      %3892 = vrot.lane.b32.xlu0 %v3802, 80
      %v3893 = vpop.permute.xlu0 %3892
      %3894 = vrot.lane.b32.xlu0 %v3803, 80
      %v3895 = vpop.permute.xlu0 %3894
      %3896 = vrot.lane.b32.xlu0 %v3804, 80
      %v3897 = vpop.permute.xlu0 %3896
      %3898 = vrot.lane.b32.xlu0 %v3805, 80
      %v3899 = vpop.permute.xlu0 %3898
      %3900 = vrot.lane.b32.xlu0 %v3806, 80
      %v3901 = vpop.permute.xlu0 %3900
      %3902 = vrot.lane.b32.xlu0 %v3807, 80
      %v3903 = vpop.permute.xlu0 %3902
      %vm3936 = vcmask 130048
      %3937 = vst.msk [vmem:[%s406] sm:$0xff] %vm3936, %v3841
      %3938 = vst.msk [vmem:[%s406 + $0x8] sm:$0xff] %vm3936, %v3843
      %3939 = vst.msk [vmem:[%s406 + $0x10] sm:$0xff] %vm3936, %v3845
      %3940 = vst.msk [vmem:[%s406 + $0x18] sm:$0xff] %vm3936, %v3847
      %3941 = vst.msk [vmem:[%s406 + $0x20] sm:$0xff] %vm3936, %v3849
      %3942 = vst.msk [vmem:[%s406 + $0x28] sm:$0xff] %vm3936, %v3851
      %3943 = vst.msk [vmem:[%s406 + $0x30] sm:$0xff] %vm3936, %v3853
      %3944 = vst.msk [vmem:[%s406 + $0x38] sm:$0xff] %vm3936, %v3855
      %3945 = vst.msk [vmem:[%s406 + $0x40] sm:$0xff] %vm3936, %v3857
      %3946 = vst.msk [vmem:[%s406 + $0x48] sm:$0xff] %vm3936, %v3859
      %3947 = vst.msk [vmem:[%s406 + $0x50] sm:$0xff] %vm3936, %v3861
      %3948 = vst.msk [vmem:[%s406 + $0x58] sm:$0xff] %vm3936, %v3863
      %3949 = vst.msk [vmem:[%s406 + $0x60] sm:$0xff] %vm3936, %v3865
      %3950 = vst.msk [vmem:[%s406 + $0x68] sm:$0xff] %vm3936, %v3867
      %3951 = vst.msk [vmem:[%s406 + $0x70] sm:$0xff] %vm3936, %v3869
      %3952 = vst.msk [vmem:[%s406 + $0x78] sm:$0xff] %vm3936, %v3871
      %3953 = vst.msk [vmem:[%s406 + $0x80] sm:$0xff] %vm3936, %v3873
      %3954 = vst.msk [vmem:[%s406 + $0x88] sm:$0xff] %vm3936, %v3875
      %3955 = vst.msk [vmem:[%s406 + $0x90] sm:$0xff] %vm3936, %v3877
      %3956 = vst.msk [vmem:[%s406 + $0x98] sm:$0xff] %vm3936, %v3879
      %3957 = vst.msk [vmem:[%s406 + $0xa0] sm:$0xff] %vm3936, %v3881
      %3958 = vst.msk [vmem:[%s406 + $0xa8] sm:$0xff] %vm3936, %v3883
      %3959 = vst.msk [vmem:[%s406 + $0xb0] sm:$0xff] %vm3936, %v3885
      %3960 = vst.msk [vmem:[%s406 + $0xb8] sm:$0xff] %vm3936, %v3887
      %3961 = vst.msk [vmem:[%s406 + $0xc0] sm:$0xff] %vm3936, %v3889
      %3962 = vst.msk [vmem:[%s406 + $0xc8] sm:$0xff] %vm3936, %v3891
      %3963 = vst.msk [vmem:[%s406 + $0xd0] sm:$0xff] %vm3936, %v3893
      %3964 = vst.msk [vmem:[%s406 + $0xd8] sm:$0xff] %vm3936, %v3895
      %3965 = vst.msk [vmem:[%s406 + $0xe0] sm:$0xff] %vm3936, %v3897
      %3966 = vst.msk [vmem:[%s406 + $0xe8] sm:$0xff] %vm3936, %v3899
      %3967 = vst.msk [vmem:[%s406 + $0xf0] sm:$0xff] %vm3936, %v3901
      %3968 = vst.msk [vmem:[%s406 + $0xf8] sm:$0xff] %vm3936, %v3903
      %3969 = vst.msk [vmem:[%s412] sm:$0xff] %vm3936, %v2752
      %3970 = vst.msk [vmem:[%s412 + $0x8] sm:$0xff] %vm3936, %v2753
      %3971 = vst.msk [vmem:[%s412 + $0x10] sm:$0xff] %vm3936, %v2754
      %3972 = vst.msk [vmem:[%s412 + $0x18] sm:$0xff] %vm3936, %v2755
      %3973 = vst.msk [vmem:[%s412 + $0x20] sm:$0xff] %vm3936, %v2756
      %3974 = vst.msk [vmem:[%s412 + $0x28] sm:$0xff] %vm3936, %v2757
      %3975 = vst.msk [vmem:[%s412 + $0x30] sm:$0xff] %vm3936, %v2758
      %3976 = vst.msk [vmem:[%s412 + $0x38] sm:$0xff] %vm3936, %v2759
      %3977 = vst.msk [vmem:[%s412 + $0x40] sm:$0xff] %vm3936, %v2760
      %3978 = vst.msk [vmem:[%s412 + $0x48] sm:$0xff] %vm3936, %v2761
      %3979 = vst.msk [vmem:[%s412 + $0x50] sm:$0xff] %vm3936, %v2762
      %3980 = vst.msk [vmem:[%s412 + $0x58] sm:$0xff] %vm3936, %v2763
      %3981 = vst.msk [vmem:[%s412 + $0x60] sm:$0xff] %vm3936, %v2764
      %3982 = vst.msk [vmem:[%s412 + $0x68] sm:$0xff] %vm3936, %v2765
      %3983 = vst.msk [vmem:[%s412 + $0x70] sm:$0xff] %vm3936, %v2766
      %3984 = vst.msk [vmem:[%s412 + $0x78] sm:$0xff] %vm3936, %v2767
      %3985 = vst.msk [vmem:[%s412 + $0x80] sm:$0xff] %vm3936, %v2768
      %3986 = vst.msk [vmem:[%s412 + $0x88] sm:$0xff] %vm3936, %v2769
      %3987 = vst.msk [vmem:[%s412 + $0x90] sm:$0xff] %vm3936, %v2770
      %3988 = vst.msk [vmem:[%s412 + $0x98] sm:$0xff] %vm3936, %v2771
      %3989 = vst.msk [vmem:[%s412 + $0xa0] sm:$0xff] %vm3936, %v2772
      %3990 = vst.msk [vmem:[%s412 + $0xa8] sm:$0xff] %vm3936, %v2773
      %3991 = vst.msk [vmem:[%s412 + $0xb0] sm:$0xff] %vm3936, %v2774
      %3992 = vst.msk [vmem:[%s412 + $0xb8] sm:$0xff] %vm3936, %v2775
      %3993 = vst.msk [vmem:[%s412 + $0xc0] sm:$0xff] %vm3936, %v2776
      %3994 = vst.msk [vmem:[%s412 + $0xc8] sm:$0xff] %vm3936, %v2777
      %3995 = vst.msk [vmem:[%s412 + $0xd0] sm:$0xff] %vm3936, %v2778
      %3996 = vst.msk [vmem:[%s412 + $0xd8] sm:$0xff] %vm3936, %v2779
      %3997 = vst.msk [vmem:[%s412 + $0xe0] sm:$0xff] %vm3936, %v2780
      %3998 = vst.msk [vmem:[%s412 + $0xe8] sm:$0xff] %vm3936, %v2781
      %3999 = vst.msk [vmem:[%s412 + $0xf0] sm:$0xff] %vm3936, %v2782
      %4000 = vst.msk [vmem:[%s412 + $0xf8] sm:$0xff] %vm3936, %v2783
      %s4001 = smul.u32 32, %s20
      %p4002 = scmp.lt.s32.totalorder %s4001, 63
      %s4003 = scalar_select %p4002, %s4001, 63
      %s4004 = smul.addr %s4003, 8
      %s4005 = scalar_lea.vmem %s7, %s4004
      %s4006 = smul.u32 32, %s20
      %p4007 = scmp.lt.s32.totalorder %s4006, 63
      %s4008 = scalar_select %p4007, %s4006, 63
      %s4009 = smul.addr %s4008, 8
      %s4010 = scalar_lea.vmem %s8, %s4009
      // Predicated region
      $region49: #{conv_lstm_forward.8} parent=47 // pred_check
        %p4011 = pneg %p210
      $region50: #{conv_lstm_forward.8} parent=47 // pred_check_branch
        %4013 = sbr.rel (%p4011) target = $region52
      $region51: #{conv_lstm_forward.8} parent=47 // pred_region
        %s4014 = smul.u32 32, %s20
      $region52: #{conv_lstm_forward.8} parent=47 // pred_fallthru
        _
      // Predicated region
      $region53: #{conv_lstm_forward.8} parent=47 // pred_check
        %p4015 = pneg %p236
      $region54: #{conv_lstm_forward.8} parent=47 // pred_check_branch
        %4017 = sbr.rel (%p4015) target = $region56
      $region55: #{conv_lstm_forward.8} parent=47 // pred_region
        %s4018 = smul.u32 32, %s20
      $region56: #{conv_lstm_forward.8} parent=47 // pred_fallthru
        _
    $region48: #{conv_lstm_forward.8} parent=5 // pred_fallthru
      _
    %p4019 = scmp.le.s32.totalorder 2, %s15
    // Predicated region
    $region57: #{conv_lstm_forward.8} parent=5 // pred_check
      %p4020 = pneg %p4019
    $region58: #{conv_lstm_forward.8} parent=5 // pred_check_branch
      %4022 = sbr.rel (%p4020) target = $region60
    $region59: #{conv_lstm_forward.8} parent=5 // pred_region
      %s4023 = ssub.s32 %s15, 2
      // Predicated region
      $region61: #{conv_lstm_forward.8} parent=59 // pred_check
        %p4024 = pneg %p216
      $region62: #{conv_lstm_forward.8} parent=59 // pred_check_branch
        %4026 = sbr.rel (%p4024) target = $region64
      $region63: #{conv_lstm_forward.8} parent=59 // pred_region
        %s4027 = smul.u32 32, %s21
        %p4028 = scmp.lt.s32.totalorder %s4027, 63
        %s4029 = scalar_select %p4028, %s4027, 63
        %s4030 = smul.addr %s4029, 8
        %s4031 = scalar_lea.vmem %s7, %s4030
      $region64: #{conv_lstm_forward.8} parent=59 // pred_fallthru
        _
      // Predicated region
      $region65: #{conv_lstm_forward.8} parent=59 // pred_check
        %p4032 = pneg %p242
      $region66: #{conv_lstm_forward.8} parent=59 // pred_check_branch
        %4034 = sbr.rel (%p4032) target = $region68
      $region67: #{conv_lstm_forward.8} parent=59 // pred_region
        %s4035 = smul.u32 32, %s21
        %p4036 = scmp.lt.s32.totalorder %s4035, 63
        %s4037 = scalar_select %p4036, %s4035, 63
        %s4038 = smul.addr %s4037, 8
        %s4039 = scalar_lea.vmem %s8, %s4038
      $region68: #{conv_lstm_forward.8} parent=59 // pred_fallthru
        _
    $region60: #{conv_lstm_forward.8} parent=5 // pred_fallthru
      _
  $region6: #{conv_lstm_forward.8} parent=0 // loop_footer
    %s19 = sadd.s32 1, %s15
  $region7: #{conv_lstm_forward.8} parent=0 // loop_footer_branch
    %14 = sbr.rel target = $region3
  $region8: #{conv_lstm_forward.8} parent=0 // loop_exit
    _

// kernel: conv_lstm_forward.15
$region0: #{conv_lstm_forward.15}
  #allocation0 [shape = 'u32[]', space=smem, size = 0x4, offset = 0x4, fixed_abs, tag = 'smem constant byte address 0x4 - core index']
  #allocation1 [shape = 'u32[72,128]{1,0:T(1,128)}', space=vmem, size = 0x9000, scoped, tag = 'internal scratch']
  %s0 = inlined_call_operand.vmem [shape: f32[512,180], index: 0, kind: input, shape index: {}]
  %s1 = inlined_call_operand.vmem [shape: f32[180,64], index: 1, kind: input, shape index: {}]
  %s2 = inlined_call_operand.vmem [shape: f32[1,64], index: 2, kind: input, shape index: {}]
  %s3 = inlined_call_operand.vmem [shape: f32[512,16], index: 3, kind: input, shape index: {}]
  %s4 = inlined_call_operand.vmem [shape: f32[512,16], index: 4, kind: input, shape index: {}]
  %s5 = inlined_call_operand.vmem [shape: f32[512,16], index: 5, kind: input, shape index: {}]
  %s6 = inlined_call_operand.vmem [shape: f32[512,16], index: 6, kind: input, shape index: {}]
  %s7 = inlined_call_operand.vmem [shape: f32[512,16], index: 7, kind: output, shape index: {0}]
  %s8 = inlined_call_operand.hbm [shape: f32[512,16], index: 8, kind: output, shape index: {1}]
  %9 = xla_tuple %s7, %s8
  %s10 = sld [smem:[#allocation0]]
  $region69: #{conv_lstm_forward.15} parent=0
    _
  %s12 = ssub.s32 1, %s10
  %s13 = scalar_select 0, %s12, %s10
  $region1: #{conv_lstm_forward.15} parent=0
    #allocation2 [shape = 'u8[262144]{0}', space=vmem, size = 0x40000, scoped, tag = 'output window, operand 1']
    #allocation3 [shape = 's32[2]{0}', space=sflag, size = 0x8, scoped, tag = 'scoped memory for conv_lstm_forward.15']
    %14 = vsyncpa [#allocation3], 0
    %s15 = scalar_lea.sflag [#allocation3], 1
    %16 = vsyncpa %s15, 0
    loop: start=0, step=1, limit=4
    $region2: #{conv_lstm_forward.15} parent=1 // loop_pre_header
      _
    $region3: #{conv_lstm_forward.15} parent=1 // loop_header
      %s18 = sphi 0, %s22
      %p19 = scmp.ge.s32.totalorder %s18, 4
      %s28 = sphi 0, %s30
      %s31 = sphi 0, %s28
      %s32 = sphi 0, %s31
      %s48 = sphi 0, %s32
      %s52 = sphi 0, %s52
      %s54 = sphi 0, %s52
      %s55 = sphi 0, %s54
      %s69 = sphi 0, %s55
      %s73 = sphi 0, %s73
      %s75 = sphi 0, %s73
      %s76 = sphi 0, %s75
      %s90 = sphi 0, %s76
      %s96 = sphi 0, %s98
      %s99 = sphi 0, %s96
      %s100 = sphi 0, %s99
      %s116 = sphi 0, %s100
      %s122 = sphi 0, %s124
      %s125 = sphi 0, %s122
      %s126 = sphi 0, %s125
      %s142 = sphi 0, %s126
      %s148 = sphi 0, %s150
      %s151 = sphi 0, %s148
      %s152 = sphi 0, %s151
      %s168 = sphi 0, %s152
      %s174 = sphi 0, %s176
      %s177 = sphi 0, %s174
      %s178 = sphi 0, %s177
      %s194 = sphi 0, %s178
      %s200 = sphi 0, %s202
      %s203 = sphi 0, %s200
      %s204 = sphi 0, %s203
      %s220 = sphi 0, %s204
      %s226 = sphi 0, %s228
      %s229 = sphi 0, %s226
      %s230 = sphi 0, %s229
      %s246 = sphi 0, %s230
    $region4: #{conv_lstm_forward.15} parent=1 // loop_header_branch
      %21 = sbr.rel (%p19) target = $region8
    $region5: #{conv_lstm_forward.15} parent=1 // loop_body
      %s23 = ssub.s32 %s18, 1
      %s24 = ssub.s32 %s18, 2
      %s25 = sadd.s32 %s18, 1
      %s26 = ssub.s32 %s18, %s25
      %p27 = scmp.eq.s32.totalorder %s26, 0
      %s29 = sadd.s32 %s28, 1
      %s30 = scalar_select %p27, %s28, %s29
      %p33 = pneg %p27
      %p34 = scmp.eq.s32.totalorder %s18, 1
      %p35 = por %p33, %p34
      %p36 = scmp.ne.s32.totalorder %s28, %s31
      %p37 = scmp.eq.s32.totalorder %s18, 0
      %p38 = por %p36, %p37
      %p39 = scmp.ne.s32.totalorder %s28, %s31
      %p40 = scmp.eq.s32.totalorder %s23, 1
      %p41 = por %p39, %p40
      %p42 = scmp.ne.s32.totalorder %s31, %s32
      %p43 = scmp.eq.s32.totalorder %s23, 0
      %p44 = por %p42, %p43
      %p45 = scmp.ne.s32.totalorder %s31, %s32
      %p46 = scmp.eq.s32.totalorder %s24, 1
      %p47 = por %p45, %p46
      %p49 = scmp.ne.s32.totalorder %s32, %s48
      %p50 = scmp.eq.s32.totalorder %s24, 0
      %p51 = por %p49, %p50
      %s53 = sadd.s32 %s52, 1
      %p56 = scmp.eq.s32.totalorder %s18, 1
      %p57 = scmp.ne.s32.totalorder %s52, %s54
      %p58 = scmp.eq.s32.totalorder %s18, 0
      %p59 = por %p57, %p58
      %p60 = scmp.ne.s32.totalorder %s52, %s54
      %p61 = scmp.eq.s32.totalorder %s23, 1
      %p62 = por %p60, %p61
      %p63 = scmp.ne.s32.totalorder %s54, %s55
      %p64 = scmp.eq.s32.totalorder %s23, 0
      %p65 = por %p63, %p64
      %p66 = scmp.ne.s32.totalorder %s54, %s55
      %p67 = scmp.eq.s32.totalorder %s24, 1
      %p68 = por %p66, %p67
      %p70 = scmp.ne.s32.totalorder %s55, %s69
      %p71 = scmp.eq.s32.totalorder %s24, 0
      %p72 = por %p70, %p71
      %s74 = sadd.s32 %s73, 1
      %p77 = scmp.eq.s32.totalorder %s18, 1
      %p78 = scmp.ne.s32.totalorder %s73, %s75
      %p79 = scmp.eq.s32.totalorder %s18, 0
      %p80 = por %p78, %p79
      %p81 = scmp.ne.s32.totalorder %s73, %s75
      %p82 = scmp.eq.s32.totalorder %s23, 1
      %p83 = por %p81, %p82
      %p84 = scmp.ne.s32.totalorder %s75, %s76
      %p85 = scmp.eq.s32.totalorder %s23, 0
      %p86 = por %p84, %p85
      %p87 = scmp.ne.s32.totalorder %s75, %s76
      %p88 = scmp.eq.s32.totalorder %s24, 1
      %p89 = por %p87, %p88
      %p91 = scmp.ne.s32.totalorder %s76, %s90
      %p92 = scmp.eq.s32.totalorder %s24, 0
      %p93 = por %p91, %p92
      %s94 = ssub.s32 %s18, %s25
      %p95 = scmp.eq.s32.totalorder %s94, 0
      %s97 = sadd.s32 %s96, 1
      %s98 = scalar_select %p95, %s96, %s97
      %p101 = pneg %p95
      %p102 = scmp.eq.s32.totalorder %s18, 1
      %p103 = por %p101, %p102
      %p104 = scmp.ne.s32.totalorder %s96, %s99
      %p105 = scmp.eq.s32.totalorder %s18, 0
      %p106 = por %p104, %p105
      %p107 = scmp.ne.s32.totalorder %s96, %s99
      %p108 = scmp.eq.s32.totalorder %s23, 1
      %p109 = por %p107, %p108
      %p110 = scmp.ne.s32.totalorder %s99, %s100
      %p111 = scmp.eq.s32.totalorder %s23, 0
      %p112 = por %p110, %p111
      %p113 = scmp.ne.s32.totalorder %s99, %s100
      %p114 = scmp.eq.s32.totalorder %s24, 1
      %p115 = por %p113, %p114
      %p117 = scmp.ne.s32.totalorder %s100, %s116
      %p118 = scmp.eq.s32.totalorder %s24, 0
      %p119 = por %p117, %p118
      %s120 = ssub.s32 %s18, %s25
      %p121 = scmp.eq.s32.totalorder %s120, 0
      %s123 = sadd.s32 %s122, 1
      %s124 = scalar_select %p121, %s122, %s123
      %p127 = pneg %p121
      %p128 = scmp.eq.s32.totalorder %s18, 1
      %p129 = por %p127, %p128
      %p130 = scmp.ne.s32.totalorder %s122, %s125
      %p131 = scmp.eq.s32.totalorder %s18, 0
      %p132 = por %p130, %p131
      %p133 = scmp.ne.s32.totalorder %s122, %s125
      %p134 = scmp.eq.s32.totalorder %s23, 1
      %p135 = por %p133, %p134
      %p136 = scmp.ne.s32.totalorder %s125, %s126
      %p137 = scmp.eq.s32.totalorder %s23, 0
      %p138 = por %p136, %p137
      %p139 = scmp.ne.s32.totalorder %s125, %s126
      %p140 = scmp.eq.s32.totalorder %s24, 1
      %p141 = por %p139, %p140
      %p143 = scmp.ne.s32.totalorder %s126, %s142
      %p144 = scmp.eq.s32.totalorder %s24, 0
      %p145 = por %p143, %p144
      %s146 = ssub.s32 %s18, %s25
      %p147 = scmp.eq.s32.totalorder %s146, 0
      %s149 = sadd.s32 %s148, 1
      %s150 = scalar_select %p147, %s148, %s149
      %p153 = pneg %p147
      %p154 = scmp.eq.s32.totalorder %s18, 1
      %p155 = por %p153, %p154
      %p156 = scmp.ne.s32.totalorder %s148, %s151
      %p157 = scmp.eq.s32.totalorder %s18, 0
      %p158 = por %p156, %p157
      %p159 = scmp.ne.s32.totalorder %s148, %s151
      %p160 = scmp.eq.s32.totalorder %s23, 1
      %p161 = por %p159, %p160
      %p162 = scmp.ne.s32.totalorder %s151, %s152
      %p163 = scmp.eq.s32.totalorder %s23, 0
      %p164 = por %p162, %p163
      %p165 = scmp.ne.s32.totalorder %s151, %s152
      %p166 = scmp.eq.s32.totalorder %s24, 1
      %p167 = por %p165, %p166
      %p169 = scmp.ne.s32.totalorder %s152, %s168
      %p170 = scmp.eq.s32.totalorder %s24, 0
      %p171 = por %p169, %p170
      %s172 = ssub.s32 %s18, %s25
      %p173 = scmp.eq.s32.totalorder %s172, 0
      %s175 = sadd.s32 %s174, 1
      %s176 = scalar_select %p173, %s174, %s175
      %p179 = pneg %p173
      %p180 = scmp.eq.s32.totalorder %s18, 1
      %p181 = por %p179, %p180
      %p182 = scmp.ne.s32.totalorder %s174, %s177
      %p183 = scmp.eq.s32.totalorder %s18, 0
      %p184 = por %p182, %p183
      %p185 = scmp.ne.s32.totalorder %s174, %s177
      %p186 = scmp.eq.s32.totalorder %s23, 1
      %p187 = por %p185, %p186
      %p188 = scmp.ne.s32.totalorder %s177, %s178
      %p189 = scmp.eq.s32.totalorder %s23, 0
      %p190 = por %p188, %p189
      %p191 = scmp.ne.s32.totalorder %s177, %s178
      %p192 = scmp.eq.s32.totalorder %s24, 1
      %p193 = por %p191, %p192
      %p195 = scmp.ne.s32.totalorder %s178, %s194
      %p196 = scmp.eq.s32.totalorder %s24, 0
      %p197 = por %p195, %p196
      %s198 = ssub.s32 %s18, %s25
      %p199 = scmp.eq.s32.totalorder %s198, 0
      %s201 = sadd.s32 %s200, 1
      %s202 = scalar_select %p199, %s200, %s201
      %p205 = pneg %p199
      %p206 = scmp.eq.s32.totalorder %s18, 1
      %p207 = por %p205, %p206
      %p208 = scmp.ne.s32.totalorder %s200, %s203
      %p209 = scmp.eq.s32.totalorder %s18, 0
      %p210 = por %p208, %p209
      %p211 = scmp.ne.s32.totalorder %s200, %s203
      %p212 = scmp.eq.s32.totalorder %s23, 1
      %p213 = por %p211, %p212
      %p214 = scmp.ne.s32.totalorder %s203, %s204
      %p215 = scmp.eq.s32.totalorder %s23, 0
      %p216 = por %p214, %p215
      %p217 = scmp.ne.s32.totalorder %s203, %s204
      %p218 = scmp.eq.s32.totalorder %s24, 1
      %p219 = por %p217, %p218
      %p221 = scmp.ne.s32.totalorder %s204, %s220
      %p222 = scmp.eq.s32.totalorder %s24, 0
      %p223 = por %p221, %p222
      %s224 = ssub.s32 %s18, %s25
      %p225 = scmp.eq.s32.totalorder %s224, 0
      %s227 = sadd.s32 %s226, 1
      %s228 = scalar_select %p225, %s226, %s227
      %p231 = pneg %p225
      %p232 = scmp.eq.s32.totalorder %s18, 1
      %p233 = por %p231, %p232
      %p234 = scmp.ne.s32.totalorder %s226, %s229
      %p235 = scmp.eq.s32.totalorder %s18, 0
      %p236 = por %p234, %p235
      %p237 = scmp.ne.s32.totalorder %s226, %s229
      %p238 = scmp.eq.s32.totalorder %s23, 1
      %p239 = por %p237, %p238
      %p240 = scmp.ne.s32.totalorder %s229, %s230
      %p241 = scmp.eq.s32.totalorder %s23, 0
      %p242 = por %p240, %p241
      %p243 = scmp.ne.s32.totalorder %s229, %s230
      %p244 = scmp.eq.s32.totalorder %s24, 1
      %p245 = por %p243, %p244
      %p247 = scmp.ne.s32.totalorder %s230, %s246
      %p248 = scmp.eq.s32.totalorder %s24, 0
      %p249 = por %p247, %p248
      %p250 = scmp.le.s32.totalorder 1, %s18
      %p251 = scmp.lt.s32.totalorder %s18, 3
      %p252 = pnand %p250, %p251
      %p253 = pneg %p252
      // Predicated region
      $region9: #{conv_lstm_forward.15} parent=5 // pred_check
        _
      $region10: #{conv_lstm_forward.15} parent=5 // pred_check_branch
        %255 = sbr.rel (%p252) target = $region12
      $region11: #{conv_lstm_forward.15} parent=5 // pred_region
        %s256 = ssub.s32 %s18, 1
        // Predicated region
        $region13: #{conv_lstm_forward.15} parent=11 // pred_check
          %p257 = pneg %p65
        $region14: #{conv_lstm_forward.15} parent=11 // pred_check_branch
          %259 = sbr.rel (%p257) target = $region16
        $region15: #{conv_lstm_forward.15} parent=11 // pred_region
          _
        $region16: #{conv_lstm_forward.15} parent=11 // pred_fallthru
          _
        // Predicated region
        $region17: #{conv_lstm_forward.15} parent=11 // pred_check
          %p260 = pneg %p86
        $region18: #{conv_lstm_forward.15} parent=11 // pred_check_branch
          %262 = sbr.rel (%p260) target = $region20
        $region19: #{conv_lstm_forward.15} parent=11 // pred_region
          _
        $region20: #{conv_lstm_forward.15} parent=11 // pred_fallthru
          _
      $region12: #{conv_lstm_forward.15} parent=5 // pred_fallthru
        _
      %p263 = scmp.lt.s32.totalorder %s18, 2
      // Predicated region
      $region21: #{conv_lstm_forward.15} parent=5 // pred_check
        %p264 = pneg %p263
      $region22: #{conv_lstm_forward.15} parent=5 // pred_check_branch
        %266 = sbr.rel (%p264) target = $region24
      $region23: #{conv_lstm_forward.15} parent=5 // pred_region
        // Predicated region
        $region25: #{conv_lstm_forward.15} parent=23 // pred_check
          %p267 = pneg %p38
        $region26: #{conv_lstm_forward.15} parent=23 // pred_check_branch
          %269 = sbr.rel (%p267) target = $region28
        $region27: #{conv_lstm_forward.15} parent=23 // pred_region
          %s270 = smul.u32 32, %s18
          %p271 = scmp.lt.s32.totalorder %s270, 63
          %s272 = scalar_select %p271, %s270, 63
          %s273 = smul.addr %s272, 2
          %s274 = smul.addr %s273, 8
          %s275 = scalar_lea.vmem %s0, %s274
          %s276 = smul.u32 32, %s18
        $region28: #{conv_lstm_forward.15} parent=23 // pred_fallthru
          _
        // Predicated region
        $region29: #{conv_lstm_forward.15} parent=23 // pred_check
          %p277 = pneg %p106
        $region30: #{conv_lstm_forward.15} parent=23 // pred_check_branch
          %279 = sbr.rel (%p277) target = $region32
        $region31: #{conv_lstm_forward.15} parent=23 // pred_region
          %s280 = smul.u32 32, %s18
          %p281 = scmp.lt.s32.totalorder %s280, 63
          %s282 = scalar_select %p281, %s280, 63
          %s283 = smul.addr %s282, 8
          %s284 = scalar_lea.vmem %s3, %s283
          %s285 = smul.u32 32, %s18
        $region32: #{conv_lstm_forward.15} parent=23 // pred_fallthru
          _
        // Predicated region
        $region33: #{conv_lstm_forward.15} parent=23 // pred_check
          %p286 = pneg %p132
        $region34: #{conv_lstm_forward.15} parent=23 // pred_check_branch
          %288 = sbr.rel (%p286) target = $region36
        $region35: #{conv_lstm_forward.15} parent=23 // pred_region
          %s289 = smul.u32 32, %s18
          %p290 = scmp.lt.s32.totalorder %s289, 63
          %s291 = scalar_select %p290, %s289, 63
          %s292 = smul.addr %s291, 8
          %s293 = scalar_lea.vmem %s4, %s292
          %s294 = smul.u32 32, %s18
        $region36: #{conv_lstm_forward.15} parent=23 // pred_fallthru
          _
        // Predicated region
        $region37: #{conv_lstm_forward.15} parent=23 // pred_check
          %p295 = pneg %p158
        $region38: #{conv_lstm_forward.15} parent=23 // pred_check_branch
          %297 = sbr.rel (%p295) target = $region40
        $region39: #{conv_lstm_forward.15} parent=23 // pred_region
          %s298 = smul.u32 32, %s18
          %p299 = scmp.lt.s32.totalorder %s298, 63
          %s300 = scalar_select %p299, %s298, 63
          %s301 = smul.addr %s300, 8
          %s302 = scalar_lea.vmem %s5, %s301
          %s303 = smul.u32 32, %s18
        $region40: #{conv_lstm_forward.15} parent=23 // pred_fallthru
          _
        // Predicated region
        $region41: #{conv_lstm_forward.15} parent=23 // pred_check
          %p304 = pneg %p184
        $region42: #{conv_lstm_forward.15} parent=23 // pred_check_branch
          %306 = sbr.rel (%p304) target = $region44
        $region43: #{conv_lstm_forward.15} parent=23 // pred_region
          %s307 = smul.u32 32, %s18
          %p308 = scmp.lt.s32.totalorder %s307, 63
          %s309 = scalar_select %p308, %s307, 63
          %s310 = smul.addr %s309, 8
          %s311 = scalar_lea.vmem %s6, %s310
          %s312 = smul.u32 32, %s18
        $region44: #{conv_lstm_forward.15} parent=23 // pred_fallthru
          _
      $region24: #{conv_lstm_forward.15} parent=5 // pred_fallthru
        _
      %p313 = scmp.le.s32.totalorder 1, %s18
      %p314 = scmp.lt.s32.totalorder %s18, 3
      %p315 = pnand %p313, %p314
      %p316 = pneg %p315
      // Predicated region
      $region45: #{conv_lstm_forward.15} parent=5 // pred_check
        _
      $region46: #{conv_lstm_forward.15} parent=5 // pred_check_branch
        %318 = sbr.rel (%p315) target = $region48
      $region47: #{conv_lstm_forward.15} parent=5 // pred_region
        %s319 = ssub.s32 %s18, 1
        %s320 = smul.u32 32, %s23
        %p321 = scmp.lt.s32.totalorder %s320, 63
        %s322 = scalar_select %p321, %s320, 63
        %s323 = smul.addr %s322, 2
        %s324 = smul.addr %s323, 8
        %s325 = scalar_lea.vmem %s0, %s324
        %p326 = pneg %p44
        %p327 = pneg %p41
        %p328 = pneg %p65
        %p329 = pneg %p62
        %p330 = pneg %p86
        %p331 = pneg %p83
        %s332 = smul.u32 32, %s23
        %p333 = scmp.lt.s32.totalorder %s332, 63
        %s334 = scalar_select %p333, %s332, 63
        %s335 = smul.addr %s334, 8
        %s336 = scalar_lea.vmem %s3, %s335
        %p337 = pneg %p112
        %p338 = pneg %p109
        %s339 = smul.u32 32, %s23
        %p340 = scmp.lt.s32.totalorder %s339, 63
        %s341 = scalar_select %p340, %s339, 63
        %s342 = smul.addr %s341, 8
        %s343 = scalar_lea.vmem %s4, %s342
        %p344 = pneg %p138
        %p345 = pneg %p135
        %s346 = smul.u32 32, %s23
        %p347 = scmp.lt.s32.totalorder %s346, 63
        %s348 = scalar_select %p347, %s346, 63
        %s349 = smul.addr %s348, 8
        %s350 = scalar_lea.vmem %s5, %s349
        %p351 = pneg %p164
        %p352 = pneg %p161
        %s353 = smul.u32 32, %s23
        %p354 = scmp.lt.s32.totalorder %s353, 63
        %s355 = scalar_select %p354, %s353, 63
        %s356 = smul.addr %s355, 8
        %s357 = scalar_lea.vmem %s6, %s356
        %p358 = pneg %p190
        %p359 = pneg %p187
        %p360 = pneg %p216
        %p361 = pneg %p213
        %s362 = smul.u32 32, %s23
        %p363 = scmp.lt.s32.totalorder %s362, 63
        %s364 = scalar_select %p363, %s362, 63
        %s365 = smul.addr %s364, 8
        %s366 = scalar_lea.vmem %s7, %s365
        %p367 = pneg %p242
        %p368 = pneg %p239
        %s369 = sand.u32 %s229, 1
        %s370 = scalar_lea.sflag [#allocation3], %s369
        %s371 = sand.u32 %s229, 1
        %s372 = smul.addr %s371, 256
        %s373 = scalar_lea.vmem [#allocation2], %s372
        %s374 = smul.u32 32, %s23
        %p375 = scmp.lt.s32.totalorder %s374, 63
        %s376 = scalar_select %p375, %s374, 63
        %s377 = smul.addr %s376, 2
        %s378 = smul.addr %s377, 8
        %s379 = scalar_lea.vmem %s0, %s378
        %s380 = smul.u32 32, %s23
        %s381 = smul.u32 32, %s23
        %p382 = scmp.lt.s32.totalorder %s381, 63
        %s383 = scalar_select %p382, %s381, 63
        %s384 = smul.addr %s383, 8
        %s385 = scalar_lea.vmem %s3, %s384
        %s386 = smul.u32 32, %s23
        %s387 = smul.u32 32, %s23
        %p388 = scmp.lt.s32.totalorder %s387, 63
        %s389 = scalar_select %p388, %s387, 63
        %s390 = smul.addr %s389, 8
        %s391 = scalar_lea.vmem %s4, %s390
        %s392 = smul.u32 32, %s23
        %s393 = smul.u32 32, %s23
        %p394 = scmp.lt.s32.totalorder %s393, 63
        %s395 = scalar_select %p394, %s393, 63
        %s396 = smul.addr %s395, 8
        %s397 = scalar_lea.vmem %s5, %s396
        %s398 = smul.u32 32, %s23
        %s399 = smul.u32 32, %s23
        %p400 = scmp.lt.s32.totalorder %s399, 63
        %s401 = scalar_select %p400, %s399, 63
        %s402 = smul.addr %s401, 8
        %s403 = scalar_lea.vmem %s6, %s402
        %s404 = smul.u32 32, %s23
        %s405 = smul.u32 32, %s23
        %p406 = scmp.lt.s32.totalorder %s405, 63
        %s407 = scalar_select %p406, %s405, 63
        %s408 = smul.addr %s407, 8
        %s409 = scalar_lea.vmem %s7, %s408
        %s410 = smul.u32 32, %s23
        %s411 = smul.u32 32, %s23
        %v412 = vld [vmem:[%s379] sm:$0xff]
        %v413 = vld [vmem:[%s379 + $0x8] sm:$0xff]
        %v414 = vld [vmem:[%s379 + $0x10] sm:$0xff]
        %v415 = vld [vmem:[%s379 + $0x18] sm:$0xff]
        %v416 = vld [vmem:[%s379 + $0x20] sm:$0xff]
        %v417 = vld [vmem:[%s379 + $0x28] sm:$0xff]
        %v418 = vld [vmem:[%s379 + $0x30] sm:$0xff]
        %v419 = vld [vmem:[%s379 + $0x38] sm:$0xff]
        %v420 = vld [vmem:[%s379 + $0x40] sm:$0xff]
        %v421 = vld [vmem:[%s379 + $0x48] sm:$0xff]
        %v422 = vld [vmem:[%s379 + $0x50] sm:$0xff]
        %v423 = vld [vmem:[%s379 + $0x58] sm:$0xff]
        %v424 = vld [vmem:[%s379 + $0x60] sm:$0xff]
        %v425 = vld [vmem:[%s379 + $0x68] sm:$0xff]
        %v426 = vld [vmem:[%s379 + $0x70] sm:$0xff]
        %v427 = vld [vmem:[%s379 + $0x78] sm:$0xff]
        %v428 = vld [vmem:[%s379 + $0x80] sm:$0xff]
        %v429 = vld [vmem:[%s379 + $0x88] sm:$0xff]
        %v430 = vld [vmem:[%s379 + $0x90] sm:$0xff]
        %v431 = vld [vmem:[%s379 + $0x98] sm:$0xff]
        %v432 = vld [vmem:[%s379 + $0xa0] sm:$0xff]
        %v433 = vld [vmem:[%s379 + $0xa8] sm:$0xff]
        %v434 = vld [vmem:[%s379 + $0xb0] sm:$0xff]
        %v435 = vld [vmem:[%s379 + $0xb8] sm:$0xff]
        %v436 = vld [vmem:[%s379 + $0xc0] sm:$0xff]
        %v437 = vld [vmem:[%s379 + $0xc8] sm:$0xff]
        %v438 = vld [vmem:[%s379 + $0xd0] sm:$0xff]
        %v439 = vld [vmem:[%s379 + $0xd8] sm:$0xff]
        %v440 = vld [vmem:[%s379 + $0xe0] sm:$0xff]
        %v441 = vld [vmem:[%s379 + $0xe8] sm:$0xff]
        %v442 = vld [vmem:[%s379 + $0xf0] sm:$0xff]
        %v443 = vld [vmem:[%s379 + $0xf8] sm:$0xff]
        %v444 = vld [vmem:[%s379 + $0x100] sm:$0xff]
        %v445 = vld [vmem:[%s379 + $0x108] sm:$0xff]
        %v446 = vld [vmem:[%s379 + $0x110] sm:$0xff]
        %v447 = vld [vmem:[%s379 + $0x118] sm:$0xff]
        %v448 = vld [vmem:[%s379 + $0x120] sm:$0xff]
        %v449 = vld [vmem:[%s379 + $0x128] sm:$0xff]
        %v450 = vld [vmem:[%s379 + $0x130] sm:$0xff]
        %v451 = vld [vmem:[%s379 + $0x138] sm:$0xff]
        %v452 = vld [vmem:[%s379 + $0x140] sm:$0xff]
        %v453 = vld [vmem:[%s379 + $0x148] sm:$0xff]
        %v454 = vld [vmem:[%s379 + $0x150] sm:$0xff]
        %v455 = vld [vmem:[%s379 + $0x158] sm:$0xff]
        %v456 = vld [vmem:[%s379 + $0x160] sm:$0xff]
        %v457 = vld [vmem:[%s379 + $0x168] sm:$0xff]
        %v458 = vld [vmem:[%s379 + $0x170] sm:$0xff]
        %v459 = vld [vmem:[%s379 + $0x178] sm:$0xff]
        %v460 = vld [vmem:[%s379 + $0x180] sm:$0xff]
        %v461 = vld [vmem:[%s379 + $0x188] sm:$0xff]
        %v462 = vld [vmem:[%s379 + $0x190] sm:$0xff]
        %v463 = vld [vmem:[%s379 + $0x198] sm:$0xff]
        %v464 = vld [vmem:[%s379 + $0x1a0] sm:$0xff]
        %v465 = vld [vmem:[%s379 + $0x1a8] sm:$0xff]
        %v466 = vld [vmem:[%s379 + $0x1b0] sm:$0xff]
        %v467 = vld [vmem:[%s379 + $0x1b8] sm:$0xff]
        %v468 = vld [vmem:[%s379 + $0x1c0] sm:$0xff]
        %v469 = vld [vmem:[%s379 + $0x1c8] sm:$0xff]
        %v470 = vld [vmem:[%s379 + $0x1d0] sm:$0xff]
        %v471 = vld [vmem:[%s379 + $0x1d8] sm:$0xff]
        %v472 = vld [vmem:[%s379 + $0x1e0] sm:$0xff]
        %v473 = vld [vmem:[%s379 + $0x1e8] sm:$0xff]
        %v474 = vld [vmem:[%s379 + $0x1f0] sm:$0xff]
        %v475 = vld [vmem:[%s379 + $0x1f8] sm:$0xff]
        %v476 = vld [vmem:[%s1] sm:$0xff]
        %v477 = vld [vmem:[%s1 + $0x8] sm:$0xff]
        %v478 = vld [vmem:[%s1 + $0x10] sm:$0xff]
        %v479 = vld [vmem:[%s1 + $0x18] sm:$0xff]
        %v480 = vld [vmem:[%s1 + $0x20] sm:$0xff]
        %v481 = vld [vmem:[%s1 + $0x28] sm:$0xff]
        %v482 = vld [vmem:[%s1 + $0x30] sm:$0xff]
        %v483 = vld [vmem:[%s1 + $0x38] sm:$0xff]
        %v484 = vld [vmem:[%s1 + $0x40] sm:$0xff]
        %v485 = vld [vmem:[%s1 + $0x48] sm:$0xff]
        %v486 = vld [vmem:[%s1 + $0x50] sm:$0xff]
        %v487 = vld [vmem:[%s1 + $0x58] sm:$0xff]
        %v488 = vld [vmem:[%s1 + $0x60] sm:$0xff]
        %v489 = vld [vmem:[%s1 + $0x68] sm:$0xff]
        %v490 = vld [vmem:[%s1 + $0x70] sm:$0xff]
        %v491 = vld [vmem:[%s1 + $0x78] sm:$0xff]
        %v492 = vld [vmem:[%s1 + $0x80] sm:$0xff]
        %v493 = vld [vmem:[%s1 + $0x88] sm:$0xff]
        %v494 = vld [vmem:[%s1 + $0x90] sm:$0xff]
        %v495 = vld [vmem:[%s1 + $0x98] sm:$0xff]
        %v496 = vld [vmem:[%s1 + $0xa0] sm:$0xff]
        %v497 = vld [vmem:[%s1 + $0xa8] sm:$0xff]
        %v498 = vld [vmem:[%s1 + $0xb0] sm:$0xf]
        %v499 = vld [vmem:[%s2] sm:$0x1]
        %v501 = vperm.slane %v499, 0
        %vm503 = vcmask 424960
        %v505 = vsel %vm503, %v413, 0
        %v508 = vsel %vm503, %v415, 0
        %v511 = vsel %vm503, %v417, 0
        %v514 = vsel %vm503, %v419, 0
        %v517 = vsel %vm503, %v421, 0
        %v520 = vsel %vm503, %v423, 0
        %v523 = vsel %vm503, %v425, 0
        %v526 = vsel %vm503, %v427, 0
        %v529 = vsel %vm503, %v429, 0
        %v532 = vsel %vm503, %v431, 0
        %v535 = vsel %vm503, %v433, 0
        %v538 = vsel %vm503, %v435, 0
        %v541 = vsel %vm503, %v437, 0
        %v544 = vsel %vm503, %v439, 0
        %v547 = vsel %vm503, %v441, 0
        %v550 = vsel %vm503, %v443, 0
        %v553 = vsel %vm503, %v445, 0
        %v556 = vsel %vm503, %v447, 0
        %v559 = vsel %vm503, %v449, 0
        %v562 = vsel %vm503, %v451, 0
        %v565 = vsel %vm503, %v453, 0
        %v568 = vsel %vm503, %v455, 0
        %v571 = vsel %vm503, %v457, 0
        %v574 = vsel %vm503, %v459, 0
        %v577 = vsel %vm503, %v461, 0
        %v580 = vsel %vm503, %v463, 0
        %v583 = vsel %vm503, %v465, 0
        %v586 = vsel %vm503, %v467, 0
        %v589 = vsel %vm503, %v469, 0
        %v592 = vsel %vm503, %v471, 0
        %v595 = vsel %vm503, %v473, 0
        %v598 = vsel %vm503, %v475, 0
        %vm600 = vcmask 1043456
        %v602 = vsel %vm600, %v498, 0
        %604 = vmatpush.msra.mxu0 %v491
        %605 = vmatpush.msra.mxu0 %v490
        %606 = vmatpush.msra.mxu0 %v489
        %607 = vmatpush.msra.mxu0 %v488
        %608 = vmatpush.msra.mxu0 %v487
        %609 = vmatpush.msra.mxu0 %v486
        %610 = vmatpush.msra.mxu0 %v485
        %611 = vmatpush.msra.mxu0 %v484
        %612 = vmatpush.msra.mxu0 %v483
        %613 = vmatpush.msra.mxu0 %v482
        %614 = vmatpush.msra.mxu0 %v481
        %615 = vmatpush.msra.mxu0 %v480
        %616 = vmatpush.msra.mxu0 %v479
        %617 = vmatpush.msra.mxu0 %v478
        %618 = vmatpush.msra.mxu0 %v477
        %619 = vmatpush.msra.mxu0 %v476
        %620 = vmatmul.f32.gmra.mxu0 %v412
        %v621 = vpop.f32.mrf.mxu0
        %v622 = vadd.f32 %v501, %v621
        %623 = vmatmul.f32.gmra.mxu0 %v414
        %v624 = vpop.f32.mrf.mxu0
        %v625 = vadd.f32 %v501, %v624
        %626 = vmatmul.f32.gmra.mxu0 %v416
        %v627 = vpop.f32.mrf.mxu0
        %v628 = vadd.f32 %v501, %v627
        %629 = vmatmul.f32.gmra.mxu0 %v418
        %v630 = vpop.f32.mrf.mxu0
        %v631 = vadd.f32 %v501, %v630
        %632 = vmatmul.f32.gmra.mxu0 %v420
        %v633 = vpop.f32.mrf.mxu0
        %v634 = vadd.f32 %v501, %v633
        %635 = vmatmul.f32.gmra.mxu0 %v422
        %v636 = vpop.f32.mrf.mxu0
        %v637 = vadd.f32 %v501, %v636
        %638 = vmatmul.f32.gmra.mxu0 %v424
        %v639 = vpop.f32.mrf.mxu0
        %v640 = vadd.f32 %v501, %v639
        %641 = vmatmul.f32.gmra.mxu0 %v426
        %v642 = vpop.f32.mrf.mxu0
        %v643 = vadd.f32 %v501, %v642
        %644 = vmatmul.f32.gmra.mxu0 %v428
        %v645 = vpop.f32.mrf.mxu0
        %v646 = vadd.f32 %v501, %v645
        %647 = vmatmul.f32.gmra.mxu0 %v430
        %v648 = vpop.f32.mrf.mxu0
        %v649 = vadd.f32 %v501, %v648
        %650 = vmatmul.f32.gmra.mxu0 %v432
        %v651 = vpop.f32.mrf.mxu0
        %v652 = vadd.f32 %v501, %v651
        %653 = vmatmul.f32.gmra.mxu0 %v434
        %v654 = vpop.f32.mrf.mxu0
        %v655 = vadd.f32 %v501, %v654
        %656 = vmatmul.f32.gmra.mxu0 %v436
        %v657 = vpop.f32.mrf.mxu0
        %v658 = vadd.f32 %v501, %v657
        %659 = vmatmul.f32.gmra.mxu0 %v438
        %v660 = vpop.f32.mrf.mxu0
        %v661 = vadd.f32 %v501, %v660
        %662 = vmatmul.f32.gmra.mxu0 %v440
        %v663 = vpop.f32.mrf.mxu0
        %v664 = vadd.f32 %v501, %v663
        %665 = vmatmul.f32.gmra.mxu0 %v442
        %v666 = vpop.f32.mrf.mxu0
        %v667 = vadd.f32 %v501, %v666
        %668 = vmatmul.f32.gmra.mxu0 %v444
        %v669 = vpop.f32.mrf.mxu0
        %v670 = vadd.f32 %v501, %v669
        %671 = vmatmul.f32.gmra.mxu0 %v446
        %v672 = vpop.f32.mrf.mxu0
        %v673 = vadd.f32 %v501, %v672
        %674 = vmatmul.f32.gmra.mxu0 %v448
        %v675 = vpop.f32.mrf.mxu0
        %v676 = vadd.f32 %v501, %v675
        %677 = vmatmul.f32.gmra.mxu0 %v450
        %v678 = vpop.f32.mrf.mxu0
        %v679 = vadd.f32 %v501, %v678
        %680 = vmatmul.f32.gmra.mxu0 %v452
        %v681 = vpop.f32.mrf.mxu0
        %v682 = vadd.f32 %v501, %v681
        %683 = vmatmul.f32.gmra.mxu0 %v454
        %v684 = vpop.f32.mrf.mxu0
        %v685 = vadd.f32 %v501, %v684
        %686 = vmatmul.f32.gmra.mxu0 %v456
        %v687 = vpop.f32.mrf.mxu0
        %v688 = vadd.f32 %v501, %v687
        %689 = vmatmul.f32.gmra.mxu0 %v458
        %v690 = vpop.f32.mrf.mxu0
        %v691 = vadd.f32 %v501, %v690
        %692 = vmatmul.f32.gmra.mxu0 %v460
        %v693 = vpop.f32.mrf.mxu0
        %v694 = vadd.f32 %v501, %v693
        %695 = vmatmul.f32.gmra.mxu0 %v462
        %v696 = vpop.f32.mrf.mxu0
        %v697 = vadd.f32 %v501, %v696
        %698 = vmatmul.f32.gmra.mxu0 %v464
        %v699 = vpop.f32.mrf.mxu0
        %v700 = vadd.f32 %v501, %v699
        %701 = vmatmul.f32.gmra.mxu0 %v466
        %v702 = vpop.f32.mrf.mxu0
        %v703 = vadd.f32 %v501, %v702
        %704 = vmatmul.f32.gmra.mxu0 %v468
        %v705 = vpop.f32.mrf.mxu0
        %v706 = vadd.f32 %v501, %v705
        %707 = vmatmul.f32.gmra.mxu0 %v470
        %v708 = vpop.f32.mrf.mxu0
        %v709 = vadd.f32 %v501, %v708
        %710 = vmatmul.f32.gmra.mxu0 %v472
        %v711 = vpop.f32.mrf.mxu0
        %v712 = vadd.f32 %v501, %v711
        %713 = vmatmul.f32.gmra.mxu0 %v474
        %v714 = vpop.f32.mrf.mxu0
        %v715 = vadd.f32 %v501, %v714
        %716 = vdwg.mxu0
        %717 = vmatpush.msra.mxu0 0.0
        %718 = vmatpush.msra.mxu0 0.0
        %719 = vmatpush.msra.mxu0 0.0
        %720 = vmatpush.msra.mxu0 0.0
        %721 = vmatpush.msra.mxu0 0.0
        %722 = vmatpush.msra.mxu0 0.0
        %723 = vmatpush.msra.mxu0 0.0
        %724 = vmatpush.msra.mxu0 0.0
        %725 = vmatpush.msra.mxu0 0.0
        %726 = vmatpush.msra.mxu0 %v602
        %727 = vmatpush.msra.mxu0 %v497
        %728 = vmatpush.msra.mxu0 %v496
        %729 = vmatpush.msra.mxu0 %v495
        %730 = vmatpush.msra.mxu0 %v494
        %731 = vmatpush.msra.mxu0 %v493
        %732 = vmatpush.msra.mxu0 %v492
        %733 = vmatmul.f32.gmra.mxu0 %v505
        %v734 = vpop.f32.mrf.mxu0
        %v735 = vadd.f32 %v622, %v734
        %736 = vmatmul.f32.gmra.mxu0 %v508
        %v737 = vpop.f32.mrf.mxu0
        %v738 = vadd.f32 %v625, %v737
        %739 = vmatmul.f32.gmra.mxu0 %v511
        %v740 = vpop.f32.mrf.mxu0
        %v741 = vadd.f32 %v628, %v740
        %742 = vmatmul.f32.gmra.mxu0 %v514
        %v743 = vpop.f32.mrf.mxu0
        %v744 = vadd.f32 %v631, %v743
        %745 = vmatmul.f32.gmra.mxu0 %v517
        %v746 = vpop.f32.mrf.mxu0
        %v747 = vadd.f32 %v634, %v746
        %748 = vmatmul.f32.gmra.mxu0 %v520
        %v749 = vpop.f32.mrf.mxu0
        %v750 = vadd.f32 %v637, %v749
        %751 = vmatmul.f32.gmra.mxu0 %v523
        %v752 = vpop.f32.mrf.mxu0
        %v753 = vadd.f32 %v640, %v752
        %754 = vmatmul.f32.gmra.mxu0 %v526
        %v755 = vpop.f32.mrf.mxu0
        %v756 = vadd.f32 %v643, %v755
        %757 = vmatmul.f32.gmra.mxu0 %v529
        %v758 = vpop.f32.mrf.mxu0
        %v759 = vadd.f32 %v646, %v758
        %760 = vmatmul.f32.gmra.mxu0 %v532
        %v761 = vpop.f32.mrf.mxu0
        %v762 = vadd.f32 %v649, %v761
        %763 = vmatmul.f32.gmra.mxu0 %v535
        %v764 = vpop.f32.mrf.mxu0
        %v765 = vadd.f32 %v652, %v764
        %766 = vmatmul.f32.gmra.mxu0 %v538
        %v767 = vpop.f32.mrf.mxu0
        %v768 = vadd.f32 %v655, %v767
        %769 = vmatmul.f32.gmra.mxu0 %v541
        %v770 = vpop.f32.mrf.mxu0
        %v771 = vadd.f32 %v658, %v770
        %772 = vmatmul.f32.gmra.mxu0 %v544
        %v773 = vpop.f32.mrf.mxu0
        %v774 = vadd.f32 %v661, %v773
        %775 = vmatmul.f32.gmra.mxu0 %v547
        %v776 = vpop.f32.mrf.mxu0
        %v777 = vadd.f32 %v664, %v776
        %778 = vmatmul.f32.gmra.mxu0 %v550
        %v779 = vpop.f32.mrf.mxu0
        %v780 = vadd.f32 %v667, %v779
        %781 = vmatmul.f32.gmra.mxu0 %v553
        %v782 = vpop.f32.mrf.mxu0
        %v783 = vadd.f32 %v670, %v782
        %784 = vmatmul.f32.gmra.mxu0 %v556
        %v785 = vpop.f32.mrf.mxu0
        %v786 = vadd.f32 %v673, %v785
        %787 = vmatmul.f32.gmra.mxu0 %v559
        %v788 = vpop.f32.mrf.mxu0
        %v789 = vadd.f32 %v676, %v788
        %790 = vmatmul.f32.gmra.mxu0 %v562
        %v791 = vpop.f32.mrf.mxu0
        %v792 = vadd.f32 %v679, %v791
        %793 = vmatmul.f32.gmra.mxu0 %v565
        %v794 = vpop.f32.mrf.mxu0
        %v795 = vadd.f32 %v682, %v794
        %796 = vmatmul.f32.gmra.mxu0 %v568
        %v797 = vpop.f32.mrf.mxu0
        %v798 = vadd.f32 %v685, %v797
        %799 = vmatmul.f32.gmra.mxu0 %v571
        %v800 = vpop.f32.mrf.mxu0
        %v801 = vadd.f32 %v688, %v800
        %802 = vmatmul.f32.gmra.mxu0 %v574
        %v803 = vpop.f32.mrf.mxu0
        %v804 = vadd.f32 %v691, %v803
        %805 = vmatmul.f32.gmra.mxu0 %v577
        %v806 = vpop.f32.mrf.mxu0
        %v807 = vadd.f32 %v694, %v806
        %808 = vmatmul.f32.gmra.mxu0 %v580
        %v809 = vpop.f32.mrf.mxu0
        %v810 = vadd.f32 %v697, %v809
        %811 = vmatmul.f32.gmra.mxu0 %v583
        %v812 = vpop.f32.mrf.mxu0
        %v813 = vadd.f32 %v700, %v812
        %814 = vmatmul.f32.gmra.mxu0 %v586
        %v815 = vpop.f32.mrf.mxu0
        %v816 = vadd.f32 %v703, %v815
        %817 = vmatmul.f32.gmra.mxu0 %v589
        %v818 = vpop.f32.mrf.mxu0
        %v819 = vadd.f32 %v706, %v818
        %820 = vmatmul.f32.gmra.mxu0 %v592
        %v821 = vpop.f32.mrf.mxu0
        %v822 = vadd.f32 %v709, %v821
        %823 = vmatmul.f32.gmra.mxu0 %v595
        %v824 = vpop.f32.mrf.mxu0
        %v825 = vadd.f32 %v712, %v824
        %826 = vmatmul.f32.gmra.mxu0 %v598
        %v827 = vpop.f32.mrf.mxu0
        %v828 = vadd.f32 %v715, %v827
        %829 = vdwg.mxu0
        %v830 = vld [vmem:[%s385] sm:$0xff]
        %v831 = vld [vmem:[%s385 + $0x8] sm:$0xff]
        %v832 = vld [vmem:[%s385 + $0x10] sm:$0xff]
        %v833 = vld [vmem:[%s385 + $0x18] sm:$0xff]
        %v834 = vld [vmem:[%s385 + $0x20] sm:$0xff]
        %v835 = vld [vmem:[%s385 + $0x28] sm:$0xff]
        %v836 = vld [vmem:[%s385 + $0x30] sm:$0xff]
        %v837 = vld [vmem:[%s385 + $0x38] sm:$0xff]
        %v838 = vld [vmem:[%s385 + $0x40] sm:$0xff]
        %v839 = vld [vmem:[%s385 + $0x48] sm:$0xff]
        %v840 = vld [vmem:[%s385 + $0x50] sm:$0xff]
        %v841 = vld [vmem:[%s385 + $0x58] sm:$0xff]
        %v842 = vld [vmem:[%s385 + $0x60] sm:$0xff]
        %v843 = vld [vmem:[%s385 + $0x68] sm:$0xff]
        %v844 = vld [vmem:[%s385 + $0x70] sm:$0xff]
        %v845 = vld [vmem:[%s385 + $0x78] sm:$0xff]
        %v846 = vld [vmem:[%s385 + $0x80] sm:$0xff]
        %v847 = vld [vmem:[%s385 + $0x88] sm:$0xff]
        %v848 = vld [vmem:[%s385 + $0x90] sm:$0xff]
        %v849 = vld [vmem:[%s385 + $0x98] sm:$0xff]
        %v850 = vld [vmem:[%s385 + $0xa0] sm:$0xff]
        %v851 = vld [vmem:[%s385 + $0xa8] sm:$0xff]
        %v852 = vld [vmem:[%s385 + $0xb0] sm:$0xff]
        %v853 = vld [vmem:[%s385 + $0xb8] sm:$0xff]
        %v854 = vld [vmem:[%s385 + $0xc0] sm:$0xff]
        %v855 = vld [vmem:[%s385 + $0xc8] sm:$0xff]
        %v856 = vld [vmem:[%s385 + $0xd0] sm:$0xff]
        %v857 = vld [vmem:[%s385 + $0xd8] sm:$0xff]
        %v858 = vld [vmem:[%s385 + $0xe0] sm:$0xff]
        %v859 = vld [vmem:[%s385 + $0xe8] sm:$0xff]
        %v860 = vld [vmem:[%s385 + $0xf0] sm:$0xff]
        %v861 = vld [vmem:[%s385 + $0xf8] sm:$0xff]
        %v862 = vld [vmem:[%s391] sm:$0xff]
        %v863 = vld [vmem:[%s391 + $0x8] sm:$0xff]
        %v864 = vld [vmem:[%s391 + $0x10] sm:$0xff]
        %v865 = vld [vmem:[%s391 + $0x18] sm:$0xff]
        %v866 = vld [vmem:[%s391 + $0x20] sm:$0xff]
        %v867 = vld [vmem:[%s391 + $0x28] sm:$0xff]
        %v868 = vld [vmem:[%s391 + $0x30] sm:$0xff]
        %v869 = vld [vmem:[%s391 + $0x38] sm:$0xff]
        %v870 = vld [vmem:[%s391 + $0x40] sm:$0xff]
        %v871 = vld [vmem:[%s391 + $0x48] sm:$0xff]
        %v872 = vld [vmem:[%s391 + $0x50] sm:$0xff]
        %v873 = vld [vmem:[%s391 + $0x58] sm:$0xff]
        %v874 = vld [vmem:[%s391 + $0x60] sm:$0xff]
        %v875 = vld [vmem:[%s391 + $0x68] sm:$0xff]
        %v876 = vld [vmem:[%s391 + $0x70] sm:$0xff]
        %v877 = vld [vmem:[%s391 + $0x78] sm:$0xff]
        %v878 = vld [vmem:[%s391 + $0x80] sm:$0xff]
        %v879 = vld [vmem:[%s391 + $0x88] sm:$0xff]
        %v880 = vld [vmem:[%s391 + $0x90] sm:$0xff]
        %v881 = vld [vmem:[%s391 + $0x98] sm:$0xff]
        %v882 = vld [vmem:[%s391 + $0xa0] sm:$0xff]
        %v883 = vld [vmem:[%s391 + $0xa8] sm:$0xff]
        %v884 = vld [vmem:[%s391 + $0xb0] sm:$0xff]
        %v885 = vld [vmem:[%s391 + $0xb8] sm:$0xff]
        %v886 = vld [vmem:[%s391 + $0xc0] sm:$0xff]
        %v887 = vld [vmem:[%s391 + $0xc8] sm:$0xff]
        %v888 = vld [vmem:[%s391 + $0xd0] sm:$0xff]
        %v889 = vld [vmem:[%s391 + $0xd8] sm:$0xff]
        %v890 = vld [vmem:[%s391 + $0xe0] sm:$0xff]
        %v891 = vld [vmem:[%s391 + $0xe8] sm:$0xff]
        %v892 = vld [vmem:[%s391 + $0xf0] sm:$0xff]
        %v893 = vld [vmem:[%s391 + $0xf8] sm:$0xff]
        %v894 = vmul.f32 %v830, %v862
        %v895 = vmul.f32 %v831, %v863
        %v896 = vmul.f32 %v832, %v864
        %v897 = vmul.f32 %v833, %v865
        %v898 = vmul.f32 %v834, %v866
        %v899 = vmul.f32 %v835, %v867
        %v900 = vmul.f32 %v836, %v868
        %v901 = vmul.f32 %v837, %v869
        %v902 = vmul.f32 %v838, %v870
        %v903 = vmul.f32 %v839, %v871
        %v904 = vmul.f32 %v840, %v872
        %v905 = vmul.f32 %v841, %v873
        %v906 = vmul.f32 %v842, %v874
        %v907 = vmul.f32 %v843, %v875
        %v908 = vmul.f32 %v844, %v876
        %v909 = vmul.f32 %v845, %v877
        %v910 = vmul.f32 %v846, %v878
        %v911 = vmul.f32 %v847, %v879
        %v912 = vmul.f32 %v848, %v880
        %v913 = vmul.f32 %v849, %v881
        %v914 = vmul.f32 %v850, %v882
        %v915 = vmul.f32 %v851, %v883
        %v916 = vmul.f32 %v852, %v884
        %v917 = vmul.f32 %v853, %v885
        %v918 = vmul.f32 %v854, %v886
        %v919 = vmul.f32 %v855, %v887
        %v920 = vmul.f32 %v856, %v888
        %v921 = vmul.f32 %v857, %v889
        %v922 = vmul.f32 %v858, %v890
        %v923 = vmul.f32 %v859, %v891
        %v924 = vmul.f32 %v860, %v892
        %v925 = vmul.f32 %v861, %v893
        %v926 = vadd.f32 %v735, %v894
        %v927 = vadd.f32 %v738, %v895
        %v928 = vadd.f32 %v741, %v896
        %v929 = vadd.f32 %v744, %v897
        %v930 = vadd.f32 %v747, %v898
        %v931 = vadd.f32 %v750, %v899
        %v932 = vadd.f32 %v753, %v900
        %v933 = vadd.f32 %v756, %v901
        %v934 = vadd.f32 %v759, %v902
        %v935 = vadd.f32 %v762, %v903
        %v936 = vadd.f32 %v765, %v904
        %v937 = vadd.f32 %v768, %v905
        %v938 = vadd.f32 %v771, %v906
        %v939 = vadd.f32 %v774, %v907
        %v940 = vadd.f32 %v777, %v908
        %v941 = vadd.f32 %v780, %v909
        %v942 = vadd.f32 %v783, %v910
        %v943 = vadd.f32 %v786, %v911
        %v944 = vadd.f32 %v789, %v912
        %v945 = vadd.f32 %v792, %v913
        %v946 = vadd.f32 %v795, %v914
        %v947 = vadd.f32 %v798, %v915
        %v948 = vadd.f32 %v801, %v916
        %v949 = vadd.f32 %v804, %v917
        %v950 = vadd.f32 %v807, %v918
        %v951 = vadd.f32 %v810, %v919
        %v952 = vadd.f32 %v813, %v920
        %v953 = vadd.f32 %v816, %v921
        %v954 = vadd.f32 %v819, %v922
        %v955 = vadd.f32 %v822, %v923
        %v956 = vadd.f32 %v825, %v924
        %v957 = vadd.f32 %v828, %v925
        %v958 = vxor.u32 %v926, 2147483648
        %v959 = vxor.u32 %v927, 2147483648
        %v960 = vxor.u32 %v928, 2147483648
        %v961 = vxor.u32 %v929, 2147483648
        %v962 = vxor.u32 %v930, 2147483648
        %v963 = vxor.u32 %v931, 2147483648
        %v964 = vxor.u32 %v932, 2147483648
        %v965 = vxor.u32 %v933, 2147483648
        %v966 = vxor.u32 %v934, 2147483648
        %v967 = vxor.u32 %v935, 2147483648
        %v968 = vxor.u32 %v936, 2147483648
        %v969 = vxor.u32 %v937, 2147483648
        %v970 = vxor.u32 %v938, 2147483648
        %v971 = vxor.u32 %v939, 2147483648
        %v972 = vxor.u32 %v940, 2147483648
        %v973 = vxor.u32 %v941, 2147483648
        %v974 = vxor.u32 %v942, 2147483648
        %v975 = vxor.u32 %v943, 2147483648
        %v976 = vxor.u32 %v944, 2147483648
        %v977 = vxor.u32 %v945, 2147483648
        %v978 = vxor.u32 %v946, 2147483648
        %v979 = vxor.u32 %v947, 2147483648
        %v980 = vxor.u32 %v948, 2147483648
        %v981 = vxor.u32 %v949, 2147483648
        %v982 = vxor.u32 %v950, 2147483648
        %v983 = vxor.u32 %v951, 2147483648
        %v984 = vxor.u32 %v952, 2147483648
        %v985 = vxor.u32 %v953, 2147483648
        %v986 = vxor.u32 %v954, 2147483648
        %v987 = vxor.u32 %v955, 2147483648
        %v988 = vxor.u32 %v956, 2147483648
        %v989 = vxor.u32 %v957, 2147483648
        %v990 = vmul.f32 %v958, 1.442695
        %v991 = vpow.pop %v990
        %v992 = vmul.f32 %v959, 1.442695
        %v993 = vpow.pop %v992
        %v994 = vmul.f32 %v960, 1.442695
        %v995 = vpow.pop %v994
        %v996 = vmul.f32 %v961, 1.442695
        %v997 = vpow.pop %v996
        %v998 = vmul.f32 %v962, 1.442695
        %v999 = vpow.pop %v998
        %v1000 = vmul.f32 %v963, 1.442695
        %v1001 = vpow.pop %v1000
        %v1002 = vmul.f32 %v964, 1.442695
        %v1003 = vpow.pop %v1002
        %v1004 = vmul.f32 %v965, 1.442695
        %v1005 = vpow.pop %v1004
        %v1006 = vmul.f32 %v966, 1.442695
        %v1007 = vpow.pop %v1006
        %v1008 = vmul.f32 %v967, 1.442695
        %v1009 = vpow.pop %v1008
        %v1010 = vmul.f32 %v968, 1.442695
        %v1011 = vpow.pop %v1010
        %v1012 = vmul.f32 %v969, 1.442695
        %v1013 = vpow.pop %v1012
        %v1014 = vmul.f32 %v970, 1.442695
        %v1015 = vpow.pop %v1014
        %v1016 = vmul.f32 %v971, 1.442695
        %v1017 = vpow.pop %v1016
        %v1018 = vmul.f32 %v972, 1.442695
        %v1019 = vpow.pop %v1018
        %v1020 = vmul.f32 %v973, 1.442695
        %v1021 = vpow.pop %v1020
        %v1022 = vmul.f32 %v974, 1.442695
        %v1023 = vpow.pop %v1022
        %v1024 = vmul.f32 %v975, 1.442695
        %v1025 = vpow.pop %v1024
        %v1026 = vmul.f32 %v976, 1.442695
        %v1027 = vpow.pop %v1026
        %v1028 = vmul.f32 %v977, 1.442695
        %v1029 = vpow.pop %v1028
        %v1030 = vmul.f32 %v978, 1.442695
        %v1031 = vpow.pop %v1030
        %v1032 = vmul.f32 %v979, 1.442695
        %v1033 = vpow.pop %v1032
        %v1034 = vmul.f32 %v980, 1.442695
        %v1035 = vpow.pop %v1034
        %v1036 = vmul.f32 %v981, 1.442695
        %v1037 = vpow.pop %v1036
        %v1038 = vmul.f32 %v982, 1.442695
        %v1039 = vpow.pop %v1038
        %v1040 = vmul.f32 %v983, 1.442695
        %v1041 = vpow.pop %v1040
        %v1042 = vmul.f32 %v984, 1.442695
        %v1043 = vpow.pop %v1042
        %v1044 = vmul.f32 %v985, 1.442695
        %v1045 = vpow.pop %v1044
        %v1046 = vmul.f32 %v986, 1.442695
        %v1047 = vpow.pop %v1046
        %v1048 = vmul.f32 %v987, 1.442695
        %v1049 = vpow.pop %v1048
        %v1050 = vmul.f32 %v988, 1.442695
        %v1051 = vpow.pop %v1050
        %v1052 = vmul.f32 %v989, 1.442695
        %v1053 = vpow.pop %v1052
        %v1054 = vadd.f32 %v991, 1.0
        %v1055 = vadd.f32 %v993, 1.0
        %v1056 = vadd.f32 %v995, 1.0
        %v1057 = vadd.f32 %v997, 1.0
        %v1058 = vadd.f32 %v999, 1.0
        %v1059 = vadd.f32 %v1001, 1.0
        %v1060 = vadd.f32 %v1003, 1.0
        %v1061 = vadd.f32 %v1005, 1.0
        %v1062 = vadd.f32 %v1007, 1.0
        %v1063 = vadd.f32 %v1009, 1.0
        %v1064 = vadd.f32 %v1011, 1.0
        %v1065 = vadd.f32 %v1013, 1.0
        %v1066 = vadd.f32 %v1015, 1.0
        %v1067 = vadd.f32 %v1017, 1.0
        %v1068 = vadd.f32 %v1019, 1.0
        %v1069 = vadd.f32 %v1021, 1.0
        %v1070 = vadd.f32 %v1023, 1.0
        %v1071 = vadd.f32 %v1025, 1.0
        %v1072 = vadd.f32 %v1027, 1.0
        %v1073 = vadd.f32 %v1029, 1.0
        %v1074 = vadd.f32 %v1031, 1.0
        %v1075 = vadd.f32 %v1033, 1.0
        %v1076 = vadd.f32 %v1035, 1.0
        %v1077 = vadd.f32 %v1037, 1.0
        %v1078 = vadd.f32 %v1039, 1.0
        %v1079 = vadd.f32 %v1041, 1.0
        %v1080 = vadd.f32 %v1043, 1.0
        %v1081 = vadd.f32 %v1045, 1.0
        %v1082 = vadd.f32 %v1047, 1.0
        %v1083 = vadd.f32 %v1049, 1.0
        %v1084 = vadd.f32 %v1051, 1.0
        %v1085 = vadd.f32 %v1053, 1.0
        %v1086 = vrcp.pop %v1054
        %v1087 = vmul.f32 %v1054, %v1086
        %v1088 = vsub.f32 1.0, %v1087
        %v1089 = vmul.f32 %v1086, %v1088
        %v1090 = vadd.f32 %v1086, %v1089
        %vm1091 = vweird.f32 %v1054
        %vm1092 = vweird.f32 %v1086
        %vm1093 = vmor %vm1091, %vm1092
        %v1094 = vsel %vm1093, %v1086, %v1090
        %v1095 = vand.u32 2147483647, %v1054
        %vm1096 = vcmp.eq.f32.partialorder %v1095, 8.507059e+37
        %v1097 = vand.u32 %v1054, 2147483648
        %v1098 = vor.u32 1.1754944e-38, %v1097
        %v1099 = vsel %vm1096, %v1098, %v1094
        %v1100 = vmul.f32 1.0, %v1099
        %v1101 = vrcp.pop %v1055
        %v1102 = vmul.f32 %v1055, %v1101
        %v1103 = vsub.f32 1.0, %v1102
        %v1104 = vmul.f32 %v1101, %v1103
        %v1105 = vadd.f32 %v1101, %v1104
        %vm1106 = vweird.f32 %v1055
        %vm1107 = vweird.f32 %v1101
        %vm1108 = vmor %vm1106, %vm1107
        %v1109 = vsel %vm1108, %v1101, %v1105
        %v1110 = vand.u32 2147483647, %v1055
        %vm1111 = vcmp.eq.f32.partialorder %v1110, 8.507059e+37
        %v1112 = vand.u32 %v1055, 2147483648
        %v1113 = vor.u32 1.1754944e-38, %v1112
        %v1114 = vsel %vm1111, %v1113, %v1109
        %v1115 = vmul.f32 1.0, %v1114
        %v1116 = vrcp.pop %v1056
        %v1117 = vmul.f32 %v1056, %v1116
        %v1118 = vsub.f32 1.0, %v1117
        %v1119 = vmul.f32 %v1116, %v1118
        %v1120 = vadd.f32 %v1116, %v1119
        %vm1121 = vweird.f32 %v1056
        %vm1122 = vweird.f32 %v1116
        %vm1123 = vmor %vm1121, %vm1122
        %v1124 = vsel %vm1123, %v1116, %v1120
        %v1125 = vand.u32 2147483647, %v1056
        %vm1126 = vcmp.eq.f32.partialorder %v1125, 8.507059e+37
        %v1127 = vand.u32 %v1056, 2147483648
        %v1128 = vor.u32 1.1754944e-38, %v1127
        %v1129 = vsel %vm1126, %v1128, %v1124
        %v1130 = vmul.f32 1.0, %v1129
        %v1131 = vrcp.pop %v1057
        %v1132 = vmul.f32 %v1057, %v1131
        %v1133 = vsub.f32 1.0, %v1132
        %v1134 = vmul.f32 %v1131, %v1133
        %v1135 = vadd.f32 %v1131, %v1134
        %vm1136 = vweird.f32 %v1057
        %vm1137 = vweird.f32 %v1131
        %vm1138 = vmor %vm1136, %vm1137
        %v1139 = vsel %vm1138, %v1131, %v1135
        %v1140 = vand.u32 2147483647, %v1057
        %vm1141 = vcmp.eq.f32.partialorder %v1140, 8.507059e+37
        %v1142 = vand.u32 %v1057, 2147483648
        %v1143 = vor.u32 1.1754944e-38, %v1142
        %v1144 = vsel %vm1141, %v1143, %v1139
        %v1145 = vmul.f32 1.0, %v1144
        %v1146 = vrcp.pop %v1058
        %v1147 = vmul.f32 %v1058, %v1146
        %v1148 = vsub.f32 1.0, %v1147
        %v1149 = vmul.f32 %v1146, %v1148
        %v1150 = vadd.f32 %v1146, %v1149
        %vm1151 = vweird.f32 %v1058
        %vm1152 = vweird.f32 %v1146
        %vm1153 = vmor %vm1151, %vm1152
        %v1154 = vsel %vm1153, %v1146, %v1150
        %v1155 = vand.u32 2147483647, %v1058
        %vm1156 = vcmp.eq.f32.partialorder %v1155, 8.507059e+37
        %v1157 = vand.u32 %v1058, 2147483648
        %v1158 = vor.u32 1.1754944e-38, %v1157
        %v1159 = vsel %vm1156, %v1158, %v1154
        %v1160 = vmul.f32 1.0, %v1159
        %v1161 = vrcp.pop %v1059
        %v1162 = vmul.f32 %v1059, %v1161
        %v1163 = vsub.f32 1.0, %v1162
        %v1164 = vmul.f32 %v1161, %v1163
        %v1165 = vadd.f32 %v1161, %v1164
        %vm1166 = vweird.f32 %v1059
        %vm1167 = vweird.f32 %v1161
        %vm1168 = vmor %vm1166, %vm1167
        %v1169 = vsel %vm1168, %v1161, %v1165
        %v1170 = vand.u32 2147483647, %v1059
        %vm1171 = vcmp.eq.f32.partialorder %v1170, 8.507059e+37
        %v1172 = vand.u32 %v1059, 2147483648
        %v1173 = vor.u32 1.1754944e-38, %v1172
        %v1174 = vsel %vm1171, %v1173, %v1169
        %v1175 = vmul.f32 1.0, %v1174
        %v1176 = vrcp.pop %v1060
        %v1177 = vmul.f32 %v1060, %v1176
        %v1178 = vsub.f32 1.0, %v1177
        %v1179 = vmul.f32 %v1176, %v1178
        %v1180 = vadd.f32 %v1176, %v1179
        %vm1181 = vweird.f32 %v1060
        %vm1182 = vweird.f32 %v1176
        %vm1183 = vmor %vm1181, %vm1182
        %v1184 = vsel %vm1183, %v1176, %v1180
        %v1185 = vand.u32 2147483647, %v1060
        %vm1186 = vcmp.eq.f32.partialorder %v1185, 8.507059e+37
        %v1187 = vand.u32 %v1060, 2147483648
        %v1188 = vor.u32 1.1754944e-38, %v1187
        %v1189 = vsel %vm1186, %v1188, %v1184
        %v1190 = vmul.f32 1.0, %v1189
        %v1191 = vrcp.pop %v1061
        %v1192 = vmul.f32 %v1061, %v1191
        %v1193 = vsub.f32 1.0, %v1192
        %v1194 = vmul.f32 %v1191, %v1193
        %v1195 = vadd.f32 %v1191, %v1194
        %vm1196 = vweird.f32 %v1061
        %vm1197 = vweird.f32 %v1191
        %vm1198 = vmor %vm1196, %vm1197
        %v1199 = vsel %vm1198, %v1191, %v1195
        %v1200 = vand.u32 2147483647, %v1061
        %vm1201 = vcmp.eq.f32.partialorder %v1200, 8.507059e+37
        %v1202 = vand.u32 %v1061, 2147483648
        %v1203 = vor.u32 1.1754944e-38, %v1202
        %v1204 = vsel %vm1201, %v1203, %v1199
        %v1205 = vmul.f32 1.0, %v1204
        %v1206 = vrcp.pop %v1062
        %v1207 = vmul.f32 %v1062, %v1206
        %v1208 = vsub.f32 1.0, %v1207
        %v1209 = vmul.f32 %v1206, %v1208
        %v1210 = vadd.f32 %v1206, %v1209
        %vm1211 = vweird.f32 %v1062
        %vm1212 = vweird.f32 %v1206
        %vm1213 = vmor %vm1211, %vm1212
        %v1214 = vsel %vm1213, %v1206, %v1210
        %v1215 = vand.u32 2147483647, %v1062
        %vm1216 = vcmp.eq.f32.partialorder %v1215, 8.507059e+37
        %v1217 = vand.u32 %v1062, 2147483648
        %v1218 = vor.u32 1.1754944e-38, %v1217
        %v1219 = vsel %vm1216, %v1218, %v1214
        %v1220 = vmul.f32 1.0, %v1219
        %v1221 = vrcp.pop %v1063
        %v1222 = vmul.f32 %v1063, %v1221
        %v1223 = vsub.f32 1.0, %v1222
        %v1224 = vmul.f32 %v1221, %v1223
        %v1225 = vadd.f32 %v1221, %v1224
        %vm1226 = vweird.f32 %v1063
        %vm1227 = vweird.f32 %v1221
        %vm1228 = vmor %vm1226, %vm1227
        %v1229 = vsel %vm1228, %v1221, %v1225
        %v1230 = vand.u32 2147483647, %v1063
        %vm1231 = vcmp.eq.f32.partialorder %v1230, 8.507059e+37
        %v1232 = vand.u32 %v1063, 2147483648
        %v1233 = vor.u32 1.1754944e-38, %v1232
        %v1234 = vsel %vm1231, %v1233, %v1229
        %v1235 = vmul.f32 1.0, %v1234
        %v1236 = vrcp.pop %v1064
        %v1237 = vmul.f32 %v1064, %v1236
        %v1238 = vsub.f32 1.0, %v1237
        %v1239 = vmul.f32 %v1236, %v1238
        %v1240 = vadd.f32 %v1236, %v1239
        %vm1241 = vweird.f32 %v1064
        %vm1242 = vweird.f32 %v1236
        %vm1243 = vmor %vm1241, %vm1242
        %v1244 = vsel %vm1243, %v1236, %v1240
        %v1245 = vand.u32 2147483647, %v1064
        %vm1246 = vcmp.eq.f32.partialorder %v1245, 8.507059e+37
        %v1247 = vand.u32 %v1064, 2147483648
        %v1248 = vor.u32 1.1754944e-38, %v1247
        %v1249 = vsel %vm1246, %v1248, %v1244
        %v1250 = vmul.f32 1.0, %v1249
        %v1251 = vrcp.pop %v1065
        %v1252 = vmul.f32 %v1065, %v1251
        %v1253 = vsub.f32 1.0, %v1252
        %v1254 = vmul.f32 %v1251, %v1253
        %v1255 = vadd.f32 %v1251, %v1254
        %vm1256 = vweird.f32 %v1065
        %vm1257 = vweird.f32 %v1251
        %vm1258 = vmor %vm1256, %vm1257
        %v1259 = vsel %vm1258, %v1251, %v1255
        %v1260 = vand.u32 2147483647, %v1065
        %vm1261 = vcmp.eq.f32.partialorder %v1260, 8.507059e+37
        %v1262 = vand.u32 %v1065, 2147483648
        %v1263 = vor.u32 1.1754944e-38, %v1262
        %v1264 = vsel %vm1261, %v1263, %v1259
        %v1265 = vmul.f32 1.0, %v1264
        %v1266 = vrcp.pop %v1066
        %v1267 = vmul.f32 %v1066, %v1266
        %v1268 = vsub.f32 1.0, %v1267
        %v1269 = vmul.f32 %v1266, %v1268
        %v1270 = vadd.f32 %v1266, %v1269
        %vm1271 = vweird.f32 %v1066
        %vm1272 = vweird.f32 %v1266
        %vm1273 = vmor %vm1271, %vm1272
        %v1274 = vsel %vm1273, %v1266, %v1270
        %v1275 = vand.u32 2147483647, %v1066
        %vm1276 = vcmp.eq.f32.partialorder %v1275, 8.507059e+37
        %v1277 = vand.u32 %v1066, 2147483648
        %v1278 = vor.u32 1.1754944e-38, %v1277
        %v1279 = vsel %vm1276, %v1278, %v1274
        %v1280 = vmul.f32 1.0, %v1279
        %v1281 = vrcp.pop %v1067
        %v1282 = vmul.f32 %v1067, %v1281
        %v1283 = vsub.f32 1.0, %v1282
        %v1284 = vmul.f32 %v1281, %v1283
        %v1285 = vadd.f32 %v1281, %v1284
        %vm1286 = vweird.f32 %v1067
        %vm1287 = vweird.f32 %v1281
        %vm1288 = vmor %vm1286, %vm1287
        %v1289 = vsel %vm1288, %v1281, %v1285
        %v1290 = vand.u32 2147483647, %v1067
        %vm1291 = vcmp.eq.f32.partialorder %v1290, 8.507059e+37
        %v1292 = vand.u32 %v1067, 2147483648
        %v1293 = vor.u32 1.1754944e-38, %v1292
        %v1294 = vsel %vm1291, %v1293, %v1289
        %v1295 = vmul.f32 1.0, %v1294
        %v1296 = vrcp.pop %v1068
        %v1297 = vmul.f32 %v1068, %v1296
        %v1298 = vsub.f32 1.0, %v1297
        %v1299 = vmul.f32 %v1296, %v1298
        %v1300 = vadd.f32 %v1296, %v1299
        %vm1301 = vweird.f32 %v1068
        %vm1302 = vweird.f32 %v1296
        %vm1303 = vmor %vm1301, %vm1302
        %v1304 = vsel %vm1303, %v1296, %v1300
        %v1305 = vand.u32 2147483647, %v1068
        %vm1306 = vcmp.eq.f32.partialorder %v1305, 8.507059e+37
        %v1307 = vand.u32 %v1068, 2147483648
        %v1308 = vor.u32 1.1754944e-38, %v1307
        %v1309 = vsel %vm1306, %v1308, %v1304
        %v1310 = vmul.f32 1.0, %v1309
        %v1311 = vrcp.pop %v1069
        %v1312 = vmul.f32 %v1069, %v1311
        %v1313 = vsub.f32 1.0, %v1312
        %v1314 = vmul.f32 %v1311, %v1313
        %v1315 = vadd.f32 %v1311, %v1314
        %vm1316 = vweird.f32 %v1069
        %vm1317 = vweird.f32 %v1311
        %vm1318 = vmor %vm1316, %vm1317
        %v1319 = vsel %vm1318, %v1311, %v1315
        %v1320 = vand.u32 2147483647, %v1069
        %vm1321 = vcmp.eq.f32.partialorder %v1320, 8.507059e+37
        %v1322 = vand.u32 %v1069, 2147483648
        %v1323 = vor.u32 1.1754944e-38, %v1322
        %v1324 = vsel %vm1321, %v1323, %v1319
        %v1325 = vmul.f32 1.0, %v1324
        %v1326 = vrcp.pop %v1070
        %v1327 = vmul.f32 %v1070, %v1326
        %v1328 = vsub.f32 1.0, %v1327
        %v1329 = vmul.f32 %v1326, %v1328
        %v1330 = vadd.f32 %v1326, %v1329
        %vm1331 = vweird.f32 %v1070
        %vm1332 = vweird.f32 %v1326
        %vm1333 = vmor %vm1331, %vm1332
        %v1334 = vsel %vm1333, %v1326, %v1330
        %v1335 = vand.u32 2147483647, %v1070
        %vm1336 = vcmp.eq.f32.partialorder %v1335, 8.507059e+37
        %v1337 = vand.u32 %v1070, 2147483648
        %v1338 = vor.u32 1.1754944e-38, %v1337
        %v1339 = vsel %vm1336, %v1338, %v1334
        %v1340 = vmul.f32 1.0, %v1339
        %v1341 = vrcp.pop %v1071
        %v1342 = vmul.f32 %v1071, %v1341
        %v1343 = vsub.f32 1.0, %v1342
        %v1344 = vmul.f32 %v1341, %v1343
        %v1345 = vadd.f32 %v1341, %v1344
        %vm1346 = vweird.f32 %v1071
        %vm1347 = vweird.f32 %v1341
        %vm1348 = vmor %vm1346, %vm1347
        %v1349 = vsel %vm1348, %v1341, %v1345
        %v1350 = vand.u32 2147483647, %v1071
        %vm1351 = vcmp.eq.f32.partialorder %v1350, 8.507059e+37
        %v1352 = vand.u32 %v1071, 2147483648
        %v1353 = vor.u32 1.1754944e-38, %v1352
        %v1354 = vsel %vm1351, %v1353, %v1349
        %v1355 = vmul.f32 1.0, %v1354
        %v1356 = vrcp.pop %v1072
        %v1357 = vmul.f32 %v1072, %v1356
        %v1358 = vsub.f32 1.0, %v1357
        %v1359 = vmul.f32 %v1356, %v1358
        %v1360 = vadd.f32 %v1356, %v1359
        %vm1361 = vweird.f32 %v1072
        %vm1362 = vweird.f32 %v1356
        %vm1363 = vmor %vm1361, %vm1362
        %v1364 = vsel %vm1363, %v1356, %v1360
        %v1365 = vand.u32 2147483647, %v1072
        %vm1366 = vcmp.eq.f32.partialorder %v1365, 8.507059e+37
        %v1367 = vand.u32 %v1072, 2147483648
        %v1368 = vor.u32 1.1754944e-38, %v1367
        %v1369 = vsel %vm1366, %v1368, %v1364
        %v1370 = vmul.f32 1.0, %v1369
        %v1371 = vrcp.pop %v1073
        %v1372 = vmul.f32 %v1073, %v1371
        %v1373 = vsub.f32 1.0, %v1372
        %v1374 = vmul.f32 %v1371, %v1373
        %v1375 = vadd.f32 %v1371, %v1374
        %vm1376 = vweird.f32 %v1073
        %vm1377 = vweird.f32 %v1371
        %vm1378 = vmor %vm1376, %vm1377
        %v1379 = vsel %vm1378, %v1371, %v1375
        %v1380 = vand.u32 2147483647, %v1073
        %vm1381 = vcmp.eq.f32.partialorder %v1380, 8.507059e+37
        %v1382 = vand.u32 %v1073, 2147483648
        %v1383 = vor.u32 1.1754944e-38, %v1382
        %v1384 = vsel %vm1381, %v1383, %v1379
        %v1385 = vmul.f32 1.0, %v1384
        %v1386 = vrcp.pop %v1074
        %v1387 = vmul.f32 %v1074, %v1386
        %v1388 = vsub.f32 1.0, %v1387
        %v1389 = vmul.f32 %v1386, %v1388
        %v1390 = vadd.f32 %v1386, %v1389
        %vm1391 = vweird.f32 %v1074
        %vm1392 = vweird.f32 %v1386
        %vm1393 = vmor %vm1391, %vm1392
        %v1394 = vsel %vm1393, %v1386, %v1390
        %v1395 = vand.u32 2147483647, %v1074
        %vm1396 = vcmp.eq.f32.partialorder %v1395, 8.507059e+37
        %v1397 = vand.u32 %v1074, 2147483648
        %v1398 = vor.u32 1.1754944e-38, %v1397
        %v1399 = vsel %vm1396, %v1398, %v1394
        %v1400 = vmul.f32 1.0, %v1399
        %v1401 = vrcp.pop %v1075
        %v1402 = vmul.f32 %v1075, %v1401
        %v1403 = vsub.f32 1.0, %v1402
        %v1404 = vmul.f32 %v1401, %v1403
        %v1405 = vadd.f32 %v1401, %v1404
        %vm1406 = vweird.f32 %v1075
        %vm1407 = vweird.f32 %v1401
        %vm1408 = vmor %vm1406, %vm1407
        %v1409 = vsel %vm1408, %v1401, %v1405
        %v1410 = vand.u32 2147483647, %v1075
        %vm1411 = vcmp.eq.f32.partialorder %v1410, 8.507059e+37
        %v1412 = vand.u32 %v1075, 2147483648
        %v1413 = vor.u32 1.1754944e-38, %v1412
        %v1414 = vsel %vm1411, %v1413, %v1409
        %v1415 = vmul.f32 1.0, %v1414
        %v1416 = vrcp.pop %v1076
        %v1417 = vmul.f32 %v1076, %v1416
        %v1418 = vsub.f32 1.0, %v1417
        %v1419 = vmul.f32 %v1416, %v1418
        %v1420 = vadd.f32 %v1416, %v1419
        %vm1421 = vweird.f32 %v1076
        %vm1422 = vweird.f32 %v1416
        %vm1423 = vmor %vm1421, %vm1422
        %v1424 = vsel %vm1423, %v1416, %v1420
        %v1425 = vand.u32 2147483647, %v1076
        %vm1426 = vcmp.eq.f32.partialorder %v1425, 8.507059e+37
        %v1427 = vand.u32 %v1076, 2147483648
        %v1428 = vor.u32 1.1754944e-38, %v1427
        %v1429 = vsel %vm1426, %v1428, %v1424
        %v1430 = vmul.f32 1.0, %v1429
        %v1431 = vrcp.pop %v1077
        %v1432 = vmul.f32 %v1077, %v1431
        %v1433 = vsub.f32 1.0, %v1432
        %v1434 = vmul.f32 %v1431, %v1433
        %v1435 = vadd.f32 %v1431, %v1434
        %vm1436 = vweird.f32 %v1077
        %vm1437 = vweird.f32 %v1431
        %vm1438 = vmor %vm1436, %vm1437
        %v1439 = vsel %vm1438, %v1431, %v1435
        %v1440 = vand.u32 2147483647, %v1077
        %vm1441 = vcmp.eq.f32.partialorder %v1440, 8.507059e+37
        %v1442 = vand.u32 %v1077, 2147483648
        %v1443 = vor.u32 1.1754944e-38, %v1442
        %v1444 = vsel %vm1441, %v1443, %v1439
        %v1445 = vmul.f32 1.0, %v1444
        %v1446 = vrcp.pop %v1078
        %v1447 = vmul.f32 %v1078, %v1446
        %v1448 = vsub.f32 1.0, %v1447
        %v1449 = vmul.f32 %v1446, %v1448
        %v1450 = vadd.f32 %v1446, %v1449
        %vm1451 = vweird.f32 %v1078
        %vm1452 = vweird.f32 %v1446
        %vm1453 = vmor %vm1451, %vm1452
        %v1454 = vsel %vm1453, %v1446, %v1450
        %v1455 = vand.u32 2147483647, %v1078
        %vm1456 = vcmp.eq.f32.partialorder %v1455, 8.507059e+37
        %v1457 = vand.u32 %v1078, 2147483648
        %v1458 = vor.u32 1.1754944e-38, %v1457
        %v1459 = vsel %vm1456, %v1458, %v1454
        %v1460 = vmul.f32 1.0, %v1459
        %v1461 = vrcp.pop %v1079
        %v1462 = vmul.f32 %v1079, %v1461
        %v1463 = vsub.f32 1.0, %v1462
        %v1464 = vmul.f32 %v1461, %v1463
        %v1465 = vadd.f32 %v1461, %v1464
        %vm1466 = vweird.f32 %v1079
        %vm1467 = vweird.f32 %v1461
        %vm1468 = vmor %vm1466, %vm1467
        %v1469 = vsel %vm1468, %v1461, %v1465
        %v1470 = vand.u32 2147483647, %v1079
        %vm1471 = vcmp.eq.f32.partialorder %v1470, 8.507059e+37
        %v1472 = vand.u32 %v1079, 2147483648
        %v1473 = vor.u32 1.1754944e-38, %v1472
        %v1474 = vsel %vm1471, %v1473, %v1469
        %v1475 = vmul.f32 1.0, %v1474
        %v1476 = vrcp.pop %v1080
        %v1477 = vmul.f32 %v1080, %v1476
        %v1478 = vsub.f32 1.0, %v1477
        %v1479 = vmul.f32 %v1476, %v1478
        %v1480 = vadd.f32 %v1476, %v1479
        %vm1481 = vweird.f32 %v1080
        %vm1482 = vweird.f32 %v1476
        %vm1483 = vmor %vm1481, %vm1482
        %v1484 = vsel %vm1483, %v1476, %v1480
        %v1485 = vand.u32 2147483647, %v1080
        %vm1486 = vcmp.eq.f32.partialorder %v1485, 8.507059e+37
        %v1487 = vand.u32 %v1080, 2147483648
        %v1488 = vor.u32 1.1754944e-38, %v1487
        %v1489 = vsel %vm1486, %v1488, %v1484
        %v1490 = vmul.f32 1.0, %v1489
        %v1491 = vrcp.pop %v1081
        %v1492 = vmul.f32 %v1081, %v1491
        %v1493 = vsub.f32 1.0, %v1492
        %v1494 = vmul.f32 %v1491, %v1493
        %v1495 = vadd.f32 %v1491, %v1494
        %vm1496 = vweird.f32 %v1081
        %vm1497 = vweird.f32 %v1491
        %vm1498 = vmor %vm1496, %vm1497
        %v1499 = vsel %vm1498, %v1491, %v1495
        %v1500 = vand.u32 2147483647, %v1081
        %vm1501 = vcmp.eq.f32.partialorder %v1500, 8.507059e+37
        %v1502 = vand.u32 %v1081, 2147483648
        %v1503 = vor.u32 1.1754944e-38, %v1502
        %v1504 = vsel %vm1501, %v1503, %v1499
        %v1505 = vmul.f32 1.0, %v1504
        %v1506 = vrcp.pop %v1082
        %v1507 = vmul.f32 %v1082, %v1506
        %v1508 = vsub.f32 1.0, %v1507
        %v1509 = vmul.f32 %v1506, %v1508
        %v1510 = vadd.f32 %v1506, %v1509
        %vm1511 = vweird.f32 %v1082
        %vm1512 = vweird.f32 %v1506
        %vm1513 = vmor %vm1511, %vm1512
        %v1514 = vsel %vm1513, %v1506, %v1510
        %v1515 = vand.u32 2147483647, %v1082
        %vm1516 = vcmp.eq.f32.partialorder %v1515, 8.507059e+37
        %v1517 = vand.u32 %v1082, 2147483648
        %v1518 = vor.u32 1.1754944e-38, %v1517
        %v1519 = vsel %vm1516, %v1518, %v1514
        %v1520 = vmul.f32 1.0, %v1519
        %v1521 = vrcp.pop %v1083
        %v1522 = vmul.f32 %v1083, %v1521
        %v1523 = vsub.f32 1.0, %v1522
        %v1524 = vmul.f32 %v1521, %v1523
        %v1525 = vadd.f32 %v1521, %v1524
        %vm1526 = vweird.f32 %v1083
        %vm1527 = vweird.f32 %v1521
        %vm1528 = vmor %vm1526, %vm1527
        %v1529 = vsel %vm1528, %v1521, %v1525
        %v1530 = vand.u32 2147483647, %v1083
        %vm1531 = vcmp.eq.f32.partialorder %v1530, 8.507059e+37
        %v1532 = vand.u32 %v1083, 2147483648
        %v1533 = vor.u32 1.1754944e-38, %v1532
        %v1534 = vsel %vm1531, %v1533, %v1529
        %v1535 = vmul.f32 1.0, %v1534
        %v1536 = vrcp.pop %v1084
        %v1537 = vmul.f32 %v1084, %v1536
        %v1538 = vsub.f32 1.0, %v1537
        %v1539 = vmul.f32 %v1536, %v1538
        %v1540 = vadd.f32 %v1536, %v1539
        %vm1541 = vweird.f32 %v1084
        %vm1542 = vweird.f32 %v1536
        %vm1543 = vmor %vm1541, %vm1542
        %v1544 = vsel %vm1543, %v1536, %v1540
        %v1545 = vand.u32 2147483647, %v1084
        %vm1546 = vcmp.eq.f32.partialorder %v1545, 8.507059e+37
        %v1547 = vand.u32 %v1084, 2147483648
        %v1548 = vor.u32 1.1754944e-38, %v1547
        %v1549 = vsel %vm1546, %v1548, %v1544
        %v1550 = vmul.f32 1.0, %v1549
        %v1551 = vrcp.pop %v1085
        %v1552 = vmul.f32 %v1085, %v1551
        %v1553 = vsub.f32 1.0, %v1552
        %v1554 = vmul.f32 %v1551, %v1553
        %v1555 = vadd.f32 %v1551, %v1554
        %vm1556 = vweird.f32 %v1085
        %vm1557 = vweird.f32 %v1551
        %vm1558 = vmor %vm1556, %vm1557
        %v1559 = vsel %vm1558, %v1551, %v1555
        %v1560 = vand.u32 2147483647, %v1085
        %vm1561 = vcmp.eq.f32.partialorder %v1560, 8.507059e+37
        %v1562 = vand.u32 %v1085, 2147483648
        %v1563 = vor.u32 1.1754944e-38, %v1562
        %v1564 = vsel %vm1561, %v1563, %v1559
        %v1565 = vmul.f32 1.0, %v1564
        %v1566 = vld [vmem:[%s397] sm:$0xff]
        %v1567 = vld [vmem:[%s397 + $0x8] sm:$0xff]
        %v1568 = vld [vmem:[%s397 + $0x10] sm:$0xff]
        %v1569 = vld [vmem:[%s397 + $0x18] sm:$0xff]
        %v1570 = vld [vmem:[%s397 + $0x20] sm:$0xff]
        %v1571 = vld [vmem:[%s397 + $0x28] sm:$0xff]
        %v1572 = vld [vmem:[%s397 + $0x30] sm:$0xff]
        %v1573 = vld [vmem:[%s397 + $0x38] sm:$0xff]
        %v1574 = vld [vmem:[%s397 + $0x40] sm:$0xff]
        %v1575 = vld [vmem:[%s397 + $0x48] sm:$0xff]
        %v1576 = vld [vmem:[%s397 + $0x50] sm:$0xff]
        %v1577 = vld [vmem:[%s397 + $0x58] sm:$0xff]
        %v1578 = vld [vmem:[%s397 + $0x60] sm:$0xff]
        %v1579 = vld [vmem:[%s397 + $0x68] sm:$0xff]
        %v1580 = vld [vmem:[%s397 + $0x70] sm:$0xff]
        %v1581 = vld [vmem:[%s397 + $0x78] sm:$0xff]
        %v1582 = vld [vmem:[%s397 + $0x80] sm:$0xff]
        %v1583 = vld [vmem:[%s397 + $0x88] sm:$0xff]
        %v1584 = vld [vmem:[%s397 + $0x90] sm:$0xff]
        %v1585 = vld [vmem:[%s397 + $0x98] sm:$0xff]
        %v1586 = vld [vmem:[%s397 + $0xa0] sm:$0xff]
        %v1587 = vld [vmem:[%s397 + $0xa8] sm:$0xff]
        %v1588 = vld [vmem:[%s397 + $0xb0] sm:$0xff]
        %v1589 = vld [vmem:[%s397 + $0xb8] sm:$0xff]
        %v1590 = vld [vmem:[%s397 + $0xc0] sm:$0xff]
        %v1591 = vld [vmem:[%s397 + $0xc8] sm:$0xff]
        %v1592 = vld [vmem:[%s397 + $0xd0] sm:$0xff]
        %v1593 = vld [vmem:[%s397 + $0xd8] sm:$0xff]
        %v1594 = vld [vmem:[%s397 + $0xe0] sm:$0xff]
        %v1595 = vld [vmem:[%s397 + $0xe8] sm:$0xff]
        %v1596 = vld [vmem:[%s397 + $0xf0] sm:$0xff]
        %v1597 = vld [vmem:[%s397 + $0xf8] sm:$0xff]
        %v1598 = vmul.f32 %v830, %v1566
        %v1599 = vmul.f32 %v831, %v1567
        %v1600 = vmul.f32 %v832, %v1568
        %v1601 = vmul.f32 %v833, %v1569
        %v1602 = vmul.f32 %v834, %v1570
        %v1603 = vmul.f32 %v835, %v1571
        %v1604 = vmul.f32 %v836, %v1572
        %v1605 = vmul.f32 %v837, %v1573
        %v1606 = vmul.f32 %v838, %v1574
        %v1607 = vmul.f32 %v839, %v1575
        %v1608 = vmul.f32 %v840, %v1576
        %v1609 = vmul.f32 %v841, %v1577
        %v1610 = vmul.f32 %v842, %v1578
        %v1611 = vmul.f32 %v843, %v1579
        %v1612 = vmul.f32 %v844, %v1580
        %v1613 = vmul.f32 %v845, %v1581
        %v1614 = vmul.f32 %v846, %v1582
        %v1615 = vmul.f32 %v847, %v1583
        %v1616 = vmul.f32 %v848, %v1584
        %v1617 = vmul.f32 %v849, %v1585
        %v1618 = vmul.f32 %v850, %v1586
        %v1619 = vmul.f32 %v851, %v1587
        %v1620 = vmul.f32 %v852, %v1588
        %v1621 = vmul.f32 %v853, %v1589
        %v1622 = vmul.f32 %v854, %v1590
        %v1623 = vmul.f32 %v855, %v1591
        %v1624 = vmul.f32 %v856, %v1592
        %v1625 = vmul.f32 %v857, %v1593
        %v1626 = vmul.f32 %v858, %v1594
        %v1627 = vmul.f32 %v859, %v1595
        %v1628 = vmul.f32 %v860, %v1596
        %v1629 = vmul.f32 %v861, %v1597
        %1662 = vrot.lane.b32.xlu0 %v1598, 16
        %v1663 = vpop.permute.xlu0 %1662
        %1664 = vrot.lane.b32.xlu0 %v1599, 16
        %v1665 = vpop.permute.xlu0 %1664
        %1666 = vrot.lane.b32.xlu0 %v1600, 16
        %v1667 = vpop.permute.xlu0 %1666
        %1668 = vrot.lane.b32.xlu0 %v1601, 16
        %v1669 = vpop.permute.xlu0 %1668
        %1670 = vrot.lane.b32.xlu0 %v1602, 16
        %v1671 = vpop.permute.xlu0 %1670
        %1672 = vrot.lane.b32.xlu0 %v1603, 16
        %v1673 = vpop.permute.xlu0 %1672
        %1674 = vrot.lane.b32.xlu0 %v1604, 16
        %v1675 = vpop.permute.xlu0 %1674
        %1676 = vrot.lane.b32.xlu0 %v1605, 16
        %v1677 = vpop.permute.xlu0 %1676
        %1678 = vrot.lane.b32.xlu0 %v1606, 16
        %v1679 = vpop.permute.xlu0 %1678
        %1680 = vrot.lane.b32.xlu0 %v1607, 16
        %v1681 = vpop.permute.xlu0 %1680
        %1682 = vrot.lane.b32.xlu0 %v1608, 16
        %v1683 = vpop.permute.xlu0 %1682
        %1684 = vrot.lane.b32.xlu0 %v1609, 16
        %v1685 = vpop.permute.xlu0 %1684
        %1686 = vrot.lane.b32.xlu0 %v1610, 16
        %v1687 = vpop.permute.xlu0 %1686
        %1688 = vrot.lane.b32.xlu0 %v1611, 16
        %v1689 = vpop.permute.xlu0 %1688
        %1690 = vrot.lane.b32.xlu0 %v1612, 16
        %v1691 = vpop.permute.xlu0 %1690
        %1692 = vrot.lane.b32.xlu0 %v1613, 16
        %v1693 = vpop.permute.xlu0 %1692
        %1694 = vrot.lane.b32.xlu0 %v1614, 16
        %v1695 = vpop.permute.xlu0 %1694
        %1696 = vrot.lane.b32.xlu0 %v1615, 16
        %v1697 = vpop.permute.xlu0 %1696
        %1698 = vrot.lane.b32.xlu0 %v1616, 16
        %v1699 = vpop.permute.xlu0 %1698
        %1700 = vrot.lane.b32.xlu0 %v1617, 16
        %v1701 = vpop.permute.xlu0 %1700
        %1702 = vrot.lane.b32.xlu0 %v1618, 16
        %v1703 = vpop.permute.xlu0 %1702
        %1704 = vrot.lane.b32.xlu0 %v1619, 16
        %v1705 = vpop.permute.xlu0 %1704
        %1706 = vrot.lane.b32.xlu0 %v1620, 16
        %v1707 = vpop.permute.xlu0 %1706
        %1708 = vrot.lane.b32.xlu0 %v1621, 16
        %v1709 = vpop.permute.xlu0 %1708
        %1710 = vrot.lane.b32.xlu0 %v1622, 16
        %v1711 = vpop.permute.xlu0 %1710
        %1712 = vrot.lane.b32.xlu0 %v1623, 16
        %v1713 = vpop.permute.xlu0 %1712
        %1714 = vrot.lane.b32.xlu0 %v1624, 16
        %v1715 = vpop.permute.xlu0 %1714
        %1716 = vrot.lane.b32.xlu0 %v1625, 16
        %v1717 = vpop.permute.xlu0 %1716
        %1718 = vrot.lane.b32.xlu0 %v1626, 16
        %v1719 = vpop.permute.xlu0 %1718
        %1720 = vrot.lane.b32.xlu0 %v1627, 16
        %v1721 = vpop.permute.xlu0 %1720
        %1722 = vrot.lane.b32.xlu0 %v1628, 16
        %v1723 = vpop.permute.xlu0 %1722
        %1724 = vrot.lane.b32.xlu0 %v1629, 16
        %v1725 = vpop.permute.xlu0 %1724
        %v1758 = vadd.f32 %v735, %v1663
        %v1759 = vadd.f32 %v738, %v1665
        %v1760 = vadd.f32 %v741, %v1667
        %v1761 = vadd.f32 %v744, %v1669
        %v1762 = vadd.f32 %v747, %v1671
        %v1763 = vadd.f32 %v750, %v1673
        %v1764 = vadd.f32 %v753, %v1675
        %v1765 = vadd.f32 %v756, %v1677
        %v1766 = vadd.f32 %v759, %v1679
        %v1767 = vadd.f32 %v762, %v1681
        %v1768 = vadd.f32 %v765, %v1683
        %v1769 = vadd.f32 %v768, %v1685
        %v1770 = vadd.f32 %v771, %v1687
        %v1771 = vadd.f32 %v774, %v1689
        %v1772 = vadd.f32 %v777, %v1691
        %v1773 = vadd.f32 %v780, %v1693
        %v1774 = vadd.f32 %v783, %v1695
        %v1775 = vadd.f32 %v786, %v1697
        %v1776 = vadd.f32 %v789, %v1699
        %v1777 = vadd.f32 %v792, %v1701
        %v1778 = vadd.f32 %v795, %v1703
        %v1779 = vadd.f32 %v798, %v1705
        %v1780 = vadd.f32 %v801, %v1707
        %v1781 = vadd.f32 %v804, %v1709
        %v1782 = vadd.f32 %v807, %v1711
        %v1783 = vadd.f32 %v810, %v1713
        %v1784 = vadd.f32 %v813, %v1715
        %v1785 = vadd.f32 %v816, %v1717
        %v1786 = vadd.f32 %v819, %v1719
        %v1787 = vadd.f32 %v822, %v1721
        %v1788 = vadd.f32 %v825, %v1723
        %v1789 = vadd.f32 %v828, %v1725
        %v1790 = vxor.u32 %v1758, 2147483648
        %v1791 = vxor.u32 %v1759, 2147483648
        %v1792 = vxor.u32 %v1760, 2147483648
        %v1793 = vxor.u32 %v1761, 2147483648
        %v1794 = vxor.u32 %v1762, 2147483648
        %v1795 = vxor.u32 %v1763, 2147483648
        %v1796 = vxor.u32 %v1764, 2147483648
        %v1797 = vxor.u32 %v1765, 2147483648
        %v1798 = vxor.u32 %v1766, 2147483648
        %v1799 = vxor.u32 %v1767, 2147483648
        %v1800 = vxor.u32 %v1768, 2147483648
        %v1801 = vxor.u32 %v1769, 2147483648
        %v1802 = vxor.u32 %v1770, 2147483648
        %v1803 = vxor.u32 %v1771, 2147483648
        %v1804 = vxor.u32 %v1772, 2147483648
        %v1805 = vxor.u32 %v1773, 2147483648
        %v1806 = vxor.u32 %v1774, 2147483648
        %v1807 = vxor.u32 %v1775, 2147483648
        %v1808 = vxor.u32 %v1776, 2147483648
        %v1809 = vxor.u32 %v1777, 2147483648
        %v1810 = vxor.u32 %v1778, 2147483648
        %v1811 = vxor.u32 %v1779, 2147483648
        %v1812 = vxor.u32 %v1780, 2147483648
        %v1813 = vxor.u32 %v1781, 2147483648
        %v1814 = vxor.u32 %v1782, 2147483648
        %v1815 = vxor.u32 %v1783, 2147483648
        %v1816 = vxor.u32 %v1784, 2147483648
        %v1817 = vxor.u32 %v1785, 2147483648
        %v1818 = vxor.u32 %v1786, 2147483648
        %v1819 = vxor.u32 %v1787, 2147483648
        %v1820 = vxor.u32 %v1788, 2147483648
        %v1821 = vxor.u32 %v1789, 2147483648
        %v1822 = vmul.f32 %v1790, 1.442695
        %v1823 = vpow.pop %v1822
        %v1824 = vmul.f32 %v1791, 1.442695
        %v1825 = vpow.pop %v1824
        %v1826 = vmul.f32 %v1792, 1.442695
        %v1827 = vpow.pop %v1826
        %v1828 = vmul.f32 %v1793, 1.442695
        %v1829 = vpow.pop %v1828
        %v1830 = vmul.f32 %v1794, 1.442695
        %v1831 = vpow.pop %v1830
        %v1832 = vmul.f32 %v1795, 1.442695
        %v1833 = vpow.pop %v1832
        %v1834 = vmul.f32 %v1796, 1.442695
        %v1835 = vpow.pop %v1834
        %v1836 = vmul.f32 %v1797, 1.442695
        %v1837 = vpow.pop %v1836
        %v1838 = vmul.f32 %v1798, 1.442695
        %v1839 = vpow.pop %v1838
        %v1840 = vmul.f32 %v1799, 1.442695
        %v1841 = vpow.pop %v1840
        %v1842 = vmul.f32 %v1800, 1.442695
        %v1843 = vpow.pop %v1842
        %v1844 = vmul.f32 %v1801, 1.442695
        %v1845 = vpow.pop %v1844
        %v1846 = vmul.f32 %v1802, 1.442695
        %v1847 = vpow.pop %v1846
        %v1848 = vmul.f32 %v1803, 1.442695
        %v1849 = vpow.pop %v1848
        %v1850 = vmul.f32 %v1804, 1.442695
        %v1851 = vpow.pop %v1850
        %v1852 = vmul.f32 %v1805, 1.442695
        %v1853 = vpow.pop %v1852
        %v1854 = vmul.f32 %v1806, 1.442695
        %v1855 = vpow.pop %v1854
        %v1856 = vmul.f32 %v1807, 1.442695
        %v1857 = vpow.pop %v1856
        %v1858 = vmul.f32 %v1808, 1.442695
        %v1859 = vpow.pop %v1858
        %v1860 = vmul.f32 %v1809, 1.442695
        %v1861 = vpow.pop %v1860
        %v1862 = vmul.f32 %v1810, 1.442695
        %v1863 = vpow.pop %v1862
        %v1864 = vmul.f32 %v1811, 1.442695
        %v1865 = vpow.pop %v1864
        %v1866 = vmul.f32 %v1812, 1.442695
        %v1867 = vpow.pop %v1866
        %v1868 = vmul.f32 %v1813, 1.442695
        %v1869 = vpow.pop %v1868
        %v1870 = vmul.f32 %v1814, 1.442695
        %v1871 = vpow.pop %v1870
        %v1872 = vmul.f32 %v1815, 1.442695
        %v1873 = vpow.pop %v1872
        %v1874 = vmul.f32 %v1816, 1.442695
        %v1875 = vpow.pop %v1874
        %v1876 = vmul.f32 %v1817, 1.442695
        %v1877 = vpow.pop %v1876
        %v1878 = vmul.f32 %v1818, 1.442695
        %v1879 = vpow.pop %v1878
        %v1880 = vmul.f32 %v1819, 1.442695
        %v1881 = vpow.pop %v1880
        %v1882 = vmul.f32 %v1820, 1.442695
        %v1883 = vpow.pop %v1882
        %v1884 = vmul.f32 %v1821, 1.442695
        %v1885 = vpow.pop %v1884
        %v1886 = vadd.f32 %v1823, 1.0
        %v1887 = vadd.f32 %v1825, 1.0
        %v1888 = vadd.f32 %v1827, 1.0
        %v1889 = vadd.f32 %v1829, 1.0
        %v1890 = vadd.f32 %v1831, 1.0
        %v1891 = vadd.f32 %v1833, 1.0
        %v1892 = vadd.f32 %v1835, 1.0
        %v1893 = vadd.f32 %v1837, 1.0
        %v1894 = vadd.f32 %v1839, 1.0
        %v1895 = vadd.f32 %v1841, 1.0
        %v1896 = vadd.f32 %v1843, 1.0
        %v1897 = vadd.f32 %v1845, 1.0
        %v1898 = vadd.f32 %v1847, 1.0
        %v1899 = vadd.f32 %v1849, 1.0
        %v1900 = vadd.f32 %v1851, 1.0
        %v1901 = vadd.f32 %v1853, 1.0
        %v1902 = vadd.f32 %v1855, 1.0
        %v1903 = vadd.f32 %v1857, 1.0
        %v1904 = vadd.f32 %v1859, 1.0
        %v1905 = vadd.f32 %v1861, 1.0
        %v1906 = vadd.f32 %v1863, 1.0
        %v1907 = vadd.f32 %v1865, 1.0
        %v1908 = vadd.f32 %v1867, 1.0
        %v1909 = vadd.f32 %v1869, 1.0
        %v1910 = vadd.f32 %v1871, 1.0
        %v1911 = vadd.f32 %v1873, 1.0
        %v1912 = vadd.f32 %v1875, 1.0
        %v1913 = vadd.f32 %v1877, 1.0
        %v1914 = vadd.f32 %v1879, 1.0
        %v1915 = vadd.f32 %v1881, 1.0
        %v1916 = vadd.f32 %v1883, 1.0
        %v1917 = vadd.f32 %v1885, 1.0
        %v1918 = vrcp.pop %v1886
        %v1919 = vmul.f32 %v1886, %v1918
        %v1920 = vsub.f32 1.0, %v1919
        %v1921 = vmul.f32 %v1918, %v1920
        %v1922 = vadd.f32 %v1918, %v1921
        %vm1923 = vweird.f32 %v1886
        %vm1924 = vweird.f32 %v1918
        %vm1925 = vmor %vm1923, %vm1924
        %v1926 = vsel %vm1925, %v1918, %v1922
        %v1927 = vand.u32 2147483647, %v1886
        %vm1928 = vcmp.eq.f32.partialorder %v1927, 8.507059e+37
        %v1929 = vand.u32 %v1886, 2147483648
        %v1930 = vor.u32 1.1754944e-38, %v1929
        %v1931 = vsel %vm1928, %v1930, %v1926
        %v1932 = vmul.f32 1.0, %v1931
        %v1933 = vrcp.pop %v1887
        %v1934 = vmul.f32 %v1887, %v1933
        %v1935 = vsub.f32 1.0, %v1934
        %v1936 = vmul.f32 %v1933, %v1935
        %v1937 = vadd.f32 %v1933, %v1936
        %vm1938 = vweird.f32 %v1887
        %vm1939 = vweird.f32 %v1933
        %vm1940 = vmor %vm1938, %vm1939
        %v1941 = vsel %vm1940, %v1933, %v1937
        %v1942 = vand.u32 2147483647, %v1887
        %vm1943 = vcmp.eq.f32.partialorder %v1942, 8.507059e+37
        %v1944 = vand.u32 %v1887, 2147483648
        %v1945 = vor.u32 1.1754944e-38, %v1944
        %v1946 = vsel %vm1943, %v1945, %v1941
        %v1947 = vmul.f32 1.0, %v1946
        %v1948 = vrcp.pop %v1888
        %v1949 = vmul.f32 %v1888, %v1948
        %v1950 = vsub.f32 1.0, %v1949
        %v1951 = vmul.f32 %v1948, %v1950
        %v1952 = vadd.f32 %v1948, %v1951
        %vm1953 = vweird.f32 %v1888
        %vm1954 = vweird.f32 %v1948
        %vm1955 = vmor %vm1953, %vm1954
        %v1956 = vsel %vm1955, %v1948, %v1952
        %v1957 = vand.u32 2147483647, %v1888
        %vm1958 = vcmp.eq.f32.partialorder %v1957, 8.507059e+37
        %v1959 = vand.u32 %v1888, 2147483648
        %v1960 = vor.u32 1.1754944e-38, %v1959
        %v1961 = vsel %vm1958, %v1960, %v1956
        %v1962 = vmul.f32 1.0, %v1961
        %v1963 = vrcp.pop %v1889
        %v1964 = vmul.f32 %v1889, %v1963
        %v1965 = vsub.f32 1.0, %v1964
        %v1966 = vmul.f32 %v1963, %v1965
        %v1967 = vadd.f32 %v1963, %v1966
        %vm1968 = vweird.f32 %v1889
        %vm1969 = vweird.f32 %v1963
        %vm1970 = vmor %vm1968, %vm1969
        %v1971 = vsel %vm1970, %v1963, %v1967
        %v1972 = vand.u32 2147483647, %v1889
        %vm1973 = vcmp.eq.f32.partialorder %v1972, 8.507059e+37
        %v1974 = vand.u32 %v1889, 2147483648
        %v1975 = vor.u32 1.1754944e-38, %v1974
        %v1976 = vsel %vm1973, %v1975, %v1971
        %v1977 = vmul.f32 1.0, %v1976
        %v1978 = vrcp.pop %v1890
        %v1979 = vmul.f32 %v1890, %v1978
        %v1980 = vsub.f32 1.0, %v1979
        %v1981 = vmul.f32 %v1978, %v1980
        %v1982 = vadd.f32 %v1978, %v1981
        %vm1983 = vweird.f32 %v1890
        %vm1984 = vweird.f32 %v1978
        %vm1985 = vmor %vm1983, %vm1984
        %v1986 = vsel %vm1985, %v1978, %v1982
        %v1987 = vand.u32 2147483647, %v1890
        %vm1988 = vcmp.eq.f32.partialorder %v1987, 8.507059e+37
        %v1989 = vand.u32 %v1890, 2147483648
        %v1990 = vor.u32 1.1754944e-38, %v1989
        %v1991 = vsel %vm1988, %v1990, %v1986
        %v1992 = vmul.f32 1.0, %v1991
        %v1993 = vrcp.pop %v1891
        %v1994 = vmul.f32 %v1891, %v1993
        %v1995 = vsub.f32 1.0, %v1994
        %v1996 = vmul.f32 %v1993, %v1995
        %v1997 = vadd.f32 %v1993, %v1996
        %vm1998 = vweird.f32 %v1891
        %vm1999 = vweird.f32 %v1993
        %vm2000 = vmor %vm1998, %vm1999
        %v2001 = vsel %vm2000, %v1993, %v1997
        %v2002 = vand.u32 2147483647, %v1891
        %vm2003 = vcmp.eq.f32.partialorder %v2002, 8.507059e+37
        %v2004 = vand.u32 %v1891, 2147483648
        %v2005 = vor.u32 1.1754944e-38, %v2004
        %v2006 = vsel %vm2003, %v2005, %v2001
        %v2007 = vmul.f32 1.0, %v2006
        %v2008 = vrcp.pop %v1892
        %v2009 = vmul.f32 %v1892, %v2008
        %v2010 = vsub.f32 1.0, %v2009
        %v2011 = vmul.f32 %v2008, %v2010
        %v2012 = vadd.f32 %v2008, %v2011
        %vm2013 = vweird.f32 %v1892
        %vm2014 = vweird.f32 %v2008
        %vm2015 = vmor %vm2013, %vm2014
        %v2016 = vsel %vm2015, %v2008, %v2012
        %v2017 = vand.u32 2147483647, %v1892
        %vm2018 = vcmp.eq.f32.partialorder %v2017, 8.507059e+37
        %v2019 = vand.u32 %v1892, 2147483648
        %v2020 = vor.u32 1.1754944e-38, %v2019
        %v2021 = vsel %vm2018, %v2020, %v2016
        %v2022 = vmul.f32 1.0, %v2021
        %v2023 = vrcp.pop %v1893
        %v2024 = vmul.f32 %v1893, %v2023
        %v2025 = vsub.f32 1.0, %v2024
        %v2026 = vmul.f32 %v2023, %v2025
        %v2027 = vadd.f32 %v2023, %v2026
        %vm2028 = vweird.f32 %v1893
        %vm2029 = vweird.f32 %v2023
        %vm2030 = vmor %vm2028, %vm2029
        %v2031 = vsel %vm2030, %v2023, %v2027
        %v2032 = vand.u32 2147483647, %v1893
        %vm2033 = vcmp.eq.f32.partialorder %v2032, 8.507059e+37
        %v2034 = vand.u32 %v1893, 2147483648
        %v2035 = vor.u32 1.1754944e-38, %v2034
        %v2036 = vsel %vm2033, %v2035, %v2031
        %v2037 = vmul.f32 1.0, %v2036
        %v2038 = vrcp.pop %v1894
        %v2039 = vmul.f32 %v1894, %v2038
        %v2040 = vsub.f32 1.0, %v2039
        %v2041 = vmul.f32 %v2038, %v2040
        %v2042 = vadd.f32 %v2038, %v2041
        %vm2043 = vweird.f32 %v1894
        %vm2044 = vweird.f32 %v2038
        %vm2045 = vmor %vm2043, %vm2044
        %v2046 = vsel %vm2045, %v2038, %v2042
        %v2047 = vand.u32 2147483647, %v1894
        %vm2048 = vcmp.eq.f32.partialorder %v2047, 8.507059e+37
        %v2049 = vand.u32 %v1894, 2147483648
        %v2050 = vor.u32 1.1754944e-38, %v2049
        %v2051 = vsel %vm2048, %v2050, %v2046
        %v2052 = vmul.f32 1.0, %v2051
        %v2053 = vrcp.pop %v1895
        %v2054 = vmul.f32 %v1895, %v2053
        %v2055 = vsub.f32 1.0, %v2054
        %v2056 = vmul.f32 %v2053, %v2055
        %v2057 = vadd.f32 %v2053, %v2056
        %vm2058 = vweird.f32 %v1895
        %vm2059 = vweird.f32 %v2053
        %vm2060 = vmor %vm2058, %vm2059
        %v2061 = vsel %vm2060, %v2053, %v2057
        %v2062 = vand.u32 2147483647, %v1895
        %vm2063 = vcmp.eq.f32.partialorder %v2062, 8.507059e+37
        %v2064 = vand.u32 %v1895, 2147483648
        %v2065 = vor.u32 1.1754944e-38, %v2064
        %v2066 = vsel %vm2063, %v2065, %v2061
        %v2067 = vmul.f32 1.0, %v2066
        %v2068 = vrcp.pop %v1896
        %v2069 = vmul.f32 %v1896, %v2068
        %v2070 = vsub.f32 1.0, %v2069
        %v2071 = vmul.f32 %v2068, %v2070
        %v2072 = vadd.f32 %v2068, %v2071
        %vm2073 = vweird.f32 %v1896
        %vm2074 = vweird.f32 %v2068
        %vm2075 = vmor %vm2073, %vm2074
        %v2076 = vsel %vm2075, %v2068, %v2072
        %v2077 = vand.u32 2147483647, %v1896
        %vm2078 = vcmp.eq.f32.partialorder %v2077, 8.507059e+37
        %v2079 = vand.u32 %v1896, 2147483648
        %v2080 = vor.u32 1.1754944e-38, %v2079
        %v2081 = vsel %vm2078, %v2080, %v2076
        %v2082 = vmul.f32 1.0, %v2081
        %v2083 = vrcp.pop %v1897
        %v2084 = vmul.f32 %v1897, %v2083
        %v2085 = vsub.f32 1.0, %v2084
        %v2086 = vmul.f32 %v2083, %v2085
        %v2087 = vadd.f32 %v2083, %v2086
        %vm2088 = vweird.f32 %v1897
        %vm2089 = vweird.f32 %v2083
        %vm2090 = vmor %vm2088, %vm2089
        %v2091 = vsel %vm2090, %v2083, %v2087
        %v2092 = vand.u32 2147483647, %v1897
        %vm2093 = vcmp.eq.f32.partialorder %v2092, 8.507059e+37
        %v2094 = vand.u32 %v1897, 2147483648
        %v2095 = vor.u32 1.1754944e-38, %v2094
        %v2096 = vsel %vm2093, %v2095, %v2091
        %v2097 = vmul.f32 1.0, %v2096
        %v2098 = vrcp.pop %v1898
        %v2099 = vmul.f32 %v1898, %v2098
        %v2100 = vsub.f32 1.0, %v2099
        %v2101 = vmul.f32 %v2098, %v2100
        %v2102 = vadd.f32 %v2098, %v2101
        %vm2103 = vweird.f32 %v1898
        %vm2104 = vweird.f32 %v2098
        %vm2105 = vmor %vm2103, %vm2104
        %v2106 = vsel %vm2105, %v2098, %v2102
        %v2107 = vand.u32 2147483647, %v1898
        %vm2108 = vcmp.eq.f32.partialorder %v2107, 8.507059e+37
        %v2109 = vand.u32 %v1898, 2147483648
        %v2110 = vor.u32 1.1754944e-38, %v2109
        %v2111 = vsel %vm2108, %v2110, %v2106
        %v2112 = vmul.f32 1.0, %v2111
        %v2113 = vrcp.pop %v1899
        %v2114 = vmul.f32 %v1899, %v2113
        %v2115 = vsub.f32 1.0, %v2114
        %v2116 = vmul.f32 %v2113, %v2115
        %v2117 = vadd.f32 %v2113, %v2116
        %vm2118 = vweird.f32 %v1899
        %vm2119 = vweird.f32 %v2113
        %vm2120 = vmor %vm2118, %vm2119
        %v2121 = vsel %vm2120, %v2113, %v2117
        %v2122 = vand.u32 2147483647, %v1899
        %vm2123 = vcmp.eq.f32.partialorder %v2122, 8.507059e+37
        %v2124 = vand.u32 %v1899, 2147483648
        %v2125 = vor.u32 1.1754944e-38, %v2124
        %v2126 = vsel %vm2123, %v2125, %v2121
        %v2127 = vmul.f32 1.0, %v2126
        %v2128 = vrcp.pop %v1900
        %v2129 = vmul.f32 %v1900, %v2128
        %v2130 = vsub.f32 1.0, %v2129
        %v2131 = vmul.f32 %v2128, %v2130
        %v2132 = vadd.f32 %v2128, %v2131
        %vm2133 = vweird.f32 %v1900
        %vm2134 = vweird.f32 %v2128
        %vm2135 = vmor %vm2133, %vm2134
        %v2136 = vsel %vm2135, %v2128, %v2132
        %v2137 = vand.u32 2147483647, %v1900
        %vm2138 = vcmp.eq.f32.partialorder %v2137, 8.507059e+37
        %v2139 = vand.u32 %v1900, 2147483648
        %v2140 = vor.u32 1.1754944e-38, %v2139
        %v2141 = vsel %vm2138, %v2140, %v2136
        %v2142 = vmul.f32 1.0, %v2141
        %v2143 = vrcp.pop %v1901
        %v2144 = vmul.f32 %v1901, %v2143
        %v2145 = vsub.f32 1.0, %v2144
        %v2146 = vmul.f32 %v2143, %v2145
        %v2147 = vadd.f32 %v2143, %v2146
        %vm2148 = vweird.f32 %v1901
        %vm2149 = vweird.f32 %v2143
        %vm2150 = vmor %vm2148, %vm2149
        %v2151 = vsel %vm2150, %v2143, %v2147
        %v2152 = vand.u32 2147483647, %v1901
        %vm2153 = vcmp.eq.f32.partialorder %v2152, 8.507059e+37
        %v2154 = vand.u32 %v1901, 2147483648
        %v2155 = vor.u32 1.1754944e-38, %v2154
        %v2156 = vsel %vm2153, %v2155, %v2151
        %v2157 = vmul.f32 1.0, %v2156
        %v2158 = vrcp.pop %v1902
        %v2159 = vmul.f32 %v1902, %v2158
        %v2160 = vsub.f32 1.0, %v2159
        %v2161 = vmul.f32 %v2158, %v2160
        %v2162 = vadd.f32 %v2158, %v2161
        %vm2163 = vweird.f32 %v1902
        %vm2164 = vweird.f32 %v2158
        %vm2165 = vmor %vm2163, %vm2164
        %v2166 = vsel %vm2165, %v2158, %v2162
        %v2167 = vand.u32 2147483647, %v1902
        %vm2168 = vcmp.eq.f32.partialorder %v2167, 8.507059e+37
        %v2169 = vand.u32 %v1902, 2147483648
        %v2170 = vor.u32 1.1754944e-38, %v2169
        %v2171 = vsel %vm2168, %v2170, %v2166
        %v2172 = vmul.f32 1.0, %v2171
        %v2173 = vrcp.pop %v1903
        %v2174 = vmul.f32 %v1903, %v2173
        %v2175 = vsub.f32 1.0, %v2174
        %v2176 = vmul.f32 %v2173, %v2175
        %v2177 = vadd.f32 %v2173, %v2176
        %vm2178 = vweird.f32 %v1903
        %vm2179 = vweird.f32 %v2173
        %vm2180 = vmor %vm2178, %vm2179
        %v2181 = vsel %vm2180, %v2173, %v2177
        %v2182 = vand.u32 2147483647, %v1903
        %vm2183 = vcmp.eq.f32.partialorder %v2182, 8.507059e+37
        %v2184 = vand.u32 %v1903, 2147483648
        %v2185 = vor.u32 1.1754944e-38, %v2184
        %v2186 = vsel %vm2183, %v2185, %v2181
        %v2187 = vmul.f32 1.0, %v2186
        %v2188 = vrcp.pop %v1904
        %v2189 = vmul.f32 %v1904, %v2188
        %v2190 = vsub.f32 1.0, %v2189
        %v2191 = vmul.f32 %v2188, %v2190
        %v2192 = vadd.f32 %v2188, %v2191
        %vm2193 = vweird.f32 %v1904
        %vm2194 = vweird.f32 %v2188
        %vm2195 = vmor %vm2193, %vm2194
        %v2196 = vsel %vm2195, %v2188, %v2192
        %v2197 = vand.u32 2147483647, %v1904
        %vm2198 = vcmp.eq.f32.partialorder %v2197, 8.507059e+37
        %v2199 = vand.u32 %v1904, 2147483648
        %v2200 = vor.u32 1.1754944e-38, %v2199
        %v2201 = vsel %vm2198, %v2200, %v2196
        %v2202 = vmul.f32 1.0, %v2201
        %v2203 = vrcp.pop %v1905
        %v2204 = vmul.f32 %v1905, %v2203
        %v2205 = vsub.f32 1.0, %v2204
        %v2206 = vmul.f32 %v2203, %v2205
        %v2207 = vadd.f32 %v2203, %v2206
        %vm2208 = vweird.f32 %v1905
        %vm2209 = vweird.f32 %v2203
        %vm2210 = vmor %vm2208, %vm2209
        %v2211 = vsel %vm2210, %v2203, %v2207
        %v2212 = vand.u32 2147483647, %v1905
        %vm2213 = vcmp.eq.f32.partialorder %v2212, 8.507059e+37
        %v2214 = vand.u32 %v1905, 2147483648
        %v2215 = vor.u32 1.1754944e-38, %v2214
        %v2216 = vsel %vm2213, %v2215, %v2211
        %v2217 = vmul.f32 1.0, %v2216
        %v2218 = vrcp.pop %v1906
        %v2219 = vmul.f32 %v1906, %v2218
        %v2220 = vsub.f32 1.0, %v2219
        %v2221 = vmul.f32 %v2218, %v2220
        %v2222 = vadd.f32 %v2218, %v2221
        %vm2223 = vweird.f32 %v1906
        %vm2224 = vweird.f32 %v2218
        %vm2225 = vmor %vm2223, %vm2224
        %v2226 = vsel %vm2225, %v2218, %v2222
        %v2227 = vand.u32 2147483647, %v1906
        %vm2228 = vcmp.eq.f32.partialorder %v2227, 8.507059e+37
        %v2229 = vand.u32 %v1906, 2147483648
        %v2230 = vor.u32 1.1754944e-38, %v2229
        %v2231 = vsel %vm2228, %v2230, %v2226
        %v2232 = vmul.f32 1.0, %v2231
        %v2233 = vrcp.pop %v1907
        %v2234 = vmul.f32 %v1907, %v2233
        %v2235 = vsub.f32 1.0, %v2234
        %v2236 = vmul.f32 %v2233, %v2235
        %v2237 = vadd.f32 %v2233, %v2236
        %vm2238 = vweird.f32 %v1907
        %vm2239 = vweird.f32 %v2233
        %vm2240 = vmor %vm2238, %vm2239
        %v2241 = vsel %vm2240, %v2233, %v2237
        %v2242 = vand.u32 2147483647, %v1907
        %vm2243 = vcmp.eq.f32.partialorder %v2242, 8.507059e+37
        %v2244 = vand.u32 %v1907, 2147483648
        %v2245 = vor.u32 1.1754944e-38, %v2244
        %v2246 = vsel %vm2243, %v2245, %v2241
        %v2247 = vmul.f32 1.0, %v2246
        %v2248 = vrcp.pop %v1908
        %v2249 = vmul.f32 %v1908, %v2248
        %v2250 = vsub.f32 1.0, %v2249
        %v2251 = vmul.f32 %v2248, %v2250
        %v2252 = vadd.f32 %v2248, %v2251
        %vm2253 = vweird.f32 %v1908
        %vm2254 = vweird.f32 %v2248
        %vm2255 = vmor %vm2253, %vm2254
        %v2256 = vsel %vm2255, %v2248, %v2252
        %v2257 = vand.u32 2147483647, %v1908
        %vm2258 = vcmp.eq.f32.partialorder %v2257, 8.507059e+37
        %v2259 = vand.u32 %v1908, 2147483648
        %v2260 = vor.u32 1.1754944e-38, %v2259
        %v2261 = vsel %vm2258, %v2260, %v2256
        %v2262 = vmul.f32 1.0, %v2261
        %v2263 = vrcp.pop %v1909
        %v2264 = vmul.f32 %v1909, %v2263
        %v2265 = vsub.f32 1.0, %v2264
        %v2266 = vmul.f32 %v2263, %v2265
        %v2267 = vadd.f32 %v2263, %v2266
        %vm2268 = vweird.f32 %v1909
        %vm2269 = vweird.f32 %v2263
        %vm2270 = vmor %vm2268, %vm2269
        %v2271 = vsel %vm2270, %v2263, %v2267
        %v2272 = vand.u32 2147483647, %v1909
        %vm2273 = vcmp.eq.f32.partialorder %v2272, 8.507059e+37
        %v2274 = vand.u32 %v1909, 2147483648
        %v2275 = vor.u32 1.1754944e-38, %v2274
        %v2276 = vsel %vm2273, %v2275, %v2271
        %v2277 = vmul.f32 1.0, %v2276
        %v2278 = vrcp.pop %v1910
        %v2279 = vmul.f32 %v1910, %v2278
        %v2280 = vsub.f32 1.0, %v2279
        %v2281 = vmul.f32 %v2278, %v2280
        %v2282 = vadd.f32 %v2278, %v2281
        %vm2283 = vweird.f32 %v1910
        %vm2284 = vweird.f32 %v2278
        %vm2285 = vmor %vm2283, %vm2284
        %v2286 = vsel %vm2285, %v2278, %v2282
        %v2287 = vand.u32 2147483647, %v1910
        %vm2288 = vcmp.eq.f32.partialorder %v2287, 8.507059e+37
        %v2289 = vand.u32 %v1910, 2147483648
        %v2290 = vor.u32 1.1754944e-38, %v2289
        %v2291 = vsel %vm2288, %v2290, %v2286
        %v2292 = vmul.f32 1.0, %v2291
        %v2293 = vrcp.pop %v1911
        %v2294 = vmul.f32 %v1911, %v2293
        %v2295 = vsub.f32 1.0, %v2294
        %v2296 = vmul.f32 %v2293, %v2295
        %v2297 = vadd.f32 %v2293, %v2296
        %vm2298 = vweird.f32 %v1911
        %vm2299 = vweird.f32 %v2293
        %vm2300 = vmor %vm2298, %vm2299
        %v2301 = vsel %vm2300, %v2293, %v2297
        %v2302 = vand.u32 2147483647, %v1911
        %vm2303 = vcmp.eq.f32.partialorder %v2302, 8.507059e+37
        %v2304 = vand.u32 %v1911, 2147483648
        %v2305 = vor.u32 1.1754944e-38, %v2304
        %v2306 = vsel %vm2303, %v2305, %v2301
        %v2307 = vmul.f32 1.0, %v2306
        %v2308 = vrcp.pop %v1912
        %v2309 = vmul.f32 %v1912, %v2308
        %v2310 = vsub.f32 1.0, %v2309
        %v2311 = vmul.f32 %v2308, %v2310
        %v2312 = vadd.f32 %v2308, %v2311
        %vm2313 = vweird.f32 %v1912
        %vm2314 = vweird.f32 %v2308
        %vm2315 = vmor %vm2313, %vm2314
        %v2316 = vsel %vm2315, %v2308, %v2312
        %v2317 = vand.u32 2147483647, %v1912
        %vm2318 = vcmp.eq.f32.partialorder %v2317, 8.507059e+37
        %v2319 = vand.u32 %v1912, 2147483648
        %v2320 = vor.u32 1.1754944e-38, %v2319
        %v2321 = vsel %vm2318, %v2320, %v2316
        %v2322 = vmul.f32 1.0, %v2321
        %v2323 = vrcp.pop %v1913
        %v2324 = vmul.f32 %v1913, %v2323
        %v2325 = vsub.f32 1.0, %v2324
        %v2326 = vmul.f32 %v2323, %v2325
        %v2327 = vadd.f32 %v2323, %v2326
        %vm2328 = vweird.f32 %v1913
        %vm2329 = vweird.f32 %v2323
        %vm2330 = vmor %vm2328, %vm2329
        %v2331 = vsel %vm2330, %v2323, %v2327
        %v2332 = vand.u32 2147483647, %v1913
        %vm2333 = vcmp.eq.f32.partialorder %v2332, 8.507059e+37
        %v2334 = vand.u32 %v1913, 2147483648
        %v2335 = vor.u32 1.1754944e-38, %v2334
        %v2336 = vsel %vm2333, %v2335, %v2331
        %v2337 = vmul.f32 1.0, %v2336
        %v2338 = vrcp.pop %v1914
        %v2339 = vmul.f32 %v1914, %v2338
        %v2340 = vsub.f32 1.0, %v2339
        %v2341 = vmul.f32 %v2338, %v2340
        %v2342 = vadd.f32 %v2338, %v2341
        %vm2343 = vweird.f32 %v1914
        %vm2344 = vweird.f32 %v2338
        %vm2345 = vmor %vm2343, %vm2344
        %v2346 = vsel %vm2345, %v2338, %v2342
        %v2347 = vand.u32 2147483647, %v1914
        %vm2348 = vcmp.eq.f32.partialorder %v2347, 8.507059e+37
        %v2349 = vand.u32 %v1914, 2147483648
        %v2350 = vor.u32 1.1754944e-38, %v2349
        %v2351 = vsel %vm2348, %v2350, %v2346
        %v2352 = vmul.f32 1.0, %v2351
        %v2353 = vrcp.pop %v1915
        %v2354 = vmul.f32 %v1915, %v2353
        %v2355 = vsub.f32 1.0, %v2354
        %v2356 = vmul.f32 %v2353, %v2355
        %v2357 = vadd.f32 %v2353, %v2356
        %vm2358 = vweird.f32 %v1915
        %vm2359 = vweird.f32 %v2353
        %vm2360 = vmor %vm2358, %vm2359
        %v2361 = vsel %vm2360, %v2353, %v2357
        %v2362 = vand.u32 2147483647, %v1915
        %vm2363 = vcmp.eq.f32.partialorder %v2362, 8.507059e+37
        %v2364 = vand.u32 %v1915, 2147483648
        %v2365 = vor.u32 1.1754944e-38, %v2364
        %v2366 = vsel %vm2363, %v2365, %v2361
        %v2367 = vmul.f32 1.0, %v2366
        %v2368 = vrcp.pop %v1916
        %v2369 = vmul.f32 %v1916, %v2368
        %v2370 = vsub.f32 1.0, %v2369
        %v2371 = vmul.f32 %v2368, %v2370
        %v2372 = vadd.f32 %v2368, %v2371
        %vm2373 = vweird.f32 %v1916
        %vm2374 = vweird.f32 %v2368
        %vm2375 = vmor %vm2373, %vm2374
        %v2376 = vsel %vm2375, %v2368, %v2372
        %v2377 = vand.u32 2147483647, %v1916
        %vm2378 = vcmp.eq.f32.partialorder %v2377, 8.507059e+37
        %v2379 = vand.u32 %v1916, 2147483648
        %v2380 = vor.u32 1.1754944e-38, %v2379
        %v2381 = vsel %vm2378, %v2380, %v2376
        %v2382 = vmul.f32 1.0, %v2381
        %v2383 = vrcp.pop %v1917
        %v2384 = vmul.f32 %v1917, %v2383
        %v2385 = vsub.f32 1.0, %v2384
        %v2386 = vmul.f32 %v2383, %v2385
        %v2387 = vadd.f32 %v2383, %v2386
        %vm2388 = vweird.f32 %v1917
        %vm2389 = vweird.f32 %v2383
        %vm2390 = vmor %vm2388, %vm2389
        %v2391 = vsel %vm2390, %v2383, %v2387
        %v2392 = vand.u32 2147483647, %v1917
        %vm2393 = vcmp.eq.f32.partialorder %v2392, 8.507059e+37
        %v2394 = vand.u32 %v1917, 2147483648
        %v2395 = vor.u32 1.1754944e-38, %v2394
        %v2396 = vsel %vm2393, %v2395, %v2391
        %v2397 = vmul.f32 1.0, %v2396
        %v2398 = vtanh.pop %v735
        %v2399 = vtanh.pop %v738
        %v2400 = vtanh.pop %v741
        %v2401 = vtanh.pop %v744
        %v2402 = vtanh.pop %v747
        %v2403 = vtanh.pop %v750
        %v2404 = vtanh.pop %v753
        %v2405 = vtanh.pop %v756
        %v2406 = vtanh.pop %v759
        %v2407 = vtanh.pop %v762
        %v2408 = vtanh.pop %v765
        %v2409 = vtanh.pop %v768
        %v2410 = vtanh.pop %v771
        %v2411 = vtanh.pop %v774
        %v2412 = vtanh.pop %v777
        %v2413 = vtanh.pop %v780
        %v2414 = vtanh.pop %v783
        %v2415 = vtanh.pop %v786
        %v2416 = vtanh.pop %v789
        %v2417 = vtanh.pop %v792
        %v2418 = vtanh.pop %v795
        %v2419 = vtanh.pop %v798
        %v2420 = vtanh.pop %v801
        %v2421 = vtanh.pop %v804
        %v2422 = vtanh.pop %v807
        %v2423 = vtanh.pop %v810
        %v2424 = vtanh.pop %v813
        %v2425 = vtanh.pop %v816
        %v2426 = vtanh.pop %v819
        %v2427 = vtanh.pop %v822
        %v2428 = vtanh.pop %v825
        %v2429 = vtanh.pop %v828
        %v2430 = vmul.f32 %v1100, %v830
        %v2431 = vmul.f32 %v1115, %v831
        %v2432 = vmul.f32 %v1130, %v832
        %v2433 = vmul.f32 %v1145, %v833
        %v2434 = vmul.f32 %v1160, %v834
        %v2435 = vmul.f32 %v1175, %v835
        %v2436 = vmul.f32 %v1190, %v836
        %v2437 = vmul.f32 %v1205, %v837
        %v2438 = vmul.f32 %v1220, %v838
        %v2439 = vmul.f32 %v1235, %v839
        %v2440 = vmul.f32 %v1250, %v840
        %v2441 = vmul.f32 %v1265, %v841
        %v2442 = vmul.f32 %v1280, %v842
        %v2443 = vmul.f32 %v1295, %v843
        %v2444 = vmul.f32 %v1310, %v844
        %v2445 = vmul.f32 %v1325, %v845
        %v2446 = vmul.f32 %v1340, %v846
        %v2447 = vmul.f32 %v1355, %v847
        %v2448 = vmul.f32 %v1370, %v848
        %v2449 = vmul.f32 %v1385, %v849
        %v2450 = vmul.f32 %v1400, %v850
        %v2451 = vmul.f32 %v1415, %v851
        %v2452 = vmul.f32 %v1430, %v852
        %v2453 = vmul.f32 %v1445, %v853
        %v2454 = vmul.f32 %v1460, %v854
        %v2455 = vmul.f32 %v1475, %v855
        %v2456 = vmul.f32 %v1490, %v856
        %v2457 = vmul.f32 %v1505, %v857
        %v2458 = vmul.f32 %v1520, %v858
        %v2459 = vmul.f32 %v1535, %v859
        %v2460 = vmul.f32 %v1550, %v860
        %v2461 = vmul.f32 %v1565, %v861
        %2494 = vrot.lane.b32.xlu0 %v2398, 112
        %v2495 = vpop.permute.xlu0 %2494
        %2496 = vrot.lane.b32.xlu0 %v2399, 112
        %v2497 = vpop.permute.xlu0 %2496
        %2498 = vrot.lane.b32.xlu0 %v2400, 112
        %v2499 = vpop.permute.xlu0 %2498
        %2500 = vrot.lane.b32.xlu0 %v2401, 112
        %v2501 = vpop.permute.xlu0 %2500
        %2502 = vrot.lane.b32.xlu0 %v2402, 112
        %v2503 = vpop.permute.xlu0 %2502
        %2504 = vrot.lane.b32.xlu0 %v2403, 112
        %v2505 = vpop.permute.xlu0 %2504
        %2506 = vrot.lane.b32.xlu0 %v2404, 112
        %v2507 = vpop.permute.xlu0 %2506
        %2508 = vrot.lane.b32.xlu0 %v2405, 112
        %v2509 = vpop.permute.xlu0 %2508
        %2510 = vrot.lane.b32.xlu0 %v2406, 112
        %v2511 = vpop.permute.xlu0 %2510
        %2512 = vrot.lane.b32.xlu0 %v2407, 112
        %v2513 = vpop.permute.xlu0 %2512
        %2514 = vrot.lane.b32.xlu0 %v2408, 112
        %v2515 = vpop.permute.xlu0 %2514
        %2516 = vrot.lane.b32.xlu0 %v2409, 112
        %v2517 = vpop.permute.xlu0 %2516
        %2518 = vrot.lane.b32.xlu0 %v2410, 112
        %v2519 = vpop.permute.xlu0 %2518
        %2520 = vrot.lane.b32.xlu0 %v2411, 112
        %v2521 = vpop.permute.xlu0 %2520
        %2522 = vrot.lane.b32.xlu0 %v2412, 112
        %v2523 = vpop.permute.xlu0 %2522
        %2524 = vrot.lane.b32.xlu0 %v2413, 112
        %v2525 = vpop.permute.xlu0 %2524
        %2526 = vrot.lane.b32.xlu0 %v2414, 112
        %v2527 = vpop.permute.xlu0 %2526
        %2528 = vrot.lane.b32.xlu0 %v2415, 112
        %v2529 = vpop.permute.xlu0 %2528
        %2530 = vrot.lane.b32.xlu0 %v2416, 112
        %v2531 = vpop.permute.xlu0 %2530
        %2532 = vrot.lane.b32.xlu0 %v2417, 112
        %v2533 = vpop.permute.xlu0 %2532
        %2534 = vrot.lane.b32.xlu0 %v2418, 112
        %v2535 = vpop.permute.xlu0 %2534
        %2536 = vrot.lane.b32.xlu0 %v2419, 112
        %v2537 = vpop.permute.xlu0 %2536
        %2538 = vrot.lane.b32.xlu0 %v2420, 112
        %v2539 = vpop.permute.xlu0 %2538
        %2540 = vrot.lane.b32.xlu0 %v2421, 112
        %v2541 = vpop.permute.xlu0 %2540
        %2542 = vrot.lane.b32.xlu0 %v2422, 112
        %v2543 = vpop.permute.xlu0 %2542
        %2544 = vrot.lane.b32.xlu0 %v2423, 112
        %v2545 = vpop.permute.xlu0 %2544
        %2546 = vrot.lane.b32.xlu0 %v2424, 112
        %v2547 = vpop.permute.xlu0 %2546
        %2548 = vrot.lane.b32.xlu0 %v2425, 112
        %v2549 = vpop.permute.xlu0 %2548
        %2550 = vrot.lane.b32.xlu0 %v2426, 112
        %v2551 = vpop.permute.xlu0 %2550
        %2552 = vrot.lane.b32.xlu0 %v2427, 112
        %v2553 = vpop.permute.xlu0 %2552
        %2554 = vrot.lane.b32.xlu0 %v2428, 112
        %v2555 = vpop.permute.xlu0 %2554
        %2556 = vrot.lane.b32.xlu0 %v2429, 112
        %v2557 = vpop.permute.xlu0 %2556
        %v2590 = vmul.f32 %v1932, %v2495
        %v2591 = vmul.f32 %v1947, %v2497
        %v2592 = vmul.f32 %v1962, %v2499
        %v2593 = vmul.f32 %v1977, %v2501
        %v2594 = vmul.f32 %v1992, %v2503
        %v2595 = vmul.f32 %v2007, %v2505
        %v2596 = vmul.f32 %v2022, %v2507
        %v2597 = vmul.f32 %v2037, %v2509
        %v2598 = vmul.f32 %v2052, %v2511
        %v2599 = vmul.f32 %v2067, %v2513
        %v2600 = vmul.f32 %v2082, %v2515
        %v2601 = vmul.f32 %v2097, %v2517
        %v2602 = vmul.f32 %v2112, %v2519
        %v2603 = vmul.f32 %v2127, %v2521
        %v2604 = vmul.f32 %v2142, %v2523
        %v2605 = vmul.f32 %v2157, %v2525
        %v2606 = vmul.f32 %v2172, %v2527
        %v2607 = vmul.f32 %v2187, %v2529
        %v2608 = vmul.f32 %v2202, %v2531
        %v2609 = vmul.f32 %v2217, %v2533
        %v2610 = vmul.f32 %v2232, %v2535
        %v2611 = vmul.f32 %v2247, %v2537
        %v2612 = vmul.f32 %v2262, %v2539
        %v2613 = vmul.f32 %v2277, %v2541
        %v2614 = vmul.f32 %v2292, %v2543
        %v2615 = vmul.f32 %v2307, %v2545
        %v2616 = vmul.f32 %v2322, %v2547
        %v2617 = vmul.f32 %v2337, %v2549
        %v2618 = vmul.f32 %v2352, %v2551
        %v2619 = vmul.f32 %v2367, %v2553
        %v2620 = vmul.f32 %v2382, %v2555
        %v2621 = vmul.f32 %v2397, %v2557
        %2654 = vrot.lane.b32.xlu0 %v2590, 112
        %v2655 = vpop.permute.xlu0 %2654
        %2656 = vrot.lane.b32.xlu0 %v2591, 112
        %v2657 = vpop.permute.xlu0 %2656
        %2658 = vrot.lane.b32.xlu0 %v2592, 112
        %v2659 = vpop.permute.xlu0 %2658
        %2660 = vrot.lane.b32.xlu0 %v2593, 112
        %v2661 = vpop.permute.xlu0 %2660
        %2662 = vrot.lane.b32.xlu0 %v2594, 112
        %v2663 = vpop.permute.xlu0 %2662
        %2664 = vrot.lane.b32.xlu0 %v2595, 112
        %v2665 = vpop.permute.xlu0 %2664
        %2666 = vrot.lane.b32.xlu0 %v2596, 112
        %v2667 = vpop.permute.xlu0 %2666
        %2668 = vrot.lane.b32.xlu0 %v2597, 112
        %v2669 = vpop.permute.xlu0 %2668
        %2670 = vrot.lane.b32.xlu0 %v2598, 112
        %v2671 = vpop.permute.xlu0 %2670
        %2672 = vrot.lane.b32.xlu0 %v2599, 112
        %v2673 = vpop.permute.xlu0 %2672
        %2674 = vrot.lane.b32.xlu0 %v2600, 112
        %v2675 = vpop.permute.xlu0 %2674
        %2676 = vrot.lane.b32.xlu0 %v2601, 112
        %v2677 = vpop.permute.xlu0 %2676
        %2678 = vrot.lane.b32.xlu0 %v2602, 112
        %v2679 = vpop.permute.xlu0 %2678
        %2680 = vrot.lane.b32.xlu0 %v2603, 112
        %v2681 = vpop.permute.xlu0 %2680
        %2682 = vrot.lane.b32.xlu0 %v2604, 112
        %v2683 = vpop.permute.xlu0 %2682
        %2684 = vrot.lane.b32.xlu0 %v2605, 112
        %v2685 = vpop.permute.xlu0 %2684
        %2686 = vrot.lane.b32.xlu0 %v2606, 112
        %v2687 = vpop.permute.xlu0 %2686
        %2688 = vrot.lane.b32.xlu0 %v2607, 112
        %v2689 = vpop.permute.xlu0 %2688
        %2690 = vrot.lane.b32.xlu0 %v2608, 112
        %v2691 = vpop.permute.xlu0 %2690
        %2692 = vrot.lane.b32.xlu0 %v2609, 112
        %v2693 = vpop.permute.xlu0 %2692
        %2694 = vrot.lane.b32.xlu0 %v2610, 112
        %v2695 = vpop.permute.xlu0 %2694
        %2696 = vrot.lane.b32.xlu0 %v2611, 112
        %v2697 = vpop.permute.xlu0 %2696
        %2698 = vrot.lane.b32.xlu0 %v2612, 112
        %v2699 = vpop.permute.xlu0 %2698
        %2700 = vrot.lane.b32.xlu0 %v2613, 112
        %v2701 = vpop.permute.xlu0 %2700
        %2702 = vrot.lane.b32.xlu0 %v2614, 112
        %v2703 = vpop.permute.xlu0 %2702
        %2704 = vrot.lane.b32.xlu0 %v2615, 112
        %v2705 = vpop.permute.xlu0 %2704
        %2706 = vrot.lane.b32.xlu0 %v2616, 112
        %v2707 = vpop.permute.xlu0 %2706
        %2708 = vrot.lane.b32.xlu0 %v2617, 112
        %v2709 = vpop.permute.xlu0 %2708
        %2710 = vrot.lane.b32.xlu0 %v2618, 112
        %v2711 = vpop.permute.xlu0 %2710
        %2712 = vrot.lane.b32.xlu0 %v2619, 112
        %v2713 = vpop.permute.xlu0 %2712
        %2714 = vrot.lane.b32.xlu0 %v2620, 112
        %v2715 = vpop.permute.xlu0 %2714
        %2716 = vrot.lane.b32.xlu0 %v2621, 112
        %v2717 = vpop.permute.xlu0 %2716
        %v2750 = vadd.f32 %v2430, %v2655
        %v2751 = vadd.f32 %v2431, %v2657
        %v2752 = vadd.f32 %v2432, %v2659
        %v2753 = vadd.f32 %v2433, %v2661
        %v2754 = vadd.f32 %v2434, %v2663
        %v2755 = vadd.f32 %v2435, %v2665
        %v2756 = vadd.f32 %v2436, %v2667
        %v2757 = vadd.f32 %v2437, %v2669
        %v2758 = vadd.f32 %v2438, %v2671
        %v2759 = vadd.f32 %v2439, %v2673
        %v2760 = vadd.f32 %v2440, %v2675
        %v2761 = vadd.f32 %v2441, %v2677
        %v2762 = vadd.f32 %v2442, %v2679
        %v2763 = vadd.f32 %v2443, %v2681
        %v2764 = vadd.f32 %v2444, %v2683
        %v2765 = vadd.f32 %v2445, %v2685
        %v2766 = vadd.f32 %v2446, %v2687
        %v2767 = vadd.f32 %v2447, %v2689
        %v2768 = vadd.f32 %v2448, %v2691
        %v2769 = vadd.f32 %v2449, %v2693
        %v2770 = vadd.f32 %v2450, %v2695
        %v2771 = vadd.f32 %v2451, %v2697
        %v2772 = vadd.f32 %v2452, %v2699
        %v2773 = vadd.f32 %v2453, %v2701
        %v2774 = vadd.f32 %v2454, %v2703
        %v2775 = vadd.f32 %v2455, %v2705
        %v2776 = vadd.f32 %v2456, %v2707
        %v2777 = vadd.f32 %v2457, %v2709
        %v2778 = vadd.f32 %v2458, %v2711
        %v2779 = vadd.f32 %v2459, %v2713
        %v2780 = vadd.f32 %v2460, %v2715
        %v2781 = vadd.f32 %v2461, %v2717
        %v2782 = vld [vmem:[%s403] sm:$0xff]
        %v2783 = vld [vmem:[%s403 + $0x8] sm:$0xff]
        %v2784 = vld [vmem:[%s403 + $0x10] sm:$0xff]
        %v2785 = vld [vmem:[%s403 + $0x18] sm:$0xff]
        %v2786 = vld [vmem:[%s403 + $0x20] sm:$0xff]
        %v2787 = vld [vmem:[%s403 + $0x28] sm:$0xff]
        %v2788 = vld [vmem:[%s403 + $0x30] sm:$0xff]
        %v2789 = vld [vmem:[%s403 + $0x38] sm:$0xff]
        %v2790 = vld [vmem:[%s403 + $0x40] sm:$0xff]
        %v2791 = vld [vmem:[%s403 + $0x48] sm:$0xff]
        %v2792 = vld [vmem:[%s403 + $0x50] sm:$0xff]
        %v2793 = vld [vmem:[%s403 + $0x58] sm:$0xff]
        %v2794 = vld [vmem:[%s403 + $0x60] sm:$0xff]
        %v2795 = vld [vmem:[%s403 + $0x68] sm:$0xff]
        %v2796 = vld [vmem:[%s403 + $0x70] sm:$0xff]
        %v2797 = vld [vmem:[%s403 + $0x78] sm:$0xff]
        %v2798 = vld [vmem:[%s403 + $0x80] sm:$0xff]
        %v2799 = vld [vmem:[%s403 + $0x88] sm:$0xff]
        %v2800 = vld [vmem:[%s403 + $0x90] sm:$0xff]
        %v2801 = vld [vmem:[%s403 + $0x98] sm:$0xff]
        %v2802 = vld [vmem:[%s403 + $0xa0] sm:$0xff]
        %v2803 = vld [vmem:[%s403 + $0xa8] sm:$0xff]
        %v2804 = vld [vmem:[%s403 + $0xb0] sm:$0xff]
        %v2805 = vld [vmem:[%s403 + $0xb8] sm:$0xff]
        %v2806 = vld [vmem:[%s403 + $0xc0] sm:$0xff]
        %v2807 = vld [vmem:[%s403 + $0xc8] sm:$0xff]
        %v2808 = vld [vmem:[%s403 + $0xd0] sm:$0xff]
        %v2809 = vld [vmem:[%s403 + $0xd8] sm:$0xff]
        %v2810 = vld [vmem:[%s403 + $0xe0] sm:$0xff]
        %v2811 = vld [vmem:[%s403 + $0xe8] sm:$0xff]
        %v2812 = vld [vmem:[%s403 + $0xf0] sm:$0xff]
        %v2813 = vld [vmem:[%s403 + $0xf8] sm:$0xff]
        %v2814 = vmul.f32 %v2750, %v2782
        %v2815 = vmul.f32 %v2751, %v2783
        %v2816 = vmul.f32 %v2752, %v2784
        %v2817 = vmul.f32 %v2753, %v2785
        %v2818 = vmul.f32 %v2754, %v2786
        %v2819 = vmul.f32 %v2755, %v2787
        %v2820 = vmul.f32 %v2756, %v2788
        %v2821 = vmul.f32 %v2757, %v2789
        %v2822 = vmul.f32 %v2758, %v2790
        %v2823 = vmul.f32 %v2759, %v2791
        %v2824 = vmul.f32 %v2760, %v2792
        %v2825 = vmul.f32 %v2761, %v2793
        %v2826 = vmul.f32 %v2762, %v2794
        %v2827 = vmul.f32 %v2763, %v2795
        %v2828 = vmul.f32 %v2764, %v2796
        %v2829 = vmul.f32 %v2765, %v2797
        %v2830 = vmul.f32 %v2766, %v2798
        %v2831 = vmul.f32 %v2767, %v2799
        %v2832 = vmul.f32 %v2768, %v2800
        %v2833 = vmul.f32 %v2769, %v2801
        %v2834 = vmul.f32 %v2770, %v2802
        %v2835 = vmul.f32 %v2771, %v2803
        %v2836 = vmul.f32 %v2772, %v2804
        %v2837 = vmul.f32 %v2773, %v2805
        %v2838 = vmul.f32 %v2774, %v2806
        %v2839 = vmul.f32 %v2775, %v2807
        %v2840 = vmul.f32 %v2776, %v2808
        %v2841 = vmul.f32 %v2777, %v2809
        %v2842 = vmul.f32 %v2778, %v2810
        %v2843 = vmul.f32 %v2779, %v2811
        %v2844 = vmul.f32 %v2780, %v2812
        %v2845 = vmul.f32 %v2781, %v2813
        %2878 = vrot.lane.b32.xlu0 %v2814, 48
        %v2879 = vpop.permute.xlu0 %2878
        %2880 = vrot.lane.b32.xlu0 %v2815, 48
        %v2881 = vpop.permute.xlu0 %2880
        %2882 = vrot.lane.b32.xlu0 %v2816, 48
        %v2883 = vpop.permute.xlu0 %2882
        %2884 = vrot.lane.b32.xlu0 %v2817, 48
        %v2885 = vpop.permute.xlu0 %2884
        %2886 = vrot.lane.b32.xlu0 %v2818, 48
        %v2887 = vpop.permute.xlu0 %2886
        %2888 = vrot.lane.b32.xlu0 %v2819, 48
        %v2889 = vpop.permute.xlu0 %2888
        %2890 = vrot.lane.b32.xlu0 %v2820, 48
        %v2891 = vpop.permute.xlu0 %2890
        %2892 = vrot.lane.b32.xlu0 %v2821, 48
        %v2893 = vpop.permute.xlu0 %2892
        %2894 = vrot.lane.b32.xlu0 %v2822, 48
        %v2895 = vpop.permute.xlu0 %2894
        %2896 = vrot.lane.b32.xlu0 %v2823, 48
        %v2897 = vpop.permute.xlu0 %2896
        %2898 = vrot.lane.b32.xlu0 %v2824, 48
        %v2899 = vpop.permute.xlu0 %2898
        %2900 = vrot.lane.b32.xlu0 %v2825, 48
        %v2901 = vpop.permute.xlu0 %2900
        %2902 = vrot.lane.b32.xlu0 %v2826, 48
        %v2903 = vpop.permute.xlu0 %2902
        %2904 = vrot.lane.b32.xlu0 %v2827, 48
        %v2905 = vpop.permute.xlu0 %2904
        %2906 = vrot.lane.b32.xlu0 %v2828, 48
        %v2907 = vpop.permute.xlu0 %2906
        %2908 = vrot.lane.b32.xlu0 %v2829, 48
        %v2909 = vpop.permute.xlu0 %2908
        %2910 = vrot.lane.b32.xlu0 %v2830, 48
        %v2911 = vpop.permute.xlu0 %2910
        %2912 = vrot.lane.b32.xlu0 %v2831, 48
        %v2913 = vpop.permute.xlu0 %2912
        %2914 = vrot.lane.b32.xlu0 %v2832, 48
        %v2915 = vpop.permute.xlu0 %2914
        %2916 = vrot.lane.b32.xlu0 %v2833, 48
        %v2917 = vpop.permute.xlu0 %2916
        %2918 = vrot.lane.b32.xlu0 %v2834, 48
        %v2919 = vpop.permute.xlu0 %2918
        %2920 = vrot.lane.b32.xlu0 %v2835, 48
        %v2921 = vpop.permute.xlu0 %2920
        %2922 = vrot.lane.b32.xlu0 %v2836, 48
        %v2923 = vpop.permute.xlu0 %2922
        %2924 = vrot.lane.b32.xlu0 %v2837, 48
        %v2925 = vpop.permute.xlu0 %2924
        %2926 = vrot.lane.b32.xlu0 %v2838, 48
        %v2927 = vpop.permute.xlu0 %2926
        %2928 = vrot.lane.b32.xlu0 %v2839, 48
        %v2929 = vpop.permute.xlu0 %2928
        %2930 = vrot.lane.b32.xlu0 %v2840, 48
        %v2931 = vpop.permute.xlu0 %2930
        %2932 = vrot.lane.b32.xlu0 %v2841, 48
        %v2933 = vpop.permute.xlu0 %2932
        %2934 = vrot.lane.b32.xlu0 %v2842, 48
        %v2935 = vpop.permute.xlu0 %2934
        %2936 = vrot.lane.b32.xlu0 %v2843, 48
        %v2937 = vpop.permute.xlu0 %2936
        %2938 = vrot.lane.b32.xlu0 %v2844, 48
        %v2939 = vpop.permute.xlu0 %2938
        %2940 = vrot.lane.b32.xlu0 %v2845, 48
        %v2941 = vpop.permute.xlu0 %2940
        %v2974 = vadd.f32 %v735, %v2879
        %v2975 = vadd.f32 %v738, %v2881
        %v2976 = vadd.f32 %v741, %v2883
        %v2977 = vadd.f32 %v744, %v2885
        %v2978 = vadd.f32 %v747, %v2887
        %v2979 = vadd.f32 %v750, %v2889
        %v2980 = vadd.f32 %v753, %v2891
        %v2981 = vadd.f32 %v756, %v2893
        %v2982 = vadd.f32 %v759, %v2895
        %v2983 = vadd.f32 %v762, %v2897
        %v2984 = vadd.f32 %v765, %v2899
        %v2985 = vadd.f32 %v768, %v2901
        %v2986 = vadd.f32 %v771, %v2903
        %v2987 = vadd.f32 %v774, %v2905
        %v2988 = vadd.f32 %v777, %v2907
        %v2989 = vadd.f32 %v780, %v2909
        %v2990 = vadd.f32 %v783, %v2911
        %v2991 = vadd.f32 %v786, %v2913
        %v2992 = vadd.f32 %v789, %v2915
        %v2993 = vadd.f32 %v792, %v2917
        %v2994 = vadd.f32 %v795, %v2919
        %v2995 = vadd.f32 %v798, %v2921
        %v2996 = vadd.f32 %v801, %v2923
        %v2997 = vadd.f32 %v804, %v2925
        %v2998 = vadd.f32 %v807, %v2927
        %v2999 = vadd.f32 %v810, %v2929
        %v3000 = vadd.f32 %v813, %v2931
        %v3001 = vadd.f32 %v816, %v2933
        %v3002 = vadd.f32 %v819, %v2935
        %v3003 = vadd.f32 %v822, %v2937
        %v3004 = vadd.f32 %v825, %v2939
        %v3005 = vadd.f32 %v828, %v2941
        %v3006 = vxor.u32 %v2974, 2147483648
        %v3007 = vxor.u32 %v2975, 2147483648
        %v3008 = vxor.u32 %v2976, 2147483648
        %v3009 = vxor.u32 %v2977, 2147483648
        %v3010 = vxor.u32 %v2978, 2147483648
        %v3011 = vxor.u32 %v2979, 2147483648
        %v3012 = vxor.u32 %v2980, 2147483648
        %v3013 = vxor.u32 %v2981, 2147483648
        %v3014 = vxor.u32 %v2982, 2147483648
        %v3015 = vxor.u32 %v2983, 2147483648
        %v3016 = vxor.u32 %v2984, 2147483648
        %v3017 = vxor.u32 %v2985, 2147483648
        %v3018 = vxor.u32 %v2986, 2147483648
        %v3019 = vxor.u32 %v2987, 2147483648
        %v3020 = vxor.u32 %v2988, 2147483648
        %v3021 = vxor.u32 %v2989, 2147483648
        %v3022 = vxor.u32 %v2990, 2147483648
        %v3023 = vxor.u32 %v2991, 2147483648
        %v3024 = vxor.u32 %v2992, 2147483648
        %v3025 = vxor.u32 %v2993, 2147483648
        %v3026 = vxor.u32 %v2994, 2147483648
        %v3027 = vxor.u32 %v2995, 2147483648
        %v3028 = vxor.u32 %v2996, 2147483648
        %v3029 = vxor.u32 %v2997, 2147483648
        %v3030 = vxor.u32 %v2998, 2147483648
        %v3031 = vxor.u32 %v2999, 2147483648
        %v3032 = vxor.u32 %v3000, 2147483648
        %v3033 = vxor.u32 %v3001, 2147483648
        %v3034 = vxor.u32 %v3002, 2147483648
        %v3035 = vxor.u32 %v3003, 2147483648
        %v3036 = vxor.u32 %v3004, 2147483648
        %v3037 = vxor.u32 %v3005, 2147483648
        %v3038 = vmul.f32 %v3006, 1.442695
        %v3039 = vpow.pop %v3038
        %v3040 = vmul.f32 %v3007, 1.442695
        %v3041 = vpow.pop %v3040
        %v3042 = vmul.f32 %v3008, 1.442695
        %v3043 = vpow.pop %v3042
        %v3044 = vmul.f32 %v3009, 1.442695
        %v3045 = vpow.pop %v3044
        %v3046 = vmul.f32 %v3010, 1.442695
        %v3047 = vpow.pop %v3046
        %v3048 = vmul.f32 %v3011, 1.442695
        %v3049 = vpow.pop %v3048
        %v3050 = vmul.f32 %v3012, 1.442695
        %v3051 = vpow.pop %v3050
        %v3052 = vmul.f32 %v3013, 1.442695
        %v3053 = vpow.pop %v3052
        %v3054 = vmul.f32 %v3014, 1.442695
        %v3055 = vpow.pop %v3054
        %v3056 = vmul.f32 %v3015, 1.442695
        %v3057 = vpow.pop %v3056
        %v3058 = vmul.f32 %v3016, 1.442695
        %v3059 = vpow.pop %v3058
        %v3060 = vmul.f32 %v3017, 1.442695
        %v3061 = vpow.pop %v3060
        %v3062 = vmul.f32 %v3018, 1.442695
        %v3063 = vpow.pop %v3062
        %v3064 = vmul.f32 %v3019, 1.442695
        %v3065 = vpow.pop %v3064
        %v3066 = vmul.f32 %v3020, 1.442695
        %v3067 = vpow.pop %v3066
        %v3068 = vmul.f32 %v3021, 1.442695
        %v3069 = vpow.pop %v3068
        %v3070 = vmul.f32 %v3022, 1.442695
        %v3071 = vpow.pop %v3070
        %v3072 = vmul.f32 %v3023, 1.442695
        %v3073 = vpow.pop %v3072
        %v3074 = vmul.f32 %v3024, 1.442695
        %v3075 = vpow.pop %v3074
        %v3076 = vmul.f32 %v3025, 1.442695
        %v3077 = vpow.pop %v3076
        %v3078 = vmul.f32 %v3026, 1.442695
        %v3079 = vpow.pop %v3078
        %v3080 = vmul.f32 %v3027, 1.442695
        %v3081 = vpow.pop %v3080
        %v3082 = vmul.f32 %v3028, 1.442695
        %v3083 = vpow.pop %v3082
        %v3084 = vmul.f32 %v3029, 1.442695
        %v3085 = vpow.pop %v3084
        %v3086 = vmul.f32 %v3030, 1.442695
        %v3087 = vpow.pop %v3086
        %v3088 = vmul.f32 %v3031, 1.442695
        %v3089 = vpow.pop %v3088
        %v3090 = vmul.f32 %v3032, 1.442695
        %v3091 = vpow.pop %v3090
        %v3092 = vmul.f32 %v3033, 1.442695
        %v3093 = vpow.pop %v3092
        %v3094 = vmul.f32 %v3034, 1.442695
        %v3095 = vpow.pop %v3094
        %v3096 = vmul.f32 %v3035, 1.442695
        %v3097 = vpow.pop %v3096
        %v3098 = vmul.f32 %v3036, 1.442695
        %v3099 = vpow.pop %v3098
        %v3100 = vmul.f32 %v3037, 1.442695
        %v3101 = vpow.pop %v3100
        %v3102 = vadd.f32 %v3039, 1.0
        %v3103 = vadd.f32 %v3041, 1.0
        %v3104 = vadd.f32 %v3043, 1.0
        %v3105 = vadd.f32 %v3045, 1.0
        %v3106 = vadd.f32 %v3047, 1.0
        %v3107 = vadd.f32 %v3049, 1.0
        %v3108 = vadd.f32 %v3051, 1.0
        %v3109 = vadd.f32 %v3053, 1.0
        %v3110 = vadd.f32 %v3055, 1.0
        %v3111 = vadd.f32 %v3057, 1.0
        %v3112 = vadd.f32 %v3059, 1.0
        %v3113 = vadd.f32 %v3061, 1.0
        %v3114 = vadd.f32 %v3063, 1.0
        %v3115 = vadd.f32 %v3065, 1.0
        %v3116 = vadd.f32 %v3067, 1.0
        %v3117 = vadd.f32 %v3069, 1.0
        %v3118 = vadd.f32 %v3071, 1.0
        %v3119 = vadd.f32 %v3073, 1.0
        %v3120 = vadd.f32 %v3075, 1.0
        %v3121 = vadd.f32 %v3077, 1.0
        %v3122 = vadd.f32 %v3079, 1.0
        %v3123 = vadd.f32 %v3081, 1.0
        %v3124 = vadd.f32 %v3083, 1.0
        %v3125 = vadd.f32 %v3085, 1.0
        %v3126 = vadd.f32 %v3087, 1.0
        %v3127 = vadd.f32 %v3089, 1.0
        %v3128 = vadd.f32 %v3091, 1.0
        %v3129 = vadd.f32 %v3093, 1.0
        %v3130 = vadd.f32 %v3095, 1.0
        %v3131 = vadd.f32 %v3097, 1.0
        %v3132 = vadd.f32 %v3099, 1.0
        %v3133 = vadd.f32 %v3101, 1.0
        %v3134 = vrcp.pop %v3102
        %v3135 = vmul.f32 %v3102, %v3134
        %v3136 = vsub.f32 1.0, %v3135
        %v3137 = vmul.f32 %v3134, %v3136
        %v3138 = vadd.f32 %v3134, %v3137
        %vm3139 = vweird.f32 %v3102
        %vm3140 = vweird.f32 %v3134
        %vm3141 = vmor %vm3139, %vm3140
        %v3142 = vsel %vm3141, %v3134, %v3138
        %v3143 = vand.u32 2147483647, %v3102
        %vm3144 = vcmp.eq.f32.partialorder %v3143, 8.507059e+37
        %v3145 = vand.u32 %v3102, 2147483648
        %v3146 = vor.u32 1.1754944e-38, %v3145
        %v3147 = vsel %vm3144, %v3146, %v3142
        %v3148 = vmul.f32 1.0, %v3147
        %v3149 = vrcp.pop %v3103
        %v3150 = vmul.f32 %v3103, %v3149
        %v3151 = vsub.f32 1.0, %v3150
        %v3152 = vmul.f32 %v3149, %v3151
        %v3153 = vadd.f32 %v3149, %v3152
        %vm3154 = vweird.f32 %v3103
        %vm3155 = vweird.f32 %v3149
        %vm3156 = vmor %vm3154, %vm3155
        %v3157 = vsel %vm3156, %v3149, %v3153
        %v3158 = vand.u32 2147483647, %v3103
        %vm3159 = vcmp.eq.f32.partialorder %v3158, 8.507059e+37
        %v3160 = vand.u32 %v3103, 2147483648
        %v3161 = vor.u32 1.1754944e-38, %v3160
        %v3162 = vsel %vm3159, %v3161, %v3157
        %v3163 = vmul.f32 1.0, %v3162
        %v3164 = vrcp.pop %v3104
        %v3165 = vmul.f32 %v3104, %v3164
        %v3166 = vsub.f32 1.0, %v3165
        %v3167 = vmul.f32 %v3164, %v3166
        %v3168 = vadd.f32 %v3164, %v3167
        %vm3169 = vweird.f32 %v3104
        %vm3170 = vweird.f32 %v3164
        %vm3171 = vmor %vm3169, %vm3170
        %v3172 = vsel %vm3171, %v3164, %v3168
        %v3173 = vand.u32 2147483647, %v3104
        %vm3174 = vcmp.eq.f32.partialorder %v3173, 8.507059e+37
        %v3175 = vand.u32 %v3104, 2147483648
        %v3176 = vor.u32 1.1754944e-38, %v3175
        %v3177 = vsel %vm3174, %v3176, %v3172
        %v3178 = vmul.f32 1.0, %v3177
        %v3179 = vrcp.pop %v3105
        %v3180 = vmul.f32 %v3105, %v3179
        %v3181 = vsub.f32 1.0, %v3180
        %v3182 = vmul.f32 %v3179, %v3181
        %v3183 = vadd.f32 %v3179, %v3182
        %vm3184 = vweird.f32 %v3105
        %vm3185 = vweird.f32 %v3179
        %vm3186 = vmor %vm3184, %vm3185
        %v3187 = vsel %vm3186, %v3179, %v3183
        %v3188 = vand.u32 2147483647, %v3105
        %vm3189 = vcmp.eq.f32.partialorder %v3188, 8.507059e+37
        %v3190 = vand.u32 %v3105, 2147483648
        %v3191 = vor.u32 1.1754944e-38, %v3190
        %v3192 = vsel %vm3189, %v3191, %v3187
        %v3193 = vmul.f32 1.0, %v3192
        %v3194 = vrcp.pop %v3106
        %v3195 = vmul.f32 %v3106, %v3194
        %v3196 = vsub.f32 1.0, %v3195
        %v3197 = vmul.f32 %v3194, %v3196
        %v3198 = vadd.f32 %v3194, %v3197
        %vm3199 = vweird.f32 %v3106
        %vm3200 = vweird.f32 %v3194
        %vm3201 = vmor %vm3199, %vm3200
        %v3202 = vsel %vm3201, %v3194, %v3198
        %v3203 = vand.u32 2147483647, %v3106
        %vm3204 = vcmp.eq.f32.partialorder %v3203, 8.507059e+37
        %v3205 = vand.u32 %v3106, 2147483648
        %v3206 = vor.u32 1.1754944e-38, %v3205
        %v3207 = vsel %vm3204, %v3206, %v3202
        %v3208 = vmul.f32 1.0, %v3207
        %v3209 = vrcp.pop %v3107
        %v3210 = vmul.f32 %v3107, %v3209
        %v3211 = vsub.f32 1.0, %v3210
        %v3212 = vmul.f32 %v3209, %v3211
        %v3213 = vadd.f32 %v3209, %v3212
        %vm3214 = vweird.f32 %v3107
        %vm3215 = vweird.f32 %v3209
        %vm3216 = vmor %vm3214, %vm3215
        %v3217 = vsel %vm3216, %v3209, %v3213
        %v3218 = vand.u32 2147483647, %v3107
        %vm3219 = vcmp.eq.f32.partialorder %v3218, 8.507059e+37
        %v3220 = vand.u32 %v3107, 2147483648
        %v3221 = vor.u32 1.1754944e-38, %v3220
        %v3222 = vsel %vm3219, %v3221, %v3217
        %v3223 = vmul.f32 1.0, %v3222
        %v3224 = vrcp.pop %v3108
        %v3225 = vmul.f32 %v3108, %v3224
        %v3226 = vsub.f32 1.0, %v3225
        %v3227 = vmul.f32 %v3224, %v3226
        %v3228 = vadd.f32 %v3224, %v3227
        %vm3229 = vweird.f32 %v3108
        %vm3230 = vweird.f32 %v3224
        %vm3231 = vmor %vm3229, %vm3230
        %v3232 = vsel %vm3231, %v3224, %v3228
        %v3233 = vand.u32 2147483647, %v3108
        %vm3234 = vcmp.eq.f32.partialorder %v3233, 8.507059e+37
        %v3235 = vand.u32 %v3108, 2147483648
        %v3236 = vor.u32 1.1754944e-38, %v3235
        %v3237 = vsel %vm3234, %v3236, %v3232
        %v3238 = vmul.f32 1.0, %v3237
        %v3239 = vrcp.pop %v3109
        %v3240 = vmul.f32 %v3109, %v3239
        %v3241 = vsub.f32 1.0, %v3240
        %v3242 = vmul.f32 %v3239, %v3241
        %v3243 = vadd.f32 %v3239, %v3242
        %vm3244 = vweird.f32 %v3109
        %vm3245 = vweird.f32 %v3239
        %vm3246 = vmor %vm3244, %vm3245
        %v3247 = vsel %vm3246, %v3239, %v3243
        %v3248 = vand.u32 2147483647, %v3109
        %vm3249 = vcmp.eq.f32.partialorder %v3248, 8.507059e+37
        %v3250 = vand.u32 %v3109, 2147483648
        %v3251 = vor.u32 1.1754944e-38, %v3250
        %v3252 = vsel %vm3249, %v3251, %v3247
        %v3253 = vmul.f32 1.0, %v3252
        %v3254 = vrcp.pop %v3110
        %v3255 = vmul.f32 %v3110, %v3254
        %v3256 = vsub.f32 1.0, %v3255
        %v3257 = vmul.f32 %v3254, %v3256
        %v3258 = vadd.f32 %v3254, %v3257
        %vm3259 = vweird.f32 %v3110
        %vm3260 = vweird.f32 %v3254
        %vm3261 = vmor %vm3259, %vm3260
        %v3262 = vsel %vm3261, %v3254, %v3258
        %v3263 = vand.u32 2147483647, %v3110
        %vm3264 = vcmp.eq.f32.partialorder %v3263, 8.507059e+37
        %v3265 = vand.u32 %v3110, 2147483648
        %v3266 = vor.u32 1.1754944e-38, %v3265
        %v3267 = vsel %vm3264, %v3266, %v3262
        %v3268 = vmul.f32 1.0, %v3267
        %v3269 = vrcp.pop %v3111
        %v3270 = vmul.f32 %v3111, %v3269
        %v3271 = vsub.f32 1.0, %v3270
        %v3272 = vmul.f32 %v3269, %v3271
        %v3273 = vadd.f32 %v3269, %v3272
        %vm3274 = vweird.f32 %v3111
        %vm3275 = vweird.f32 %v3269
        %vm3276 = vmor %vm3274, %vm3275
        %v3277 = vsel %vm3276, %v3269, %v3273
        %v3278 = vand.u32 2147483647, %v3111
        %vm3279 = vcmp.eq.f32.partialorder %v3278, 8.507059e+37
        %v3280 = vand.u32 %v3111, 2147483648
        %v3281 = vor.u32 1.1754944e-38, %v3280
        %v3282 = vsel %vm3279, %v3281, %v3277
        %v3283 = vmul.f32 1.0, %v3282
        %v3284 = vrcp.pop %v3112
        %v3285 = vmul.f32 %v3112, %v3284
        %v3286 = vsub.f32 1.0, %v3285
        %v3287 = vmul.f32 %v3284, %v3286
        %v3288 = vadd.f32 %v3284, %v3287
        %vm3289 = vweird.f32 %v3112
        %vm3290 = vweird.f32 %v3284
        %vm3291 = vmor %vm3289, %vm3290
        %v3292 = vsel %vm3291, %v3284, %v3288
        %v3293 = vand.u32 2147483647, %v3112
        %vm3294 = vcmp.eq.f32.partialorder %v3293, 8.507059e+37
        %v3295 = vand.u32 %v3112, 2147483648
        %v3296 = vor.u32 1.1754944e-38, %v3295
        %v3297 = vsel %vm3294, %v3296, %v3292
        %v3298 = vmul.f32 1.0, %v3297
        %v3299 = vrcp.pop %v3113
        %v3300 = vmul.f32 %v3113, %v3299
        %v3301 = vsub.f32 1.0, %v3300
        %v3302 = vmul.f32 %v3299, %v3301
        %v3303 = vadd.f32 %v3299, %v3302
        %vm3304 = vweird.f32 %v3113
        %vm3305 = vweird.f32 %v3299
        %vm3306 = vmor %vm3304, %vm3305
        %v3307 = vsel %vm3306, %v3299, %v3303
        %v3308 = vand.u32 2147483647, %v3113
        %vm3309 = vcmp.eq.f32.partialorder %v3308, 8.507059e+37
        %v3310 = vand.u32 %v3113, 2147483648
        %v3311 = vor.u32 1.1754944e-38, %v3310
        %v3312 = vsel %vm3309, %v3311, %v3307
        %v3313 = vmul.f32 1.0, %v3312
        %v3314 = vrcp.pop %v3114
        %v3315 = vmul.f32 %v3114, %v3314
        %v3316 = vsub.f32 1.0, %v3315
        %v3317 = vmul.f32 %v3314, %v3316
        %v3318 = vadd.f32 %v3314, %v3317
        %vm3319 = vweird.f32 %v3114
        %vm3320 = vweird.f32 %v3314
        %vm3321 = vmor %vm3319, %vm3320
        %v3322 = vsel %vm3321, %v3314, %v3318
        %v3323 = vand.u32 2147483647, %v3114
        %vm3324 = vcmp.eq.f32.partialorder %v3323, 8.507059e+37
        %v3325 = vand.u32 %v3114, 2147483648
        %v3326 = vor.u32 1.1754944e-38, %v3325
        %v3327 = vsel %vm3324, %v3326, %v3322
        %v3328 = vmul.f32 1.0, %v3327
        %v3329 = vrcp.pop %v3115
        %v3330 = vmul.f32 %v3115, %v3329
        %v3331 = vsub.f32 1.0, %v3330
        %v3332 = vmul.f32 %v3329, %v3331
        %v3333 = vadd.f32 %v3329, %v3332
        %vm3334 = vweird.f32 %v3115
        %vm3335 = vweird.f32 %v3329
        %vm3336 = vmor %vm3334, %vm3335
        %v3337 = vsel %vm3336, %v3329, %v3333
        %v3338 = vand.u32 2147483647, %v3115
        %vm3339 = vcmp.eq.f32.partialorder %v3338, 8.507059e+37
        %v3340 = vand.u32 %v3115, 2147483648
        %v3341 = vor.u32 1.1754944e-38, %v3340
        %v3342 = vsel %vm3339, %v3341, %v3337
        %v3343 = vmul.f32 1.0, %v3342
        %v3344 = vrcp.pop %v3116
        %v3345 = vmul.f32 %v3116, %v3344
        %v3346 = vsub.f32 1.0, %v3345
        %v3347 = vmul.f32 %v3344, %v3346
        %v3348 = vadd.f32 %v3344, %v3347
        %vm3349 = vweird.f32 %v3116
        %vm3350 = vweird.f32 %v3344
        %vm3351 = vmor %vm3349, %vm3350
        %v3352 = vsel %vm3351, %v3344, %v3348
        %v3353 = vand.u32 2147483647, %v3116
        %vm3354 = vcmp.eq.f32.partialorder %v3353, 8.507059e+37
        %v3355 = vand.u32 %v3116, 2147483648
        %v3356 = vor.u32 1.1754944e-38, %v3355
        %v3357 = vsel %vm3354, %v3356, %v3352
        %v3358 = vmul.f32 1.0, %v3357
        %v3359 = vrcp.pop %v3117
        %v3360 = vmul.f32 %v3117, %v3359
        %v3361 = vsub.f32 1.0, %v3360
        %v3362 = vmul.f32 %v3359, %v3361
        %v3363 = vadd.f32 %v3359, %v3362
        %vm3364 = vweird.f32 %v3117
        %vm3365 = vweird.f32 %v3359
        %vm3366 = vmor %vm3364, %vm3365
        %v3367 = vsel %vm3366, %v3359, %v3363
        %v3368 = vand.u32 2147483647, %v3117
        %vm3369 = vcmp.eq.f32.partialorder %v3368, 8.507059e+37
        %v3370 = vand.u32 %v3117, 2147483648
        %v3371 = vor.u32 1.1754944e-38, %v3370
        %v3372 = vsel %vm3369, %v3371, %v3367
        %v3373 = vmul.f32 1.0, %v3372
        %v3374 = vrcp.pop %v3118
        %v3375 = vmul.f32 %v3118, %v3374
        %v3376 = vsub.f32 1.0, %v3375
        %v3377 = vmul.f32 %v3374, %v3376
        %v3378 = vadd.f32 %v3374, %v3377
        %vm3379 = vweird.f32 %v3118
        %vm3380 = vweird.f32 %v3374
        %vm3381 = vmor %vm3379, %vm3380
        %v3382 = vsel %vm3381, %v3374, %v3378
        %v3383 = vand.u32 2147483647, %v3118
        %vm3384 = vcmp.eq.f32.partialorder %v3383, 8.507059e+37
        %v3385 = vand.u32 %v3118, 2147483648
        %v3386 = vor.u32 1.1754944e-38, %v3385
        %v3387 = vsel %vm3384, %v3386, %v3382
        %v3388 = vmul.f32 1.0, %v3387
        %v3389 = vrcp.pop %v3119
        %v3390 = vmul.f32 %v3119, %v3389
        %v3391 = vsub.f32 1.0, %v3390
        %v3392 = vmul.f32 %v3389, %v3391
        %v3393 = vadd.f32 %v3389, %v3392
        %vm3394 = vweird.f32 %v3119
        %vm3395 = vweird.f32 %v3389
        %vm3396 = vmor %vm3394, %vm3395
        %v3397 = vsel %vm3396, %v3389, %v3393
        %v3398 = vand.u32 2147483647, %v3119
        %vm3399 = vcmp.eq.f32.partialorder %v3398, 8.507059e+37
        %v3400 = vand.u32 %v3119, 2147483648
        %v3401 = vor.u32 1.1754944e-38, %v3400
        %v3402 = vsel %vm3399, %v3401, %v3397
        %v3403 = vmul.f32 1.0, %v3402
        %v3404 = vrcp.pop %v3120
        %v3405 = vmul.f32 %v3120, %v3404
        %v3406 = vsub.f32 1.0, %v3405
        %v3407 = vmul.f32 %v3404, %v3406
        %v3408 = vadd.f32 %v3404, %v3407
        %vm3409 = vweird.f32 %v3120
        %vm3410 = vweird.f32 %v3404
        %vm3411 = vmor %vm3409, %vm3410
        %v3412 = vsel %vm3411, %v3404, %v3408
        %v3413 = vand.u32 2147483647, %v3120
        %vm3414 = vcmp.eq.f32.partialorder %v3413, 8.507059e+37
        %v3415 = vand.u32 %v3120, 2147483648
        %v3416 = vor.u32 1.1754944e-38, %v3415
        %v3417 = vsel %vm3414, %v3416, %v3412
        %v3418 = vmul.f32 1.0, %v3417
        %v3419 = vrcp.pop %v3121
        %v3420 = vmul.f32 %v3121, %v3419
        %v3421 = vsub.f32 1.0, %v3420
        %v3422 = vmul.f32 %v3419, %v3421
        %v3423 = vadd.f32 %v3419, %v3422
        %vm3424 = vweird.f32 %v3121
        %vm3425 = vweird.f32 %v3419
        %vm3426 = vmor %vm3424, %vm3425
        %v3427 = vsel %vm3426, %v3419, %v3423
        %v3428 = vand.u32 2147483647, %v3121
        %vm3429 = vcmp.eq.f32.partialorder %v3428, 8.507059e+37
        %v3430 = vand.u32 %v3121, 2147483648
        %v3431 = vor.u32 1.1754944e-38, %v3430
        %v3432 = vsel %vm3429, %v3431, %v3427
        %v3433 = vmul.f32 1.0, %v3432
        %v3434 = vrcp.pop %v3122
        %v3435 = vmul.f32 %v3122, %v3434
        %v3436 = vsub.f32 1.0, %v3435
        %v3437 = vmul.f32 %v3434, %v3436
        %v3438 = vadd.f32 %v3434, %v3437
        %vm3439 = vweird.f32 %v3122
        %vm3440 = vweird.f32 %v3434
        %vm3441 = vmor %vm3439, %vm3440
        %v3442 = vsel %vm3441, %v3434, %v3438
        %v3443 = vand.u32 2147483647, %v3122
        %vm3444 = vcmp.eq.f32.partialorder %v3443, 8.507059e+37
        %v3445 = vand.u32 %v3122, 2147483648
        %v3446 = vor.u32 1.1754944e-38, %v3445
        %v3447 = vsel %vm3444, %v3446, %v3442
        %v3448 = vmul.f32 1.0, %v3447
        %v3449 = vrcp.pop %v3123
        %v3450 = vmul.f32 %v3123, %v3449
        %v3451 = vsub.f32 1.0, %v3450
        %v3452 = vmul.f32 %v3449, %v3451
        %v3453 = vadd.f32 %v3449, %v3452
        %vm3454 = vweird.f32 %v3123
        %vm3455 = vweird.f32 %v3449
        %vm3456 = vmor %vm3454, %vm3455
        %v3457 = vsel %vm3456, %v3449, %v3453
        %v3458 = vand.u32 2147483647, %v3123
        %vm3459 = vcmp.eq.f32.partialorder %v3458, 8.507059e+37
        %v3460 = vand.u32 %v3123, 2147483648
        %v3461 = vor.u32 1.1754944e-38, %v3460
        %v3462 = vsel %vm3459, %v3461, %v3457
        %v3463 = vmul.f32 1.0, %v3462
        %v3464 = vrcp.pop %v3124
        %v3465 = vmul.f32 %v3124, %v3464
        %v3466 = vsub.f32 1.0, %v3465
        %v3467 = vmul.f32 %v3464, %v3466
        %v3468 = vadd.f32 %v3464, %v3467
        %vm3469 = vweird.f32 %v3124
        %vm3470 = vweird.f32 %v3464
        %vm3471 = vmor %vm3469, %vm3470
        %v3472 = vsel %vm3471, %v3464, %v3468
        %v3473 = vand.u32 2147483647, %v3124
        %vm3474 = vcmp.eq.f32.partialorder %v3473, 8.507059e+37
        %v3475 = vand.u32 %v3124, 2147483648
        %v3476 = vor.u32 1.1754944e-38, %v3475
        %v3477 = vsel %vm3474, %v3476, %v3472
        %v3478 = vmul.f32 1.0, %v3477
        %v3479 = vrcp.pop %v3125
        %v3480 = vmul.f32 %v3125, %v3479
        %v3481 = vsub.f32 1.0, %v3480
        %v3482 = vmul.f32 %v3479, %v3481
        %v3483 = vadd.f32 %v3479, %v3482
        %vm3484 = vweird.f32 %v3125
        %vm3485 = vweird.f32 %v3479
        %vm3486 = vmor %vm3484, %vm3485
        %v3487 = vsel %vm3486, %v3479, %v3483
        %v3488 = vand.u32 2147483647, %v3125
        %vm3489 = vcmp.eq.f32.partialorder %v3488, 8.507059e+37
        %v3490 = vand.u32 %v3125, 2147483648
        %v3491 = vor.u32 1.1754944e-38, %v3490
        %v3492 = vsel %vm3489, %v3491, %v3487
        %v3493 = vmul.f32 1.0, %v3492
        %v3494 = vrcp.pop %v3126
        %v3495 = vmul.f32 %v3126, %v3494
        %v3496 = vsub.f32 1.0, %v3495
        %v3497 = vmul.f32 %v3494, %v3496
        %v3498 = vadd.f32 %v3494, %v3497
        %vm3499 = vweird.f32 %v3126
        %vm3500 = vweird.f32 %v3494
        %vm3501 = vmor %vm3499, %vm3500
        %v3502 = vsel %vm3501, %v3494, %v3498
        %v3503 = vand.u32 2147483647, %v3126
        %vm3504 = vcmp.eq.f32.partialorder %v3503, 8.507059e+37
        %v3505 = vand.u32 %v3126, 2147483648
        %v3506 = vor.u32 1.1754944e-38, %v3505
        %v3507 = vsel %vm3504, %v3506, %v3502
        %v3508 = vmul.f32 1.0, %v3507
        %v3509 = vrcp.pop %v3127
        %v3510 = vmul.f32 %v3127, %v3509
        %v3511 = vsub.f32 1.0, %v3510
        %v3512 = vmul.f32 %v3509, %v3511
        %v3513 = vadd.f32 %v3509, %v3512
        %vm3514 = vweird.f32 %v3127
        %vm3515 = vweird.f32 %v3509
        %vm3516 = vmor %vm3514, %vm3515
        %v3517 = vsel %vm3516, %v3509, %v3513
        %v3518 = vand.u32 2147483647, %v3127
        %vm3519 = vcmp.eq.f32.partialorder %v3518, 8.507059e+37
        %v3520 = vand.u32 %v3127, 2147483648
        %v3521 = vor.u32 1.1754944e-38, %v3520
        %v3522 = vsel %vm3519, %v3521, %v3517
        %v3523 = vmul.f32 1.0, %v3522
        %v3524 = vrcp.pop %v3128
        %v3525 = vmul.f32 %v3128, %v3524
        %v3526 = vsub.f32 1.0, %v3525
        %v3527 = vmul.f32 %v3524, %v3526
        %v3528 = vadd.f32 %v3524, %v3527
        %vm3529 = vweird.f32 %v3128
        %vm3530 = vweird.f32 %v3524
        %vm3531 = vmor %vm3529, %vm3530
        %v3532 = vsel %vm3531, %v3524, %v3528
        %v3533 = vand.u32 2147483647, %v3128
        %vm3534 = vcmp.eq.f32.partialorder %v3533, 8.507059e+37
        %v3535 = vand.u32 %v3128, 2147483648
        %v3536 = vor.u32 1.1754944e-38, %v3535
        %v3537 = vsel %vm3534, %v3536, %v3532
        %v3538 = vmul.f32 1.0, %v3537
        %v3539 = vrcp.pop %v3129
        %v3540 = vmul.f32 %v3129, %v3539
        %v3541 = vsub.f32 1.0, %v3540
        %v3542 = vmul.f32 %v3539, %v3541
        %v3543 = vadd.f32 %v3539, %v3542
        %vm3544 = vweird.f32 %v3129
        %vm3545 = vweird.f32 %v3539
        %vm3546 = vmor %vm3544, %vm3545
        %v3547 = vsel %vm3546, %v3539, %v3543
        %v3548 = vand.u32 2147483647, %v3129
        %vm3549 = vcmp.eq.f32.partialorder %v3548, 8.507059e+37
        %v3550 = vand.u32 %v3129, 2147483648
        %v3551 = vor.u32 1.1754944e-38, %v3550
        %v3552 = vsel %vm3549, %v3551, %v3547
        %v3553 = vmul.f32 1.0, %v3552
        %v3554 = vrcp.pop %v3130
        %v3555 = vmul.f32 %v3130, %v3554
        %v3556 = vsub.f32 1.0, %v3555
        %v3557 = vmul.f32 %v3554, %v3556
        %v3558 = vadd.f32 %v3554, %v3557
        %vm3559 = vweird.f32 %v3130
        %vm3560 = vweird.f32 %v3554
        %vm3561 = vmor %vm3559, %vm3560
        %v3562 = vsel %vm3561, %v3554, %v3558
        %v3563 = vand.u32 2147483647, %v3130
        %vm3564 = vcmp.eq.f32.partialorder %v3563, 8.507059e+37
        %v3565 = vand.u32 %v3130, 2147483648
        %v3566 = vor.u32 1.1754944e-38, %v3565
        %v3567 = vsel %vm3564, %v3566, %v3562
        %v3568 = vmul.f32 1.0, %v3567
        %v3569 = vrcp.pop %v3131
        %v3570 = vmul.f32 %v3131, %v3569
        %v3571 = vsub.f32 1.0, %v3570
        %v3572 = vmul.f32 %v3569, %v3571
        %v3573 = vadd.f32 %v3569, %v3572
        %vm3574 = vweird.f32 %v3131
        %vm3575 = vweird.f32 %v3569
        %vm3576 = vmor %vm3574, %vm3575
        %v3577 = vsel %vm3576, %v3569, %v3573
        %v3578 = vand.u32 2147483647, %v3131
        %vm3579 = vcmp.eq.f32.partialorder %v3578, 8.507059e+37
        %v3580 = vand.u32 %v3131, 2147483648
        %v3581 = vor.u32 1.1754944e-38, %v3580
        %v3582 = vsel %vm3579, %v3581, %v3577
        %v3583 = vmul.f32 1.0, %v3582
        %v3584 = vrcp.pop %v3132
        %v3585 = vmul.f32 %v3132, %v3584
        %v3586 = vsub.f32 1.0, %v3585
        %v3587 = vmul.f32 %v3584, %v3586
        %v3588 = vadd.f32 %v3584, %v3587
        %vm3589 = vweird.f32 %v3132
        %vm3590 = vweird.f32 %v3584
        %vm3591 = vmor %vm3589, %vm3590
        %v3592 = vsel %vm3591, %v3584, %v3588
        %v3593 = vand.u32 2147483647, %v3132
        %vm3594 = vcmp.eq.f32.partialorder %v3593, 8.507059e+37
        %v3595 = vand.u32 %v3132, 2147483648
        %v3596 = vor.u32 1.1754944e-38, %v3595
        %v3597 = vsel %vm3594, %v3596, %v3592
        %v3598 = vmul.f32 1.0, %v3597
        %v3599 = vrcp.pop %v3133
        %v3600 = vmul.f32 %v3133, %v3599
        %v3601 = vsub.f32 1.0, %v3600
        %v3602 = vmul.f32 %v3599, %v3601
        %v3603 = vadd.f32 %v3599, %v3602
        %vm3604 = vweird.f32 %v3133
        %vm3605 = vweird.f32 %v3599
        %vm3606 = vmor %vm3604, %vm3605
        %v3607 = vsel %vm3606, %v3599, %v3603
        %v3608 = vand.u32 2147483647, %v3133
        %vm3609 = vcmp.eq.f32.partialorder %v3608, 8.507059e+37
        %v3610 = vand.u32 %v3133, 2147483648
        %v3611 = vor.u32 1.1754944e-38, %v3610
        %v3612 = vsel %vm3609, %v3611, %v3607
        %v3613 = vmul.f32 1.0, %v3612
        %v3614 = vtanh.pop %v2750
        %v3615 = vtanh.pop %v2751
        %v3616 = vtanh.pop %v2752
        %v3617 = vtanh.pop %v2753
        %v3618 = vtanh.pop %v2754
        %v3619 = vtanh.pop %v2755
        %v3620 = vtanh.pop %v2756
        %v3621 = vtanh.pop %v2757
        %v3622 = vtanh.pop %v2758
        %v3623 = vtanh.pop %v2759
        %v3624 = vtanh.pop %v2760
        %v3625 = vtanh.pop %v2761
        %v3626 = vtanh.pop %v2762
        %v3627 = vtanh.pop %v2763
        %v3628 = vtanh.pop %v2764
        %v3629 = vtanh.pop %v2765
        %v3630 = vtanh.pop %v2766
        %v3631 = vtanh.pop %v2767
        %v3632 = vtanh.pop %v2768
        %v3633 = vtanh.pop %v2769
        %v3634 = vtanh.pop %v2770
        %v3635 = vtanh.pop %v2771
        %v3636 = vtanh.pop %v2772
        %v3637 = vtanh.pop %v2773
        %v3638 = vtanh.pop %v2774
        %v3639 = vtanh.pop %v2775
        %v3640 = vtanh.pop %v2776
        %v3641 = vtanh.pop %v2777
        %v3642 = vtanh.pop %v2778
        %v3643 = vtanh.pop %v2779
        %v3644 = vtanh.pop %v2780
        %v3645 = vtanh.pop %v2781
        %3678 = vrot.lane.b32.xlu0 %v3614, 48
        %v3679 = vpop.permute.xlu0 %3678
        %3680 = vrot.lane.b32.xlu0 %v3615, 48
        %v3681 = vpop.permute.xlu0 %3680
        %3682 = vrot.lane.b32.xlu0 %v3616, 48
        %v3683 = vpop.permute.xlu0 %3682
        %3684 = vrot.lane.b32.xlu0 %v3617, 48
        %v3685 = vpop.permute.xlu0 %3684
        %3686 = vrot.lane.b32.xlu0 %v3618, 48
        %v3687 = vpop.permute.xlu0 %3686
        %3688 = vrot.lane.b32.xlu0 %v3619, 48
        %v3689 = vpop.permute.xlu0 %3688
        %3690 = vrot.lane.b32.xlu0 %v3620, 48
        %v3691 = vpop.permute.xlu0 %3690
        %3692 = vrot.lane.b32.xlu0 %v3621, 48
        %v3693 = vpop.permute.xlu0 %3692
        %3694 = vrot.lane.b32.xlu0 %v3622, 48
        %v3695 = vpop.permute.xlu0 %3694
        %3696 = vrot.lane.b32.xlu0 %v3623, 48
        %v3697 = vpop.permute.xlu0 %3696
        %3698 = vrot.lane.b32.xlu0 %v3624, 48
        %v3699 = vpop.permute.xlu0 %3698
        %3700 = vrot.lane.b32.xlu0 %v3625, 48
        %v3701 = vpop.permute.xlu0 %3700
        %3702 = vrot.lane.b32.xlu0 %v3626, 48
        %v3703 = vpop.permute.xlu0 %3702
        %3704 = vrot.lane.b32.xlu0 %v3627, 48
        %v3705 = vpop.permute.xlu0 %3704
        %3706 = vrot.lane.b32.xlu0 %v3628, 48
        %v3707 = vpop.permute.xlu0 %3706
        %3708 = vrot.lane.b32.xlu0 %v3629, 48
        %v3709 = vpop.permute.xlu0 %3708
        %3710 = vrot.lane.b32.xlu0 %v3630, 48
        %v3711 = vpop.permute.xlu0 %3710
        %3712 = vrot.lane.b32.xlu0 %v3631, 48
        %v3713 = vpop.permute.xlu0 %3712
        %3714 = vrot.lane.b32.xlu0 %v3632, 48
        %v3715 = vpop.permute.xlu0 %3714
        %3716 = vrot.lane.b32.xlu0 %v3633, 48
        %v3717 = vpop.permute.xlu0 %3716
        %3718 = vrot.lane.b32.xlu0 %v3634, 48
        %v3719 = vpop.permute.xlu0 %3718
        %3720 = vrot.lane.b32.xlu0 %v3635, 48
        %v3721 = vpop.permute.xlu0 %3720
        %3722 = vrot.lane.b32.xlu0 %v3636, 48
        %v3723 = vpop.permute.xlu0 %3722
        %3724 = vrot.lane.b32.xlu0 %v3637, 48
        %v3725 = vpop.permute.xlu0 %3724
        %3726 = vrot.lane.b32.xlu0 %v3638, 48
        %v3727 = vpop.permute.xlu0 %3726
        %3728 = vrot.lane.b32.xlu0 %v3639, 48
        %v3729 = vpop.permute.xlu0 %3728
        %3730 = vrot.lane.b32.xlu0 %v3640, 48
        %v3731 = vpop.permute.xlu0 %3730
        %3732 = vrot.lane.b32.xlu0 %v3641, 48
        %v3733 = vpop.permute.xlu0 %3732
        %3734 = vrot.lane.b32.xlu0 %v3642, 48
        %v3735 = vpop.permute.xlu0 %3734
        %3736 = vrot.lane.b32.xlu0 %v3643, 48
        %v3737 = vpop.permute.xlu0 %3736
        %3738 = vrot.lane.b32.xlu0 %v3644, 48
        %v3739 = vpop.permute.xlu0 %3738
        %3740 = vrot.lane.b32.xlu0 %v3645, 48
        %v3741 = vpop.permute.xlu0 %3740
        %v3774 = vmul.f32 %v3148, %v3679
        %v3775 = vmul.f32 %v3163, %v3681
        %v3776 = vmul.f32 %v3178, %v3683
        %v3777 = vmul.f32 %v3193, %v3685
        %v3778 = vmul.f32 %v3208, %v3687
        %v3779 = vmul.f32 %v3223, %v3689
        %v3780 = vmul.f32 %v3238, %v3691
        %v3781 = vmul.f32 %v3253, %v3693
        %v3782 = vmul.f32 %v3268, %v3695
        %v3783 = vmul.f32 %v3283, %v3697
        %v3784 = vmul.f32 %v3298, %v3699
        %v3785 = vmul.f32 %v3313, %v3701
        %v3786 = vmul.f32 %v3328, %v3703
        %v3787 = vmul.f32 %v3343, %v3705
        %v3788 = vmul.f32 %v3358, %v3707
        %v3789 = vmul.f32 %v3373, %v3709
        %v3790 = vmul.f32 %v3388, %v3711
        %v3791 = vmul.f32 %v3403, %v3713
        %v3792 = vmul.f32 %v3418, %v3715
        %v3793 = vmul.f32 %v3433, %v3717
        %v3794 = vmul.f32 %v3448, %v3719
        %v3795 = vmul.f32 %v3463, %v3721
        %v3796 = vmul.f32 %v3478, %v3723
        %v3797 = vmul.f32 %v3493, %v3725
        %v3798 = vmul.f32 %v3508, %v3727
        %v3799 = vmul.f32 %v3523, %v3729
        %v3800 = vmul.f32 %v3538, %v3731
        %v3801 = vmul.f32 %v3553, %v3733
        %v3802 = vmul.f32 %v3568, %v3735
        %v3803 = vmul.f32 %v3583, %v3737
        %v3804 = vmul.f32 %v3598, %v3739
        %v3805 = vmul.f32 %v3613, %v3741
        %3838 = vrot.lane.b32.xlu0 %v3774, 80
        %v3839 = vpop.permute.xlu0 %3838
        %3840 = vrot.lane.b32.xlu0 %v3775, 80
        %v3841 = vpop.permute.xlu0 %3840
        %3842 = vrot.lane.b32.xlu0 %v3776, 80
        %v3843 = vpop.permute.xlu0 %3842
        %3844 = vrot.lane.b32.xlu0 %v3777, 80
        %v3845 = vpop.permute.xlu0 %3844
        %3846 = vrot.lane.b32.xlu0 %v3778, 80
        %v3847 = vpop.permute.xlu0 %3846
        %3848 = vrot.lane.b32.xlu0 %v3779, 80
        %v3849 = vpop.permute.xlu0 %3848
        %3850 = vrot.lane.b32.xlu0 %v3780, 80
        %v3851 = vpop.permute.xlu0 %3850
        %3852 = vrot.lane.b32.xlu0 %v3781, 80
        %v3853 = vpop.permute.xlu0 %3852
        %3854 = vrot.lane.b32.xlu0 %v3782, 80
        %v3855 = vpop.permute.xlu0 %3854
        %3856 = vrot.lane.b32.xlu0 %v3783, 80
        %v3857 = vpop.permute.xlu0 %3856
        %3858 = vrot.lane.b32.xlu0 %v3784, 80
        %v3859 = vpop.permute.xlu0 %3858
        %3860 = vrot.lane.b32.xlu0 %v3785, 80
        %v3861 = vpop.permute.xlu0 %3860
        %3862 = vrot.lane.b32.xlu0 %v3786, 80
        %v3863 = vpop.permute.xlu0 %3862
        %3864 = vrot.lane.b32.xlu0 %v3787, 80
        %v3865 = vpop.permute.xlu0 %3864
        %3866 = vrot.lane.b32.xlu0 %v3788, 80
        %v3867 = vpop.permute.xlu0 %3866
        %3868 = vrot.lane.b32.xlu0 %v3789, 80
        %v3869 = vpop.permute.xlu0 %3868
        %3870 = vrot.lane.b32.xlu0 %v3790, 80
        %v3871 = vpop.permute.xlu0 %3870
        %3872 = vrot.lane.b32.xlu0 %v3791, 80
        %v3873 = vpop.permute.xlu0 %3872
        %3874 = vrot.lane.b32.xlu0 %v3792, 80
        %v3875 = vpop.permute.xlu0 %3874
        %3876 = vrot.lane.b32.xlu0 %v3793, 80
        %v3877 = vpop.permute.xlu0 %3876
        %3878 = vrot.lane.b32.xlu0 %v3794, 80
        %v3879 = vpop.permute.xlu0 %3878
        %3880 = vrot.lane.b32.xlu0 %v3795, 80
        %v3881 = vpop.permute.xlu0 %3880
        %3882 = vrot.lane.b32.xlu0 %v3796, 80
        %v3883 = vpop.permute.xlu0 %3882
        %3884 = vrot.lane.b32.xlu0 %v3797, 80
        %v3885 = vpop.permute.xlu0 %3884
        %3886 = vrot.lane.b32.xlu0 %v3798, 80
        %v3887 = vpop.permute.xlu0 %3886
        %3888 = vrot.lane.b32.xlu0 %v3799, 80
        %v3889 = vpop.permute.xlu0 %3888
        %3890 = vrot.lane.b32.xlu0 %v3800, 80
        %v3891 = vpop.permute.xlu0 %3890
        %3892 = vrot.lane.b32.xlu0 %v3801, 80
        %v3893 = vpop.permute.xlu0 %3892
        %3894 = vrot.lane.b32.xlu0 %v3802, 80
        %v3895 = vpop.permute.xlu0 %3894
        %3896 = vrot.lane.b32.xlu0 %v3803, 80
        %v3897 = vpop.permute.xlu0 %3896
        %3898 = vrot.lane.b32.xlu0 %v3804, 80
        %v3899 = vpop.permute.xlu0 %3898
        %3900 = vrot.lane.b32.xlu0 %v3805, 80
        %v3901 = vpop.permute.xlu0 %3900
        %vm3934 = vcmask 130048
        %3935 = vst.msk [vmem:[%s409] sm:$0xff] %vm3934, %v3839
        %3936 = vst.msk [vmem:[%s409 + $0x8] sm:$0xff] %vm3934, %v3841
        %3937 = vst.msk [vmem:[%s409 + $0x10] sm:$0xff] %vm3934, %v3843
        %3938 = vst.msk [vmem:[%s409 + $0x18] sm:$0xff] %vm3934, %v3845
        %3939 = vst.msk [vmem:[%s409 + $0x20] sm:$0xff] %vm3934, %v3847
        %3940 = vst.msk [vmem:[%s409 + $0x28] sm:$0xff] %vm3934, %v3849
        %3941 = vst.msk [vmem:[%s409 + $0x30] sm:$0xff] %vm3934, %v3851
        %3942 = vst.msk [vmem:[%s409 + $0x38] sm:$0xff] %vm3934, %v3853
        %3943 = vst.msk [vmem:[%s409 + $0x40] sm:$0xff] %vm3934, %v3855
        %3944 = vst.msk [vmem:[%s409 + $0x48] sm:$0xff] %vm3934, %v3857
        %3945 = vst.msk [vmem:[%s409 + $0x50] sm:$0xff] %vm3934, %v3859
        %3946 = vst.msk [vmem:[%s409 + $0x58] sm:$0xff] %vm3934, %v3861
        %3947 = vst.msk [vmem:[%s409 + $0x60] sm:$0xff] %vm3934, %v3863
        %3948 = vst.msk [vmem:[%s409 + $0x68] sm:$0xff] %vm3934, %v3865
        %3949 = vst.msk [vmem:[%s409 + $0x70] sm:$0xff] %vm3934, %v3867
        %3950 = vst.msk [vmem:[%s409 + $0x78] sm:$0xff] %vm3934, %v3869
        %3951 = vst.msk [vmem:[%s409 + $0x80] sm:$0xff] %vm3934, %v3871
        %3952 = vst.msk [vmem:[%s409 + $0x88] sm:$0xff] %vm3934, %v3873
        %3953 = vst.msk [vmem:[%s409 + $0x90] sm:$0xff] %vm3934, %v3875
        %3954 = vst.msk [vmem:[%s409 + $0x98] sm:$0xff] %vm3934, %v3877
        %3955 = vst.msk [vmem:[%s409 + $0xa0] sm:$0xff] %vm3934, %v3879
        %3956 = vst.msk [vmem:[%s409 + $0xa8] sm:$0xff] %vm3934, %v3881
        %3957 = vst.msk [vmem:[%s409 + $0xb0] sm:$0xff] %vm3934, %v3883
        %3958 = vst.msk [vmem:[%s409 + $0xb8] sm:$0xff] %vm3934, %v3885
        %3959 = vst.msk [vmem:[%s409 + $0xc0] sm:$0xff] %vm3934, %v3887
        %3960 = vst.msk [vmem:[%s409 + $0xc8] sm:$0xff] %vm3934, %v3889
        %3961 = vst.msk [vmem:[%s409 + $0xd0] sm:$0xff] %vm3934, %v3891
        %3962 = vst.msk [vmem:[%s409 + $0xd8] sm:$0xff] %vm3934, %v3893
        %3963 = vst.msk [vmem:[%s409 + $0xe0] sm:$0xff] %vm3934, %v3895
        %3964 = vst.msk [vmem:[%s409 + $0xe8] sm:$0xff] %vm3934, %v3897
        %3965 = vst.msk [vmem:[%s409 + $0xf0] sm:$0xff] %vm3934, %v3899
        %3966 = vst.msk [vmem:[%s409 + $0xf8] sm:$0xff] %vm3934, %v3901
        %3967 = vst.msk [vmem:[%s373] sm:$0xff] %vm3934, %v2750
        %3968 = vst.msk [vmem:[%s373 + $0x8] sm:$0xff] %vm3934, %v2751
        %3969 = vst.msk [vmem:[%s373 + $0x10] sm:$0xff] %vm3934, %v2752
        %3970 = vst.msk [vmem:[%s373 + $0x18] sm:$0xff] %vm3934, %v2753
        %3971 = vst.msk [vmem:[%s373 + $0x20] sm:$0xff] %vm3934, %v2754
        %3972 = vst.msk [vmem:[%s373 + $0x28] sm:$0xff] %vm3934, %v2755
        %3973 = vst.msk [vmem:[%s373 + $0x30] sm:$0xff] %vm3934, %v2756
        %3974 = vst.msk [vmem:[%s373 + $0x38] sm:$0xff] %vm3934, %v2757
        %3975 = vst.msk [vmem:[%s373 + $0x40] sm:$0xff] %vm3934, %v2758
        %3976 = vst.msk [vmem:[%s373 + $0x48] sm:$0xff] %vm3934, %v2759
        %3977 = vst.msk [vmem:[%s373 + $0x50] sm:$0xff] %vm3934, %v2760
        %3978 = vst.msk [vmem:[%s373 + $0x58] sm:$0xff] %vm3934, %v2761
        %3979 = vst.msk [vmem:[%s373 + $0x60] sm:$0xff] %vm3934, %v2762
        %3980 = vst.msk [vmem:[%s373 + $0x68] sm:$0xff] %vm3934, %v2763
        %3981 = vst.msk [vmem:[%s373 + $0x70] sm:$0xff] %vm3934, %v2764
        %3982 = vst.msk [vmem:[%s373 + $0x78] sm:$0xff] %vm3934, %v2765
        %3983 = vst.msk [vmem:[%s373 + $0x80] sm:$0xff] %vm3934, %v2766
        %3984 = vst.msk [vmem:[%s373 + $0x88] sm:$0xff] %vm3934, %v2767
        %3985 = vst.msk [vmem:[%s373 + $0x90] sm:$0xff] %vm3934, %v2768
        %3986 = vst.msk [vmem:[%s373 + $0x98] sm:$0xff] %vm3934, %v2769
        %3987 = vst.msk [vmem:[%s373 + $0xa0] sm:$0xff] %vm3934, %v2770
        %3988 = vst.msk [vmem:[%s373 + $0xa8] sm:$0xff] %vm3934, %v2771
        %3989 = vst.msk [vmem:[%s373 + $0xb0] sm:$0xff] %vm3934, %v2772
        %3990 = vst.msk [vmem:[%s373 + $0xb8] sm:$0xff] %vm3934, %v2773
        %3991 = vst.msk [vmem:[%s373 + $0xc0] sm:$0xff] %vm3934, %v2774
        %3992 = vst.msk [vmem:[%s373 + $0xc8] sm:$0xff] %vm3934, %v2775
        %3993 = vst.msk [vmem:[%s373 + $0xd0] sm:$0xff] %vm3934, %v2776
        %3994 = vst.msk [vmem:[%s373 + $0xd8] sm:$0xff] %vm3934, %v2777
        %3995 = vst.msk [vmem:[%s373 + $0xe0] sm:$0xff] %vm3934, %v2778
        %3996 = vst.msk [vmem:[%s373 + $0xe8] sm:$0xff] %vm3934, %v2779
        %3997 = vst.msk [vmem:[%s373 + $0xf0] sm:$0xff] %vm3934, %v2780
        %3998 = vst.msk [vmem:[%s373 + $0xf8] sm:$0xff] %vm3934, %v2781
        %s3999 = smul.u32 32, %s23
        %p4000 = scmp.lt.s32.totalorder %s3999, 63
        %s4001 = scalar_select %p4000, %s3999, 63
        %s4002 = smul.addr %s4001, 8
        %s4003 = scalar_lea.vmem %s7, %s4002
        %s4004 = sand.u32 %s229, 1
        %s4005 = scalar_lea.sflag [#allocation3], %s4004
        %s4006 = sand.u32 %s229, 1
        %s4007 = smul.addr %s4006, 256
        %s4008 = scalar_lea.vmem [#allocation2], %s4007
        // Predicated region
        $region49: #{conv_lstm_forward.15} parent=47 // pred_check
          %p4009 = pneg %p213
        $region50: #{conv_lstm_forward.15} parent=47 // pred_check_branch
          %4011 = sbr.rel (%p4009) target = $region52
        $region51: #{conv_lstm_forward.15} parent=47 // pred_region
          %s4012 = smul.u32 32, %s23
        $region52: #{conv_lstm_forward.15} parent=47 // pred_fallthru
          _
        // Predicated region
        $region53: #{conv_lstm_forward.15} parent=47 // pred_check
          %p4013 = pneg %p239
        $region54: #{conv_lstm_forward.15} parent=47 // pred_check_branch
          %4015 = sbr.rel (%p4013) target = $region56
        $region55: #{conv_lstm_forward.15} parent=47 // pred_region
          %s4016 = smul.u32 32, %s23
          %4018 = vsyncadd %s4005, 0
          %s4019 = smul.addr %s4016, 8
          %s4020 = scalar_lea.hbm %s8, %s4019
          %s4021 = sshll.u32 %s4008, 4
          %s4022 = int_to_ptr.vmem [resolvable:$true] %s4021
          %s4023 = sshll.u32 %s4020, 4
          %s4024 = int_to_ptr.hbm [resolvable:$true] %s4023
          %4029 = dma.vmem_to_hbm [thread:$0]  %s4022, 4096, %s4024, %s4005, 128, 128, 8
        $region56: #{conv_lstm_forward.15} parent=47 // pred_fallthru
          _
      $region48: #{conv_lstm_forward.15} parent=5 // pred_fallthru
        _
      %p4030 = scmp.le.s32.totalorder 2, %s18
      // Predicated region
      $region57: #{conv_lstm_forward.15} parent=5 // pred_check
        %p4031 = pneg %p4030
      $region58: #{conv_lstm_forward.15} parent=5 // pred_check_branch
        %4033 = sbr.rel (%p4031) target = $region60
      $region59: #{conv_lstm_forward.15} parent=5 // pred_region
        %s4034 = ssub.s32 %s18, 2
        // Predicated region
        $region61: #{conv_lstm_forward.15} parent=59 // pred_check
          %p4035 = pneg %p219
        $region62: #{conv_lstm_forward.15} parent=59 // pred_check_branch
          %4037 = sbr.rel (%p4035) target = $region64
        $region63: #{conv_lstm_forward.15} parent=59 // pred_region
          %s4038 = smul.u32 32, %s24
          %p4039 = scmp.lt.s32.totalorder %s4038, 63
          %s4040 = scalar_select %p4039, %s4038, 63
          %s4041 = smul.addr %s4040, 8
          %s4042 = scalar_lea.vmem %s7, %s4041
        $region64: #{conv_lstm_forward.15} parent=59 // pred_fallthru
          _
        // Predicated region
        $region65: #{conv_lstm_forward.15} parent=59 // pred_check
          %p4043 = pneg %p245
        $region66: #{conv_lstm_forward.15} parent=59 // pred_check_branch
          %4045 = sbr.rel (%p4043) target = $region68
        $region67: #{conv_lstm_forward.15} parent=59 // pred_region
          %s4046 = sand.u32 %s230, 1
          %s4047 = scalar_lea.sflag [#allocation3], %s4046
          %s4048 = sand.u32 %s230, 1
          %s4049 = smul.addr %s4048, 256
          %s4050 = scalar_lea.vmem [#allocation2], %s4049
          %4052 = dma.done %s4047, 4096
        $region68: #{conv_lstm_forward.15} parent=59 // pred_fallthru
          _
      $region60: #{conv_lstm_forward.15} parent=5 // pred_fallthru
        _
    $region6: #{conv_lstm_forward.15} parent=1 // loop_footer
      %s22 = sadd.s32 1, %s18
    $region7: #{conv_lstm_forward.15} parent=1 // loop_footer_branch
      %17 = sbr.rel target = $region3
    $region8: #{conv_lstm_forward.15} parent=1 // loop_exit
      _
    %4053 = vsyncpa [#allocation3], 1
    %s4054 = scalar_lea.sflag [#allocation3], 1
    %4055 = vsyncpa %s4054, 1

</llo_original>
